<compile_context>
chip_gen: v7x
topology: tpu7x:2x2x1
jax: 0.10.0
libtpu: 0.0.40
codegen_flags: <defaults>
</compile_context>

<pallas_src>
import functools
import math

import jax
import jax.numpy as jnp
from jax import lax
from jax.experimental import pallas as pl
from jax.experimental.pallas import tpu as pltpu


# ---------------------------------------------------------------------------
# 3x3 same-conv encoder (key & value heads fused into one GEMM).
# One grid step = one query-batch element; all QL frames are folded into the block.
# TODO(synk): the reference CNN(2048, 'resnet50_NL', ...) backbone is unspecified; a single
#             3x3-conv key/value encoder stands in for it (same as the previous version).
# ---------------------------------------------------------------------------
def _conv3x3_kernel(x_ref, w_ref, b_ref, o_ref, *, H, W, QL):
    # x_ref : (1, QL, C, (H+2)*(W+2)+2)  zero-padded image, row-major linearized with one
    #         guard element at each end so every 3x3 shift is a contiguous lane slice.
    # w_ref : (O, 9*C)   columns ordered (dh, dw)-major, channel-minor.
    # b_ref : (O, 1)
    # o_ref : (1, O, QL*H*(W+2))  conv output over all padded columns; the invalid border
    #         columns are sliced away by the wrapper.
    wp2 = W + 2
    lout = H * wp2
    slabs = []
    for dh in range(3):
        for dw in range(3):
            start = dh * wp2 + dw                       # static lane offset in [0, 2*wp2+2]
            per_ql = [x_ref[0, ql, :, start:start + lout] for ql in range(QL)]
            slabs.append(per_ql[0] if QL == 1 else jnp.concatenate(per_ql, axis=1))
    patches = jnp.concatenate(slabs, axis=0)            # (9*C, QL*lout)
    acc = jnp.dot(w_ref[...], patches, preferred_element_type=jnp.float32)
    acc = acc + b_ref[...]
    o_ref[0, :, :] = acc.astype(o_ref.dtype)            # lane-dense store (QL*H*(W+2) lanes)


def query_encoder(query, w_key, b_key, w_value, b_value):
    """query (QB, QL, C, H, W) f32 -> key (QB, CK, QL*H*W) bf16, value (QB, CV, QL*H*W) bf16."""
    QB, QL, C, H, W = query.shape
    CK, CV = w_key.shape[0], w_value.shape[0]
    O = CK + CV
    wp2 = W + 2
    lpad = (H + 2) * wp2
    lout = H * wp2

    # pad spatially once, linearize rows, add one guard zero at each end of the flat axis.
    xp = jnp.pad(query, ((0, 0), (0, 0), (0, 0), (1, 1), (1, 1)))
    x_lin = jnp.pad(xp.reshape(QB, QL, C, lpad), ((0, 0), (0, 0), (0, 0), (1, 1)))

    w_mat = jnp.concatenate([w_key, w_value], axis=0)             # (O, C, 3, 3)
    w_mat = w_mat.transpose(0, 2, 3, 1).reshape(O, 9 * C).astype(jnp.float32)
    b_cat = jnp.concatenate([b_key, b_value]).reshape(O, 1).astype(jnp.float32)

    conv_out = pl.pallas_call(
        functools.partial(_conv3x3_kernel, H=H, W=W, QL=QL),
        out_shape=jax.ShapeDtypeStruct((QB, O, QL * lout), jnp.bfloat16),
        grid=(QB,),
        in_specs=[
            pl.BlockSpec((1, QL, C, lpad + 2), lambda qb: (qb, 0, 0, 0)),
            pl.BlockSpec((O, 9 * C), lambda qb: (0, 0)),
            pl.BlockSpec((O, 1), lambda qb: (0, 0)),
        ],
        out_specs=pl.BlockSpec((1, O, QL * lout), lambda qb: (qb, 0, 0)),
        compiler_params=pltpu.CompilerParams(dimension_semantics=("parallel",)),
    )(x_lin.astype(jnp.float32), w_mat, b_cat)

    # drop invalid border columns, flatten back to (QB, O, QL*H*W) — already the
    # channel-on-sublane / token-on-lane layout the memory-read kernel consumes.
    feat = conv_out.reshape(QB, O, QL, H, wp2)[..., 1:W + 1].reshape(QB, O, QL * H * W)
    return feat[:, :CK], feat[:, CK:]


# ---------------------------------------------------------------------------
# Non-local memory read (STM-style) with chunked online softmax and deferred
# normalization.  One grid step handles one (memory_batch, query_batch) pair and
# ALL query frames (QL folded into the lane axis).
# ---------------------------------------------------------------------------
def _pick_chunk(thw):
    for c in (256, 512, 128):
        if thw >= c and thw % c == 0:
            return c
    return thw


def _memory_read_kernel(qk_ref, qv_ref, mk_ref, mv_ref, o_ref, *,
                        scale, chunk, n_chunks, cv):
    # qk_ref: (1, CK, M)   M = QL*H*W   (query tokens on lanes)
    # qv_ref: (1, CV, M)
    # mk_ref: (1, CK, THW) THW = ML*H*W (memory tokens)
    # mv_ref: (1, CV, THW)
    # o_ref : (1, 1, 2*CV, M)
    m_dim = qk_ref.shape[-1]
    qk = qk_ref[0] * scale          # scale the small (CK, M) operand, not the big affinity

    m0 = jnp.full((1, m_dim), -jnp.inf, dtype=jnp.float32)
    l0 = jnp.zeros((1, m_dim), dtype=jnp.float32)
    a0 = jnp.zeros((cv, m_dim), dtype=jnp.float32)

    def body(i, carry):
        m_prev, l_prev, acc_prev = carry
        start = pl.multiple_of(i * chunk, chunk)
        mk_c = mk_ref[0, :, pl.ds(start, chunk)]            # (CK, chunk) bf16
        mv_c = mv_ref[0, :, pl.ds(start, chunk)]            # (CV, chunk) bf16
        # (chunk, M) affinity: memory tokens on sublanes, query tokens on lanes, so the
        # running softmax statistics come out as lane-dense (1, M) rows (f32 throughout).
        aff = lax.dot_general(mk_c, qk, (((0,), (0,)), ((), ())),
                              preferred_element_type=jnp.float32)
        m_new = jnp.maximum(m_prev, jnp.max(aff, axis=0, keepdims=True))
        alpha = jnp.exp(m_prev - m_new)                     # (1, M)
        p = jnp.exp(aff - m_new)                            # (chunk, M), unnormalized
        l_new = alpha * l_prev + jnp.sum(p, axis=0, keepdims=True)
        pv = jnp.dot(mv_c, p.astype(mv_c.dtype),
                     preferred_element_type=jnp.float32)    # (CV, M)
        acc_new = alpha * acc_prev + pv
        return m_new, l_new, acc_new

    _, l_fin, acc_fin = lax.fori_loop(0, n_chunks, body, (m0, l0, a0),
                                      unroll=n_chunks <= 8)

    # deferred normalization: divide the small (CV, M) read, reciprocal on the EUP slot.
    inv_l = pl.reciprocal(l_fin, approx=True)
    o_ref[0, 0, :cv, :] = (acc_fin * inv_l).astype(o_ref.dtype)
    o_ref[0, 0, cv:, :] = qv_ref[0].astype(o_ref.dtype)     # direct store, no concat


def pallas_memory_read(qk, qv, mk, mv):
    QB, CK, M = qk.shape
    CV = qv.shape[1]
    MB, _, THW = mk.shape
    chunk = _pick_chunk(THW)
    return pl.pallas_call(
        functools.partial(_memory_read_kernel, scale=1.0 / math.sqrt(CK),
                          chunk=chunk, n_chunks=THW // chunk, cv=CV),
        out_shape=jax.ShapeDtypeStruct((QB, MB, 2 * CV, M), jnp.float32),
        grid=(MB, QB),      # mb outermost: the large mk/mv blocks stay resident across qb
        in_specs=[
            pl.BlockSpec((1, CK, M), lambda mb, qb: (qb, 0, 0)),
            pl.BlockSpec((1, CV, M), lambda mb, qb: (qb, 0, 0)),
            pl.BlockSpec((1, CK, THW), lambda mb, qb: (mb, 0, 0)),
            pl.BlockSpec((1, CV, THW), lambda mb, qb: (mb, 0, 0)),
        ],
        out_specs=pl.BlockSpec((1, 1, 2 * CV, M), lambda mb, qb: (qb, mb, 0, 0)),
        compiler_params=pltpu.CompilerParams(
            dimension_semantics=("parallel", "parallel"),
            vmem_limit_bytes=32 * 1024 * 1024),
    )(qk, qv, mk, mv)


# ---------------------------------------------------------------------------
# Fused FC head: feature = relu(att @ W1 + b1), logit = feature @ W2 + b2.
# Single tiny block (M = QB*MB*QL rows) — launch-overhead bound, so one call only.
# ---------------------------------------------------------------------------
def _fc_head_kernel(a_ref, w1_ref, b1_ref, w2_ref, b2_ref, feat_ref, logit_ref):
    h = jnp.dot(a_ref[...], w1_ref[...], preferred_element_type=jnp.float32) + b1_ref[...]
    h = jnp.maximum(h, 0.0)
    feat_ref[...] = h.astype(feat_ref.dtype)
    y = jnp.dot(h, w2_ref[...], preferred_element_type=jnp.float32) + b2_ref[...]
    logit_ref[...] = y.astype(logit_ref.dtype)


def pallas_fc_head(a, w1, b1, w2, b2):
    M, K = a.shape
    F1, F2 = w1.shape[1], w2.shape[1]
    return pl.pallas_call(
        _fc_head_kernel,
        out_shape=(jax.ShapeDtypeStruct((M, F1), jnp.float32),
                   jax.ShapeDtypeStruct((M, F2), jnp.float32)),
        grid=(1,),
        in_specs=[
            pl.BlockSpec((M, K), lambda i: (0, 0)),
            pl.BlockSpec((K, F1), lambda i: (0, 0)),
            pl.BlockSpec((1, F1), lambda i: (0, 0)),
            pl.BlockSpec((F1, F2), lambda i: (0, 0)),
            pl.BlockSpec((1, F2), lambda i: (0, 0)),
        ],
        out_specs=(pl.BlockSpec((M, F1), lambda i: (0, 0)),
                   pl.BlockSpec((M, F2), lambda i: (0, 0))),
    )(a.astype(jnp.float32), w1.astype(jnp.float32),
      b1.reshape(1, F1).astype(jnp.float32),
      w2.astype(jnp.float32), b2.reshape(1, F2).astype(jnp.float32))


# ---------------------------------------------------------------------------
# MemoryNetwork.forward
# ---------------------------------------------------------------------------
def memory_network_forward(params, query, memory_key, memory_value):
    QB, QL, C, H, W = query.shape
    MB, ML = memory_key.shape[0], memory_key.shape[1]
    HW = H * W

    qk, qv = query_encoder(query, params["w_key"], params["b_key"],
                           params["w_value"], params["b_value"])   # (QB, C*, QL*HW) bf16
    CK, CV = qk.shape[1], qv.shape[1]

    # flatten memory frames into one token axis per memory batch; carry the dominant
    # operands in bf16 (f32 accumulation inside the kernel).
    mk = memory_key.transpose(0, 2, 1, 3, 4).reshape(MB, CK, ML * HW).astype(jnp.bfloat16)
    mv = memory_value.transpose(0, 2, 1, 3, 4).reshape(MB, CV, ML * HW).astype(jnp.bfloat16)

    att = pallas_memory_read(qk, qv, mk, mv)          # (QB, MB, 2*CV, QL*HW) f32

    # regroup to per-token rows (qb, mb, ql) with (channel, hw)-major columns for the head
    att_tok = att.reshape(QB, MB, 2 * CV, QL, HW).transpose(0, 1, 3, 2, 4)
    att_flat = att_tok.reshape(QB * MB * QL, 2 * CV * HW)

    feature, logit = pallas_fc_head(att_flat, params["w_fc1"], params["b_fc1"],
                                    params["w_fc2"], params["b_fc2"])
    feature = feature.reshape(QB, MB, QL, -1)
    logit = logit.reshape(QB, MB, QL, -1)
    return logit, feature


if __name__ == "__main__":
    key = jax.random.PRNGKey(0)
    C, H, W = 4, 16, 16          # input_shape = (4, 16, 16)
    CK, CV = 8, 8                # encoder key / value channels
    QB, QL = 2, 3                # query batch, query length
    MB, ML = 2, 4                # memory batch, memory length
    FEAT_DIM, OUT_SIZE = 32, 2
    classifier_input_size = 2 * CV * H * W   # flattened memory-reader output per token

    ks = jax.random.split(key, 9)
    params = {
        "w_key":   0.1 * jax.random.normal(ks[0], (CK, C, 3, 3), jnp.float32),
        "b_key":   0.1 * jax.random.normal(ks[1], (CK,), jnp.float32),
        "w_value": 0.1 * jax.random.normal(ks[2], (CV, C, 3, 3), jnp.float32),
        "b_value": 0.1 * jax.random.normal(ks[3], (CV,), jnp.float32),
        "w_fc1":   (1.0 / math.sqrt(classifier_input_size))
                   * jax.random.normal(ks[4], (classifier_input_size, FEAT_DIM), jnp.float32),
        "b_fc1":   jnp.zeros((FEAT_DIM,), jnp.float32),
        "w_fc2":   (1.0 / math.sqrt(FEAT_DIM))
                   * jax.random.normal(ks[5], (FEAT_DIM, OUT_SIZE), jnp.float32),
        "b_fc2":   jnp.zeros((OUT_SIZE,), jnp.float32),
    }

    query = jax.random.normal(ks[6], (QB, QL, C, H, W), jnp.float32)
    memory_key = jax.random.normal(ks[7], (MB, ML, CK, H, W), jnp.float32)
    memory_value = jax.random.normal(ks[8], (MB, ML, CV, H, W), jnp.float32)

    fwd = jax.jit(memory_network_forward)
    logit, feature = fwd(params, query, memory_key, memory_value)
    jax.block_until_ready((logit, feature))

    assert logit.shape == (QB, MB, QL, OUT_SIZE)
    assert feature.shape == (QB, MB, QL, FEAT_DIM)
    assert bool(jnp.all(jnp.isfinite(logit))) and bool(jnp.all(jnp.isfinite(feature)))
    print("KERNEL_OK")
</pallas_src>

<mosaic_0001>
module attributes {stable_mosaic.version = 11 : i64} {
  func.func @_conv3x3_kernel(%arg0: i32, %arg1: memref<1x3x4x326xf32, #tpu.memory_space<vmem>>, %arg2: memref<16x36xf32, #tpu.memory_space<vmem>>, %arg3: memref<16x1xf32, #tpu.memory_space<vmem>>, %arg4: memref<1x16x864xbf16, #tpu.memory_space<vmem>>) attributes {dimension_semantics = [#tpu.dimension_semantics<parallel>], iteration_bounds = array<i64: 2>, scalar_prefetch = 0 : i64, scratch_operands = 0 : i64, tpu.core_type = #tpu.core_type<tc>, window_params = [{transform_indices = @transform_0, window_bounds = array<i64: 1, 3, 4, 326>}, {pipeline_mode = #tpu.pipeline_mode<synchronous>, transform_indices = @transform_1, window_bounds = array<i64: 16, 36>}, {pipeline_mode = #tpu.pipeline_mode<synchronous>, transform_indices = @transform_2, window_bounds = array<i64: 16, 1>}, {transform_indices = @transform_3, window_bounds = array<i64: 1, 16, 864>}]} {
    %c0 = arith.constant 0 : index
    %c0_0 = arith.constant 0 : index
    %c0_1 = arith.constant 0 : index
    %c0_2 = arith.constant 0 : index
    %0 = vector.load %arg1[%c0, %c0_0, %c0_1, %c0_2] : memref<1x3x4x326xf32, #tpu.memory_space<vmem>>, vector<1x1x4x288xf32>
    %1 = vector.shape_cast %0 : vector<1x1x4x288xf32> to vector<4x288xf32>
    %c0_3 = arith.constant 0 : index
    %c1 = arith.constant 1 : index
    %c0_4 = arith.constant 0 : index
    %c0_5 = arith.constant 0 : index
    %2 = vector.load %arg1[%c0_3, %c1, %c0_4, %c0_5] : memref<1x3x4x326xf32, #tpu.memory_space<vmem>>, vector<1x1x4x288xf32>
    %3 = vector.shape_cast %2 : vector<1x1x4x288xf32> to vector<4x288xf32>
    %c0_6 = arith.constant 0 : index
    %c2 = arith.constant 2 : index
    %c0_7 = arith.constant 0 : index
    %c0_8 = arith.constant 0 : index
    %4 = vector.load %arg1[%c0_6, %c2, %c0_7, %c0_8] : memref<1x3x4x326xf32, #tpu.memory_space<vmem>>, vector<1x1x4x288xf32>
    %5 = vector.shape_cast %4 : vector<1x1x4x288xf32> to vector<4x288xf32>
    %6 = tpu.concatenate %1, %3, %5 in 1 : vector<4x288xf32>, vector<4x288xf32>, vector<4x288xf32> -> vector<4x864xf32>
    %c0_9 = arith.constant 0 : index
    %c0_10 = arith.constant 0 : index
    %c0_11 = arith.constant 0 : index
    %c1_12 = arith.constant 1 : index
    %7 = vector.load %arg1[%c0_9, %c0_10, %c0_11, %c1_12] : memref<1x3x4x326xf32, #tpu.memory_space<vmem>>, vector<1x1x4x288xf32>
    %8 = vector.shape_cast %7 : vector<1x1x4x288xf32> to vector<4x288xf32>
    %c0_13 = arith.constant 0 : index
    %c1_14 = arith.constant 1 : index
    %c0_15 = arith.constant 0 : index
    %c1_16 = arith.constant 1 : index
    %9 = vector.load %arg1[%c0_13, %c1_14, %c0_15, %c1_16] : memref<1x3x4x326xf32, #tpu.memory_space<vmem>>, vector<1x1x4x288xf32>
    %10 = vector.shape_cast %9 : vector<1x1x4x288xf32> to vector<4x288xf32>
    %c0_17 = arith.constant 0 : index
    %c2_18 = arith.constant 2 : index
    %c0_19 = arith.constant 0 : index
    %c1_20 = arith.constant 1 : index
    %11 = vector.load %arg1[%c0_17, %c2_18, %c0_19, %c1_20] : memref<1x3x4x326xf32, #tpu.memory_space<vmem>>, vector<1x1x4x288xf32>
    %12 = vector.shape_cast %11 : vector<1x1x4x288xf32> to vector<4x288xf32>
    %13 = tpu.concatenate %8, %10, %12 in 1 : vector<4x288xf32>, vector<4x288xf32>, vector<4x288xf32> -> vector<4x864xf32>
    %c0_21 = arith.constant 0 : index
    %c0_22 = arith.constant 0 : index
    %c0_23 = arith.constant 0 : index
    %c2_24 = arith.constant 2 : index
    %14 = vector.load %arg1[%c0_21, %c0_22, %c0_23, %c2_24] : memref<1x3x4x326xf32, #tpu.memory_space<vmem>>, vector<1x1x4x288xf32>
    %15 = vector.shape_cast %14 : vector<1x1x4x288xf32> to vector<4x288xf32>
    %c0_25 = arith.constant 0 : index
    %c1_26 = arith.constant 1 : index
    %c0_27 = arith.constant 0 : index
    %c2_28 = arith.constant 2 : index
    %16 = vector.load %arg1[%c0_25, %c1_26, %c0_27, %c2_28] : memref<1x3x4x326xf32, #tpu.memory_space<vmem>>, vector<1x1x4x288xf32>
    %17 = vector.shape_cast %16 : vector<1x1x4x288xf32> to vector<4x288xf32>
    %c0_29 = arith.constant 0 : index
    %c2_30 = arith.constant 2 : index
    %c0_31 = arith.constant 0 : index
    %c2_32 = arith.constant 2 : index
    %18 = vector.load %arg1[%c0_29, %c2_30, %c0_31, %c2_32] : memref<1x3x4x326xf32, #tpu.memory_space<vmem>>, vector<1x1x4x288xf32>
    %19 = vector.shape_cast %18 : vector<1x1x4x288xf32> to vector<4x288xf32>
    %20 = tpu.concatenate %15, %17, %19 in 1 : vector<4x288xf32>, vector<4x288xf32>, vector<4x288xf32> -> vector<4x864xf32>
    %c0_33 = arith.constant 0 : index
    %c0_34 = arith.constant 0 : index
    %c0_35 = arith.constant 0 : index
    %c18 = arith.constant 18 : index
    %21 = vector.load %arg1[%c0_33, %c0_34, %c0_35, %c18] : memref<1x3x4x326xf32, #tpu.memory_space<vmem>>, vector<1x1x4x288xf32>
    %22 = vector.shape_cast %21 : vector<1x1x4x288xf32> to vector<4x288xf32>
    %c0_36 = arith.constant 0 : index
    %c1_37 = arith.constant 1 : index
    %c0_38 = arith.constant 0 : index
    %c18_39 = arith.constant 18 : index
    %23 = vector.load %arg1[%c0_36, %c1_37, %c0_38, %c18_39] : memref<1x3x4x326xf32, #tpu.memory_space<vmem>>, vector<1x1x4x288xf32>
    %24 = vector.shape_cast %23 : vector<1x1x4x288xf32> to vector<4x288xf32>
    %c0_40 = arith.constant 0 : index
    %c2_41 = arith.constant 2 : index
    %c0_42 = arith.constant 0 : index
    %c18_43 = arith.constant 18 : index
    %25 = vector.load %arg1[%c0_40, %c2_41, %c0_42, %c18_43] : memref<1x3x4x326xf32, #tpu.memory_space<vmem>>, vector<1x1x4x288xf32>
    %26 = vector.shape_cast %25 : vector<1x1x4x288xf32> to vector<4x288xf32>
    %27 = tpu.concatenate %22, %24, %26 in 1 : vector<4x288xf32>, vector<4x288xf32>, vector<4x288xf32> -> vector<4x864xf32>
    %c0_44 = arith.constant 0 : index
    %c0_45 = arith.constant 0 : index
    %c0_46 = arith.constant 0 : index
    %c19 = arith.constant 19 : index
    %28 = vector.load %arg1[%c0_44, %c0_45, %c0_46, %c19] : memref<1x3x4x326xf32, #tpu.memory_space<vmem>>, vector<1x1x4x288xf32>
    %29 = vector.shape_cast %28 : vector<1x1x4x288xf32> to vector<4x288xf32>
    %c0_47 = arith.constant 0 : index
    %c1_48 = arith.constant 1 : index
    %c0_49 = arith.constant 0 : index
    %c19_50 = arith.constant 19 : index
    %30 = vector.load %arg1[%c0_47, %c1_48, %c0_49, %c19_50] : memref<1x3x4x326xf32, #tpu.memory_space<vmem>>, vector<1x1x4x288xf32>
    %31 = vector.shape_cast %30 : vector<1x1x4x288xf32> to vector<4x288xf32>
    %c0_51 = arith.constant 0 : index
    %c2_52 = arith.constant 2 : index
    %c0_53 = arith.constant 0 : index
    %c19_54 = arith.constant 19 : index
    %32 = vector.load %arg1[%c0_51, %c2_52, %c0_53, %c19_54] : memref<1x3x4x326xf32, #tpu.memory_space<vmem>>, vector<1x1x4x288xf32>
    %33 = vector.shape_cast %32 : vector<1x1x4x288xf32> to vector<4x288xf32>
    %34 = tpu.concatenate %29, %31, %33 in 1 : vector<4x288xf32>, vector<4x288xf32>, vector<4x288xf32> -> vector<4x864xf32>
    %c0_55 = arith.constant 0 : index
    %c0_56 = arith.constant 0 : index
    %c0_57 = arith.constant 0 : index
    %c20 = arith.constant 20 : index
    %35 = vector.load %arg1[%c0_55, %c0_56, %c0_57, %c20] : memref<1x3x4x326xf32, #tpu.memory_space<vmem>>, vector<1x1x4x288xf32>
    %36 = vector.shape_cast %35 : vector<1x1x4x288xf32> to vector<4x288xf32>
    %c0_58 = arith.constant 0 : index
    %c1_59 = arith.constant 1 : index
    %c0_60 = arith.constant 0 : index
    %c20_61 = arith.constant 20 : index
    %37 = vector.load %arg1[%c0_58, %c1_59, %c0_60, %c20_61] : memref<1x3x4x326xf32, #tpu.memory_space<vmem>>, vector<1x1x4x288xf32>
    %38 = vector.shape_cast %37 : vector<1x1x4x288xf32> to vector<4x288xf32>
    %c0_62 = arith.constant 0 : index
    %c2_63 = arith.constant 2 : index
    %c0_64 = arith.constant 0 : index
    %c20_65 = arith.constant 20 : index
    %39 = vector.load %arg1[%c0_62, %c2_63, %c0_64, %c20_65] : memref<1x3x4x326xf32, #tpu.memory_space<vmem>>, vector<1x1x4x288xf32>
    %40 = vector.shape_cast %39 : vector<1x1x4x288xf32> to vector<4x288xf32>
    %41 = tpu.concatenate %36, %38, %40 in 1 : vector<4x288xf32>, vector<4x288xf32>, vector<4x288xf32> -> vector<4x864xf32>
    %c0_66 = arith.constant 0 : index
    %c0_67 = arith.constant 0 : index
    %c0_68 = arith.constant 0 : index
    %c36 = arith.constant 36 : index
    %42 = vector.load %arg1[%c0_66, %c0_67, %c0_68, %c36] : memref<1x3x4x326xf32, #tpu.memory_space<vmem>>, vector<1x1x4x288xf32>
    %43 = vector.shape_cast %42 : vector<1x1x4x288xf32> to vector<4x288xf32>
    %c0_69 = arith.constant 0 : index
    %c1_70 = arith.constant 1 : index
    %c0_71 = arith.constant 0 : index
    %c36_72 = arith.constant 36 : index
    %44 = vector.load %arg1[%c0_69, %c1_70, %c0_71, %c36_72] : memref<1x3x4x326xf32, #tpu.memory_space<vmem>>, vector<1x1x4x288xf32>
    %45 = vector.shape_cast %44 : vector<1x1x4x288xf32> to vector<4x288xf32>
    %c0_73 = arith.constant 0 : index
    %c2_74 = arith.constant 2 : index
    %c0_75 = arith.constant 0 : index
    %c36_76 = arith.constant 36 : index
    %46 = vector.load %arg1[%c0_73, %c2_74, %c0_75, %c36_76] : memref<1x3x4x326xf32, #tpu.memory_space<vmem>>, vector<1x1x4x288xf32>
    %47 = vector.shape_cast %46 : vector<1x1x4x288xf32> to vector<4x288xf32>
    %48 = tpu.concatenate %43, %45, %47 in 1 : vector<4x288xf32>, vector<4x288xf32>, vector<4x288xf32> -> vector<4x864xf32>
    %c0_77 = arith.constant 0 : index
    %c0_78 = arith.constant 0 : index
    %c0_79 = arith.constant 0 : index
    %c37 = arith.constant 37 : index
    %49 = vector.load %arg1[%c0_77, %c0_78, %c0_79, %c37] : memref<1x3x4x326xf32, #tpu.memory_space<vmem>>, vector<1x1x4x288xf32>
    %50 = vector.shape_cast %49 : vector<1x1x4x288xf32> to vector<4x288xf32>
    %c0_80 = arith.constant 0 : index
    %c1_81 = arith.constant 1 : index
    %c0_82 = arith.constant 0 : index
    %c37_83 = arith.constant 37 : index
    %51 = vector.load %arg1[%c0_80, %c1_81, %c0_82, %c37_83] : memref<1x3x4x326xf32, #tpu.memory_space<vmem>>, vector<1x1x4x288xf32>
    %52 = vector.shape_cast %51 : vector<1x1x4x288xf32> to vector<4x288xf32>
    %c0_84 = arith.constant 0 : index
    %c2_85 = arith.constant 2 : index
    %c0_86 = arith.constant 0 : index
    %c37_87 = arith.constant 37 : index
    %53 = vector.load %arg1[%c0_84, %c2_85, %c0_86, %c37_87] : memref<1x3x4x326xf32, #tpu.memory_space<vmem>>, vector<1x1x4x288xf32>
    %54 = vector.shape_cast %53 : vector<1x1x4x288xf32> to vector<4x288xf32>
    %55 = tpu.concatenate %50, %52, %54 in 1 : vector<4x288xf32>, vector<4x288xf32>, vector<4x288xf32> -> vector<4x864xf32>
    %c0_88 = arith.constant 0 : index
    %c0_89 = arith.constant 0 : index
    %c0_90 = arith.constant 0 : index
    %c38 = arith.constant 38 : index
    %56 = vector.load %arg1[%c0_88, %c0_89, %c0_90, %c38] : memref<1x3x4x326xf32, #tpu.memory_space<vmem>>, vector<1x1x4x288xf32>
    %57 = vector.shape_cast %56 : vector<1x1x4x288xf32> to vector<4x288xf32>
    %c0_91 = arith.constant 0 : index
    %c1_92 = arith.constant 1 : index
    %c0_93 = arith.constant 0 : index
    %c38_94 = arith.constant 38 : index
    %58 = vector.load %arg1[%c0_91, %c1_92, %c0_93, %c38_94] : memref<1x3x4x326xf32, #tpu.memory_space<vmem>>, vector<1x1x4x288xf32>
    %59 = vector.shape_cast %58 : vector<1x1x4x288xf32> to vector<4x288xf32>
    %c0_95 = arith.constant 0 : index
    %c2_96 = arith.constant 2 : index
    %c0_97 = arith.constant 0 : index
    %c38_98 = arith.constant 38 : index
    %60 = vector.load %arg1[%c0_95, %c2_96, %c0_97, %c38_98] : memref<1x3x4x326xf32, #tpu.memory_space<vmem>>, vector<1x1x4x288xf32>
    %61 = vector.shape_cast %60 : vector<1x1x4x288xf32> to vector<4x288xf32>
    %62 = tpu.concatenate %57, %59, %61 in 1 : vector<4x288xf32>, vector<4x288xf32>, vector<4x288xf32> -> vector<4x864xf32>
    %63 = tpu.concatenate %6, %13, %20, %27, %34, %41, %48, %55, %62 in 0 : vector<4x864xf32>, vector<4x864xf32>, vector<4x864xf32>, vector<4x864xf32>, vector<4x864xf32>, vector<4x864xf32>, vector<4x864xf32>, vector<4x864xf32>, vector<4x864xf32> -> vector<36x864xf32>
    %c0_99 = arith.constant 0 : index
    %c0_100 = arith.constant 0 : index
    %64 = vector.load %arg2[%c0_99, %c0_100] : memref<16x36xf32, #tpu.memory_space<vmem>>, vector<16x36xf32>
    %cst = arith.constant dense<0.000000e+00> : vector<16x864xf32>
    %65 = tpu.matmul %64, %63, %cst {dimension_numbers = #tpu.dot_dimension_numbers<[1], [0], [0], [1], [0, 0, 1, 1], [], []>} : vector<16x36xf32>, vector<36x864xf32>, vector<16x864xf32> -> vector<16x864xf32>
    %c0_101 = arith.constant 0 : index
    %c0_102 = arith.constant 0 : index
    %66 = vector.load %arg3[%c0_101, %c0_102] : memref<16x1xf32, #tpu.memory_space<vmem>>, vector<16x1xf32>
    %67 = vector.broadcast %66 : vector<16x1xf32> to vector<16x864xf32>
    %68 = arith.addf %65, %67 : vector<16x864xf32>
    %69 = arith.truncf %68 : vector<16x864xf32> to vector<16x864xbf16>
    %c0_103 = arith.constant 0 : index
    %c0_104 = arith.constant 0 : index
    %c0_105 = arith.constant 0 : index
    %70 = vector.load %arg4[%c0_103, %c0_104, %c0_105] : memref<1x16x864xbf16, #tpu.memory_space<vmem>>, vector<1x16x864xbf16>
    %71 = vector.shape_cast %70 : vector<1x16x864xbf16> to vector<16x864xbf16>
    %72 = vector.shape_cast %69 : vector<16x864xbf16> to vector<1x16x864xbf16>
    tpu.vector_store %arg4[%c0_103, %c0_104, %c0_105], %72 {strides = array<i32>} : memref<1x16x864xbf16, #tpu.memory_space<vmem>>, vector<1x16x864xbf16>,
    return
  }
  func.func @transform_0(%arg0: i32) -> (i32, i32, i32, i32) {
    %c0_i32 = arith.constant 0 : i32
    %c0_i32_0 = arith.constant 0 : i32
    %c0_i32_1 = arith.constant 0 : i32
    %c0_i32_2 = arith.constant 0 : i32
    return %arg0, %c0_i32, %c0_i32_0, %c0_i32_1 : i32, i32, i32, i32
  }
  func.func @transform_1(%arg0: i32) -> (i32, i32) {
    %c0_i32 = arith.constant 0 : i32
    %c0_i32_0 = arith.constant 0 : i32
    %c0_i32_1 = arith.constant 0 : i32
    return %c0_i32, %c0_i32_0 : i32, i32
  }
  func.func @transform_2(%arg0: i32) -> (i32, i32) {
    %c0_i32 = arith.constant 0 : i32
    %c0_i32_0 = arith.constant 0 : i32
    %c0_i32_1 = arith.constant 0 : i32
    return %c0_i32, %c0_i32_0 : i32, i32
  }
  func.func @transform_3(%arg0: i32) -> (i32, i32, i32) {
    %c0_i32 = arith.constant 0 : i32
    %c0_i32_0 = arith.constant 0 : i32
    %c0_i32_1 = arith.constant 0 : i32
    return %arg0, %c0_i32, %c0_i32_0 : i32, i32, i32
  }
}

module attributes {stable_mosaic.version = 11 : i64} {
  func.func @_memory_read_kernel(%arg0: i32, %arg1: i32, %arg2: memref<1x8x768xbf16, #tpu.memory_space<vmem>>, %arg3: memref<1x8x768xbf16, #tpu.memory_space<vmem>>, %arg4: memref<1x8x1024xbf16, #tpu.memory_space<vmem>>, %arg5: memref<1x8x1024xbf16, #tpu.memory_space<vmem>>, %arg6: memref<1x1x16x768xf32, #tpu.memory_space<vmem>>) attributes {dimension_semantics = [#tpu.dimension_semantics<parallel>, #tpu.dimension_semantics<parallel>], iteration_bounds = array<i64: 2, 2>, scalar_prefetch = 0 : i64, scratch_operands = 0 : i64, tpu.core_type = #tpu.core_type<tc>, window_params = [{transform_indices = @transform_0, window_bounds = array<i64: 1, 8, 768>}, {transform_indices = @transform_1, window_bounds = array<i64: 1, 8, 768>}, {transform_indices = @transform_2, window_bounds = array<i64: 1, 8, 1024>}, {transform_indices = @transform_3, window_bounds = array<i64: 1, 8, 1024>}, {transform_indices = @transform_4, window_bounds = array<i64: 1, 1, 16, 768>}]} {
    %c0 = arith.constant 0 : index
    %c0_0 = arith.constant 0 : index
    %c0_1 = arith.constant 0 : index
    %0 = vector.load %arg2[%c0, %c0_0, %c0_1] : memref<1x8x768xbf16, #tpu.memory_space<vmem>>, vector<1x8x768xbf16>
    %1 = vector.shape_cast %0 : vector<1x8x768xbf16> to vector<8x768xbf16>
    %cst = arith.constant 3.535160e-01 : bf16
    %2 = vector.broadcast %cst : bf16 to vector<8x768xbf16>
    %3 = arith.mulf %1, %2 : vector<8x768xbf16>
    %cst_2 = arith.constant 0xFF800000 : f32
    %4 = vector.broadcast %cst_2 : f32 to vector<1x768xf32>
    %cst_3 = arith.constant 0.000000e+00 : f32
    %5 = vector.broadcast %cst_3 : f32 to vector<1x768xf32>
    %cst_4 = arith.constant 0.000000e+00 : f32
    %6 = vector.broadcast %cst_4 : f32 to vector<8x768xf32>
    %c0_i32 = arith.constant 0 : i32
    %c256_i32 = arith.constant 256 : i32
    %7 = arith.muli %c0_i32, %c256_i32 : i32
    %8 = tpu.assume_multiple %7, 256 : i32
    %c0_5 = arith.constant 0 : index
    %c0_6 = arith.constant 0 : index
    %9 = arith.index_cast %8 : i32 to index
    %10 = vector.load %arg4[%c0_5, %c0_6, %9] : memref<1x8x1024xbf16, #tpu.memory_space<vmem>>, vector<1x8x256xbf16>
    %11 = vector.shape_cast %10 : vector<1x8x256xbf16> to vector<8x256xbf16>
    %c0_7 = arith.constant 0 : index
    %c0_8 = arith.constant 0 : index
    %12 = arith.index_cast %8 : i32 to index
    %13 = vector.load %arg5[%c0_7, %c0_8, %12] : memref<1x8x1024xbf16, #tpu.memory_space<vmem>>, vector<1x8x256xbf16>
    %14 = vector.shape_cast %13 : vector<1x8x256xbf16> to vector<8x256xbf16>
    %cst_9 = arith.constant dense<0.000000e+00> : vector<256x768xf32>
    %15 = tpu.matmul %11, %3, %cst_9 {dimension_numbers = #tpu.dot_dimension_numbers<[0], [0], [1], [1], [0, 1, 1, 1], [], []>} : vector<8x256xbf16>, vector<8x768xbf16>, vector<256x768xf32> -> vector<256x768xf32>
    %cst_10 = arith.constant dense<0xFF800000> : vector<768xf32>
    %16 = vector.multi_reduction <maximumf>, %15, %cst_10 [0] : vector<256x768xf32> to vector<768xf32>
    %17 = vector.shape_cast %16 : vector<768xf32> to vector<1x768xf32>
    %18 = arith.maximumf %4, %17 : vector<1x768xf32>
    %19 = arith.subf %4, %18 : vector<1x768xf32>
    %20 = math.exp %19 : vector<1x768xf32>
    %21 = vector.broadcast %18 : vector<1x768xf32> to vector<256x768xf32>
    %22 = arith.subf %15, %21 : vector<256x768xf32>
    %23 = math.exp %22 : vector<256x768xf32>
    %24 = arith.mulf %20, %5 : vector<1x768xf32>
    %cst_11 = arith.constant dense<0.000000e+00> : vector<768xf32>
    %25 = vector.multi_reduction <add>, %23, %cst_11 [0] : vector<256x768xf32> to vector<768xf32>
    %26 = vector.shape_cast %25 : vector<768xf32> to vector<1x768xf32>
    %27 = arith.addf %24, %26 : vector<1x768xf32>
    %28 = arith.truncf %23 : vector<256x768xf32> to vector<256x768xbf16>
    %cst_12 = arith.constant dense<0.000000e+00> : vector<8x768xf32>
    %29 = tpu.matmul %14, %28, %cst_12 {dimension_numbers = #tpu.dot_dimension_numbers<[1], [0], [0], [1], [0, 0, 1, 1], [], []>} : vector<8x256xbf16>, vector<256x768xbf16>, vector<8x768xf32> -> vector<8x768xf32>
    %30 = vector.broadcast %20 : vector<1x768xf32> to vector<8x768xf32>
    %31 = arith.mulf %30, %6 : vector<8x768xf32>
    %32 = arith.addf %31, %29 : vector<8x768xf32>
    %c1_i32 = arith.constant 1 : i32
    %c256_i32_13 = arith.constant 256 : i32
    %33 = arith.muli %c1_i32, %c256_i32_13 : i32
    %34 = tpu.assume_multiple %33, 256 : i32
    %c0_14 = arith.constant 0 : index
    %c0_15 = arith.constant 0 : index
    %35 = arith.index_cast %34 : i32 to index
    %36 = vector.load %arg4[%c0_14, %c0_15, %35] : memref<1x8x1024xbf16, #tpu.memory_space<vmem>>, vector<1x8x256xbf16>
    %37 = vector.shape_cast %36 : vector<1x8x256xbf16> to vector<8x256xbf16>
    %c0_16 = arith.constant 0 : index
    %c0_17 = arith.constant 0 : index
    %38 = arith.index_cast %34 : i32 to index
    %39 = vector.load %arg5[%c0_16, %c0_17, %38] : memref<1x8x1024xbf16, #tpu.memory_space<vmem>>, vector<1x8x256xbf16>
    %40 = vector.shape_cast %39 : vector<1x8x256xbf16> to vector<8x256xbf16>
    %cst_18 = arith.constant dense<0.000000e+00> : vector<256x768xf32>
    %41 = tpu.matmul %37, %3, %cst_18 {dimension_numbers = #tpu.dot_dimension_numbers<[0], [0], [1], [1], [0, 1, 1, 1], [], []>} : vector<8x256xbf16>, vector<8x768xbf16>, vector<256x768xf32> -> vector<256x768xf32>
    %cst_19 = arith.constant dense<0xFF800000> : vector<768xf32>
    %42 = vector.multi_reduction <maximumf>, %41, %cst_19 [0] : vector<256x768xf32> to vector<768xf32>
    %43 = vector.shape_cast %42 : vector<768xf32> to vector<1x768xf32>
    %44 = arith.maximumf %18, %43 : vector<1x768xf32>
    %45 = arith.subf %18, %44 : vector<1x768xf32>
    %46 = math.exp %45 : vector<1x768xf32>
    %47 = vector.broadcast %44 : vector<1x768xf32> to vector<256x768xf32>
    %48 = arith.subf %41, %47 : vector<256x768xf32>
    %49 = math.exp %48 : vector<256x768xf32>
    %50 = arith.mulf %46, %27 : vector<1x768xf32>
    %cst_20 = arith.constant dense<0.000000e+00> : vector<768xf32>
    %51 = vector.multi_reduction <add>, %49, %cst_20 [0] : vector<256x768xf32> to vector<768xf32>
    %52 = vector.shape_cast %51 : vector<768xf32> to vector<1x768xf32>
    %53 = arith.addf %50, %52 : vector<1x768xf32>
    %54 = arith.truncf %49 : vector<256x768xf32> to vector<256x768xbf16>
    %cst_21 = arith.constant dense<0.000000e+00> : vector<8x768xf32>
    %55 = tpu.matmul %40, %54, %cst_21 {dimension_numbers = #tpu.dot_dimension_numbers<[1], [0], [0], [1], [0, 0, 1, 1], [], []>} : vector<8x256xbf16>, vector<256x768xbf16>, vector<8x768xf32> -> vector<8x768xf32>
    %56 = vector.broadcast %46 : vector<1x768xf32> to vector<8x768xf32>
    %57 = arith.mulf %56, %32 : vector<8x768xf32>
    %58 = arith.addf %57, %55 : vector<8x768xf32>
    %c2_i32 = arith.constant 2 : i32
    %c256_i32_22 = arith.constant 256 : i32
    %59 = arith.muli %c2_i32, %c256_i32_22 : i32
    %60 = tpu.assume_multiple %59, 256 : i32
    %c0_23 = arith.constant 0 : index
    %c0_24 = arith.constant 0 : index
    %61 = arith.index_cast %60 : i32 to index
    %62 = vector.load %arg4[%c0_23, %c0_24, %61] : memref<1x8x1024xbf16, #tpu.memory_space<vmem>>, vector<1x8x256xbf16>
    %63 = vector.shape_cast %62 : vector<1x8x256xbf16> to vector<8x256xbf16>
    %c0_25 = arith.constant 0 : index
    %c0_26 = arith.constant 0 : index
    %64 = arith.index_cast %60 : i32 to index
    %65 = vector.load %arg5[%c0_25, %c0_26, %64] : memref<1x8x1024xbf16, #tpu.memory_space<vmem>>, vector<1x8x256xbf16>
    %66 = vector.shape_cast %65 : vector<1x8x256xbf16> to vector<8x256xbf16>
    %cst_27 = arith.constant dense<0.000000e+00> : vector<256x768xf32>
    %67 = tpu.matmul %63, %3, %cst_27 {dimension_numbers = #tpu.dot_dimension_numbers<[0], [0], [1], [1], [0, 1, 1, 1], [], []>} : vector<8x256xbf16>, vector<8x768xbf16>, vector<256x768xf32> -> vector<256x768xf32>
    %cst_28 = arith.constant dense<0xFF800000> : vector<768xf32>
    %68 = vector.multi_reduction <maximumf>, %67, %cst_28 [0] : vector<256x768xf32> to vector<768xf32>
    %69 = vector.shape_cast %68 : vector<768xf32> to vector<1x768xf32>
    %70 = arith.maximumf %44, %69 : vector<1x768xf32>
    %71 = arith.subf %44, %70 : vector<1x768xf32>
    %72 = math.exp %71 : vector<1x768xf32>
    %73 = vector.broadcast %70 : vector<1x768xf32> to vector<256x768xf32>
    %74 = arith.subf %67, %73 : vector<256x768xf32>
    %75 = math.exp %74 : vector<256x768xf32>
    %76 = arith.mulf %72, %53 : vector<1x768xf32>
    %cst_29 = arith.constant dense<0.000000e+00> : vector<768xf32>
    %77 = vector.multi_reduction <add>, %75, %cst_29 [0] : vector<256x768xf32> to vector<768xf32>
    %78 = vector.shape_cast %77 : vector<768xf32> to vector<1x768xf32>
    %79 = arith.addf %76, %78 : vector<1x768xf32>
    %80 = arith.truncf %75 : vector<256x768xf32> to vector<256x768xbf16>
    %cst_30 = arith.constant dense<0.000000e+00> : vector<8x768xf32>
    %81 = tpu.matmul %66, %80, %cst_30 {dimension_numbers = #tpu.dot_dimension_numbers<[1], [0], [0], [1], [0, 0, 1, 1], [], []>} : vector<8x256xbf16>, vector<256x768xbf16>, vector<8x768xf32> -> vector<8x768xf32>
    %82 = vector.broadcast %72 : vector<1x768xf32> to vector<8x768xf32>
    %83 = arith.mulf %82, %58 : vector<8x768xf32>
    %84 = arith.addf %83, %81 : vector<8x768xf32>
    %c3_i32 = arith.constant 3 : i32
    %c256_i32_31 = arith.constant 256 : i32
    %85 = arith.muli %c3_i32, %c256_i32_31 : i32
    %86 = tpu.assume_multiple %85, 256 : i32
    %c0_32 = arith.constant 0 : index
    %c0_33 = arith.constant 0 : index
    %87 = arith.index_cast %86 : i32 to index
    %88 = vector.load %arg4[%c0_32, %c0_33, %87] : memref<1x8x1024xbf16, #tpu.memory_space<vmem>>, vector<1x8x256xbf16>
    %89 = vector.shape_cast %88 : vector<1x8x256xbf16> to vector<8x256xbf16>
    %c0_34 = arith.constant 0 : index
    %c0_35 = arith.constant 0 : index
    %90 = arith.index_cast %86 : i32 to index
    %91 = vector.load %arg5[%c0_34, %c0_35, %90] : memref<1x8x1024xbf16, #tpu.memory_space<vmem>>, vector<1x8x256xbf16>
    %92 = vector.shape_cast %91 : vector<1x8x256xbf16> to vector<8x256xbf16>
    %cst_36 = arith.constant dense<0.000000e+00> : vector<256x768xf32>
    %93 = tpu.matmul %89, %3, %cst_36 {dimension_numbers = #tpu.dot_dimension_numbers<[0], [0], [1], [1], [0, 1, 1, 1], [], []>} : vector<8x256xbf16>, vector<8x768xbf16>, vector<256x768xf32> -> vector<256x768xf32>
    %cst_37 = arith.constant dense<0xFF800000> : vector<768xf32>
    %94 = vector.multi_reduction <maximumf>, %93, %cst_37 [0] : vector<256x768xf32> to vector<768xf32>
    %95 = vector.shape_cast %94 : vector<768xf32> to vector<1x768xf32>
    %96 = arith.maximumf %70, %95 : vector<1x768xf32>
    %97 = arith.subf %70, %96 : vector<1x768xf32>
    %98 = math.exp %97 : vector<1x768xf32>
    %99 = vector.broadcast %96 : vector<1x768xf32> to vector<256x768xf32>
    %100 = arith.subf %93, %99 : vector<256x768xf32>
    %101 = math.exp %100 : vector<256x768xf32>
    %102 = arith.mulf %98, %79 : vector<1x768xf32>
    %cst_38 = arith.constant dense<0.000000e+00> : vector<768xf32>
    %103 = vector.multi_reduction <add>, %101, %cst_38 [0] : vector<256x768xf32> to vector<768xf32>
    %104 = vector.shape_cast %103 : vector<768xf32> to vector<1x768xf32>
    %105 = arith.addf %102, %104 : vector<1x768xf32>
    %106 = arith.truncf %101 : vector<256x768xf32> to vector<256x768xbf16>
    %cst_39 = arith.constant dense<0.000000e+00> : vector<8x768xf32>
    %107 = tpu.matmul %92, %106, %cst_39 {dimension_numbers = #tpu.dot_dimension_numbers<[1], [0], [0], [1], [0, 0, 1, 1], [], []>} : vector<8x256xbf16>, vector<256x768xbf16>, vector<8x768xf32> -> vector<8x768xf32>
    %108 = vector.broadcast %98 : vector<1x768xf32> to vector<8x768xf32>
    %109 = arith.mulf %108, %84 : vector<8x768xf32>
    %110 = arith.addf %109, %107 : vector<8x768xf32>
    %c4_i32 = arith.constant 4 : i32
    %111 = tpu.reciprocal %105 {approx = true} : vector<1x768xf32> -> vector<1x768xf32>
    %112 = vector.broadcast %111 : vector<1x768xf32> to vector<8x768xf32>
    %113 = arith.mulf %110, %112 : vector<8x768xf32>
    %c0_40 = arith.constant 0 : index
    %c0_41 = arith.constant 0 : index
    %c0_42 = arith.constant 0 : index
    %c0_43 = arith.constant 0 : index
    %114 = vector.load %arg6[%c0_40, %c0_41, %c0_42, %c0_43] : memref<1x1x16x768xf32, #tpu.memory_space<vmem>>, vector<1x1x8x768xf32>
    %115 = vector.shape_cast %114 : vector<1x1x8x768xf32> to vector<8x768xf32>
    %116 = vector.shape_cast %113 : vector<8x768xf32> to vector<1x1x8x768xf32>
    tpu.vector_store %arg6[%c0_40, %c0_41, %c0_42, %c0_43], %116 {strides = array<i32>} : memref<1x1x16x768xf32, #tpu.memory_space<vmem>>, vector<1x1x8x768xf32>,
    %c0_44 = arith.constant 0 : index
    %c0_45 = arith.constant 0 : index
    %c0_46 = arith.constant 0 : index
    %117 = vector.load %arg3[%c0_44, %c0_45, %c0_46] : memref<1x8x768xbf16, #tpu.memory_space<vmem>>, vector<1x8x768xbf16>
    %118 = vector.shape_cast %117 : vector<1x8x768xbf16> to vector<8x768xbf16>
    %119 = arith.extf %118 : vector<8x768xbf16> to vector<8x768xf32>
    %c0_47 = arith.constant 0 : index
    %c0_48 = arith.constant 0 : index
    %c8 = arith.constant 8 : index
    %c0_49 = arith.constant 0 : index
    %120 = vector.load %arg6[%c0_47, %c0_48, %c8, %c0_49] : memref<1x1x16x768xf32, #tpu.memory_space<vmem>>, vector<1x1x8x768xf32>
    %121 = vector.shape_cast %120 : vector<1x1x8x768xf32> to vector<8x768xf32>
    %122 = vector.shape_cast %119 : vector<8x768xf32> to vector<1x1x8x768xf32>
    tpu.vector_store %arg6[%c0_47, %c0_48, %c8, %c0_49], %122 {strides = array<i32>} : memref<1x1x16x768xf32, #tpu.memory_space<vmem>>, vector<1x1x8x768xf32>,
    return
  }
  func.func @transform_0(%arg0: i32, %arg1: i32) -> (i32, i32, i32) {
    %c0_i32 = arith.constant 0 : i32
    %c0_i32_0 = arith.constant 0 : i32
    %c0_i32_1 = arith.constant 0 : i32
    return %arg1, %c0_i32, %c0_i32_0 : i32, i32, i32
  }
  func.func @transform_1(%arg0: i32, %arg1: i32) -> (i32, i32, i32) {
    %c0_i32 = arith.constant 0 : i32
    %c0_i32_0 = arith.constant 0 : i32
    %c0_i32_1 = arith.constant 0 : i32
    return %arg1, %c0_i32, %c0_i32_0 : i32, i32, i32
  }
  func.func @transform_2(%arg0: i32, %arg1: i32) -> (i32, i32, i32) {
    %c0_i32 = arith.constant 0 : i32
    %c0_i32_0 = arith.constant 0 : i32
    %c0_i32_1 = arith.constant 0 : i32
    return %arg0, %c0_i32, %c0_i32_0 : i32, i32, i32
  }
  func.func @transform_3(%arg0: i32, %arg1: i32) -> (i32, i32, i32) {
    %c0_i32 = arith.constant 0 : i32
    %c0_i32_0 = arith.constant 0 : i32
    %c0_i32_1 = arith.constant 0 : i32
    return %arg0, %c0_i32, %c0_i32_0 : i32, i32, i32
  }
  func.func @transform_4(%arg0: i32, %arg1: i32) -> (i32, i32, i32, i32) {
    %c0_i32 = arith.constant 0 : i32
    %c0_i32_0 = arith.constant 0 : i32
    %c0_i32_1 = arith.constant 0 : i32
    return %arg1, %arg0, %c0_i32, %c0_i32_0 : i32, i32, i32, i32
  }
}

module attributes {stable_mosaic.version = 11 : i64} {
  func.func @_fc_head_kernel(%arg0: i32, %arg1: memref<12x4096xf32, #tpu.memory_space<vmem>>, %arg2: memref<4096x32xf32, #tpu.memory_space<vmem>>, %arg3: memref<1x32xf32, #tpu.memory_space<vmem>>, %arg4: memref<32x2xf32, #tpu.memory_space<vmem>>, %arg5: memref<1x2xf32, #tpu.memory_space<vmem>>, %arg6: memref<12x32xf32, #tpu.memory_space<vmem>>, %arg7: memref<12x2xf32, #tpu.memory_space<vmem>>) attributes {dimension_semantics = [#tpu.dimension_semantics<arbitrary>], iteration_bounds = array<i64: 1>, scalar_prefetch = 0 : i64, scratch_operands = 0 : i64, tpu.core_type = #tpu.core_type<tc>, window_params = [{pipeline_mode = #tpu.pipeline_mode<synchronous>, transform_indices = @transform_0, window_bounds = array<i64: 12, 4096>}, {pipeline_mode = #tpu.pipeline_mode<synchronous>, transform_indices = @transform_1, window_bounds = array<i64: 4096, 32>}, {pipeline_mode = #tpu.pipeline_mode<synchronous>, transform_indices = @transform_2, window_bounds = array<i64: 1, 32>}, {pipeline_mode = #tpu.pipeline_mode<synchronous>, transform_indices = @transform_3, window_bounds = array<i64: 32, 2>}, {pipeline_mode = #tpu.pipeline_mode<synchronous>, transform_indices = @transform_4, window_bounds = array<i64: 1, 2>}, {pipeline_mode = #tpu.pipeline_mode<synchronous>, transform_indices = @transform_5, window_bounds = array<i64: 12, 32>}, {pipeline_mode = #tpu.pipeline_mode<synchronous>, transform_indices = @transform_6, window_bounds = array<i64: 12, 2>}]} {
    %c0 = arith.constant 0 : index
    %c0_0 = arith.constant 0 : index
    %0 = vector.load %arg1[%c0, %c0_0] : memref<12x4096xf32, #tpu.memory_space<vmem>>, vector<12x4096xf32>
    %c0_1 = arith.constant 0 : index
    %c0_2 = arith.constant 0 : index
    %1 = vector.load %arg2[%c0_1, %c0_2] : memref<4096x32xf32, #tpu.memory_space<vmem>>, vector<4096x32xf32>
    %cst = arith.constant dense<0.000000e+00> : vector<12x32xf32>
    %2 = tpu.matmul %0, %1, %cst {dimension_numbers = #tpu.dot_dimension_numbers<[1], [0], [0], [1], [0, 0, 1, 1], [], []>} : vector<12x4096xf32>, vector<4096x32xf32>, vector<12x32xf32> -> vector<12x32xf32>
    %c0_3 = arith.constant 0 : index
    %c0_4 = arith.constant 0 : index
    %3 = vector.load %arg3[%c0_3, %c0_4] : memref<1x32xf32, #tpu.memory_space<vmem>>, vector<1x32xf32>
    %4 = vector.broadcast %3 : vector<1x32xf32> to vector<12x32xf32>
    %5 = arith.addf %2, %4 : vector<12x32xf32>
    %cst_5 = arith.constant 0.000000e+00 : f32
    %6 = vector.broadcast %cst_5 : f32 to vector<12x32xf32>
    %7 = arith.maximumf %5, %6 : vector<12x32xf32>
    %c0_6 = arith.constant 0 : index
    %c0_7 = arith.constant 0 : index
    %8 = vector.load %arg6[%c0_6, %c0_7] : memref<12x32xf32, #tpu.memory_space<vmem>>, vector<12x32xf32>
    tpu.vector_store %arg6[%c0_6, %c0_7], %7 {strides = array<i32>} : memref<12x32xf32, #tpu.memory_space<vmem>>, vector<12x32xf32>,
    %c0_8 = arith.constant 0 : index
    %c0_9 = arith.constant 0 : index
    %9 = vector.load %arg4[%c0_8, %c0_9] : memref<32x2xf32, #tpu.memory_space<vmem>>, vector<32x2xf32>
    %cst_10 = arith.constant dense<0.000000e+00> : vector<12x2xf32>
    %10 = tpu.matmul %7, %9, %cst_10 {dimension_numbers = #tpu.dot_dimension_numbers<[1], [0], [0], [1], [0, 0, 1, 1], [], []>} : vector<12x32xf32>, vector<32x2xf32>, vector<12x2xf32> -> vector<12x2xf32>
    %c0_11 = arith.constant 0 : index
    %c0_12 = arith.constant 0 : index
    %11 = vector.load %arg5[%c0_11, %c0_12] : memref<1x2xf32, #tpu.memory_space<vmem>>, vector<1x2xf32>
    %12 = vector.broadcast %11 : vector<1x2xf32> to vector<12x2xf32>
    %13 = arith.addf %10, %12 : vector<12x2xf32>
    %c0_13 = arith.constant 0 : index
    %c0_14 = arith.constant 0 : index
    %14 = vector.load %arg7[%c0_13, %c0_14] : memref<12x2xf32, #tpu.memory_space<vmem>>, vector<12x2xf32>
    tpu.vector_store %arg7[%c0_13, %c0_14], %13 {strides = array<i32>} : memref<12x2xf32, #tpu.memory_space<vmem>>, vector<12x2xf32>,
    return
  }
  func.func @transform_0(%arg0: i32) -> (i32, i32) {
    %c0_i32 = arith.constant 0 : i32
    %c0_i32_0 = arith.constant 0 : i32
    %c0_i32_1 = arith.constant 0 : i32
    return %c0_i32, %c0_i32_0 : i32, i32
  }
  func.func @transform_1(%arg0: i32) -> (i32, i32) {
    %c0_i32 = arith.constant 0 : i32
    %c0_i32_0 = arith.constant 0 : i32
    %c0_i32_1 = arith.constant 0 : i32
    return %c0_i32, %c0_i32_0 : i32, i32
  }
  func.func @transform_2(%arg0: i32) -> (i32, i32) {
    %c0_i32 = arith.constant 0 : i32
    %c0_i32_0 = arith.constant 0 : i32
    %c0_i32_1 = arith.constant 0 : i32
    return %c0_i32, %c0_i32_0 : i32, i32
  }
  func.func @transform_3(%arg0: i32) -> (i32, i32) {
    %c0_i32 = arith.constant 0 : i32
    %c0_i32_0 = arith.constant 0 : i32
    %c0_i32_1 = arith.constant 0 : i32
    return %c0_i32, %c0_i32_0 : i32, i32
  }
  func.func @transform_4(%arg0: i32) -> (i32, i32) {
    %c0_i32 = arith.constant 0 : i32
    %c0_i32_0 = arith.constant 0 : i32
    %c0_i32_1 = arith.constant 0 : i32
    return %c0_i32, %c0_i32_0 : i32, i32
  }
  func.func @transform_5(%arg0: i32) -> (i32, i32) {
    %c0_i32 = arith.constant 0 : i32
    %c0_i32_0 = arith.constant 0 : i32
    %c0_i32_1 = arith.constant 0 : i32
    return %c0_i32, %c0_i32_0 : i32, i32
  }
  func.func @transform_6(%arg0: i32) -> (i32, i32) {
    %c0_i32 = arith.constant 0 : i32
    %c0_i32_0 = arith.constant 0 : i32
    %c0_i32_1 = arith.constant 0 : i32
    return %c0_i32, %c0_i32_0 : i32, i32
  }
}

</mosaic_0001>

<llo_original>
// kernel: memory_network_forward.3
$region0: #{memory_network_forward.3}
  #allocation0 [shape = 'u32[]', space=smem, size = 0x4, offset = 0x4, fixed_abs, tag = 'smem constant byte address 0x4 - core index']
  #allocation1 [shape = 'u32[144,128]{1,0:T(1,128)}', space=vmem, size = 0x12000, scoped, tag = 'internal scratch']
  %s0 = inlined_call_operand.vmem [shape: f32[2,3,4,326], index: 0, kind: input, shape index: {}]
  %s1 = inlined_call_operand.vmem [shape: f32[16,36], index: 1, kind: input, shape index: {}]
  %s2 = inlined_call_operand.vmem [shape: f32[16,1], index: 2, kind: input, shape index: {}]
  %s3 = inlined_call_operand.vmem [shape: bf16[2,16,864], index: 3, kind: output, shape index: {}]
  %s4 = sld [smem:[#allocation0]]
  $region45: #{memory_network_forward.3} parent=0
    _
  %s6 = ssub.s32 1, %s4
  %s7 = scalar_select 0, %s6, %s4
  loop: start=0, step=1, limit=4
  $region2: #{memory_network_forward.3} parent=0 // loop_pre_header
    _
  $region3: #{memory_network_forward.3} parent=0 // loop_header
    %s9 = sphi 0, %s13
    %p10 = scmp.ge.s32.totalorder %s9, 4
    %s19 = sphi 0, %s21
    %s22 = sphi 0, %s19
    %s23 = sphi 0, %s22
    %s39 = sphi 0, %s23
    %s43 = sphi 0, %s43
    %s45 = sphi 0, %s43
    %s46 = sphi 0, %s45
    %s60 = sphi 0, %s46
    %s64 = sphi 0, %s64
    %s66 = sphi 0, %s64
    %s67 = sphi 0, %s66
    %s81 = sphi 0, %s67
    %s87 = sphi 0, %s89
    %s90 = sphi 0, %s87
    %s91 = sphi 0, %s90
    %s107 = sphi 0, %s91
  $region4: #{memory_network_forward.3} parent=0 // loop_header_branch
    %12 = sbr.rel (%p10) target = $region8
  $region5: #{memory_network_forward.3} parent=0 // loop_body
    %s14 = ssub.s32 %s9, 1
    %s15 = ssub.s32 %s9, 2
    %s16 = sadd.s32 %s9, 1
    %s17 = ssub.s32 %s9, %s16
    %p18 = scmp.eq.s32.totalorder %s17, 0
    %s20 = sadd.s32 %s19, 1
    %s21 = scalar_select %p18, %s19, %s20
    %p24 = pneg %p18
    %p25 = scmp.eq.s32.totalorder %s9, 1
    %p26 = por %p24, %p25
    %p27 = scmp.ne.s32.totalorder %s19, %s22
    %p28 = scmp.eq.s32.totalorder %s9, 0
    %p29 = por %p27, %p28
    %p30 = scmp.ne.s32.totalorder %s19, %s22
    %p31 = scmp.eq.s32.totalorder %s14, 1
    %p32 = por %p30, %p31
    %p33 = scmp.ne.s32.totalorder %s22, %s23
    %p34 = scmp.eq.s32.totalorder %s14, 0
    %p35 = por %p33, %p34
    %p36 = scmp.ne.s32.totalorder %s22, %s23
    %p37 = scmp.eq.s32.totalorder %s15, 1
    %p38 = por %p36, %p37
    %p40 = scmp.ne.s32.totalorder %s23, %s39
    %p41 = scmp.eq.s32.totalorder %s15, 0
    %p42 = por %p40, %p41
    %s44 = sadd.s32 %s43, 1
    %p47 = scmp.eq.s32.totalorder %s9, 1
    %p48 = scmp.ne.s32.totalorder %s43, %s45
    %p49 = scmp.eq.s32.totalorder %s9, 0
    %p50 = por %p48, %p49
    %p51 = scmp.ne.s32.totalorder %s43, %s45
    %p52 = scmp.eq.s32.totalorder %s14, 1
    %p53 = por %p51, %p52
    %p54 = scmp.ne.s32.totalorder %s45, %s46
    %p55 = scmp.eq.s32.totalorder %s14, 0
    %p56 = por %p54, %p55
    %p57 = scmp.ne.s32.totalorder %s45, %s46
    %p58 = scmp.eq.s32.totalorder %s15, 1
    %p59 = por %p57, %p58
    %p61 = scmp.ne.s32.totalorder %s46, %s60
    %p62 = scmp.eq.s32.totalorder %s15, 0
    %p63 = por %p61, %p62
    %s65 = sadd.s32 %s64, 1
    %p68 = scmp.eq.s32.totalorder %s9, 1
    %p69 = scmp.ne.s32.totalorder %s64, %s66
    %p70 = scmp.eq.s32.totalorder %s9, 0
    %p71 = por %p69, %p70
    %p72 = scmp.ne.s32.totalorder %s64, %s66
    %p73 = scmp.eq.s32.totalorder %s14, 1
    %p74 = por %p72, %p73
    %p75 = scmp.ne.s32.totalorder %s66, %s67
    %p76 = scmp.eq.s32.totalorder %s14, 0
    %p77 = por %p75, %p76
    %p78 = scmp.ne.s32.totalorder %s66, %s67
    %p79 = scmp.eq.s32.totalorder %s15, 1
    %p80 = por %p78, %p79
    %p82 = scmp.ne.s32.totalorder %s67, %s81
    %p83 = scmp.eq.s32.totalorder %s15, 0
    %p84 = por %p82, %p83
    %s85 = ssub.s32 %s9, %s16
    %p86 = scmp.eq.s32.totalorder %s85, 0
    %s88 = sadd.s32 %s87, 1
    %s89 = scalar_select %p86, %s87, %s88
    %p92 = pneg %p86
    %p93 = scmp.eq.s32.totalorder %s9, 1
    %p94 = por %p92, %p93
    %p95 = scmp.ne.s32.totalorder %s87, %s90
    %p96 = scmp.eq.s32.totalorder %s9, 0
    %p97 = por %p95, %p96
    %p98 = scmp.ne.s32.totalorder %s87, %s90
    %p99 = scmp.eq.s32.totalorder %s14, 1
    %p100 = por %p98, %p99
    %p101 = scmp.ne.s32.totalorder %s90, %s91
    %p102 = scmp.eq.s32.totalorder %s14, 0
    %p103 = por %p101, %p102
    %p104 = scmp.ne.s32.totalorder %s90, %s91
    %p105 = scmp.eq.s32.totalorder %s15, 1
    %p106 = por %p104, %p105
    %p108 = scmp.ne.s32.totalorder %s91, %s107
    %p109 = scmp.eq.s32.totalorder %s15, 0
    %p110 = por %p108, %p109
    %p111 = scmp.le.s32.totalorder 1, %s9
    %p112 = scmp.lt.s32.totalorder %s9, 3
    %p113 = pnand %p111, %p112
    %p114 = pneg %p113
    // Predicated region
    $region9: #{memory_network_forward.3} parent=5 // pred_check
      _
    $region10: #{memory_network_forward.3} parent=5 // pred_check_branch
      %116 = sbr.rel (%p113) target = $region12
    $region11: #{memory_network_forward.3} parent=5 // pred_region
      %s117 = ssub.s32 %s9, 1
      // Predicated region
      $region13: #{memory_network_forward.3} parent=11 // pred_check
        %p118 = pneg %p56
      $region14: #{memory_network_forward.3} parent=11 // pred_check_branch
        %120 = sbr.rel (%p118) target = $region16
      $region15: #{memory_network_forward.3} parent=11 // pred_region
        _
      $region16: #{memory_network_forward.3} parent=11 // pred_fallthru
        _
      // Predicated region
      $region17: #{memory_network_forward.3} parent=11 // pred_check
        %p121 = pneg %p77
      $region18: #{memory_network_forward.3} parent=11 // pred_check_branch
        %123 = sbr.rel (%p121) target = $region20
      $region19: #{memory_network_forward.3} parent=11 // pred_region
        _
      $region20: #{memory_network_forward.3} parent=11 // pred_fallthru
        _
    $region12: #{memory_network_forward.3} parent=5 // pred_fallthru
      _
    %p124 = scmp.lt.s32.totalorder %s9, 2
    // Predicated region
    $region21: #{memory_network_forward.3} parent=5 // pred_check
      %p125 = pneg %p124
    $region22: #{memory_network_forward.3} parent=5 // pred_check_branch
      %127 = sbr.rel (%p125) target = $region24
    $region23: #{memory_network_forward.3} parent=5 // pred_region
      // Predicated region
      $region25: #{memory_network_forward.3} parent=23 // pred_check
        %p128 = pneg %p29
      $region26: #{memory_network_forward.3} parent=23 // pred_check_branch
        %130 = sbr.rel (%p128) target = $region28
      $region27: #{memory_network_forward.3} parent=23 // pred_region
        %p131 = scmp.lt.s32.totalorder %s9, 1
        %s132 = scalar_select %p131, %s9, 1
        %s133 = smul.addr %s132, 9
        %s134 = smul.addr %s133, 4
        %s135 = scalar_lea.vmem %s0, %s134
      $region28: #{memory_network_forward.3} parent=23 // pred_fallthru
        _
    $region24: #{memory_network_forward.3} parent=5 // pred_fallthru
      _
    %p136 = scmp.le.s32.totalorder 1, %s9
    %p137 = scmp.lt.s32.totalorder %s9, 3
    %p138 = pnand %p136, %p137
    %p139 = pneg %p138
    // Predicated region
    $region29: #{memory_network_forward.3} parent=5 // pred_check
      _
    $region30: #{memory_network_forward.3} parent=5 // pred_check_branch
      %141 = sbr.rel (%p138) target = $region32
    $region31: #{memory_network_forward.3} parent=5 // pred_region
      %s142 = ssub.s32 %s9, 1
      %p143 = scmp.lt.s32.totalorder %s14, 1
      %s144 = scalar_select %p143, %s14, 1
      %s145 = smul.addr %s144, 9
      %s146 = smul.addr %s145, 4
      %s147 = scalar_lea.vmem %s0, %s146
      %p148 = pneg %p35
      %p149 = pneg %p32
      %p150 = pneg %p56
      %p151 = pneg %p53
      %p152 = pneg %p77
      %p153 = pneg %p74
      %p154 = pneg %p103
      %p155 = pneg %p100
      %p156 = scmp.lt.s32.totalorder %s14, 1
      %s157 = scalar_select %p156, %s14, 1
      %s158 = smul.addr %s157, 14
      %s159 = smul.addr %s158, 4
      %s160 = scalar_lea.vmem %s3, %s159
      %p161 = scmp.lt.s32.totalorder %s14, 1
      %s162 = scalar_select %p161, %s14, 1
      %s163 = smul.addr %s162, 9
      %s164 = smul.addr %s163, 4
      %s165 = scalar_lea.vmem %s0, %s164
      %p166 = scmp.lt.s32.totalorder %s14, 1
      %s167 = scalar_select %p166, %s14, 1
      %s168 = smul.addr %s167, 14
      %s169 = smul.addr %s168, 4
      %s170 = scalar_lea.vmem %s3, %s169
      %v171 = vld [vmem:[%s165] sm:$0xff]
      %v172 = vld [vmem:[%s165 + $0x8] sm:$0xf]
      %s173 = scalar_lea.vmem %s165, 12
      %v174 = vld [vmem:[%s173] sm:$0xff]
      %v175 = vld [vmem:[%s173 + $0x8] sm:$0xf]
      %s176 = scalar_lea.vmem %s165, 24
      %v177 = vld [vmem:[%s176] sm:$0xff]
      %v178 = vld [vmem:[%s176 + $0x8] sm:$0xf]
      %v180 = vcombine.high %v171, %v171
      %v184 = vcombine.high %v174, %v174
      %185 = vrot.lane.b32.xlu0 %v174, 32
      %v186 = vpop.permute.xlu0 %185
      %187 = vrot.lane.b32.xlu0 %v184, 32
      %v188 = vpop.permute.xlu0 %187
      %189 = vrot.lane.b32.xlu0 %v175, 32
      %v190 = vpop.permute.xlu0 %189
      %vm191 = vcmask 261120
      %v192 = vsel %vm191, %v186, %v188
      %v193 = vsel %vm191, %v188, %v190
      %v199 = vcombine.high %v177, %v177
      %200 = vrot.lane.b32.xlu0 %v177, 64
      %v201 = vpop.permute.xlu0 %200
      %202 = vrot.lane.b32.xlu0 %v199, 64
      %v203 = vpop.permute.xlu0 %202
      %204 = vrot.lane.b32.xlu0 %v178, 64
      %v205 = vpop.permute.xlu0 %204
      %vm206 = vcmask 523264
      %v207 = vsel %vm206, %v201, %v203
      %v208 = vsel %vm206, %v203, %v205
      %v212 = vsel %vm191, %v172, %v186
      %v213 = vsel %vm206, %v193, %v201
      %215 = vrot.lane.b32.xlu0 %v171, 127
      %v216 = vpop.permute.xlu0 %215
      %217 = vrot.lane.b32.xlu0 %v180, 127
      %v218 = vpop.permute.xlu0 %217
      %219 = vrot.lane.b32.xlu0 %v172, 127
      %v220 = vpop.permute.xlu0 %219
      %vm221 = vcmask 1039360
      %v222 = vsel %vm221, %v216, %v218
      %v223 = vsel %vm221, %v218, %v220
      %225 = vrot.lane.b32.xlu0 %v174, 31
      %v226 = vpop.permute.xlu0 %225
      %227 = vrot.lane.b32.xlu0 %v184, 31
      %v228 = vpop.permute.xlu0 %227
      %229 = vrot.lane.b32.xlu0 %v175, 31
      %v230 = vpop.permute.xlu0 %229
      %vm231 = vcmask 252928
      %v232 = vsel %vm231, %v226, %v228
      %v233 = vsel %vm231, %v228, %v230
      %236 = vrot.lane.b32.xlu0 %v177, 63
      %v237 = vpop.permute.xlu0 %236
      %238 = vrot.lane.b32.xlu0 %v199, 63
      %v239 = vpop.permute.xlu0 %238
      %240 = vrot.lane.b32.xlu0 %v178, 63
      %v241 = vpop.permute.xlu0 %240
      %vm242 = vcmask 515072
      %v243 = vsel %vm242, %v237, %v239
      %v244 = vsel %vm242, %v239, %v241
      %v246 = vsel %vm191, %v220, %v226
      %v247 = vsel %vm206, %v233, %v237
      %248 = vrot.lane.b32.xlu0 %v171, 126
      %v249 = vpop.permute.xlu0 %248
      %250 = vrot.lane.b32.xlu0 %v180, 126
      %v251 = vpop.permute.xlu0 %250
      %252 = vrot.lane.b32.xlu0 %v172, 126
      %v253 = vpop.permute.xlu0 %252
      %vm254 = vcmask 1031168
      %v255 = vsel %vm254, %v249, %v251
      %v256 = vsel %vm254, %v251, %v253
      %260 = vrot.lane.b32.xlu0 %v174, 30
      %v261 = vpop.permute.xlu0 %260
      %262 = vrot.lane.b32.xlu0 %v184, 30
      %v263 = vpop.permute.xlu0 %262
      %264 = vrot.lane.b32.xlu0 %v175, 30
      %v265 = vpop.permute.xlu0 %264
      %vm266 = vcmask 244736
      %v267 = vsel %vm266, %v261, %v263
      %v268 = vsel %vm266, %v263, %v265
      %272 = vrot.lane.b32.xlu0 %v177, 62
      %v273 = vpop.permute.xlu0 %272
      %274 = vrot.lane.b32.xlu0 %v199, 62
      %v275 = vpop.permute.xlu0 %274
      %276 = vrot.lane.b32.xlu0 %v178, 62
      %v277 = vpop.permute.xlu0 %276
      %vm278 = vcmask 506880
      %v279 = vsel %vm278, %v273, %v275
      %v280 = vsel %vm278, %v275, %v277
      %v284 = vsel %vm191, %v253, %v261
      %v285 = vsel %vm206, %v268, %v273
      %286 = vrot.lane.b32.xlu0 %v171, 110
      %v287 = vpop.permute.xlu0 %286
      %288 = vrot.lane.b32.xlu0 %v180, 110
      %v289 = vpop.permute.xlu0 %288
      %290 = vrot.lane.b32.xlu0 %v172, 110
      %v291 = vpop.permute.xlu0 %290
      %vm292 = vcmask 900096
      %v293 = vsel %vm292, %v287, %v289
      %v294 = vsel %vm292, %v289, %v291
      %296 = vrot.lane.b32.xlu0 %v174, 14
      %v297 = vpop.permute.xlu0 %296
      %298 = vrot.lane.b32.xlu0 %v184, 14
      %v299 = vpop.permute.xlu0 %298
      %300 = vrot.lane.b32.xlu0 %v175, 14
      %v301 = vpop.permute.xlu0 %300
      %vm302 = vcmask 113664
      %v303 = vsel %vm302, %v297, %v299
      %v304 = vsel %vm302, %v299, %v301
      %307 = vrot.lane.b32.xlu0 %v177, 46
      %v308 = vpop.permute.xlu0 %307
      %309 = vrot.lane.b32.xlu0 %v199, 46
      %v310 = vpop.permute.xlu0 %309
      %311 = vrot.lane.b32.xlu0 %v178, 46
      %v312 = vpop.permute.xlu0 %311
      %vm313 = vcmask 375808
      %v314 = vsel %vm313, %v308, %v310
      %v315 = vsel %vm313, %v310, %v312
      %v317 = vsel %vm191, %v291, %v297
      %v318 = vsel %vm206, %v304, %v308
      %319 = vrot.lane.b32.xlu0 %v171, 109
      %v320 = vpop.permute.xlu0 %319
      %321 = vrot.lane.b32.xlu0 %v180, 109
      %v322 = vpop.permute.xlu0 %321
      %323 = vrot.lane.b32.xlu0 %v172, 109
      %v324 = vpop.permute.xlu0 %323
      %vm325 = vcmask 891904
      %v326 = vsel %vm325, %v320, %v322
      %v327 = vsel %vm325, %v322, %v324
      %331 = vrot.lane.b32.xlu0 %v174, 13
      %v332 = vpop.permute.xlu0 %331
      %333 = vrot.lane.b32.xlu0 %v184, 13
      %v334 = vpop.permute.xlu0 %333
      %335 = vrot.lane.b32.xlu0 %v175, 13
      %v336 = vpop.permute.xlu0 %335
      %vm337 = vcmask 105472
      %v338 = vsel %vm337, %v332, %v334
      %v339 = vsel %vm337, %v334, %v336
      %343 = vrot.lane.b32.xlu0 %v177, 45
      %v344 = vpop.permute.xlu0 %343
      %345 = vrot.lane.b32.xlu0 %v199, 45
      %v346 = vpop.permute.xlu0 %345
      %347 = vrot.lane.b32.xlu0 %v178, 45
      %v348 = vpop.permute.xlu0 %347
      %vm349 = vcmask 367616
      %v350 = vsel %vm349, %v344, %v346
      %v351 = vsel %vm349, %v346, %v348
      %v355 = vsel %vm191, %v324, %v332
      %v356 = vsel %vm206, %v339, %v344
      %357 = vrot.lane.b32.xlu0 %v171, 108
      %v358 = vpop.permute.xlu0 %357
      %359 = vrot.lane.b32.xlu0 %v180, 108
      %v360 = vpop.permute.xlu0 %359
      %361 = vrot.lane.b32.xlu0 %v172, 108
      %v362 = vpop.permute.xlu0 %361
      %vm363 = vcmask 883712
      %v364 = vsel %vm363, %v358, %v360
      %v365 = vsel %vm363, %v360, %v362
      %367 = vrot.lane.b32.xlu0 %v174, 12
      %v368 = vpop.permute.xlu0 %367
      %369 = vrot.lane.b32.xlu0 %v184, 12
      %v370 = vpop.permute.xlu0 %369
      %371 = vrot.lane.b32.xlu0 %v175, 12
      %v372 = vpop.permute.xlu0 %371
      %vm373 = vcmask 97280
      %v374 = vsel %vm373, %v368, %v370
      %v375 = vsel %vm373, %v370, %v372
      %378 = vrot.lane.b32.xlu0 %v177, 44
      %v379 = vpop.permute.xlu0 %378
      %380 = vrot.lane.b32.xlu0 %v199, 44
      %v381 = vpop.permute.xlu0 %380
      %382 = vrot.lane.b32.xlu0 %v178, 44
      %v383 = vpop.permute.xlu0 %382
      %vm384 = vcmask 359424
      %v385 = vsel %vm384, %v379, %v381
      %v386 = vsel %vm384, %v381, %v383
      %v388 = vsel %vm191, %v362, %v368
      %v389 = vsel %vm206, %v375, %v379
      %390 = vrot.lane.b32.xlu0 %v171, 92
      %v391 = vpop.permute.xlu0 %390
      %392 = vrot.lane.b32.xlu0 %v180, 92
      %v393 = vpop.permute.xlu0 %392
      %394 = vrot.lane.b32.xlu0 %v172, 92
      %v395 = vpop.permute.xlu0 %394
      %vm396 = vcmask 752640
      %v397 = vsel %vm396, %v391, %v393
      %v398 = vsel %vm396, %v393, %v395
      %402 = vrot.lane.b32.xlu0 %v174, 124
      %v403 = vpop.permute.xlu0 %402
      %404 = vrot.lane.b32.xlu0 %v184, 124
      %v405 = vpop.permute.xlu0 %404
      %406 = vrot.lane.b32.xlu0 %v175, 124
      %v407 = vpop.permute.xlu0 %406
      %vm408 = vcmask 1014784
      %v409 = vsel %vm408, %v403, %v405
      %v410 = vsel %vm408, %v405, %v407
      %414 = vrot.lane.b32.xlu0 %v177, 28
      %v415 = vpop.permute.xlu0 %414
      %416 = vrot.lane.b32.xlu0 %v199, 28
      %v417 = vpop.permute.xlu0 %416
      %418 = vrot.lane.b32.xlu0 %v178, 28
      %v419 = vpop.permute.xlu0 %418
      %vm420 = vcmask 228352
      %v421 = vsel %vm420, %v415, %v417
      %v422 = vsel %vm420, %v417, %v419
      %v426 = vsel %vm191, %v395, %v409
      %v427 = vsel %vm206, %v407, %v415
      %428 = vrot.lane.b32.xlu0 %v171, 91
      %v429 = vpop.permute.xlu0 %428
      %430 = vrot.lane.b32.xlu0 %v180, 91
      %v431 = vpop.permute.xlu0 %430
      %432 = vrot.lane.b32.xlu0 %v172, 91
      %v433 = vpop.permute.xlu0 %432
      %vm434 = vcmask 744448
      %v435 = vsel %vm434, %v429, %v431
      %v436 = vsel %vm434, %v431, %v433
      %438 = vrot.lane.b32.xlu0 %v174, 123
      %v439 = vpop.permute.xlu0 %438
      %440 = vrot.lane.b32.xlu0 %v184, 123
      %v441 = vpop.permute.xlu0 %440
      %442 = vrot.lane.b32.xlu0 %v175, 123
      %v443 = vpop.permute.xlu0 %442
      %vm444 = vcmask 1006592
      %v445 = vsel %vm444, %v439, %v441
      %v446 = vsel %vm444, %v441, %v443
      %449 = vrot.lane.b32.xlu0 %v177, 27
      %v450 = vpop.permute.xlu0 %449
      %451 = vrot.lane.b32.xlu0 %v199, 27
      %v452 = vpop.permute.xlu0 %451
      %453 = vrot.lane.b32.xlu0 %v178, 27
      %v454 = vpop.permute.xlu0 %453
      %vm455 = vcmask 220160
      %v456 = vsel %vm455, %v450, %v452
      %v457 = vsel %vm455, %v452, %v454
      %v459 = vsel %vm191, %v433, %v445
      %v460 = vsel %vm206, %v443, %v450
      %461 = vrot.lane.b32.xlu0 %v171, 90
      %v462 = vpop.permute.xlu0 %461
      %463 = vrot.lane.b32.xlu0 %v180, 90
      %v464 = vpop.permute.xlu0 %463
      %465 = vrot.lane.b32.xlu0 %v172, 90
      %v466 = vpop.permute.xlu0 %465
      %vm467 = vcmask 736256
      %v468 = vsel %vm467, %v462, %v464
      %v469 = vsel %vm467, %v464, %v466
      %471 = vrot.lane.b32.xlu0 %v174, 122
      %v472 = vpop.permute.xlu0 %471
      %473 = vrot.lane.b32.xlu0 %v184, 122
      %v474 = vpop.permute.xlu0 %473
      %475 = vrot.lane.b32.xlu0 %v175, 122
      %v476 = vpop.permute.xlu0 %475
      %vm477 = vcmask 998400
      %v478 = vsel %vm477, %v472, %v474
      %v479 = vsel %vm477, %v474, %v476
      %482 = vrot.lane.b32.xlu0 %v177, 26
      %v483 = vpop.permute.xlu0 %482
      %484 = vrot.lane.b32.xlu0 %v199, 26
      %v485 = vpop.permute.xlu0 %484
      %486 = vrot.lane.b32.xlu0 %v178, 26
      %v487 = vpop.permute.xlu0 %486
      %vm488 = vcmask 211968
      %v489 = vsel %vm488, %v483, %v485
      %v490 = vsel %vm488, %v485, %v487
      %v492 = vsel %vm191, %v466, %v478
      %v493 = vsel %vm206, %v476, %v483
      %v496 = vrot.slane %v222, 4
      %v497 = vrot.slane %v223, 4
      %v498 = vrot.slane %v246, 4
      %v499 = vrot.slane %v232, 4
      %v500 = vrot.slane %v247, 4
      %v501 = vrot.slane %v243, 4
      %v502 = vrot.slane %v244, 4
      %v512 = vrot.slane %v293, 4
      %v513 = vrot.slane %v294, 4
      %v514 = vrot.slane %v317, 4
      %v515 = vrot.slane %v303, 4
      %v516 = vrot.slane %v318, 4
      %v517 = vrot.slane %v314, 4
      %v518 = vrot.slane %v315, 4
      %v528 = vrot.slane %v364, 4
      %v529 = vrot.slane %v365, 4
      %v530 = vrot.slane %v388, 4
      %v531 = vrot.slane %v374, 4
      %v532 = vrot.slane %v389, 4
      %v533 = vrot.slane %v385, 4
      %v534 = vrot.slane %v386, 4
      %v544 = vrot.slane %v435, 4
      %v545 = vrot.slane %v436, 4
      %v546 = vrot.slane %v459, 4
      %v547 = vrot.slane %v446, 4
      %v548 = vrot.slane %v460, 4
      %v549 = vrot.slane %v456, 4
      %v550 = vrot.slane %v457, 4
      %vm558 = vcmask 1043456
      %v559 = vsel %vm558, %v171, %v496
      %v560 = vsel %vm558, %v180, %v497
      %v561 = vsel %vm558, %v212, %v498
      %v562 = vsel %vm558, %v192, %v499
      %v563 = vsel %vm558, %v213, %v500
      %v564 = vsel %vm558, %v207, %v501
      %v565 = vsel %vm558, %v208, %v502
      %v566 = vsel %vm558, %v255, %v512
      %v567 = vsel %vm558, %v256, %v513
      %v568 = vsel %vm558, %v284, %v514
      %v569 = vsel %vm558, %v267, %v515
      %v570 = vsel %vm558, %v285, %v516
      %v571 = vsel %vm558, %v279, %v517
      %v572 = vsel %vm558, %v280, %v518
      %v573 = vsel %vm558, %v326, %v528
      %v574 = vsel %vm558, %v327, %v529
      %v575 = vsel %vm558, %v355, %v530
      %v576 = vsel %vm558, %v338, %v531
      %v577 = vsel %vm558, %v356, %v532
      %v578 = vsel %vm558, %v350, %v533
      %v579 = vsel %vm558, %v351, %v534
      %v580 = vsel %vm558, %v397, %v544
      %v581 = vsel %vm558, %v398, %v545
      %v582 = vsel %vm558, %v426, %v546
      %v583 = vsel %vm558, %v410, %v547
      %v584 = vsel %vm558, %v427, %v548
      %v585 = vsel %vm558, %v421, %v549
      %v586 = vsel %vm558, %v422, %v550
      %v587 = vld [vmem:[%s1] sm:$0xff]
      %v588 = vld [vmem:[%s1 + $0x8] sm:$0xff]
      %v589 = vld [vmem:[%s2] sm:$0xff]
      %v590 = vld [vmem:[%s2 + $0x8] sm:$0xff]
      %592 = vset.pattern.permute.xlu0 0
      %593 = vperm.xlu0 %592, %v589
      %v594 = vpop.permute.xlu0 %593
      %597 = vset.pattern.permute.xlu0 0
      %598 = vperm.xlu0 %597, %v590
      %v599 = vpop.permute.xlu0 %598
      %vm601 = vcmask 293888
      %v603 = vsel %vm601, %v587, 0
      %v606 = vsel %vm601, %v588, 0
      %v608 = vsel %vm558, %v468, 0
      %v610 = vsel %vm558, %v469, 0
      %v613 = vsel %vm558, %v492, 0
      %v615 = vsel %vm558, %v479, 0
      %v618 = vsel %vm558, %v493, 0
      %v620 = vsel %vm558, %v489, 0
      %v622 = vsel %vm558, %v490, 0
      %624 = vmatprep.subr.mxu0 %v560
      %625 = vmatpush1.msra.mxu0 %v559
      %626 = vmatprep.subr.mxu0 %v567
      %627 = vmatpush1.msra.mxu0 %v566
      %628 = vmatprep.subr.mxu0 %v574
      %629 = vmatpush1.msra.mxu0 %v573
      %630 = vmatprep.subr.mxu0 %v581
      %631 = vmatpush1.msra.mxu0 %v580
      %632 = vmatprep.subr.mxu0 %v610
      %633 = vmatpush1.msra.mxu0 %v608
      %634 = vmatprep.subr.mxu0 0.0
      %635 = vmatpush1.msra.mxu0 0.0
      %636 = vmatprep.subr.mxu0 0.0
      %637 = vmatpush1.msra.mxu0 0.0
      %638 = vmatprep.subr.mxu0 0.0
      %639 = vmatpush1.msra.mxu0 0.0
      %640 = vmatprep.subr.mxu0 0.0
      %641 = vmatpush1.msra.mxu0 0.0
      %642 = vmatprep.subr.mxu0 0.0
      %643 = vmatpush1.msra.mxu0 0.0
      %644 = vmatprep.subr.mxu0 0.0
      %645 = vmatpush1.msra.mxu0 0.0
      %646 = vmatprep.subr.mxu0 0.0
      %647 = vmatpush1.msra.mxu0 0.0
      %648 = vmatprep.subr.mxu0 0.0
      %649 = vmatpush1.msra.mxu0 0.0
      %650 = vmatprep.subr.mxu0 0.0
      %651 = vmatpush1.msra.mxu0 0.0
      %652 = vmatprep.subr.mxu0 0.0
      %653 = vmatpush1.msra.mxu0 0.0
      %654 = vmatprep.subr.mxu0 0.0
      %655 = vmatpush1.msra.mxu0 0.0
      %656 = vmatprep.subr.mxu0 0.0
      %657 = vmatpush1.msra.mxu0 0.0
      %658 = vmatprep.subr.mxu0 0.0
      %659 = vmatpush1.msra.mxu0 0.0
      %660 = vmatprep.subr.mxu0 0.0
      %661 = vmatpush1.msra.mxu0 0.0
      %662 = vmatprep.subr.mxu0 0.0
      %663 = vmatpush1.msra.mxu0 0.0
      %664 = vmatprep.subr.mxu0 0.0
      %665 = vmatpush1.msra.mxu0 0.0
      %666 = vmatprep.subr.mxu0 0.0
      %667 = vmatpush1.msra.mxu0 0.0
      %668 = vmatprep.subr.mxu0 0.0
      %669 = vmatpush1.msra.mxu0 0.0
      %670 = vmatprep.subr.mxu0 0.0
      %671 = vmatpush1.msra.mxu0 0.0
      %672 = vmatprep.subr.mxu0 0.0
      %673 = vmatpush1.msra.mxu0 0.0
      %674 = vmatprep.subr.mxu0 0.0
      %675 = vmatpush1.msra.mxu0 0.0
      %676 = vmatprep.subr.mxu0 0.0
      %677 = vmatpush1.msra.mxu0 0.0
      %678 = vmatprep.subr.mxu0 0.0
      %679 = vmatpush1.msra.mxu0 0.0
      %680 = vmatprep.subr.mxu0 0.0
      %681 = vmatpush1.msra.mxu0 0.0
      %682 = vmatprep.subr.mxu0 0.0
      %683 = vmatpush1.msra.mxu0 0.0
      %684 = vmatprep.subr.mxu0 0.0
      %685 = vmatpush1.msra.mxu0 0.0
      %686 = vmatprep.subr.mxu0 0.0
      %687 = vmatpush1.msra.mxu0 0.0
      %688 = vmatprep.mubr.f32.mxu0 0.0
      %689 = vmatmul.mubr.f32.gmra.mrb[0].mxu0 %v603
      %v690 = vpop.f32.mrb[0].mxu0
      %v691 = vadd.f32 %v594, %v690
      %v692 = vpop.f32.mrb[0].mxu0
      %v693 = vadd.f32 %v594, %v692
      %694 = vmatprep.mubr.f32.mxu0 0.0
      %695 = vmatmul.mubr.f32.gmra.mrb[0].mxu0 %v606
      %v696 = vpop.f32.mrb[0].mxu0
      %v697 = vadd.f32 %v599, %v696
      %v698 = vpop.f32.mrb[0].mxu0
      %v699 = vadd.f32 %v599, %v698
      %700 = vdwg.mxu0
      %701 = vmatprep.subr.mxu0 %v562
      %702 = vmatpush1.msra.mxu0 %v561
      %703 = vmatprep.subr.mxu0 %v569
      %704 = vmatpush1.msra.mxu0 %v568
      %705 = vmatprep.subr.mxu0 %v576
      %706 = vmatpush1.msra.mxu0 %v575
      %707 = vmatprep.subr.mxu0 %v583
      %708 = vmatpush1.msra.mxu0 %v582
      %709 = vmatprep.subr.mxu0 %v615
      %710 = vmatpush1.msra.mxu0 %v613
      %711 = vmatprep.subr.mxu0 0.0
      %712 = vmatpush1.msra.mxu0 0.0
      %713 = vmatprep.subr.mxu0 0.0
      %714 = vmatpush1.msra.mxu0 0.0
      %715 = vmatprep.subr.mxu0 0.0
      %716 = vmatpush1.msra.mxu0 0.0
      %717 = vmatprep.subr.mxu0 0.0
      %718 = vmatpush1.msra.mxu0 0.0
      %719 = vmatprep.subr.mxu0 0.0
      %720 = vmatpush1.msra.mxu0 0.0
      %721 = vmatprep.subr.mxu0 0.0
      %722 = vmatpush1.msra.mxu0 0.0
      %723 = vmatprep.subr.mxu0 0.0
      %724 = vmatpush1.msra.mxu0 0.0
      %725 = vmatprep.subr.mxu0 0.0
      %726 = vmatpush1.msra.mxu0 0.0
      %727 = vmatprep.subr.mxu0 0.0
      %728 = vmatpush1.msra.mxu0 0.0
      %729 = vmatprep.subr.mxu0 0.0
      %730 = vmatpush1.msra.mxu0 0.0
      %731 = vmatprep.subr.mxu0 0.0
      %732 = vmatpush1.msra.mxu0 0.0
      %733 = vmatprep.subr.mxu0 0.0
      %734 = vmatpush1.msra.mxu0 0.0
      %735 = vmatprep.subr.mxu0 0.0
      %736 = vmatpush1.msra.mxu0 0.0
      %737 = vmatprep.subr.mxu0 0.0
      %738 = vmatpush1.msra.mxu0 0.0
      %739 = vmatprep.subr.mxu0 0.0
      %740 = vmatpush1.msra.mxu0 0.0
      %741 = vmatprep.subr.mxu0 0.0
      %742 = vmatpush1.msra.mxu0 0.0
      %743 = vmatprep.subr.mxu0 0.0
      %744 = vmatpush1.msra.mxu0 0.0
      %745 = vmatprep.subr.mxu0 0.0
      %746 = vmatpush1.msra.mxu0 0.0
      %747 = vmatprep.subr.mxu0 0.0
      %748 = vmatpush1.msra.mxu0 0.0
      %749 = vmatprep.subr.mxu0 0.0
      %750 = vmatpush1.msra.mxu0 0.0
      %751 = vmatprep.subr.mxu0 0.0
      %752 = vmatpush1.msra.mxu0 0.0
      %753 = vmatprep.subr.mxu0 0.0
      %754 = vmatpush1.msra.mxu0 0.0
      %755 = vmatprep.subr.mxu0 0.0
      %756 = vmatpush1.msra.mxu0 0.0
      %757 = vmatprep.subr.mxu0 0.0
      %758 = vmatpush1.msra.mxu0 0.0
      %759 = vmatprep.subr.mxu0 0.0
      %760 = vmatpush1.msra.mxu0 0.0
      %761 = vmatprep.subr.mxu0 0.0
      %762 = vmatpush1.msra.mxu0 0.0
      %763 = vmatprep.subr.mxu0 0.0
      %764 = vmatpush1.msra.mxu0 0.0
      %765 = vmatprep.mubr.f32.mxu0 0.0
      %766 = vmatmul.mubr.f32.gmra.mrb[0].mxu0 %v603
      %v767 = vpop.f32.mrb[0].mxu0
      %v768 = vadd.f32 %v594, %v767
      %v769 = vpop.f32.mrb[0].mxu0
      %v770 = vadd.f32 %v594, %v769
      %771 = vmatprep.mubr.f32.mxu0 0.0
      %772 = vmatmul.mubr.f32.gmra.mrb[0].mxu0 %v606
      %v773 = vpop.f32.mrb[0].mxu0
      %v774 = vadd.f32 %v599, %v773
      %v775 = vpop.f32.mrb[0].mxu0
      %v776 = vadd.f32 %v599, %v775
      %777 = vdwg.mxu0
      %778 = vmatprep.subr.mxu0 %v564
      %779 = vmatpush1.msra.mxu0 %v563
      %780 = vmatprep.subr.mxu0 %v571
      %781 = vmatpush1.msra.mxu0 %v570
      %782 = vmatprep.subr.mxu0 %v578
      %783 = vmatpush1.msra.mxu0 %v577
      %784 = vmatprep.subr.mxu0 %v585
      %785 = vmatpush1.msra.mxu0 %v584
      %786 = vmatprep.subr.mxu0 %v620
      %787 = vmatpush1.msra.mxu0 %v618
      %788 = vmatprep.subr.mxu0 0.0
      %789 = vmatpush1.msra.mxu0 0.0
      %790 = vmatprep.subr.mxu0 0.0
      %791 = vmatpush1.msra.mxu0 0.0
      %792 = vmatprep.subr.mxu0 0.0
      %793 = vmatpush1.msra.mxu0 0.0
      %794 = vmatprep.subr.mxu0 0.0
      %795 = vmatpush1.msra.mxu0 0.0
      %796 = vmatprep.subr.mxu0 0.0
      %797 = vmatpush1.msra.mxu0 0.0
      %798 = vmatprep.subr.mxu0 0.0
      %799 = vmatpush1.msra.mxu0 0.0
      %800 = vmatprep.subr.mxu0 0.0
      %801 = vmatpush1.msra.mxu0 0.0
      %802 = vmatprep.subr.mxu0 0.0
      %803 = vmatpush1.msra.mxu0 0.0
      %804 = vmatprep.subr.mxu0 0.0
      %805 = vmatpush1.msra.mxu0 0.0
      %806 = vmatprep.subr.mxu0 0.0
      %807 = vmatpush1.msra.mxu0 0.0
      %808 = vmatprep.subr.mxu0 0.0
      %809 = vmatpush1.msra.mxu0 0.0
      %810 = vmatprep.subr.mxu0 0.0
      %811 = vmatpush1.msra.mxu0 0.0
      %812 = vmatprep.subr.mxu0 0.0
      %813 = vmatpush1.msra.mxu0 0.0
      %814 = vmatprep.subr.mxu0 0.0
      %815 = vmatpush1.msra.mxu0 0.0
      %816 = vmatprep.subr.mxu0 0.0
      %817 = vmatpush1.msra.mxu0 0.0
      %818 = vmatprep.subr.mxu0 0.0
      %819 = vmatpush1.msra.mxu0 0.0
      %820 = vmatprep.subr.mxu0 0.0
      %821 = vmatpush1.msra.mxu0 0.0
      %822 = vmatprep.subr.mxu0 0.0
      %823 = vmatpush1.msra.mxu0 0.0
      %824 = vmatprep.subr.mxu0 0.0
      %825 = vmatpush1.msra.mxu0 0.0
      %826 = vmatprep.subr.mxu0 0.0
      %827 = vmatpush1.msra.mxu0 0.0
      %828 = vmatprep.subr.mxu0 0.0
      %829 = vmatpush1.msra.mxu0 0.0
      %830 = vmatprep.subr.mxu0 0.0
      %831 = vmatpush1.msra.mxu0 0.0
      %832 = vmatprep.subr.mxu0 0.0
      %833 = vmatpush1.msra.mxu0 0.0
      %834 = vmatprep.subr.mxu0 0.0
      %835 = vmatpush1.msra.mxu0 0.0
      %836 = vmatprep.subr.mxu0 0.0
      %837 = vmatpush1.msra.mxu0 0.0
      %838 = vmatprep.subr.mxu0 0.0
      %839 = vmatpush1.msra.mxu0 0.0
      %840 = vmatprep.subr.mxu0 0.0
      %841 = vmatpush1.msra.mxu0 0.0
      %842 = vmatprep.mubr.f32.mxu0 0.0
      %843 = vmatmul.mubr.f32.gmra.mrb[0].mxu0 %v603
      %v844 = vpop.f32.mrb[0].mxu0
      %v845 = vadd.f32 %v594, %v844
      %v846 = vpop.f32.mrb[0].mxu0
      %v847 = vadd.f32 %v594, %v846
      %848 = vmatprep.mubr.f32.mxu0 0.0
      %849 = vmatmul.mubr.f32.gmra.mrb[0].mxu0 %v606
      %v850 = vpop.f32.mrb[0].mxu0
      %v851 = vadd.f32 %v599, %v850
      %v852 = vpop.f32.mrb[0].mxu0
      %v853 = vadd.f32 %v599, %v852
      %854 = vdwg.mxu0
      %855 = vmatprep.subr.mxu0 0.0
      %856 = vmatpush1.msra.mxu0 %v565
      %857 = vmatprep.subr.mxu0 0.0
      %858 = vmatpush1.msra.mxu0 %v572
      %859 = vmatprep.subr.mxu0 0.0
      %860 = vmatpush1.msra.mxu0 %v579
      %861 = vmatprep.subr.mxu0 0.0
      %862 = vmatpush1.msra.mxu0 %v586
      %863 = vmatprep.subr.mxu0 0.0
      %864 = vmatpush1.msra.mxu0 %v622
      %865 = vmatprep.subr.mxu0 0.0
      %866 = vmatpush1.msra.mxu0 0.0
      %867 = vmatprep.subr.mxu0 0.0
      %868 = vmatpush1.msra.mxu0 0.0
      %869 = vmatprep.subr.mxu0 0.0
      %870 = vmatpush1.msra.mxu0 0.0
      %871 = vmatprep.subr.mxu0 0.0
      %872 = vmatpush1.msra.mxu0 0.0
      %873 = vmatprep.subr.mxu0 0.0
      %874 = vmatpush1.msra.mxu0 0.0
      %875 = vmatprep.subr.mxu0 0.0
      %876 = vmatpush1.msra.mxu0 0.0
      %877 = vmatprep.subr.mxu0 0.0
      %878 = vmatpush1.msra.mxu0 0.0
      %879 = vmatprep.subr.mxu0 0.0
      %880 = vmatpush1.msra.mxu0 0.0
      %881 = vmatprep.subr.mxu0 0.0
      %882 = vmatpush1.msra.mxu0 0.0
      %883 = vmatprep.subr.mxu0 0.0
      %884 = vmatpush1.msra.mxu0 0.0
      %885 = vmatprep.subr.mxu0 0.0
      %886 = vmatpush1.msra.mxu0 0.0
      %887 = vmatprep.subr.mxu0 0.0
      %888 = vmatpush1.msra.mxu0 0.0
      %889 = vmatprep.subr.mxu0 0.0
      %890 = vmatpush1.msra.mxu0 0.0
      %891 = vmatprep.subr.mxu0 0.0
      %892 = vmatpush1.msra.mxu0 0.0
      %893 = vmatprep.subr.mxu0 0.0
      %894 = vmatpush1.msra.mxu0 0.0
      %895 = vmatprep.subr.mxu0 0.0
      %896 = vmatpush1.msra.mxu0 0.0
      %897 = vmatprep.subr.mxu0 0.0
      %898 = vmatpush1.msra.mxu0 0.0
      %899 = vmatprep.subr.mxu0 0.0
      %900 = vmatpush1.msra.mxu0 0.0
      %901 = vmatprep.subr.mxu0 0.0
      %902 = vmatpush1.msra.mxu0 0.0
      %903 = vmatprep.subr.mxu0 0.0
      %904 = vmatpush1.msra.mxu0 0.0
      %905 = vmatprep.subr.mxu0 0.0
      %906 = vmatpush1.msra.mxu0 0.0
      %907 = vmatprep.subr.mxu0 0.0
      %908 = vmatpush1.msra.mxu0 0.0
      %909 = vmatprep.subr.mxu0 0.0
      %910 = vmatpush1.msra.mxu0 0.0
      %911 = vmatprep.subr.mxu0 0.0
      %912 = vmatpush1.msra.mxu0 0.0
      %913 = vmatprep.subr.mxu0 0.0
      %914 = vmatpush1.msra.mxu0 0.0
      %915 = vmatprep.subr.mxu0 0.0
      %916 = vmatpush1.msra.mxu0 0.0
      %917 = vmatprep.subr.mxu0 0.0
      %918 = vmatpush1.msra.mxu0 0.0
      %919 = vmatprep.mubr.f32.mxu0 0.0
      %920 = vmatmul.mubr.f32.gmra.mrb[0].mxu0 %v603
      %v921 = vpop.f32.mrb[0].mxu0
      %v922 = vadd.f32 %v594, %v921
      %v923 = vpop.f32.mrb[0].mxu0
      %924 = vmatprep.mubr.f32.mxu0 0.0
      %925 = vmatmul.mubr.f32.gmra.mrb[0].mxu0 %v606
      %v926 = vpop.f32.mrb[0].mxu0
      %v927 = vadd.f32 %v599, %v926
      %v928 = vpop.f32.mrb[0].mxu0
      %929 = vdwg.mxu0
      %v930 = vpack.c.bf16 %v697, %v691
      %v931 = vpack.c.bf16 %v699, %v693
      %v932 = vpack.c.bf16 %v774, %v768
      %v933 = vpack.c.bf16 %v776, %v770
      %v934 = vpack.c.bf16 %v851, %v845
      %v935 = vpack.c.bf16 %v853, %v847
      %v936 = vpack.c.bf16 %v927, %v922
      %v944 = vunpack.c.l.b16 %v930
      %v945 = vunpack.c.l.b16 %v931
      %v946 = vunpack.c.l.b16 %v932
      %v947 = vunpack.c.l.b16 %v933
      %v948 = vunpack.c.l.b16 %v934
      %v949 = vunpack.c.l.b16 %v935
      %v950 = vunpack.c.l.b16 %v936
      %v951 = vunpack.c.h.b16 %v930
      %v952 = vunpack.c.h.b16 %v931
      %v953 = vunpack.c.h.b16 %v932
      %v954 = vunpack.c.h.b16 %v933
      %v955 = vunpack.c.h.b16 %v934
      %v956 = vunpack.c.h.b16 %v935
      %v957 = vunpack.c.h.b16 %v936
      %v958 = vpack.c.b16 %v945, %v944
      %v959 = vpack.c.b16 %v947, %v946
      %v960 = vpack.c.b16 %v949, %v948
      %v961 = vpack.c.b16 %v950, %v950
      %v962 = vpack.c.b16 %v952, %v951
      %v963 = vpack.c.b16 %v954, %v953
      %v964 = vpack.c.b16 %v956, %v955
      %v965 = vpack.c.b16 %v957, %v957
      %974 = vst [vmem:[%s170] sm:$0xff] %v958
      %975 = vst [vmem:[%s170 + $0x8] sm:$0xff] %v959
      %976 = vst [vmem:[%s170 + $0x10] sm:$0xff] %v960
      %vm977 = vcmask 781312
      %978 = vst.msk [vmem:[%s170 + $0x18] sm:$0xf] %vm977, %v961
      %979 = vst [vmem:[%s170 + $0x1c] sm:$0xff] %v962
      %980 = vst [vmem:[%s170 + $0x24] sm:$0xff] %v963
      %981 = vst [vmem:[%s170 + $0x2c] sm:$0xff] %v964
      %982 = vst.msk [vmem:[%s170 + $0x34] sm:$0xf] %vm977, %v965
      %p983 = scmp.lt.s32.totalorder %s14, 1
      %s984 = scalar_select %p983, %s14, 1
      %s985 = smul.addr %s984, 14
      %s986 = smul.addr %s985, 4
      %s987 = scalar_lea.vmem %s3, %s986
      // Predicated region
      $region33: #{memory_network_forward.3} parent=31 // pred_check
        %p988 = pneg %p100
      $region34: #{memory_network_forward.3} parent=31 // pred_check_branch
        %990 = sbr.rel (%p988) target = $region36
      $region35: #{memory_network_forward.3} parent=31 // pred_region
        _
      $region36: #{memory_network_forward.3} parent=31 // pred_fallthru
        _
    $region32: #{memory_network_forward.3} parent=5 // pred_fallthru
      _
    %p991 = scmp.le.s32.totalorder 2, %s9
    // Predicated region
    $region37: #{memory_network_forward.3} parent=5 // pred_check
      %p992 = pneg %p991
    $region38: #{memory_network_forward.3} parent=5 // pred_check_branch
      %994 = sbr.rel (%p992) target = $region40
    $region39: #{memory_network_forward.3} parent=5 // pred_region
      %s995 = ssub.s32 %s9, 2
      // Predicated region
      $region41: #{memory_network_forward.3} parent=39 // pred_check
        %p996 = pneg %p106
      $region42: #{memory_network_forward.3} parent=39 // pred_check_branch
        %998 = sbr.rel (%p996) target = $region44
      $region43: #{memory_network_forward.3} parent=39 // pred_region
        %p999 = scmp.lt.s32.totalorder %s15, 1
        %s1000 = scalar_select %p999, %s15, 1
        %s1001 = smul.addr %s1000, 14
        %s1002 = smul.addr %s1001, 4
        %s1003 = scalar_lea.vmem %s3, %s1002
      $region44: #{memory_network_forward.3} parent=39 // pred_fallthru
        _
    $region40: #{memory_network_forward.3} parent=5 // pred_fallthru
      _
  $region6: #{memory_network_forward.3} parent=0 // loop_footer
    %s13 = sadd.s32 1, %s9
  $region7: #{memory_network_forward.3} parent=0 // loop_footer_branch
    %8 = sbr.rel target = $region3
  $region8: #{memory_network_forward.3} parent=0 // loop_exit
    _

// kernel: memory_network_forward.5
$region0: #{memory_network_forward.5}
  #allocation0 [shape = 'u32[]', space=smem, size = 0x4, offset = 0x4, fixed_abs, tag = 'smem constant byte address 0x4 - core index']
  #allocation1 [shape = 'u32[144,128]{1,0:T(1,128)}', space=vmem, size = 0x12000, scoped, tag = 'internal scratch']
  %s0 = inlined_call_operand.vmem [shape: f32[12,4096], index: 0, kind: input, shape index: {}]
  %s1 = inlined_call_operand.vmem [shape: f32[4096,32], index: 1, kind: input, shape index: {}]
  %s2 = inlined_call_operand.vmem [shape: f32[1,32], index: 2, kind: input, shape index: {}]
  %s3 = inlined_call_operand.vmem [shape: f32[32,2], index: 3, kind: input, shape index: {}]
  %s4 = inlined_call_operand.vmem [shape: f32[1,2], index: 4, kind: input, shape index: {}]
  %s5 = inlined_call_operand.vmem [shape: f32[12,32], index: 5, kind: output, shape index: {0}]
  %s6 = inlined_call_operand.vmem [shape: f32[12,2], index: 6, kind: output, shape index: {1}]
  %7 = xla_tuple %s5, %s6
  %s8 = sld [smem:[#allocation0]]
  $region38: #{memory_network_forward.5} parent=0
    _
  %s10 = ssub.s32 1, %s8
  %s11 = scalar_select 0, %s10, %s8
  // Predicated region
  $region2: #{memory_network_forward.5} parent=0 // pred_check
    _
  $region3: #{memory_network_forward.5} parent=0 // pred_check_branch
    %13 = sbr.rel (0) target = $region5
  $region4: #{memory_network_forward.5} parent=0 // pred_region
    _
  $region5: #{memory_network_forward.5} parent=0 // pred_fallthru
    _
  // Predicated region
  $region6: #{memory_network_forward.5} parent=0 // pred_check
    _
  $region7: #{memory_network_forward.5} parent=0 // pred_check_branch
    %15 = sbr.rel (0) target = $region9
  $region8: #{memory_network_forward.5} parent=0 // pred_region
    _
  $region9: #{memory_network_forward.5} parent=0 // pred_fallthru
    _
  // Predicated region
  $region10: #{memory_network_forward.5} parent=0 // pred_check
    _
  $region11: #{memory_network_forward.5} parent=0 // pred_check_branch
    %17 = sbr.rel (0) target = $region13
  $region12: #{memory_network_forward.5} parent=0 // pred_region
    _
  $region13: #{memory_network_forward.5} parent=0 // pred_fallthru
    _
  // Predicated region
  $region14: #{memory_network_forward.5} parent=0 // pred_check
    _
  $region15: #{memory_network_forward.5} parent=0 // pred_check_branch
    %19 = sbr.rel (0) target = $region17
  $region16: #{memory_network_forward.5} parent=0 // pred_region
    _
  $region17: #{memory_network_forward.5} parent=0 // pred_fallthru
    _
  // Predicated region
  $region18: #{memory_network_forward.5} parent=0 // pred_check
    _
  $region19: #{memory_network_forward.5} parent=0 // pred_check_branch
    %21 = sbr.rel (0) target = $region21
  $region20: #{memory_network_forward.5} parent=0 // pred_region
    _
  $region21: #{memory_network_forward.5} parent=0 // pred_fallthru
    _
  %v22 = vld [vmem:[%s0] sm:$0xff]
  %v23 = vld [vmem:[%s0 + $0x8] sm:$0xff]
  %v24 = vld [vmem:[%s0 + $0x10] sm:$0xff]
  %v25 = vld [vmem:[%s0 + $0x18] sm:$0xff]
  %v26 = vld [vmem:[%s0 + $0x20] sm:$0xff]
  %v27 = vld [vmem:[%s0 + $0x28] sm:$0xff]
  %v28 = vld [vmem:[%s0 + $0x30] sm:$0xff]
  %v29 = vld [vmem:[%s0 + $0x38] sm:$0xff]
  %v30 = vld [vmem:[%s0 + $0x40] sm:$0xff]
  %v31 = vld [vmem:[%s0 + $0x48] sm:$0xff]
  %v32 = vld [vmem:[%s0 + $0x50] sm:$0xff]
  %v33 = vld [vmem:[%s0 + $0x58] sm:$0xff]
  %v34 = vld [vmem:[%s0 + $0x60] sm:$0xff]
  %v35 = vld [vmem:[%s0 + $0x68] sm:$0xff]
  %v36 = vld [vmem:[%s0 + $0x70] sm:$0xff]
  %v37 = vld [vmem:[%s0 + $0x78] sm:$0xff]
  %v38 = vld [vmem:[%s0 + $0x80] sm:$0xff]
  %v39 = vld [vmem:[%s0 + $0x88] sm:$0xff]
  %v40 = vld [vmem:[%s0 + $0x90] sm:$0xff]
  %v41 = vld [vmem:[%s0 + $0x98] sm:$0xff]
  %v42 = vld [vmem:[%s0 + $0xa0] sm:$0xff]
  %v43 = vld [vmem:[%s0 + $0xa8] sm:$0xff]
  %v44 = vld [vmem:[%s0 + $0xb0] sm:$0xff]
  %v45 = vld [vmem:[%s0 + $0xb8] sm:$0xff]
  %v46 = vld [vmem:[%s0 + $0xc0] sm:$0xff]
  %v47 = vld [vmem:[%s0 + $0xc8] sm:$0xff]
  %v48 = vld [vmem:[%s0 + $0xd0] sm:$0xff]
  %v49 = vld [vmem:[%s0 + $0xd8] sm:$0xff]
  %v50 = vld [vmem:[%s0 + $0xe0] sm:$0xff]
  %v51 = vld [vmem:[%s0 + $0xe8] sm:$0xff]
  %v52 = vld [vmem:[%s0 + $0xf0] sm:$0xff]
  %v53 = vld [vmem:[%s0 + $0xf8] sm:$0xff]
  %v54 = vld [vmem:[%s0 + $0x100] sm:$0xf]
  %v55 = vld [vmem:[%s0 + $0x108] sm:$0xf]
  %v56 = vld [vmem:[%s0 + $0x110] sm:$0xf]
  %v57 = vld [vmem:[%s0 + $0x118] sm:$0xf]
  %v58 = vld [vmem:[%s0 + $0x120] sm:$0xf]
  %v59 = vld [vmem:[%s0 + $0x128] sm:$0xf]
  %v60 = vld [vmem:[%s0 + $0x130] sm:$0xf]
  %v61 = vld [vmem:[%s0 + $0x138] sm:$0xf]
  %v62 = vld [vmem:[%s0 + $0x140] sm:$0xf]
  %v63 = vld [vmem:[%s0 + $0x148] sm:$0xf]
  %v64 = vld [vmem:[%s0 + $0x150] sm:$0xf]
  %v65 = vld [vmem:[%s0 + $0x158] sm:$0xf]
  %v66 = vld [vmem:[%s0 + $0x160] sm:$0xf]
  %v67 = vld [vmem:[%s0 + $0x168] sm:$0xf]
  %v68 = vld [vmem:[%s0 + $0x170] sm:$0xf]
  %v69 = vld [vmem:[%s0 + $0x178] sm:$0xf]
  %v70 = vld [vmem:[%s0 + $0x180] sm:$0xf]
  %v71 = vld [vmem:[%s0 + $0x188] sm:$0xf]
  %v72 = vld [vmem:[%s0 + $0x190] sm:$0xf]
  %v73 = vld [vmem:[%s0 + $0x198] sm:$0xf]
  %v74 = vld [vmem:[%s0 + $0x1a0] sm:$0xf]
  %v75 = vld [vmem:[%s0 + $0x1a8] sm:$0xf]
  %v76 = vld [vmem:[%s0 + $0x1b0] sm:$0xf]
  %v77 = vld [vmem:[%s0 + $0x1b8] sm:$0xf]
  %v78 = vld [vmem:[%s0 + $0x1c0] sm:$0xf]
  %v79 = vld [vmem:[%s0 + $0x1c8] sm:$0xf]
  %v80 = vld [vmem:[%s0 + $0x1d0] sm:$0xf]
  %v81 = vld [vmem:[%s0 + $0x1d8] sm:$0xf]
  %v82 = vld [vmem:[%s0 + $0x1e0] sm:$0xf]
  %v83 = vld [vmem:[%s0 + $0x1e8] sm:$0xf]
  %v84 = vld [vmem:[%s0 + $0x1f0] sm:$0xf]
  %v85 = vld [vmem:[%s0 + $0x1f8] sm:$0xf]
  %v86 = vld [vmem:[%s1] sm:$0xff]
  %v87 = vld [vmem:[%s1 + $0x8] sm:$0xff]
  %v88 = vld [vmem:[%s1 + $0x10] sm:$0xff]
  %v89 = vld [vmem:[%s1 + $0x18] sm:$0xff]
  %v90 = vld [vmem:[%s1 + $0x20] sm:$0xff]
  %v91 = vld [vmem:[%s1 + $0x28] sm:$0xff]
  %v92 = vld [vmem:[%s1 + $0x30] sm:$0xff]
  %v93 = vld [vmem:[%s1 + $0x38] sm:$0xff]
  %v94 = vld [vmem:[%s1 + $0x40] sm:$0xff]
  %v95 = vld [vmem:[%s1 + $0x48] sm:$0xff]
  %v96 = vld [vmem:[%s1 + $0x50] sm:$0xff]
  %v97 = vld [vmem:[%s1 + $0x58] sm:$0xff]
  %v98 = vld [vmem:[%s1 + $0x60] sm:$0xff]
  %v99 = vld [vmem:[%s1 + $0x68] sm:$0xff]
  %v100 = vld [vmem:[%s1 + $0x70] sm:$0xff]
  %v101 = vld [vmem:[%s1 + $0x78] sm:$0xff]
  %v102 = vld [vmem:[%s1 + $0x80] sm:$0xff]
  %v103 = vld [vmem:[%s1 + $0x88] sm:$0xff]
  %v104 = vld [vmem:[%s1 + $0x90] sm:$0xff]
  %v105 = vld [vmem:[%s1 + $0x98] sm:$0xff]
  %v106 = vld [vmem:[%s1 + $0xa0] sm:$0xff]
  %v107 = vld [vmem:[%s1 + $0xa8] sm:$0xff]
  %v108 = vld [vmem:[%s1 + $0xb0] sm:$0xff]
  %v109 = vld [vmem:[%s1 + $0xb8] sm:$0xff]
  %v110 = vld [vmem:[%s1 + $0xc0] sm:$0xff]
  %v111 = vld [vmem:[%s1 + $0xc8] sm:$0xff]
  %v112 = vld [vmem:[%s1 + $0xd0] sm:$0xff]
  %v113 = vld [vmem:[%s1 + $0xd8] sm:$0xff]
  %v114 = vld [vmem:[%s1 + $0xe0] sm:$0xff]
  %v115 = vld [vmem:[%s1 + $0xe8] sm:$0xff]
  %v116 = vld [vmem:[%s1 + $0xf0] sm:$0xff]
  %v117 = vld [vmem:[%s1 + $0xf8] sm:$0xff]
  %v118 = vld [vmem:[%s1 + $0x100] sm:$0xff]
  %v119 = vld [vmem:[%s1 + $0x108] sm:$0xff]
  %v120 = vld [vmem:[%s1 + $0x110] sm:$0xff]
  %v121 = vld [vmem:[%s1 + $0x118] sm:$0xff]
  %v122 = vld [vmem:[%s1 + $0x120] sm:$0xff]
  %v123 = vld [vmem:[%s1 + $0x128] sm:$0xff]
  %v124 = vld [vmem:[%s1 + $0x130] sm:$0xff]
  %v125 = vld [vmem:[%s1 + $0x138] sm:$0xff]
  %v126 = vld [vmem:[%s1 + $0x140] sm:$0xff]
  %v127 = vld [vmem:[%s1 + $0x148] sm:$0xff]
  %v128 = vld [vmem:[%s1 + $0x150] sm:$0xff]
  %v129 = vld [vmem:[%s1 + $0x158] sm:$0xff]
  %v130 = vld [vmem:[%s1 + $0x160] sm:$0xff]
  %v131 = vld [vmem:[%s1 + $0x168] sm:$0xff]
  %v132 = vld [vmem:[%s1 + $0x170] sm:$0xff]
  %v133 = vld [vmem:[%s1 + $0x178] sm:$0xff]
  %v134 = vld [vmem:[%s1 + $0x180] sm:$0xff]
  %v135 = vld [vmem:[%s1 + $0x188] sm:$0xff]
  %v136 = vld [vmem:[%s1 + $0x190] sm:$0xff]
  %v137 = vld [vmem:[%s1 + $0x198] sm:$0xff]
  %v138 = vld [vmem:[%s1 + $0x1a0] sm:$0xff]
  %v139 = vld [vmem:[%s1 + $0x1a8] sm:$0xff]
  %v140 = vld [vmem:[%s1 + $0x1b0] sm:$0xff]
  %v141 = vld [vmem:[%s1 + $0x1b8] sm:$0xff]
  %v142 = vld [vmem:[%s1 + $0x1c0] sm:$0xff]
  %v143 = vld [vmem:[%s1 + $0x1c8] sm:$0xff]
  %v144 = vld [vmem:[%s1 + $0x1d0] sm:$0xff]
  %v145 = vld [vmem:[%s1 + $0x1d8] sm:$0xff]
  %v146 = vld [vmem:[%s1 + $0x1e0] sm:$0xff]
  %v147 = vld [vmem:[%s1 + $0x1e8] sm:$0xff]
  %v148 = vld [vmem:[%s1 + $0x1f0] sm:$0xff]
  %v149 = vld [vmem:[%s1 + $0x1f8] sm:$0xff]
  %v150 = vld [vmem:[%s1 + $0x200] sm:$0xff]
  %v151 = vld [vmem:[%s1 + $0x208] sm:$0xff]
  %v152 = vld [vmem:[%s1 + $0x210] sm:$0xff]
  %v153 = vld [vmem:[%s1 + $0x218] sm:$0xff]
  %v154 = vld [vmem:[%s1 + $0x220] sm:$0xff]
  %v155 = vld [vmem:[%s1 + $0x228] sm:$0xff]
  %v156 = vld [vmem:[%s1 + $0x230] sm:$0xff]
  %v157 = vld [vmem:[%s1 + $0x238] sm:$0xff]
  %v158 = vld [vmem:[%s1 + $0x240] sm:$0xff]
  %v159 = vld [vmem:[%s1 + $0x248] sm:$0xff]
  %v160 = vld [vmem:[%s1 + $0x250] sm:$0xff]
  %v161 = vld [vmem:[%s1 + $0x258] sm:$0xff]
  %v162 = vld [vmem:[%s1 + $0x260] sm:$0xff]
  %v163 = vld [vmem:[%s1 + $0x268] sm:$0xff]
  %v164 = vld [vmem:[%s1 + $0x270] sm:$0xff]
  %v165 = vld [vmem:[%s1 + $0x278] sm:$0xff]
  %v166 = vld [vmem:[%s1 + $0x280] sm:$0xff]
  %v167 = vld [vmem:[%s1 + $0x288] sm:$0xff]
  %v168 = vld [vmem:[%s1 + $0x290] sm:$0xff]
  %v169 = vld [vmem:[%s1 + $0x298] sm:$0xff]
  %v170 = vld [vmem:[%s1 + $0x2a0] sm:$0xff]
  %v171 = vld [vmem:[%s1 + $0x2a8] sm:$0xff]
  %v172 = vld [vmem:[%s1 + $0x2b0] sm:$0xff]
  %v173 = vld [vmem:[%s1 + $0x2b8] sm:$0xff]
  %v174 = vld [vmem:[%s1 + $0x2c0] sm:$0xff]
  %v175 = vld [vmem:[%s1 + $0x2c8] sm:$0xff]
  %v176 = vld [vmem:[%s1 + $0x2d0] sm:$0xff]
  %v177 = vld [vmem:[%s1 + $0x2d8] sm:$0xff]
  %v178 = vld [vmem:[%s1 + $0x2e0] sm:$0xff]
  %v179 = vld [vmem:[%s1 + $0x2e8] sm:$0xff]
  %v180 = vld [vmem:[%s1 + $0x2f0] sm:$0xff]
  %v181 = vld [vmem:[%s1 + $0x2f8] sm:$0xff]
  %v182 = vld [vmem:[%s1 + $0x300] sm:$0xff]
  %v183 = vld [vmem:[%s1 + $0x308] sm:$0xff]
  %v184 = vld [vmem:[%s1 + $0x310] sm:$0xff]
  %v185 = vld [vmem:[%s1 + $0x318] sm:$0xff]
  %v186 = vld [vmem:[%s1 + $0x320] sm:$0xff]
  %v187 = vld [vmem:[%s1 + $0x328] sm:$0xff]
  %v188 = vld [vmem:[%s1 + $0x330] sm:$0xff]
  %v189 = vld [vmem:[%s1 + $0x338] sm:$0xff]
  %v190 = vld [vmem:[%s1 + $0x340] sm:$0xff]
  %v191 = vld [vmem:[%s1 + $0x348] sm:$0xff]
  %v192 = vld [vmem:[%s1 + $0x350] sm:$0xff]
  %v193 = vld [vmem:[%s1 + $0x358] sm:$0xff]
  %v194 = vld [vmem:[%s1 + $0x360] sm:$0xff]
  %v195 = vld [vmem:[%s1 + $0x368] sm:$0xff]
  %v196 = vld [vmem:[%s1 + $0x370] sm:$0xff]
  %v197 = vld [vmem:[%s1 + $0x378] sm:$0xff]
  %v198 = vld [vmem:[%s1 + $0x380] sm:$0xff]
  %v199 = vld [vmem:[%s1 + $0x388] sm:$0xff]
  %v200 = vld [vmem:[%s1 + $0x390] sm:$0xff]
  %v201 = vld [vmem:[%s1 + $0x398] sm:$0xff]
  %v202 = vld [vmem:[%s1 + $0x3a0] sm:$0xff]
  %v203 = vld [vmem:[%s1 + $0x3a8] sm:$0xff]
  %v204 = vld [vmem:[%s1 + $0x3b0] sm:$0xff]
  %v205 = vld [vmem:[%s1 + $0x3b8] sm:$0xff]
  %v206 = vld [vmem:[%s1 + $0x3c0] sm:$0xff]
  %v207 = vld [vmem:[%s1 + $0x3c8] sm:$0xff]
  %v208 = vld [vmem:[%s1 + $0x3d0] sm:$0xff]
  %v209 = vld [vmem:[%s1 + $0x3d8] sm:$0xff]
  %v210 = vld [vmem:[%s1 + $0x3e0] sm:$0xff]
  %v211 = vld [vmem:[%s1 + $0x3e8] sm:$0xff]
  %v212 = vld [vmem:[%s1 + $0x3f0] sm:$0xff]
  %v213 = vld [vmem:[%s1 + $0x3f8] sm:$0xff]
  %v214 = vld [vmem:[%s1 + $0x400] sm:$0xff]
  %v215 = vld [vmem:[%s1 + $0x408] sm:$0xff]
  %v216 = vld [vmem:[%s1 + $0x410] sm:$0xff]
  %v217 = vld [vmem:[%s1 + $0x418] sm:$0xff]
  %v218 = vld [vmem:[%s1 + $0x420] sm:$0xff]
  %v219 = vld [vmem:[%s1 + $0x428] sm:$0xff]
  %v220 = vld [vmem:[%s1 + $0x430] sm:$0xff]
  %v221 = vld [vmem:[%s1 + $0x438] sm:$0xff]
  %v222 = vld [vmem:[%s1 + $0x440] sm:$0xff]
  %v223 = vld [vmem:[%s1 + $0x448] sm:$0xff]
  %v224 = vld [vmem:[%s1 + $0x450] sm:$0xff]
  %v225 = vld [vmem:[%s1 + $0x458] sm:$0xff]
  %v226 = vld [vmem:[%s1 + $0x460] sm:$0xff]
  %v227 = vld [vmem:[%s1 + $0x468] sm:$0xff]
  %v228 = vld [vmem:[%s1 + $0x470] sm:$0xff]
  %v229 = vld [vmem:[%s1 + $0x478] sm:$0xff]
  %v230 = vld [vmem:[%s1 + $0x480] sm:$0xff]
  %v231 = vld [vmem:[%s1 + $0x488] sm:$0xff]
  %v232 = vld [vmem:[%s1 + $0x490] sm:$0xff]
  %v233 = vld [vmem:[%s1 + $0x498] sm:$0xff]
  %v234 = vld [vmem:[%s1 + $0x4a0] sm:$0xff]
  %v235 = vld [vmem:[%s1 + $0x4a8] sm:$0xff]
  %v236 = vld [vmem:[%s1 + $0x4b0] sm:$0xff]
  %v237 = vld [vmem:[%s1 + $0x4b8] sm:$0xff]
  %v238 = vld [vmem:[%s1 + $0x4c0] sm:$0xff]
  %v239 = vld [vmem:[%s1 + $0x4c8] sm:$0xff]
  %v240 = vld [vmem:[%s1 + $0x4d0] sm:$0xff]
  %v241 = vld [vmem:[%s1 + $0x4d8] sm:$0xff]
  %v242 = vld [vmem:[%s1 + $0x4e0] sm:$0xff]
  %v243 = vld [vmem:[%s1 + $0x4e8] sm:$0xff]
  %v244 = vld [vmem:[%s1 + $0x4f0] sm:$0xff]
  %v245 = vld [vmem:[%s1 + $0x4f8] sm:$0xff]
  %v246 = vld [vmem:[%s1 + $0x500] sm:$0xff]
  %v247 = vld [vmem:[%s1 + $0x508] sm:$0xff]
  %v248 = vld [vmem:[%s1 + $0x510] sm:$0xff]
  %v249 = vld [vmem:[%s1 + $0x518] sm:$0xff]
  %v250 = vld [vmem:[%s1 + $0x520] sm:$0xff]
  %v251 = vld [vmem:[%s1 + $0x528] sm:$0xff]
  %v252 = vld [vmem:[%s1 + $0x530] sm:$0xff]
  %v253 = vld [vmem:[%s1 + $0x538] sm:$0xff]
  %v254 = vld [vmem:[%s1 + $0x540] sm:$0xff]
  %v255 = vld [vmem:[%s1 + $0x548] sm:$0xff]
  %v256 = vld [vmem:[%s1 + $0x550] sm:$0xff]
  %v257 = vld [vmem:[%s1 + $0x558] sm:$0xff]
  %v258 = vld [vmem:[%s1 + $0x560] sm:$0xff]
  %v259 = vld [vmem:[%s1 + $0x568] sm:$0xff]
  %v260 = vld [vmem:[%s1 + $0x570] sm:$0xff]
  %v261 = vld [vmem:[%s1 + $0x578] sm:$0xff]
  %v262 = vld [vmem:[%s1 + $0x580] sm:$0xff]
  %v263 = vld [vmem:[%s1 + $0x588] sm:$0xff]
  %v264 = vld [vmem:[%s1 + $0x590] sm:$0xff]
  %v265 = vld [vmem:[%s1 + $0x598] sm:$0xff]
  %v266 = vld [vmem:[%s1 + $0x5a0] sm:$0xff]
  %v267 = vld [vmem:[%s1 + $0x5a8] sm:$0xff]
  %v268 = vld [vmem:[%s1 + $0x5b0] sm:$0xff]
  %v269 = vld [vmem:[%s1 + $0x5b8] sm:$0xff]
  %v270 = vld [vmem:[%s1 + $0x5c0] sm:$0xff]
  %v271 = vld [vmem:[%s1 + $0x5c8] sm:$0xff]
  %v272 = vld [vmem:[%s1 + $0x5d0] sm:$0xff]
  %v273 = vld [vmem:[%s1 + $0x5d8] sm:$0xff]
  %v274 = vld [vmem:[%s1 + $0x5e0] sm:$0xff]
  %v275 = vld [vmem:[%s1 + $0x5e8] sm:$0xff]
  %v276 = vld [vmem:[%s1 + $0x5f0] sm:$0xff]
  %v277 = vld [vmem:[%s1 + $0x5f8] sm:$0xff]
  %v278 = vld [vmem:[%s1 + $0x600] sm:$0xff]
  %v279 = vld [vmem:[%s1 + $0x608] sm:$0xff]
  %v280 = vld [vmem:[%s1 + $0x610] sm:$0xff]
  %v281 = vld [vmem:[%s1 + $0x618] sm:$0xff]
  %v282 = vld [vmem:[%s1 + $0x620] sm:$0xff]
  %v283 = vld [vmem:[%s1 + $0x628] sm:$0xff]
  %v284 = vld [vmem:[%s1 + $0x630] sm:$0xff]
  %v285 = vld [vmem:[%s1 + $0x638] sm:$0xff]
  %v286 = vld [vmem:[%s1 + $0x640] sm:$0xff]
  %v287 = vld [vmem:[%s1 + $0x648] sm:$0xff]
  %v288 = vld [vmem:[%s1 + $0x650] sm:$0xff]
  %v289 = vld [vmem:[%s1 + $0x658] sm:$0xff]
  %v290 = vld [vmem:[%s1 + $0x660] sm:$0xff]
  %v291 = vld [vmem:[%s1 + $0x668] sm:$0xff]
  %v292 = vld [vmem:[%s1 + $0x670] sm:$0xff]
  %v293 = vld [vmem:[%s1 + $0x678] sm:$0xff]
  %v294 = vld [vmem:[%s1 + $0x680] sm:$0xff]
  %v295 = vld [vmem:[%s1 + $0x688] sm:$0xff]
  %v296 = vld [vmem:[%s1 + $0x690] sm:$0xff]
  %v297 = vld [vmem:[%s1 + $0x698] sm:$0xff]
  %v298 = vld [vmem:[%s1 + $0x6a0] sm:$0xff]
  %v299 = vld [vmem:[%s1 + $0x6a8] sm:$0xff]
  %v300 = vld [vmem:[%s1 + $0x6b0] sm:$0xff]
  %v301 = vld [vmem:[%s1 + $0x6b8] sm:$0xff]
  %v302 = vld [vmem:[%s1 + $0x6c0] sm:$0xff]
  %v303 = vld [vmem:[%s1 + $0x6c8] sm:$0xff]
  %v304 = vld [vmem:[%s1 + $0x6d0] sm:$0xff]
  %v305 = vld [vmem:[%s1 + $0x6d8] sm:$0xff]
  %v306 = vld [vmem:[%s1 + $0x6e0] sm:$0xff]
  %v307 = vld [vmem:[%s1 + $0x6e8] sm:$0xff]
  %v308 = vld [vmem:[%s1 + $0x6f0] sm:$0xff]
  %v309 = vld [vmem:[%s1 + $0x6f8] sm:$0xff]
  %v310 = vld [vmem:[%s1 + $0x700] sm:$0xff]
  %v311 = vld [vmem:[%s1 + $0x708] sm:$0xff]
  %v312 = vld [vmem:[%s1 + $0x710] sm:$0xff]
  %v313 = vld [vmem:[%s1 + $0x718] sm:$0xff]
  %v314 = vld [vmem:[%s1 + $0x720] sm:$0xff]
  %v315 = vld [vmem:[%s1 + $0x728] sm:$0xff]
  %v316 = vld [vmem:[%s1 + $0x730] sm:$0xff]
  %v317 = vld [vmem:[%s1 + $0x738] sm:$0xff]
  %v318 = vld [vmem:[%s1 + $0x740] sm:$0xff]
  %v319 = vld [vmem:[%s1 + $0x748] sm:$0xff]
  %v320 = vld [vmem:[%s1 + $0x750] sm:$0xff]
  %v321 = vld [vmem:[%s1 + $0x758] sm:$0xff]
  %v322 = vld [vmem:[%s1 + $0x760] sm:$0xff]
  %v323 = vld [vmem:[%s1 + $0x768] sm:$0xff]
  %v324 = vld [vmem:[%s1 + $0x770] sm:$0xff]
  %v325 = vld [vmem:[%s1 + $0x778] sm:$0xff]
  %v326 = vld [vmem:[%s1 + $0x780] sm:$0xff]
  %v327 = vld [vmem:[%s1 + $0x788] sm:$0xff]
  %v328 = vld [vmem:[%s1 + $0x790] sm:$0xff]
  %v329 = vld [vmem:[%s1 + $0x798] sm:$0xff]
  %v330 = vld [vmem:[%s1 + $0x7a0] sm:$0xff]
  %v331 = vld [vmem:[%s1 + $0x7a8] sm:$0xff]
  %v332 = vld [vmem:[%s1 + $0x7b0] sm:$0xff]
  %v333 = vld [vmem:[%s1 + $0x7b8] sm:$0xff]
  %v334 = vld [vmem:[%s1 + $0x7c0] sm:$0xff]
  %v335 = vld [vmem:[%s1 + $0x7c8] sm:$0xff]
  %v336 = vld [vmem:[%s1 + $0x7d0] sm:$0xff]
  %v337 = vld [vmem:[%s1 + $0x7d8] sm:$0xff]
  %v338 = vld [vmem:[%s1 + $0x7e0] sm:$0xff]
  %v339 = vld [vmem:[%s1 + $0x7e8] sm:$0xff]
  %v340 = vld [vmem:[%s1 + $0x7f0] sm:$0xff]
  %v341 = vld [vmem:[%s1 + $0x7f8] sm:$0xff]
  %v342 = vld [vmem:[%s1 + $0x800] sm:$0xff]
  %v343 = vld [vmem:[%s1 + $0x808] sm:$0xff]
  %v344 = vld [vmem:[%s1 + $0x810] sm:$0xff]
  %v345 = vld [vmem:[%s1 + $0x818] sm:$0xff]
  %v346 = vld [vmem:[%s1 + $0x820] sm:$0xff]
  %v347 = vld [vmem:[%s1 + $0x828] sm:$0xff]
  %v348 = vld [vmem:[%s1 + $0x830] sm:$0xff]
  %v349 = vld [vmem:[%s1 + $0x838] sm:$0xff]
  %v350 = vld [vmem:[%s1 + $0x840] sm:$0xff]
  %v351 = vld [vmem:[%s1 + $0x848] sm:$0xff]
  %v352 = vld [vmem:[%s1 + $0x850] sm:$0xff]
  %v353 = vld [vmem:[%s1 + $0x858] sm:$0xff]
  %v354 = vld [vmem:[%s1 + $0x860] sm:$0xff]
  %v355 = vld [vmem:[%s1 + $0x868] sm:$0xff]
  %v356 = vld [vmem:[%s1 + $0x870] sm:$0xff]
  %v357 = vld [vmem:[%s1 + $0x878] sm:$0xff]
  %v358 = vld [vmem:[%s1 + $0x880] sm:$0xff]
  %v359 = vld [vmem:[%s1 + $0x888] sm:$0xff]
  %v360 = vld [vmem:[%s1 + $0x890] sm:$0xff]
  %v361 = vld [vmem:[%s1 + $0x898] sm:$0xff]
  %v362 = vld [vmem:[%s1 + $0x8a0] sm:$0xff]
  %v363 = vld [vmem:[%s1 + $0x8a8] sm:$0xff]
  %v364 = vld [vmem:[%s1 + $0x8b0] sm:$0xff]
  %v365 = vld [vmem:[%s1 + $0x8b8] sm:$0xff]
  %v366 = vld [vmem:[%s1 + $0x8c0] sm:$0xff]
  %v367 = vld [vmem:[%s1 + $0x8c8] sm:$0xff]
  %v368 = vld [vmem:[%s1 + $0x8d0] sm:$0xff]
  %v369 = vld [vmem:[%s1 + $0x8d8] sm:$0xff]
  %v370 = vld [vmem:[%s1 + $0x8e0] sm:$0xff]
  %v371 = vld [vmem:[%s1 + $0x8e8] sm:$0xff]
  %v372 = vld [vmem:[%s1 + $0x8f0] sm:$0xff]
  %v373 = vld [vmem:[%s1 + $0x8f8] sm:$0xff]
  %v374 = vld [vmem:[%s1 + $0x900] sm:$0xff]
  %v375 = vld [vmem:[%s1 + $0x908] sm:$0xff]
  %v376 = vld [vmem:[%s1 + $0x910] sm:$0xff]
  %v377 = vld [vmem:[%s1 + $0x918] sm:$0xff]
  %v378 = vld [vmem:[%s1 + $0x920] sm:$0xff]
  %v379 = vld [vmem:[%s1 + $0x928] sm:$0xff]
  %v380 = vld [vmem:[%s1 + $0x930] sm:$0xff]
  %v381 = vld [vmem:[%s1 + $0x938] sm:$0xff]
  %v382 = vld [vmem:[%s1 + $0x940] sm:$0xff]
  %v383 = vld [vmem:[%s1 + $0x948] sm:$0xff]
  %v384 = vld [vmem:[%s1 + $0x950] sm:$0xff]
  %v385 = vld [vmem:[%s1 + $0x958] sm:$0xff]
  %v386 = vld [vmem:[%s1 + $0x960] sm:$0xff]
  %v387 = vld [vmem:[%s1 + $0x968] sm:$0xff]
  %v388 = vld [vmem:[%s1 + $0x970] sm:$0xff]
  %v389 = vld [vmem:[%s1 + $0x978] sm:$0xff]
  %v390 = vld [vmem:[%s1 + $0x980] sm:$0xff]
  %v391 = vld [vmem:[%s1 + $0x988] sm:$0xff]
  %v392 = vld [vmem:[%s1 + $0x990] sm:$0xff]
  %v393 = vld [vmem:[%s1 + $0x998] sm:$0xff]
  %v394 = vld [vmem:[%s1 + $0x9a0] sm:$0xff]
  %v395 = vld [vmem:[%s1 + $0x9a8] sm:$0xff]
  %v396 = vld [vmem:[%s1 + $0x9b0] sm:$0xff]
  %v397 = vld [vmem:[%s1 + $0x9b8] sm:$0xff]
  %v398 = vld [vmem:[%s1 + $0x9c0] sm:$0xff]
  %v399 = vld [vmem:[%s1 + $0x9c8] sm:$0xff]
  %v400 = vld [vmem:[%s1 + $0x9d0] sm:$0xff]
  %v401 = vld [vmem:[%s1 + $0x9d8] sm:$0xff]
  %v402 = vld [vmem:[%s1 + $0x9e0] sm:$0xff]
  %v403 = vld [vmem:[%s1 + $0x9e8] sm:$0xff]
  %v404 = vld [vmem:[%s1 + $0x9f0] sm:$0xff]
  %v405 = vld [vmem:[%s1 + $0x9f8] sm:$0xff]
  %v406 = vld [vmem:[%s1 + $0xa00] sm:$0xff]
  %v407 = vld [vmem:[%s1 + $0xa08] sm:$0xff]
  %v408 = vld [vmem:[%s1 + $0xa10] sm:$0xff]
  %v409 = vld [vmem:[%s1 + $0xa18] sm:$0xff]
  %v410 = vld [vmem:[%s1 + $0xa20] sm:$0xff]
  %v411 = vld [vmem:[%s1 + $0xa28] sm:$0xff]
  %v412 = vld [vmem:[%s1 + $0xa30] sm:$0xff]
  %v413 = vld [vmem:[%s1 + $0xa38] sm:$0xff]
  %v414 = vld [vmem:[%s1 + $0xa40] sm:$0xff]
  %v415 = vld [vmem:[%s1 + $0xa48] sm:$0xff]
  %v416 = vld [vmem:[%s1 + $0xa50] sm:$0xff]
  %v417 = vld [vmem:[%s1 + $0xa58] sm:$0xff]
  %v418 = vld [vmem:[%s1 + $0xa60] sm:$0xff]
  %v419 = vld [vmem:[%s1 + $0xa68] sm:$0xff]
  %v420 = vld [vmem:[%s1 + $0xa70] sm:$0xff]
  %v421 = vld [vmem:[%s1 + $0xa78] sm:$0xff]
  %v422 = vld [vmem:[%s1 + $0xa80] sm:$0xff]
  %v423 = vld [vmem:[%s1 + $0xa88] sm:$0xff]
  %v424 = vld [vmem:[%s1 + $0xa90] sm:$0xff]
  %v425 = vld [vmem:[%s1 + $0xa98] sm:$0xff]
  %v426 = vld [vmem:[%s1 + $0xaa0] sm:$0xff]
  %v427 = vld [vmem:[%s1 + $0xaa8] sm:$0xff]
  %v428 = vld [vmem:[%s1 + $0xab0] sm:$0xff]
  %v429 = vld [vmem:[%s1 + $0xab8] sm:$0xff]
  %v430 = vld [vmem:[%s1 + $0xac0] sm:$0xff]
  %v431 = vld [vmem:[%s1 + $0xac8] sm:$0xff]
  %v432 = vld [vmem:[%s1 + $0xad0] sm:$0xff]
  %v433 = vld [vmem:[%s1 + $0xad8] sm:$0xff]
  %v434 = vld [vmem:[%s1 + $0xae0] sm:$0xff]
  %v435 = vld [vmem:[%s1 + $0xae8] sm:$0xff]
  %v436 = vld [vmem:[%s1 + $0xaf0] sm:$0xff]
  %v437 = vld [vmem:[%s1 + $0xaf8] sm:$0xff]
  %v438 = vld [vmem:[%s1 + $0xb00] sm:$0xff]
  %v439 = vld [vmem:[%s1 + $0xb08] sm:$0xff]
  %v440 = vld [vmem:[%s1 + $0xb10] sm:$0xff]
  %v441 = vld [vmem:[%s1 + $0xb18] sm:$0xff]
  %v442 = vld [vmem:[%s1 + $0xb20] sm:$0xff]
  %v443 = vld [vmem:[%s1 + $0xb28] sm:$0xff]
  %v444 = vld [vmem:[%s1 + $0xb30] sm:$0xff]
  %v445 = vld [vmem:[%s1 + $0xb38] sm:$0xff]
  %v446 = vld [vmem:[%s1 + $0xb40] sm:$0xff]
  %v447 = vld [vmem:[%s1 + $0xb48] sm:$0xff]
  %v448 = vld [vmem:[%s1 + $0xb50] sm:$0xff]
  %v449 = vld [vmem:[%s1 + $0xb58] sm:$0xff]
  %v450 = vld [vmem:[%s1 + $0xb60] sm:$0xff]
  %v451 = vld [vmem:[%s1 + $0xb68] sm:$0xff]
  %v452 = vld [vmem:[%s1 + $0xb70] sm:$0xff]
  %v453 = vld [vmem:[%s1 + $0xb78] sm:$0xff]
  %v454 = vld [vmem:[%s1 + $0xb80] sm:$0xff]
  %v455 = vld [vmem:[%s1 + $0xb88] sm:$0xff]
  %v456 = vld [vmem:[%s1 + $0xb90] sm:$0xff]
  %v457 = vld [vmem:[%s1 + $0xb98] sm:$0xff]
  %v458 = vld [vmem:[%s1 + $0xba0] sm:$0xff]
  %v459 = vld [vmem:[%s1 + $0xba8] sm:$0xff]
  %v460 = vld [vmem:[%s1 + $0xbb0] sm:$0xff]
  %v461 = vld [vmem:[%s1 + $0xbb8] sm:$0xff]
  %v462 = vld [vmem:[%s1 + $0xbc0] sm:$0xff]
  %v463 = vld [vmem:[%s1 + $0xbc8] sm:$0xff]
  %v464 = vld [vmem:[%s1 + $0xbd0] sm:$0xff]
  %v465 = vld [vmem:[%s1 + $0xbd8] sm:$0xff]
  %v466 = vld [vmem:[%s1 + $0xbe0] sm:$0xff]
  %v467 = vld [vmem:[%s1 + $0xbe8] sm:$0xff]
  %v468 = vld [vmem:[%s1 + $0xbf0] sm:$0xff]
  %v469 = vld [vmem:[%s1 + $0xbf8] sm:$0xff]
  %v470 = vld [vmem:[%s1 + $0xc00] sm:$0xff]
  %v471 = vld [vmem:[%s1 + $0xc08] sm:$0xff]
  %v472 = vld [vmem:[%s1 + $0xc10] sm:$0xff]
  %v473 = vld [vmem:[%s1 + $0xc18] sm:$0xff]
  %v474 = vld [vmem:[%s1 + $0xc20] sm:$0xff]
  %v475 = vld [vmem:[%s1 + $0xc28] sm:$0xff]
  %v476 = vld [vmem:[%s1 + $0xc30] sm:$0xff]
  %v477 = vld [vmem:[%s1 + $0xc38] sm:$0xff]
  %v478 = vld [vmem:[%s1 + $0xc40] sm:$0xff]
  %v479 = vld [vmem:[%s1 + $0xc48] sm:$0xff]
  %v480 = vld [vmem:[%s1 + $0xc50] sm:$0xff]
  %v481 = vld [vmem:[%s1 + $0xc58] sm:$0xff]
  %v482 = vld [vmem:[%s1 + $0xc60] sm:$0xff]
  %v483 = vld [vmem:[%s1 + $0xc68] sm:$0xff]
  %v484 = vld [vmem:[%s1 + $0xc70] sm:$0xff]
  %v485 = vld [vmem:[%s1 + $0xc78] sm:$0xff]
  %v486 = vld [vmem:[%s1 + $0xc80] sm:$0xff]
  %v487 = vld [vmem:[%s1 + $0xc88] sm:$0xff]
  %v488 = vld [vmem:[%s1 + $0xc90] sm:$0xff]
  %v489 = vld [vmem:[%s1 + $0xc98] sm:$0xff]
  %v490 = vld [vmem:[%s1 + $0xca0] sm:$0xff]
  %v491 = vld [vmem:[%s1 + $0xca8] sm:$0xff]
  %v492 = vld [vmem:[%s1 + $0xcb0] sm:$0xff]
  %v493 = vld [vmem:[%s1 + $0xcb8] sm:$0xff]
  %v494 = vld [vmem:[%s1 + $0xcc0] sm:$0xff]
  %v495 = vld [vmem:[%s1 + $0xcc8] sm:$0xff]
  %v496 = vld [vmem:[%s1 + $0xcd0] sm:$0xff]
  %v497 = vld [vmem:[%s1 + $0xcd8] sm:$0xff]
  %v498 = vld [vmem:[%s1 + $0xce0] sm:$0xff]
  %v499 = vld [vmem:[%s1 + $0xce8] sm:$0xff]
  %v500 = vld [vmem:[%s1 + $0xcf0] sm:$0xff]
  %v501 = vld [vmem:[%s1 + $0xcf8] sm:$0xff]
  %v502 = vld [vmem:[%s1 + $0xd00] sm:$0xff]
  %v503 = vld [vmem:[%s1 + $0xd08] sm:$0xff]
  %v504 = vld [vmem:[%s1 + $0xd10] sm:$0xff]
  %v505 = vld [vmem:[%s1 + $0xd18] sm:$0xff]
  %v506 = vld [vmem:[%s1 + $0xd20] sm:$0xff]
  %v507 = vld [vmem:[%s1 + $0xd28] sm:$0xff]
  %v508 = vld [vmem:[%s1 + $0xd30] sm:$0xff]
  %v509 = vld [vmem:[%s1 + $0xd38] sm:$0xff]
  %v510 = vld [vmem:[%s1 + $0xd40] sm:$0xff]
  %v511 = vld [vmem:[%s1 + $0xd48] sm:$0xff]
  %v512 = vld [vmem:[%s1 + $0xd50] sm:$0xff]
  %v513 = vld [vmem:[%s1 + $0xd58] sm:$0xff]
  %v514 = vld [vmem:[%s1 + $0xd60] sm:$0xff]
  %v515 = vld [vmem:[%s1 + $0xd68] sm:$0xff]
  %v516 = vld [vmem:[%s1 + $0xd70] sm:$0xff]
  %v517 = vld [vmem:[%s1 + $0xd78] sm:$0xff]
  %v518 = vld [vmem:[%s1 + $0xd80] sm:$0xff]
  %v519 = vld [vmem:[%s1 + $0xd88] sm:$0xff]
  %v520 = vld [vmem:[%s1 + $0xd90] sm:$0xff]
  %v521 = vld [vmem:[%s1 + $0xd98] sm:$0xff]
  %v522 = vld [vmem:[%s1 + $0xda0] sm:$0xff]
  %v523 = vld [vmem:[%s1 + $0xda8] sm:$0xff]
  %v524 = vld [vmem:[%s1 + $0xdb0] sm:$0xff]
  %v525 = vld [vmem:[%s1 + $0xdb8] sm:$0xff]
  %v526 = vld [vmem:[%s1 + $0xdc0] sm:$0xff]
  %v527 = vld [vmem:[%s1 + $0xdc8] sm:$0xff]
  %v528 = vld [vmem:[%s1 + $0xdd0] sm:$0xff]
  %v529 = vld [vmem:[%s1 + $0xdd8] sm:$0xff]
  %v530 = vld [vmem:[%s1 + $0xde0] sm:$0xff]
  %v531 = vld [vmem:[%s1 + $0xde8] sm:$0xff]
  %v532 = vld [vmem:[%s1 + $0xdf0] sm:$0xff]
  %v533 = vld [vmem:[%s1 + $0xdf8] sm:$0xff]
  %v534 = vld [vmem:[%s1 + $0xe00] sm:$0xff]
  %v535 = vld [vmem:[%s1 + $0xe08] sm:$0xff]
  %v536 = vld [vmem:[%s1 + $0xe10] sm:$0xff]
  %v537 = vld [vmem:[%s1 + $0xe18] sm:$0xff]
  %v538 = vld [vmem:[%s1 + $0xe20] sm:$0xff]
  %v539 = vld [vmem:[%s1 + $0xe28] sm:$0xff]
  %v540 = vld [vmem:[%s1 + $0xe30] sm:$0xff]
  %v541 = vld [vmem:[%s1 + $0xe38] sm:$0xff]
  %v542 = vld [vmem:[%s1 + $0xe40] sm:$0xff]
  %v543 = vld [vmem:[%s1 + $0xe48] sm:$0xff]
  %v544 = vld [vmem:[%s1 + $0xe50] sm:$0xff]
  %v545 = vld [vmem:[%s1 + $0xe58] sm:$0xff]
  %v546 = vld [vmem:[%s1 + $0xe60] sm:$0xff]
  %v547 = vld [vmem:[%s1 + $0xe68] sm:$0xff]
  %v548 = vld [vmem:[%s1 + $0xe70] sm:$0xff]
  %v549 = vld [vmem:[%s1 + $0xe78] sm:$0xff]
  %v550 = vld [vmem:[%s1 + $0xe80] sm:$0xff]
  %v551 = vld [vmem:[%s1 + $0xe88] sm:$0xff]
  %v552 = vld [vmem:[%s1 + $0xe90] sm:$0xff]
  %v553 = vld [vmem:[%s1 + $0xe98] sm:$0xff]
  %v554 = vld [vmem:[%s1 + $0xea0] sm:$0xff]
  %v555 = vld [vmem:[%s1 + $0xea8] sm:$0xff]
  %v556 = vld [vmem:[%s1 + $0xeb0] sm:$0xff]
  %v557 = vld [vmem:[%s1 + $0xeb8] sm:$0xff]
  %v558 = vld [vmem:[%s1 + $0xec0] sm:$0xff]
  %v559 = vld [vmem:[%s1 + $0xec8] sm:$0xff]
  %v560 = vld [vmem:[%s1 + $0xed0] sm:$0xff]
  %v561 = vld [vmem:[%s1 + $0xed8] sm:$0xff]
  %v562 = vld [vmem:[%s1 + $0xee0] sm:$0xff]
  %v563 = vld [vmem:[%s1 + $0xee8] sm:$0xff]
  %v564 = vld [vmem:[%s1 + $0xef0] sm:$0xff]
  %v565 = vld [vmem:[%s1 + $0xef8] sm:$0xff]
  %v566 = vld [vmem:[%s1 + $0xf00] sm:$0xff]
  %v567 = vld [vmem:[%s1 + $0xf08] sm:$0xff]
  %v568 = vld [vmem:[%s1 + $0xf10] sm:$0xff]
  %v569 = vld [vmem:[%s1 + $0xf18] sm:$0xff]
  %v570 = vld [vmem:[%s1 + $0xf20] sm:$0xff]
  %v571 = vld [vmem:[%s1 + $0xf28] sm:$0xff]
  %v572 = vld [vmem:[%s1 + $0xf30] sm:$0xff]
  %v573 = vld [vmem:[%s1 + $0xf38] sm:$0xff]
  %v574 = vld [vmem:[%s1 + $0xf40] sm:$0xff]
  %v575 = vld [vmem:[%s1 + $0xf48] sm:$0xff]
  %v576 = vld [vmem:[%s1 + $0xf50] sm:$0xff]
  %v577 = vld [vmem:[%s1 + $0xf58] sm:$0xff]
  %v578 = vld [vmem:[%s1 + $0xf60] sm:$0xff]
  %v579 = vld [vmem:[%s1 + $0xf68] sm:$0xff]
  %v580 = vld [vmem:[%s1 + $0xf70] sm:$0xff]
  %v581 = vld [vmem:[%s1 + $0xf78] sm:$0xff]
  %v582 = vld [vmem:[%s1 + $0xf80] sm:$0xff]
  %v583 = vld [vmem:[%s1 + $0xf88] sm:$0xff]
  %v584 = vld [vmem:[%s1 + $0xf90] sm:$0xff]
  %v585 = vld [vmem:[%s1 + $0xf98] sm:$0xff]
  %v586 = vld [vmem:[%s1 + $0xfa0] sm:$0xff]
  %v587 = vld [vmem:[%s1 + $0xfa8] sm:$0xff]
  %v588 = vld [vmem:[%s1 + $0xfb0] sm:$0xff]
  %v589 = vld [vmem:[%s1 + $0xfb8] sm:$0xff]
  %v590 = vld [vmem:[%s1 + $0xfc0] sm:$0xff]
  %v591 = vld [vmem:[%s1 + $0xfc8] sm:$0xff]
  %v592 = vld [vmem:[%s1 + $0xfd0] sm:$0xff]
  %v593 = vld [vmem:[%s1 + $0xfd8] sm:$0xff]
  %v594 = vld [vmem:[%s1 + $0xfe0] sm:$0xff]
  %v595 = vld [vmem:[%s1 + $0xfe8] sm:$0xff]
  %v596 = vld [vmem:[%s1 + $0xff0] sm:$0xff]
  %v597 = vld [vmem:[%s1 + $0xff8] sm:$0xff]
  %v598 = vld [vmem:[%s2] sm:$0x1]
  %v600 = vlaneseq
  %v601 = vshrl.u32 %v600, 7
  %v602 = vsub.s32 0, %v601
  %v603 = vrot.slane %v598, %v602
  %605 = vmatprep.subr.mxu0 0.0
  %606 = vmatpush1.msra.mxu0 %v86
  %607 = vmatprep.subr.mxu0 0.0
  %608 = vmatpush1.msra.mxu0 %v87
  %609 = vmatprep.subr.mxu0 0.0
  %610 = vmatpush1.msra.mxu0 %v88
  %611 = vmatprep.subr.mxu0 0.0
  %612 = vmatpush1.msra.mxu0 %v89
  %613 = vmatprep.subr.mxu0 0.0
  %614 = vmatpush1.msra.mxu0 %v90
  %615 = vmatprep.subr.mxu0 0.0
  %616 = vmatpush1.msra.mxu0 %v91
  %617 = vmatprep.subr.mxu0 0.0
  %618 = vmatpush1.msra.mxu0 %v92
  %619 = vmatprep.subr.mxu0 0.0
  %620 = vmatpush1.msra.mxu0 %v93
  %621 = vmatprep.subr.mxu0 0.0
  %622 = vmatpush1.msra.mxu0 %v94
  %623 = vmatprep.subr.mxu0 0.0
  %624 = vmatpush1.msra.mxu0 %v95
  %625 = vmatprep.subr.mxu0 0.0
  %626 = vmatpush1.msra.mxu0 %v96
  %627 = vmatprep.subr.mxu0 0.0
  %628 = vmatpush1.msra.mxu0 %v97
  %629 = vmatprep.subr.mxu0 0.0
  %630 = vmatpush1.msra.mxu0 %v98
  %631 = vmatprep.subr.mxu0 0.0
  %632 = vmatpush1.msra.mxu0 %v99
  %633 = vmatprep.subr.mxu0 0.0
  %634 = vmatpush1.msra.mxu0 %v100
  %635 = vmatprep.subr.mxu0 0.0
  %636 = vmatpush1.msra.mxu0 %v101
  %637 = vmatprep.subr.mxu0 0.0
  %638 = vmatpush1.msra.mxu0 %v102
  %639 = vmatprep.subr.mxu0 0.0
  %640 = vmatpush1.msra.mxu0 %v103
  %641 = vmatprep.subr.mxu0 0.0
  %642 = vmatpush1.msra.mxu0 %v104
  %643 = vmatprep.subr.mxu0 0.0
  %644 = vmatpush1.msra.mxu0 %v105
  %645 = vmatprep.subr.mxu0 0.0
  %646 = vmatpush1.msra.mxu0 %v106
  %647 = vmatprep.subr.mxu0 0.0
  %648 = vmatpush1.msra.mxu0 %v107
  %649 = vmatprep.subr.mxu0 0.0
  %650 = vmatpush1.msra.mxu0 %v108
  %651 = vmatprep.subr.mxu0 0.0
  %652 = vmatpush1.msra.mxu0 %v109
  %653 = vmatprep.subr.mxu0 0.0
  %654 = vmatpush1.msra.mxu0 %v110
  %655 = vmatprep.subr.mxu0 0.0
  %656 = vmatpush1.msra.mxu0 %v111
  %657 = vmatprep.subr.mxu0 0.0
  %658 = vmatpush1.msra.mxu0 %v112
  %659 = vmatprep.subr.mxu0 0.0
  %660 = vmatpush1.msra.mxu0 %v113
  %661 = vmatprep.subr.mxu0 0.0
  %662 = vmatpush1.msra.mxu0 %v114
  %663 = vmatprep.subr.mxu0 0.0
  %664 = vmatpush1.msra.mxu0 %v115
  %665 = vmatprep.subr.mxu0 0.0
  %666 = vmatpush1.msra.mxu0 %v116
  %667 = vmatprep.subr.mxu0 0.0
  %668 = vmatpush1.msra.mxu0 %v117
  %669 = vmatprep.mubr.f32.mxu0 %v23
  %670 = vmatmul.mubr.f32.gmra.mrb[0].mxu0 %v22
  %v671 = vpop.f32.mrb[0].mxu0
  %v672 = vadd.f32 %v603, %v671
  %v673 = vpop.f32.mrb[0].mxu0
  %674 = vmatprep.mubr.f32.mxu0 %v55
  %675 = vmatmul.mubr.f32.gmra.mrb[0].mxu0 %v54
  %v676 = vpop.f32.mrb[0].mxu0
  %v677 = vadd.f32 %v603, %v676
  %v678 = vpop.f32.mrb[0].mxu0
  %679 = vdwg.mxu0
  %680 = vmatprep.subr.mxu0 0.0
  %681 = vmatpush1.msra.mxu0 %v118
  %682 = vmatprep.subr.mxu0 0.0
  %683 = vmatpush1.msra.mxu0 %v119
  %684 = vmatprep.subr.mxu0 0.0
  %685 = vmatpush1.msra.mxu0 %v120
  %686 = vmatprep.subr.mxu0 0.0
  %687 = vmatpush1.msra.mxu0 %v121
  %688 = vmatprep.subr.mxu0 0.0
  %689 = vmatpush1.msra.mxu0 %v122
  %690 = vmatprep.subr.mxu0 0.0
  %691 = vmatpush1.msra.mxu0 %v123
  %692 = vmatprep.subr.mxu0 0.0
  %693 = vmatpush1.msra.mxu0 %v124
  %694 = vmatprep.subr.mxu0 0.0
  %695 = vmatpush1.msra.mxu0 %v125
  %696 = vmatprep.subr.mxu0 0.0
  %697 = vmatpush1.msra.mxu0 %v126
  %698 = vmatprep.subr.mxu0 0.0
  %699 = vmatpush1.msra.mxu0 %v127
  %700 = vmatprep.subr.mxu0 0.0
  %701 = vmatpush1.msra.mxu0 %v128
  %702 = vmatprep.subr.mxu0 0.0
  %703 = vmatpush1.msra.mxu0 %v129
  %704 = vmatprep.subr.mxu0 0.0
  %705 = vmatpush1.msra.mxu0 %v130
  %706 = vmatprep.subr.mxu0 0.0
  %707 = vmatpush1.msra.mxu0 %v131
  %708 = vmatprep.subr.mxu0 0.0
  %709 = vmatpush1.msra.mxu0 %v132
  %710 = vmatprep.subr.mxu0 0.0
  %711 = vmatpush1.msra.mxu0 %v133
  %712 = vmatprep.subr.mxu0 0.0
  %713 = vmatpush1.msra.mxu0 %v134
  %714 = vmatprep.subr.mxu0 0.0
  %715 = vmatpush1.msra.mxu0 %v135
  %716 = vmatprep.subr.mxu0 0.0
  %717 = vmatpush1.msra.mxu0 %v136
  %718 = vmatprep.subr.mxu0 0.0
  %719 = vmatpush1.msra.mxu0 %v137
  %720 = vmatprep.subr.mxu0 0.0
  %721 = vmatpush1.msra.mxu0 %v138
  %722 = vmatprep.subr.mxu0 0.0
  %723 = vmatpush1.msra.mxu0 %v139
  %724 = vmatprep.subr.mxu0 0.0
  %725 = vmatpush1.msra.mxu0 %v140
  %726 = vmatprep.subr.mxu0 0.0
  %727 = vmatpush1.msra.mxu0 %v141
  %728 = vmatprep.subr.mxu0 0.0
  %729 = vmatpush1.msra.mxu0 %v142
  %730 = vmatprep.subr.mxu0 0.0
  %731 = vmatpush1.msra.mxu0 %v143
  %732 = vmatprep.subr.mxu0 0.0
  %733 = vmatpush1.msra.mxu0 %v144
  %734 = vmatprep.subr.mxu0 0.0
  %735 = vmatpush1.msra.mxu0 %v145
  %736 = vmatprep.subr.mxu0 0.0
  %737 = vmatpush1.msra.mxu0 %v146
  %738 = vmatprep.subr.mxu0 0.0
  %739 = vmatpush1.msra.mxu0 %v147
  %740 = vmatprep.subr.mxu0 0.0
  %741 = vmatpush1.msra.mxu0 %v148
  %742 = vmatprep.subr.mxu0 0.0
  %743 = vmatpush1.msra.mxu0 %v149
  %744 = vmatprep.mubr.f32.mxu0 %v25
  %745 = vmatmul.mubr.f32.gmra.mrb[0].mxu0 %v24
  %v746 = vpop.f32.mrb[0].mxu0
  %v747 = vadd.f32 %v672, %v746
  %v748 = vpop.f32.mrb[0].mxu0
  %749 = vmatprep.mubr.f32.mxu0 %v57
  %750 = vmatmul.mubr.f32.gmra.mrb[0].mxu0 %v56
  %v751 = vpop.f32.mrb[0].mxu0
  %v752 = vadd.f32 %v677, %v751
  %v753 = vpop.f32.mrb[0].mxu0
  %754 = vdwg.mxu0
  %755 = vmatprep.subr.mxu0 0.0
  %756 = vmatpush1.msra.mxu0 %v150
  %757 = vmatprep.subr.mxu0 0.0
  %758 = vmatpush1.msra.mxu0 %v151
  %759 = vmatprep.subr.mxu0 0.0
  %760 = vmatpush1.msra.mxu0 %v152
  %761 = vmatprep.subr.mxu0 0.0
  %762 = vmatpush1.msra.mxu0 %v153
  %763 = vmatprep.subr.mxu0 0.0
  %764 = vmatpush1.msra.mxu0 %v154
  %765 = vmatprep.subr.mxu0 0.0
  %766 = vmatpush1.msra.mxu0 %v155
  %767 = vmatprep.subr.mxu0 0.0
  %768 = vmatpush1.msra.mxu0 %v156
  %769 = vmatprep.subr.mxu0 0.0
  %770 = vmatpush1.msra.mxu0 %v157
  %771 = vmatprep.subr.mxu0 0.0
  %772 = vmatpush1.msra.mxu0 %v158
  %773 = vmatprep.subr.mxu0 0.0
  %774 = vmatpush1.msra.mxu0 %v159
  %775 = vmatprep.subr.mxu0 0.0
  %776 = vmatpush1.msra.mxu0 %v160
  %777 = vmatprep.subr.mxu0 0.0
  %778 = vmatpush1.msra.mxu0 %v161
  %779 = vmatprep.subr.mxu0 0.0
  %780 = vmatpush1.msra.mxu0 %v162
  %781 = vmatprep.subr.mxu0 0.0
  %782 = vmatpush1.msra.mxu0 %v163
  %783 = vmatprep.subr.mxu0 0.0
  %784 = vmatpush1.msra.mxu0 %v164
  %785 = vmatprep.subr.mxu0 0.0
  %786 = vmatpush1.msra.mxu0 %v165
  %787 = vmatprep.subr.mxu0 0.0
  %788 = vmatpush1.msra.mxu0 %v166
  %789 = vmatprep.subr.mxu0 0.0
  %790 = vmatpush1.msra.mxu0 %v167
  %791 = vmatprep.subr.mxu0 0.0
  %792 = vmatpush1.msra.mxu0 %v168
  %793 = vmatprep.subr.mxu0 0.0
  %794 = vmatpush1.msra.mxu0 %v169
  %795 = vmatprep.subr.mxu0 0.0
  %796 = vmatpush1.msra.mxu0 %v170
  %797 = vmatprep.subr.mxu0 0.0
  %798 = vmatpush1.msra.mxu0 %v171
  %799 = vmatprep.subr.mxu0 0.0
  %800 = vmatpush1.msra.mxu0 %v172
  %801 = vmatprep.subr.mxu0 0.0
  %802 = vmatpush1.msra.mxu0 %v173
  %803 = vmatprep.subr.mxu0 0.0
  %804 = vmatpush1.msra.mxu0 %v174
  %805 = vmatprep.subr.mxu0 0.0
  %806 = vmatpush1.msra.mxu0 %v175
  %807 = vmatprep.subr.mxu0 0.0
  %808 = vmatpush1.msra.mxu0 %v176
  %809 = vmatprep.subr.mxu0 0.0
  %810 = vmatpush1.msra.mxu0 %v177
  %811 = vmatprep.subr.mxu0 0.0
  %812 = vmatpush1.msra.mxu0 %v178
  %813 = vmatprep.subr.mxu0 0.0
  %814 = vmatpush1.msra.mxu0 %v179
  %815 = vmatprep.subr.mxu0 0.0
  %816 = vmatpush1.msra.mxu0 %v180
  %817 = vmatprep.subr.mxu0 0.0
  %818 = vmatpush1.msra.mxu0 %v181
  %819 = vmatprep.mubr.f32.mxu0 %v27
  %820 = vmatmul.mubr.f32.gmra.mrb[0].mxu0 %v26
  %v821 = vpop.f32.mrb[0].mxu0
  %v822 = vadd.f32 %v747, %v821
  %v823 = vpop.f32.mrb[0].mxu0
  %824 = vmatprep.mubr.f32.mxu0 %v59
  %825 = vmatmul.mubr.f32.gmra.mrb[0].mxu0 %v58
  %v826 = vpop.f32.mrb[0].mxu0
  %v827 = vadd.f32 %v752, %v826
  %v828 = vpop.f32.mrb[0].mxu0
  %829 = vdwg.mxu0
  %830 = vmatprep.subr.mxu0 0.0
  %831 = vmatpush1.msra.mxu0 %v182
  %832 = vmatprep.subr.mxu0 0.0
  %833 = vmatpush1.msra.mxu0 %v183
  %834 = vmatprep.subr.mxu0 0.0
  %835 = vmatpush1.msra.mxu0 %v184
  %836 = vmatprep.subr.mxu0 0.0
  %837 = vmatpush1.msra.mxu0 %v185
  %838 = vmatprep.subr.mxu0 0.0
  %839 = vmatpush1.msra.mxu0 %v186
  %840 = vmatprep.subr.mxu0 0.0
  %841 = vmatpush1.msra.mxu0 %v187
  %842 = vmatprep.subr.mxu0 0.0
  %843 = vmatpush1.msra.mxu0 %v188
  %844 = vmatprep.subr.mxu0 0.0
  %845 = vmatpush1.msra.mxu0 %v189
  %846 = vmatprep.subr.mxu0 0.0
  %847 = vmatpush1.msra.mxu0 %v190
  %848 = vmatprep.subr.mxu0 0.0
  %849 = vmatpush1.msra.mxu0 %v191
  %850 = vmatprep.subr.mxu0 0.0
  %851 = vmatpush1.msra.mxu0 %v192
  %852 = vmatprep.subr.mxu0 0.0
  %853 = vmatpush1.msra.mxu0 %v193
  %854 = vmatprep.subr.mxu0 0.0
  %855 = vmatpush1.msra.mxu0 %v194
  %856 = vmatprep.subr.mxu0 0.0
  %857 = vmatpush1.msra.mxu0 %v195
  %858 = vmatprep.subr.mxu0 0.0
  %859 = vmatpush1.msra.mxu0 %v196
  %860 = vmatprep.subr.mxu0 0.0
  %861 = vmatpush1.msra.mxu0 %v197
  %862 = vmatprep.subr.mxu0 0.0
  %863 = vmatpush1.msra.mxu0 %v198
  %864 = vmatprep.subr.mxu0 0.0
  %865 = vmatpush1.msra.mxu0 %v199
  %866 = vmatprep.subr.mxu0 0.0
  %867 = vmatpush1.msra.mxu0 %v200
  %868 = vmatprep.subr.mxu0 0.0
  %869 = vmatpush1.msra.mxu0 %v201
  %870 = vmatprep.subr.mxu0 0.0
  %871 = vmatpush1.msra.mxu0 %v202
  %872 = vmatprep.subr.mxu0 0.0
  %873 = vmatpush1.msra.mxu0 %v203
  %874 = vmatprep.subr.mxu0 0.0
  %875 = vmatpush1.msra.mxu0 %v204
  %876 = vmatprep.subr.mxu0 0.0
  %877 = vmatpush1.msra.mxu0 %v205
  %878 = vmatprep.subr.mxu0 0.0
  %879 = vmatpush1.msra.mxu0 %v206
  %880 = vmatprep.subr.mxu0 0.0
  %881 = vmatpush1.msra.mxu0 %v207
  %882 = vmatprep.subr.mxu0 0.0
  %883 = vmatpush1.msra.mxu0 %v208
  %884 = vmatprep.subr.mxu0 0.0
  %885 = vmatpush1.msra.mxu0 %v209
  %886 = vmatprep.subr.mxu0 0.0
  %887 = vmatpush1.msra.mxu0 %v210
  %888 = vmatprep.subr.mxu0 0.0
  %889 = vmatpush1.msra.mxu0 %v211
  %890 = vmatprep.subr.mxu0 0.0
  %891 = vmatpush1.msra.mxu0 %v212
  %892 = vmatprep.subr.mxu0 0.0
  %893 = vmatpush1.msra.mxu0 %v213
  %894 = vmatprep.mubr.f32.mxu0 %v29
  %895 = vmatmul.mubr.f32.gmra.mrb[0].mxu0 %v28
  %v896 = vpop.f32.mrb[0].mxu0
  %v897 = vadd.f32 %v822, %v896
  %v898 = vpop.f32.mrb[0].mxu0
  %899 = vmatprep.mubr.f32.mxu0 %v61
  %900 = vmatmul.mubr.f32.gmra.mrb[0].mxu0 %v60
  %v901 = vpop.f32.mrb[0].mxu0
  %v902 = vadd.f32 %v827, %v901
  %v903 = vpop.f32.mrb[0].mxu0
  %904 = vdwg.mxu0
  %905 = vmatprep.subr.mxu0 0.0
  %906 = vmatpush1.msra.mxu0 %v214
  %907 = vmatprep.subr.mxu0 0.0
  %908 = vmatpush1.msra.mxu0 %v215
  %909 = vmatprep.subr.mxu0 0.0
  %910 = vmatpush1.msra.mxu0 %v216
  %911 = vmatprep.subr.mxu0 0.0
  %912 = vmatpush1.msra.mxu0 %v217
  %913 = vmatprep.subr.mxu0 0.0
  %914 = vmatpush1.msra.mxu0 %v218
  %915 = vmatprep.subr.mxu0 0.0
  %916 = vmatpush1.msra.mxu0 %v219
  %917 = vmatprep.subr.mxu0 0.0
  %918 = vmatpush1.msra.mxu0 %v220
  %919 = vmatprep.subr.mxu0 0.0
  %920 = vmatpush1.msra.mxu0 %v221
  %921 = vmatprep.subr.mxu0 0.0
  %922 = vmatpush1.msra.mxu0 %v222
  %923 = vmatprep.subr.mxu0 0.0
  %924 = vmatpush1.msra.mxu0 %v223
  %925 = vmatprep.subr.mxu0 0.0
  %926 = vmatpush1.msra.mxu0 %v224
  %927 = vmatprep.subr.mxu0 0.0
  %928 = vmatpush1.msra.mxu0 %v225
  %929 = vmatprep.subr.mxu0 0.0
  %930 = vmatpush1.msra.mxu0 %v226
  %931 = vmatprep.subr.mxu0 0.0
  %932 = vmatpush1.msra.mxu0 %v227
  %933 = vmatprep.subr.mxu0 0.0
  %934 = vmatpush1.msra.mxu0 %v228
  %935 = vmatprep.subr.mxu0 0.0
  %936 = vmatpush1.msra.mxu0 %v229
  %937 = vmatprep.subr.mxu0 0.0
  %938 = vmatpush1.msra.mxu0 %v230
  %939 = vmatprep.subr.mxu0 0.0
  %940 = vmatpush1.msra.mxu0 %v231
  %941 = vmatprep.subr.mxu0 0.0
  %942 = vmatpush1.msra.mxu0 %v232
  %943 = vmatprep.subr.mxu0 0.0
  %944 = vmatpush1.msra.mxu0 %v233
  %945 = vmatprep.subr.mxu0 0.0
  %946 = vmatpush1.msra.mxu0 %v234
  %947 = vmatprep.subr.mxu0 0.0
  %948 = vmatpush1.msra.mxu0 %v235
  %949 = vmatprep.subr.mxu0 0.0
  %950 = vmatpush1.msra.mxu0 %v236
  %951 = vmatprep.subr.mxu0 0.0
  %952 = vmatpush1.msra.mxu0 %v237
  %953 = vmatprep.subr.mxu0 0.0
  %954 = vmatpush1.msra.mxu0 %v238
  %955 = vmatprep.subr.mxu0 0.0
  %956 = vmatpush1.msra.mxu0 %v239
  %957 = vmatprep.subr.mxu0 0.0
  %958 = vmatpush1.msra.mxu0 %v240
  %959 = vmatprep.subr.mxu0 0.0
  %960 = vmatpush1.msra.mxu0 %v241
  %961 = vmatprep.subr.mxu0 0.0
  %962 = vmatpush1.msra.mxu0 %v242
  %963 = vmatprep.subr.mxu0 0.0
  %964 = vmatpush1.msra.mxu0 %v243
  %965 = vmatprep.subr.mxu0 0.0
  %966 = vmatpush1.msra.mxu0 %v244
  %967 = vmatprep.subr.mxu0 0.0
  %968 = vmatpush1.msra.mxu0 %v245
  %969 = vmatprep.mubr.f32.mxu0 %v31
  %970 = vmatmul.mubr.f32.gmra.mrb[0].mxu0 %v30
  %v971 = vpop.f32.mrb[0].mxu0
  %v972 = vadd.f32 %v897, %v971
  %v973 = vpop.f32.mrb[0].mxu0
  %974 = vmatprep.mubr.f32.mxu0 %v63
  %975 = vmatmul.mubr.f32.gmra.mrb[0].mxu0 %v62
  %v976 = vpop.f32.mrb[0].mxu0
  %v977 = vadd.f32 %v902, %v976
  %v978 = vpop.f32.mrb[0].mxu0
  %979 = vdwg.mxu0
  %980 = vmatprep.subr.mxu0 0.0
  %981 = vmatpush1.msra.mxu0 %v246
  %982 = vmatprep.subr.mxu0 0.0
  %983 = vmatpush1.msra.mxu0 %v247
  %984 = vmatprep.subr.mxu0 0.0
  %985 = vmatpush1.msra.mxu0 %v248
  %986 = vmatprep.subr.mxu0 0.0
  %987 = vmatpush1.msra.mxu0 %v249
  %988 = vmatprep.subr.mxu0 0.0
  %989 = vmatpush1.msra.mxu0 %v250
  %990 = vmatprep.subr.mxu0 0.0
  %991 = vmatpush1.msra.mxu0 %v251
  %992 = vmatprep.subr.mxu0 0.0
  %993 = vmatpush1.msra.mxu0 %v252
  %994 = vmatprep.subr.mxu0 0.0
  %995 = vmatpush1.msra.mxu0 %v253
  %996 = vmatprep.subr.mxu0 0.0
  %997 = vmatpush1.msra.mxu0 %v254
  %998 = vmatprep.subr.mxu0 0.0
  %999 = vmatpush1.msra.mxu0 %v255
  %1000 = vmatprep.subr.mxu0 0.0
  %1001 = vmatpush1.msra.mxu0 %v256
  %1002 = vmatprep.subr.mxu0 0.0
  %1003 = vmatpush1.msra.mxu0 %v257
  %1004 = vmatprep.subr.mxu0 0.0
  %1005 = vmatpush1.msra.mxu0 %v258
  %1006 = vmatprep.subr.mxu0 0.0
  %1007 = vmatpush1.msra.mxu0 %v259
  %1008 = vmatprep.subr.mxu0 0.0
  %1009 = vmatpush1.msra.mxu0 %v260
  %1010 = vmatprep.subr.mxu0 0.0
  %1011 = vmatpush1.msra.mxu0 %v261
  %1012 = vmatprep.subr.mxu0 0.0
  %1013 = vmatpush1.msra.mxu0 %v262
  %1014 = vmatprep.subr.mxu0 0.0
  %1015 = vmatpush1.msra.mxu0 %v263
  %1016 = vmatprep.subr.mxu0 0.0
  %1017 = vmatpush1.msra.mxu0 %v264
  %1018 = vmatprep.subr.mxu0 0.0
  %1019 = vmatpush1.msra.mxu0 %v265
  %1020 = vmatprep.subr.mxu0 0.0
  %1021 = vmatpush1.msra.mxu0 %v266
  %1022 = vmatprep.subr.mxu0 0.0
  %1023 = vmatpush1.msra.mxu0 %v267
  %1024 = vmatprep.subr.mxu0 0.0
  %1025 = vmatpush1.msra.mxu0 %v268
  %1026 = vmatprep.subr.mxu0 0.0
  %1027 = vmatpush1.msra.mxu0 %v269
  %1028 = vmatprep.subr.mxu0 0.0
  %1029 = vmatpush1.msra.mxu0 %v270
  %1030 = vmatprep.subr.mxu0 0.0
  %1031 = vmatpush1.msra.mxu0 %v271
  %1032 = vmatprep.subr.mxu0 0.0
  %1033 = vmatpush1.msra.mxu0 %v272
  %1034 = vmatprep.subr.mxu0 0.0
  %1035 = vmatpush1.msra.mxu0 %v273
  %1036 = vmatprep.subr.mxu0 0.0
  %1037 = vmatpush1.msra.mxu0 %v274
  %1038 = vmatprep.subr.mxu0 0.0
  %1039 = vmatpush1.msra.mxu0 %v275
  %1040 = vmatprep.subr.mxu0 0.0
  %1041 = vmatpush1.msra.mxu0 %v276
  %1042 = vmatprep.subr.mxu0 0.0
  %1043 = vmatpush1.msra.mxu0 %v277
  %1044 = vmatprep.mubr.f32.mxu0 %v33
  %1045 = vmatmul.mubr.f32.gmra.mrb[0].mxu0 %v32
  %v1046 = vpop.f32.mrb[0].mxu0
  %v1047 = vadd.f32 %v972, %v1046
  %v1048 = vpop.f32.mrb[0].mxu0
  %1049 = vmatprep.mubr.f32.mxu0 %v65
  %1050 = vmatmul.mubr.f32.gmra.mrb[0].mxu0 %v64
  %v1051 = vpop.f32.mrb[0].mxu0
  %v1052 = vadd.f32 %v977, %v1051
  %v1053 = vpop.f32.mrb[0].mxu0
  %1054 = vdwg.mxu0
  %1055 = vmatprep.subr.mxu0 0.0
  %1056 = vmatpush1.msra.mxu0 %v278
  %1057 = vmatprep.subr.mxu0 0.0
  %1058 = vmatpush1.msra.mxu0 %v279
  %1059 = vmatprep.subr.mxu0 0.0
  %1060 = vmatpush1.msra.mxu0 %v280
  %1061 = vmatprep.subr.mxu0 0.0
  %1062 = vmatpush1.msra.mxu0 %v281
  %1063 = vmatprep.subr.mxu0 0.0
  %1064 = vmatpush1.msra.mxu0 %v282
  %1065 = vmatprep.subr.mxu0 0.0
  %1066 = vmatpush1.msra.mxu0 %v283
  %1067 = vmatprep.subr.mxu0 0.0
  %1068 = vmatpush1.msra.mxu0 %v284
  %1069 = vmatprep.subr.mxu0 0.0
  %1070 = vmatpush1.msra.mxu0 %v285
  %1071 = vmatprep.subr.mxu0 0.0
  %1072 = vmatpush1.msra.mxu0 %v286
  %1073 = vmatprep.subr.mxu0 0.0
  %1074 = vmatpush1.msra.mxu0 %v287
  %1075 = vmatprep.subr.mxu0 0.0
  %1076 = vmatpush1.msra.mxu0 %v288
  %1077 = vmatprep.subr.mxu0 0.0
  %1078 = vmatpush1.msra.mxu0 %v289
  %1079 = vmatprep.subr.mxu0 0.0
  %1080 = vmatpush1.msra.mxu0 %v290
  %1081 = vmatprep.subr.mxu0 0.0
  %1082 = vmatpush1.msra.mxu0 %v291
  %1083 = vmatprep.subr.mxu0 0.0
  %1084 = vmatpush1.msra.mxu0 %v292
  %1085 = vmatprep.subr.mxu0 0.0
  %1086 = vmatpush1.msra.mxu0 %v293
  %1087 = vmatprep.subr.mxu0 0.0
  %1088 = vmatpush1.msra.mxu0 %v294
  %1089 = vmatprep.subr.mxu0 0.0
  %1090 = vmatpush1.msra.mxu0 %v295
  %1091 = vmatprep.subr.mxu0 0.0
  %1092 = vmatpush1.msra.mxu0 %v296
  %1093 = vmatprep.subr.mxu0 0.0
  %1094 = vmatpush1.msra.mxu0 %v297
  %1095 = vmatprep.subr.mxu0 0.0
  %1096 = vmatpush1.msra.mxu0 %v298
  %1097 = vmatprep.subr.mxu0 0.0
  %1098 = vmatpush1.msra.mxu0 %v299
  %1099 = vmatprep.subr.mxu0 0.0
  %1100 = vmatpush1.msra.mxu0 %v300
  %1101 = vmatprep.subr.mxu0 0.0
  %1102 = vmatpush1.msra.mxu0 %v301
  %1103 = vmatprep.subr.mxu0 0.0
  %1104 = vmatpush1.msra.mxu0 %v302
  %1105 = vmatprep.subr.mxu0 0.0
  %1106 = vmatpush1.msra.mxu0 %v303
  %1107 = vmatprep.subr.mxu0 0.0
  %1108 = vmatpush1.msra.mxu0 %v304
  %1109 = vmatprep.subr.mxu0 0.0
  %1110 = vmatpush1.msra.mxu0 %v305
  %1111 = vmatprep.subr.mxu0 0.0
  %1112 = vmatpush1.msra.mxu0 %v306
  %1113 = vmatprep.subr.mxu0 0.0
  %1114 = vmatpush1.msra.mxu0 %v307
  %1115 = vmatprep.subr.mxu0 0.0
  %1116 = vmatpush1.msra.mxu0 %v308
  %1117 = vmatprep.subr.mxu0 0.0
  %1118 = vmatpush1.msra.mxu0 %v309
  %1119 = vmatprep.mubr.f32.mxu0 %v35
  %1120 = vmatmul.mubr.f32.gmra.mrb[0].mxu0 %v34
  %v1121 = vpop.f32.mrb[0].mxu0
  %v1122 = vadd.f32 %v1047, %v1121
  %v1123 = vpop.f32.mrb[0].mxu0
  %1124 = vmatprep.mubr.f32.mxu0 %v67
  %1125 = vmatmul.mubr.f32.gmra.mrb[0].mxu0 %v66
  %v1126 = vpop.f32.mrb[0].mxu0
  %v1127 = vadd.f32 %v1052, %v1126
  %v1128 = vpop.f32.mrb[0].mxu0
  %1129 = vdwg.mxu0
  %1130 = vmatprep.subr.mxu0 0.0
  %1131 = vmatpush1.msra.mxu0 %v310
  %1132 = vmatprep.subr.mxu0 0.0
  %1133 = vmatpush1.msra.mxu0 %v311
  %1134 = vmatprep.subr.mxu0 0.0
  %1135 = vmatpush1.msra.mxu0 %v312
  %1136 = vmatprep.subr.mxu0 0.0
  %1137 = vmatpush1.msra.mxu0 %v313
  %1138 = vmatprep.subr.mxu0 0.0
  %1139 = vmatpush1.msra.mxu0 %v314
  %1140 = vmatprep.subr.mxu0 0.0
  %1141 = vmatpush1.msra.mxu0 %v315
  %1142 = vmatprep.subr.mxu0 0.0
  %1143 = vmatpush1.msra.mxu0 %v316
  %1144 = vmatprep.subr.mxu0 0.0
  %1145 = vmatpush1.msra.mxu0 %v317
  %1146 = vmatprep.subr.mxu0 0.0
  %1147 = vmatpush1.msra.mxu0 %v318
  %1148 = vmatprep.subr.mxu0 0.0
  %1149 = vmatpush1.msra.mxu0 %v319
  %1150 = vmatprep.subr.mxu0 0.0
  %1151 = vmatpush1.msra.mxu0 %v320
  %1152 = vmatprep.subr.mxu0 0.0
  %1153 = vmatpush1.msra.mxu0 %v321
  %1154 = vmatprep.subr.mxu0 0.0
  %1155 = vmatpush1.msra.mxu0 %v322
  %1156 = vmatprep.subr.mxu0 0.0
  %1157 = vmatpush1.msra.mxu0 %v323
  %1158 = vmatprep.subr.mxu0 0.0
  %1159 = vmatpush1.msra.mxu0 %v324
  %1160 = vmatprep.subr.mxu0 0.0
  %1161 = vmatpush1.msra.mxu0 %v325
  %1162 = vmatprep.subr.mxu0 0.0
  %1163 = vmatpush1.msra.mxu0 %v326
  %1164 = vmatprep.subr.mxu0 0.0
  %1165 = vmatpush1.msra.mxu0 %v327
  %1166 = vmatprep.subr.mxu0 0.0
  %1167 = vmatpush1.msra.mxu0 %v328
  %1168 = vmatprep.subr.mxu0 0.0
  %1169 = vmatpush1.msra.mxu0 %v329
  %1170 = vmatprep.subr.mxu0 0.0
  %1171 = vmatpush1.msra.mxu0 %v330
  %1172 = vmatprep.subr.mxu0 0.0
  %1173 = vmatpush1.msra.mxu0 %v331
  %1174 = vmatprep.subr.mxu0 0.0
  %1175 = vmatpush1.msra.mxu0 %v332
  %1176 = vmatprep.subr.mxu0 0.0
  %1177 = vmatpush1.msra.mxu0 %v333
  %1178 = vmatprep.subr.mxu0 0.0
  %1179 = vmatpush1.msra.mxu0 %v334
  %1180 = vmatprep.subr.mxu0 0.0
  %1181 = vmatpush1.msra.mxu0 %v335
  %1182 = vmatprep.subr.mxu0 0.0
  %1183 = vmatpush1.msra.mxu0 %v336
  %1184 = vmatprep.subr.mxu0 0.0
  %1185 = vmatpush1.msra.mxu0 %v337
  %1186 = vmatprep.subr.mxu0 0.0
  %1187 = vmatpush1.msra.mxu0 %v338
  %1188 = vmatprep.subr.mxu0 0.0
  %1189 = vmatpush1.msra.mxu0 %v339
  %1190 = vmatprep.subr.mxu0 0.0
  %1191 = vmatpush1.msra.mxu0 %v340
  %1192 = vmatprep.subr.mxu0 0.0
  %1193 = vmatpush1.msra.mxu0 %v341
  %1194 = vmatprep.mubr.f32.mxu0 %v37
  %1195 = vmatmul.mubr.f32.gmra.mrb[0].mxu0 %v36
  %v1196 = vpop.f32.mrb[0].mxu0
  %v1197 = vadd.f32 %v1122, %v1196
  %v1198 = vpop.f32.mrb[0].mxu0
  %1199 = vmatprep.mubr.f32.mxu0 %v69
  %1200 = vmatmul.mubr.f32.gmra.mrb[0].mxu0 %v68
  %v1201 = vpop.f32.mrb[0].mxu0
  %v1202 = vadd.f32 %v1127, %v1201
  %v1203 = vpop.f32.mrb[0].mxu0
  %1204 = vdwg.mxu0
  %1205 = vmatprep.subr.mxu0 0.0
  %1206 = vmatpush1.msra.mxu0 %v342
  %1207 = vmatprep.subr.mxu0 0.0
  %1208 = vmatpush1.msra.mxu0 %v343
  %1209 = vmatprep.subr.mxu0 0.0
  %1210 = vmatpush1.msra.mxu0 %v344
  %1211 = vmatprep.subr.mxu0 0.0
  %1212 = vmatpush1.msra.mxu0 %v345
  %1213 = vmatprep.subr.mxu0 0.0
  %1214 = vmatpush1.msra.mxu0 %v346
  %1215 = vmatprep.subr.mxu0 0.0
  %1216 = vmatpush1.msra.mxu0 %v347
  %1217 = vmatprep.subr.mxu0 0.0
  %1218 = vmatpush1.msra.mxu0 %v348
  %1219 = vmatprep.subr.mxu0 0.0
  %1220 = vmatpush1.msra.mxu0 %v349
  %1221 = vmatprep.subr.mxu0 0.0
  %1222 = vmatpush1.msra.mxu0 %v350
  %1223 = vmatprep.subr.mxu0 0.0
  %1224 = vmatpush1.msra.mxu0 %v351
  %1225 = vmatprep.subr.mxu0 0.0
  %1226 = vmatpush1.msra.mxu0 %v352
  %1227 = vmatprep.subr.mxu0 0.0
  %1228 = vmatpush1.msra.mxu0 %v353
  %1229 = vmatprep.subr.mxu0 0.0
  %1230 = vmatpush1.msra.mxu0 %v354
  %1231 = vmatprep.subr.mxu0 0.0
  %1232 = vmatpush1.msra.mxu0 %v355
  %1233 = vmatprep.subr.mxu0 0.0
  %1234 = vmatpush1.msra.mxu0 %v356
  %1235 = vmatprep.subr.mxu0 0.0
  %1236 = vmatpush1.msra.mxu0 %v357
  %1237 = vmatprep.subr.mxu0 0.0
  %1238 = vmatpush1.msra.mxu0 %v358
  %1239 = vmatprep.subr.mxu0 0.0
  %1240 = vmatpush1.msra.mxu0 %v359
  %1241 = vmatprep.subr.mxu0 0.0
  %1242 = vmatpush1.msra.mxu0 %v360
  %1243 = vmatprep.subr.mxu0 0.0
  %1244 = vmatpush1.msra.mxu0 %v361
  %1245 = vmatprep.subr.mxu0 0.0
  %1246 = vmatpush1.msra.mxu0 %v362
  %1247 = vmatprep.subr.mxu0 0.0
  %1248 = vmatpush1.msra.mxu0 %v363
  %1249 = vmatprep.subr.mxu0 0.0
  %1250 = vmatpush1.msra.mxu0 %v364
  %1251 = vmatprep.subr.mxu0 0.0
  %1252 = vmatpush1.msra.mxu0 %v365
  %1253 = vmatprep.subr.mxu0 0.0
  %1254 = vmatpush1.msra.mxu0 %v366
  %1255 = vmatprep.subr.mxu0 0.0
  %1256 = vmatpush1.msra.mxu0 %v367
  %1257 = vmatprep.subr.mxu0 0.0
  %1258 = vmatpush1.msra.mxu0 %v368
  %1259 = vmatprep.subr.mxu0 0.0
  %1260 = vmatpush1.msra.mxu0 %v369
  %1261 = vmatprep.subr.mxu0 0.0
  %1262 = vmatpush1.msra.mxu0 %v370
  %1263 = vmatprep.subr.mxu0 0.0
  %1264 = vmatpush1.msra.mxu0 %v371
  %1265 = vmatprep.subr.mxu0 0.0
  %1266 = vmatpush1.msra.mxu0 %v372
  %1267 = vmatprep.subr.mxu0 0.0
  %1268 = vmatpush1.msra.mxu0 %v373
  %1269 = vmatprep.mubr.f32.mxu0 %v39
  %1270 = vmatmul.mubr.f32.gmra.mrb[0].mxu0 %v38
  %v1271 = vpop.f32.mrb[0].mxu0
  %v1272 = vadd.f32 %v1197, %v1271
  %v1273 = vpop.f32.mrb[0].mxu0
  %1274 = vmatprep.mubr.f32.mxu0 %v71
  %1275 = vmatmul.mubr.f32.gmra.mrb[0].mxu0 %v70
  %v1276 = vpop.f32.mrb[0].mxu0
  %v1277 = vadd.f32 %v1202, %v1276
  %v1278 = vpop.f32.mrb[0].mxu0
  %1279 = vdwg.mxu0
  %1280 = vmatprep.subr.mxu0 0.0
  %1281 = vmatpush1.msra.mxu0 %v374
  %1282 = vmatprep.subr.mxu0 0.0
  %1283 = vmatpush1.msra.mxu0 %v375
  %1284 = vmatprep.subr.mxu0 0.0
  %1285 = vmatpush1.msra.mxu0 %v376
  %1286 = vmatprep.subr.mxu0 0.0
  %1287 = vmatpush1.msra.mxu0 %v377
  %1288 = vmatprep.subr.mxu0 0.0
  %1289 = vmatpush1.msra.mxu0 %v378
  %1290 = vmatprep.subr.mxu0 0.0
  %1291 = vmatpush1.msra.mxu0 %v379
  %1292 = vmatprep.subr.mxu0 0.0
  %1293 = vmatpush1.msra.mxu0 %v380
  %1294 = vmatprep.subr.mxu0 0.0
  %1295 = vmatpush1.msra.mxu0 %v381
  %1296 = vmatprep.subr.mxu0 0.0
  %1297 = vmatpush1.msra.mxu0 %v382
  %1298 = vmatprep.subr.mxu0 0.0
  %1299 = vmatpush1.msra.mxu0 %v383
  %1300 = vmatprep.subr.mxu0 0.0
  %1301 = vmatpush1.msra.mxu0 %v384
  %1302 = vmatprep.subr.mxu0 0.0
  %1303 = vmatpush1.msra.mxu0 %v385
  %1304 = vmatprep.subr.mxu0 0.0
  %1305 = vmatpush1.msra.mxu0 %v386
  %1306 = vmatprep.subr.mxu0 0.0
  %1307 = vmatpush1.msra.mxu0 %v387
  %1308 = vmatprep.subr.mxu0 0.0
  %1309 = vmatpush1.msra.mxu0 %v388
  %1310 = vmatprep.subr.mxu0 0.0
  %1311 = vmatpush1.msra.mxu0 %v389
  %1312 = vmatprep.subr.mxu0 0.0
  %1313 = vmatpush1.msra.mxu0 %v390
  %1314 = vmatprep.subr.mxu0 0.0
  %1315 = vmatpush1.msra.mxu0 %v391
  %1316 = vmatprep.subr.mxu0 0.0
  %1317 = vmatpush1.msra.mxu0 %v392
  %1318 = vmatprep.subr.mxu0 0.0
  %1319 = vmatpush1.msra.mxu0 %v393
  %1320 = vmatprep.subr.mxu0 0.0
  %1321 = vmatpush1.msra.mxu0 %v394
  %1322 = vmatprep.subr.mxu0 0.0
  %1323 = vmatpush1.msra.mxu0 %v395
  %1324 = vmatprep.subr.mxu0 0.0
  %1325 = vmatpush1.msra.mxu0 %v396
  %1326 = vmatprep.subr.mxu0 0.0
  %1327 = vmatpush1.msra.mxu0 %v397
  %1328 = vmatprep.subr.mxu0 0.0
  %1329 = vmatpush1.msra.mxu0 %v398
  %1330 = vmatprep.subr.mxu0 0.0
  %1331 = vmatpush1.msra.mxu0 %v399
  %1332 = vmatprep.subr.mxu0 0.0
  %1333 = vmatpush1.msra.mxu0 %v400
  %1334 = vmatprep.subr.mxu0 0.0
  %1335 = vmatpush1.msra.mxu0 %v401
  %1336 = vmatprep.subr.mxu0 0.0
  %1337 = vmatpush1.msra.mxu0 %v402
  %1338 = vmatprep.subr.mxu0 0.0
  %1339 = vmatpush1.msra.mxu0 %v403
  %1340 = vmatprep.subr.mxu0 0.0
  %1341 = vmatpush1.msra.mxu0 %v404
  %1342 = vmatprep.subr.mxu0 0.0
  %1343 = vmatpush1.msra.mxu0 %v405
  %1344 = vmatprep.mubr.f32.mxu0 %v41
  %1345 = vmatmul.mubr.f32.gmra.mrb[0].mxu0 %v40
  %v1346 = vpop.f32.mrb[0].mxu0
  %v1347 = vadd.f32 %v1272, %v1346
  %v1348 = vpop.f32.mrb[0].mxu0
  %1349 = vmatprep.mubr.f32.mxu0 %v73
  %1350 = vmatmul.mubr.f32.gmra.mrb[0].mxu0 %v72
  %v1351 = vpop.f32.mrb[0].mxu0
  %v1352 = vadd.f32 %v1277, %v1351
  %v1353 = vpop.f32.mrb[0].mxu0
  %1354 = vdwg.mxu0
  %1355 = vmatprep.subr.mxu0 0.0
  %1356 = vmatpush1.msra.mxu0 %v406
  %1357 = vmatprep.subr.mxu0 0.0
  %1358 = vmatpush1.msra.mxu0 %v407
  %1359 = vmatprep.subr.mxu0 0.0
  %1360 = vmatpush1.msra.mxu0 %v408
  %1361 = vmatprep.subr.mxu0 0.0
  %1362 = vmatpush1.msra.mxu0 %v409
  %1363 = vmatprep.subr.mxu0 0.0
  %1364 = vmatpush1.msra.mxu0 %v410
  %1365 = vmatprep.subr.mxu0 0.0
  %1366 = vmatpush1.msra.mxu0 %v411
  %1367 = vmatprep.subr.mxu0 0.0
  %1368 = vmatpush1.msra.mxu0 %v412
  %1369 = vmatprep.subr.mxu0 0.0
  %1370 = vmatpush1.msra.mxu0 %v413
  %1371 = vmatprep.subr.mxu0 0.0
  %1372 = vmatpush1.msra.mxu0 %v414
  %1373 = vmatprep.subr.mxu0 0.0
  %1374 = vmatpush1.msra.mxu0 %v415
  %1375 = vmatprep.subr.mxu0 0.0
  %1376 = vmatpush1.msra.mxu0 %v416
  %1377 = vmatprep.subr.mxu0 0.0
  %1378 = vmatpush1.msra.mxu0 %v417
  %1379 = vmatprep.subr.mxu0 0.0
  %1380 = vmatpush1.msra.mxu0 %v418
  %1381 = vmatprep.subr.mxu0 0.0
  %1382 = vmatpush1.msra.mxu0 %v419
  %1383 = vmatprep.subr.mxu0 0.0
  %1384 = vmatpush1.msra.mxu0 %v420
  %1385 = vmatprep.subr.mxu0 0.0
  %1386 = vmatpush1.msra.mxu0 %v421
  %1387 = vmatprep.subr.mxu0 0.0
  %1388 = vmatpush1.msra.mxu0 %v422
  %1389 = vmatprep.subr.mxu0 0.0
  %1390 = vmatpush1.msra.mxu0 %v423
  %1391 = vmatprep.subr.mxu0 0.0
  %1392 = vmatpush1.msra.mxu0 %v424
  %1393 = vmatprep.subr.mxu0 0.0
  %1394 = vmatpush1.msra.mxu0 %v425
  %1395 = vmatprep.subr.mxu0 0.0
  %1396 = vmatpush1.msra.mxu0 %v426
  %1397 = vmatprep.subr.mxu0 0.0
  %1398 = vmatpush1.msra.mxu0 %v427
  %1399 = vmatprep.subr.mxu0 0.0
  %1400 = vmatpush1.msra.mxu0 %v428
  %1401 = vmatprep.subr.mxu0 0.0
  %1402 = vmatpush1.msra.mxu0 %v429
  %1403 = vmatprep.subr.mxu0 0.0
  %1404 = vmatpush1.msra.mxu0 %v430
  %1405 = vmatprep.subr.mxu0 0.0
  %1406 = vmatpush1.msra.mxu0 %v431
  %1407 = vmatprep.subr.mxu0 0.0
  %1408 = vmatpush1.msra.mxu0 %v432
  %1409 = vmatprep.subr.mxu0 0.0
  %1410 = vmatpush1.msra.mxu0 %v433
  %1411 = vmatprep.subr.mxu0 0.0
  %1412 = vmatpush1.msra.mxu0 %v434
  %1413 = vmatprep.subr.mxu0 0.0
  %1414 = vmatpush1.msra.mxu0 %v435
  %1415 = vmatprep.subr.mxu0 0.0
  %1416 = vmatpush1.msra.mxu0 %v436
  %1417 = vmatprep.subr.mxu0 0.0
  %1418 = vmatpush1.msra.mxu0 %v437
  %1419 = vmatprep.mubr.f32.mxu0 %v43
  %1420 = vmatmul.mubr.f32.gmra.mrb[0].mxu0 %v42
  %v1421 = vpop.f32.mrb[0].mxu0
  %v1422 = vadd.f32 %v1347, %v1421
  %v1423 = vpop.f32.mrb[0].mxu0
  %1424 = vmatprep.mubr.f32.mxu0 %v75
  %1425 = vmatmul.mubr.f32.gmra.mrb[0].mxu0 %v74
  %v1426 = vpop.f32.mrb[0].mxu0
  %v1427 = vadd.f32 %v1352, %v1426
  %v1428 = vpop.f32.mrb[0].mxu0
  %1429 = vdwg.mxu0
  %1430 = vmatprep.subr.mxu0 0.0
  %1431 = vmatpush1.msra.mxu0 %v438
  %1432 = vmatprep.subr.mxu0 0.0
  %1433 = vmatpush1.msra.mxu0 %v439
  %1434 = vmatprep.subr.mxu0 0.0
  %1435 = vmatpush1.msra.mxu0 %v440
  %1436 = vmatprep.subr.mxu0 0.0
  %1437 = vmatpush1.msra.mxu0 %v441
  %1438 = vmatprep.subr.mxu0 0.0
  %1439 = vmatpush1.msra.mxu0 %v442
  %1440 = vmatprep.subr.mxu0 0.0
  %1441 = vmatpush1.msra.mxu0 %v443
  %1442 = vmatprep.subr.mxu0 0.0
  %1443 = vmatpush1.msra.mxu0 %v444
  %1444 = vmatprep.subr.mxu0 0.0
  %1445 = vmatpush1.msra.mxu0 %v445
  %1446 = vmatprep.subr.mxu0 0.0
  %1447 = vmatpush1.msra.mxu0 %v446
  %1448 = vmatprep.subr.mxu0 0.0
  %1449 = vmatpush1.msra.mxu0 %v447
  %1450 = vmatprep.subr.mxu0 0.0
  %1451 = vmatpush1.msra.mxu0 %v448
  %1452 = vmatprep.subr.mxu0 0.0
  %1453 = vmatpush1.msra.mxu0 %v449
  %1454 = vmatprep.subr.mxu0 0.0
  %1455 = vmatpush1.msra.mxu0 %v450
  %1456 = vmatprep.subr.mxu0 0.0
  %1457 = vmatpush1.msra.mxu0 %v451
  %1458 = vmatprep.subr.mxu0 0.0
  %1459 = vmatpush1.msra.mxu0 %v452
  %1460 = vmatprep.subr.mxu0 0.0
  %1461 = vmatpush1.msra.mxu0 %v453
  %1462 = vmatprep.subr.mxu0 0.0
  %1463 = vmatpush1.msra.mxu0 %v454
  %1464 = vmatprep.subr.mxu0 0.0
  %1465 = vmatpush1.msra.mxu0 %v455
  %1466 = vmatprep.subr.mxu0 0.0
  %1467 = vmatpush1.msra.mxu0 %v456
  %1468 = vmatprep.subr.mxu0 0.0
  %1469 = vmatpush1.msra.mxu0 %v457
  %1470 = vmatprep.subr.mxu0 0.0
  %1471 = vmatpush1.msra.mxu0 %v458
  %1472 = vmatprep.subr.mxu0 0.0
  %1473 = vmatpush1.msra.mxu0 %v459
  %1474 = vmatprep.subr.mxu0 0.0
  %1475 = vmatpush1.msra.mxu0 %v460
  %1476 = vmatprep.subr.mxu0 0.0
  %1477 = vmatpush1.msra.mxu0 %v461
  %1478 = vmatprep.subr.mxu0 0.0
  %1479 = vmatpush1.msra.mxu0 %v462
  %1480 = vmatprep.subr.mxu0 0.0
  %1481 = vmatpush1.msra.mxu0 %v463
  %1482 = vmatprep.subr.mxu0 0.0
  %1483 = vmatpush1.msra.mxu0 %v464
  %1484 = vmatprep.subr.mxu0 0.0
  %1485 = vmatpush1.msra.mxu0 %v465
  %1486 = vmatprep.subr.mxu0 0.0
  %1487 = vmatpush1.msra.mxu0 %v466
  %1488 = vmatprep.subr.mxu0 0.0
  %1489 = vmatpush1.msra.mxu0 %v467
  %1490 = vmatprep.subr.mxu0 0.0
  %1491 = vmatpush1.msra.mxu0 %v468
  %1492 = vmatprep.subr.mxu0 0.0
  %1493 = vmatpush1.msra.mxu0 %v469
  %1494 = vmatprep.mubr.f32.mxu0 %v45
  %1495 = vmatmul.mubr.f32.gmra.mrb[0].mxu0 %v44
  %v1496 = vpop.f32.mrb[0].mxu0
  %v1497 = vadd.f32 %v1422, %v1496
  %v1498 = vpop.f32.mrb[0].mxu0
  %1499 = vmatprep.mubr.f32.mxu0 %v77
  %1500 = vmatmul.mubr.f32.gmra.mrb[0].mxu0 %v76
  %v1501 = vpop.f32.mrb[0].mxu0
  %v1502 = vadd.f32 %v1427, %v1501
  %v1503 = vpop.f32.mrb[0].mxu0
  %1504 = vdwg.mxu0
  %1505 = vmatprep.subr.mxu0 0.0
  %1506 = vmatpush1.msra.mxu0 %v470
  %1507 = vmatprep.subr.mxu0 0.0
  %1508 = vmatpush1.msra.mxu0 %v471
  %1509 = vmatprep.subr.mxu0 0.0
  %1510 = vmatpush1.msra.mxu0 %v472
  %1511 = vmatprep.subr.mxu0 0.0
  %1512 = vmatpush1.msra.mxu0 %v473
  %1513 = vmatprep.subr.mxu0 0.0
  %1514 = vmatpush1.msra.mxu0 %v474
  %1515 = vmatprep.subr.mxu0 0.0
  %1516 = vmatpush1.msra.mxu0 %v475
  %1517 = vmatprep.subr.mxu0 0.0
  %1518 = vmatpush1.msra.mxu0 %v476
  %1519 = vmatprep.subr.mxu0 0.0
  %1520 = vmatpush1.msra.mxu0 %v477
  %1521 = vmatprep.subr.mxu0 0.0
  %1522 = vmatpush1.msra.mxu0 %v478
  %1523 = vmatprep.subr.mxu0 0.0
  %1524 = vmatpush1.msra.mxu0 %v479
  %1525 = vmatprep.subr.mxu0 0.0
  %1526 = vmatpush1.msra.mxu0 %v480
  %1527 = vmatprep.subr.mxu0 0.0
  %1528 = vmatpush1.msra.mxu0 %v481
  %1529 = vmatprep.subr.mxu0 0.0
  %1530 = vmatpush1.msra.mxu0 %v482
  %1531 = vmatprep.subr.mxu0 0.0
  %1532 = vmatpush1.msra.mxu0 %v483
  %1533 = vmatprep.subr.mxu0 0.0
  %1534 = vmatpush1.msra.mxu0 %v484
  %1535 = vmatprep.subr.mxu0 0.0
  %1536 = vmatpush1.msra.mxu0 %v485
  %1537 = vmatprep.subr.mxu0 0.0
  %1538 = vmatpush1.msra.mxu0 %v486
  %1539 = vmatprep.subr.mxu0 0.0
  %1540 = vmatpush1.msra.mxu0 %v487
  %1541 = vmatprep.subr.mxu0 0.0
  %1542 = vmatpush1.msra.mxu0 %v488
  %1543 = vmatprep.subr.mxu0 0.0
  %1544 = vmatpush1.msra.mxu0 %v489
  %1545 = vmatprep.subr.mxu0 0.0
  %1546 = vmatpush1.msra.mxu0 %v490
  %1547 = vmatprep.subr.mxu0 0.0
  %1548 = vmatpush1.msra.mxu0 %v491
  %1549 = vmatprep.subr.mxu0 0.0
  %1550 = vmatpush1.msra.mxu0 %v492
  %1551 = vmatprep.subr.mxu0 0.0
  %1552 = vmatpush1.msra.mxu0 %v493
  %1553 = vmatprep.subr.mxu0 0.0
  %1554 = vmatpush1.msra.mxu0 %v494
  %1555 = vmatprep.subr.mxu0 0.0
  %1556 = vmatpush1.msra.mxu0 %v495
  %1557 = vmatprep.subr.mxu0 0.0
  %1558 = vmatpush1.msra.mxu0 %v496
  %1559 = vmatprep.subr.mxu0 0.0
  %1560 = vmatpush1.msra.mxu0 %v497
  %1561 = vmatprep.subr.mxu0 0.0
  %1562 = vmatpush1.msra.mxu0 %v498
  %1563 = vmatprep.subr.mxu0 0.0
  %1564 = vmatpush1.msra.mxu0 %v499
  %1565 = vmatprep.subr.mxu0 0.0
  %1566 = vmatpush1.msra.mxu0 %v500
  %1567 = vmatprep.subr.mxu0 0.0
  %1568 = vmatpush1.msra.mxu0 %v501
  %1569 = vmatprep.mubr.f32.mxu0 %v47
  %1570 = vmatmul.mubr.f32.gmra.mrb[0].mxu0 %v46
  %v1571 = vpop.f32.mrb[0].mxu0
  %v1572 = vadd.f32 %v1497, %v1571
  %v1573 = vpop.f32.mrb[0].mxu0
  %1574 = vmatprep.mubr.f32.mxu0 %v79
  %1575 = vmatmul.mubr.f32.gmra.mrb[0].mxu0 %v78
  %v1576 = vpop.f32.mrb[0].mxu0
  %v1577 = vadd.f32 %v1502, %v1576
  %v1578 = vpop.f32.mrb[0].mxu0
  %1579 = vdwg.mxu0
  %1580 = vmatprep.subr.mxu0 0.0
  %1581 = vmatpush1.msra.mxu0 %v502
  %1582 = vmatprep.subr.mxu0 0.0
  %1583 = vmatpush1.msra.mxu0 %v503
  %1584 = vmatprep.subr.mxu0 0.0
  %1585 = vmatpush1.msra.mxu0 %v504
  %1586 = vmatprep.subr.mxu0 0.0
  %1587 = vmatpush1.msra.mxu0 %v505
  %1588 = vmatprep.subr.mxu0 0.0
  %1589 = vmatpush1.msra.mxu0 %v506
  %1590 = vmatprep.subr.mxu0 0.0
  %1591 = vmatpush1.msra.mxu0 %v507
  %1592 = vmatprep.subr.mxu0 0.0
  %1593 = vmatpush1.msra.mxu0 %v508
  %1594 = vmatprep.subr.mxu0 0.0
  %1595 = vmatpush1.msra.mxu0 %v509
  %1596 = vmatprep.subr.mxu0 0.0
  %1597 = vmatpush1.msra.mxu0 %v510
  %1598 = vmatprep.subr.mxu0 0.0
  %1599 = vmatpush1.msra.mxu0 %v511
  %1600 = vmatprep.subr.mxu0 0.0
  %1601 = vmatpush1.msra.mxu0 %v512
  %1602 = vmatprep.subr.mxu0 0.0
  %1603 = vmatpush1.msra.mxu0 %v513
  %1604 = vmatprep.subr.mxu0 0.0
  %1605 = vmatpush1.msra.mxu0 %v514
  %1606 = vmatprep.subr.mxu0 0.0
  %1607 = vmatpush1.msra.mxu0 %v515
  %1608 = vmatprep.subr.mxu0 0.0
  %1609 = vmatpush1.msra.mxu0 %v516
  %1610 = vmatprep.subr.mxu0 0.0
  %1611 = vmatpush1.msra.mxu0 %v517
  %1612 = vmatprep.subr.mxu0 0.0
  %1613 = vmatpush1.msra.mxu0 %v518
  %1614 = vmatprep.subr.mxu0 0.0
  %1615 = vmatpush1.msra.mxu0 %v519
  %1616 = vmatprep.subr.mxu0 0.0
  %1617 = vmatpush1.msra.mxu0 %v520
  %1618 = vmatprep.subr.mxu0 0.0
  %1619 = vmatpush1.msra.mxu0 %v521
  %1620 = vmatprep.subr.mxu0 0.0
  %1621 = vmatpush1.msra.mxu0 %v522
  %1622 = vmatprep.subr.mxu0 0.0
  %1623 = vmatpush1.msra.mxu0 %v523
  %1624 = vmatprep.subr.mxu0 0.0
  %1625 = vmatpush1.msra.mxu0 %v524
  %1626 = vmatprep.subr.mxu0 0.0
  %1627 = vmatpush1.msra.mxu0 %v525
  %1628 = vmatprep.subr.mxu0 0.0
  %1629 = vmatpush1.msra.mxu0 %v526
  %1630 = vmatprep.subr.mxu0 0.0
  %1631 = vmatpush1.msra.mxu0 %v527
  %1632 = vmatprep.subr.mxu0 0.0
  %1633 = vmatpush1.msra.mxu0 %v528
  %1634 = vmatprep.subr.mxu0 0.0
  %1635 = vmatpush1.msra.mxu0 %v529
  %1636 = vmatprep.subr.mxu0 0.0
  %1637 = vmatpush1.msra.mxu0 %v530
  %1638 = vmatprep.subr.mxu0 0.0
  %1639 = vmatpush1.msra.mxu0 %v531
  %1640 = vmatprep.subr.mxu0 0.0
  %1641 = vmatpush1.msra.mxu0 %v532
  %1642 = vmatprep.subr.mxu0 0.0
  %1643 = vmatpush1.msra.mxu0 %v533
  %1644 = vmatprep.mubr.f32.mxu0 %v49
  %1645 = vmatmul.mubr.f32.gmra.mrb[0].mxu0 %v48
  %v1646 = vpop.f32.mrb[0].mxu0
  %v1647 = vadd.f32 %v1572, %v1646
  %v1648 = vpop.f32.mrb[0].mxu0
  %1649 = vmatprep.mubr.f32.mxu0 %v81
  %1650 = vmatmul.mubr.f32.gmra.mrb[0].mxu0 %v80
  %v1651 = vpop.f32.mrb[0].mxu0
  %v1652 = vadd.f32 %v1577, %v1651
  %v1653 = vpop.f32.mrb[0].mxu0
  %1654 = vdwg.mxu0
  %1655 = vmatprep.subr.mxu0 0.0
  %1656 = vmatpush1.msra.mxu0 %v534
  %1657 = vmatprep.subr.mxu0 0.0
  %1658 = vmatpush1.msra.mxu0 %v535
  %1659 = vmatprep.subr.mxu0 0.0
  %1660 = vmatpush1.msra.mxu0 %v536
  %1661 = vmatprep.subr.mxu0 0.0
  %1662 = vmatpush1.msra.mxu0 %v537
  %1663 = vmatprep.subr.mxu0 0.0
  %1664 = vmatpush1.msra.mxu0 %v538
  %1665 = vmatprep.subr.mxu0 0.0
  %1666 = vmatpush1.msra.mxu0 %v539
  %1667 = vmatprep.subr.mxu0 0.0
  %1668 = vmatpush1.msra.mxu0 %v540
  %1669 = vmatprep.subr.mxu0 0.0
  %1670 = vmatpush1.msra.mxu0 %v541
  %1671 = vmatprep.subr.mxu0 0.0
  %1672 = vmatpush1.msra.mxu0 %v542
  %1673 = vmatprep.subr.mxu0 0.0
  %1674 = vmatpush1.msra.mxu0 %v543
  %1675 = vmatprep.subr.mxu0 0.0
  %1676 = vmatpush1.msra.mxu0 %v544
  %1677 = vmatprep.subr.mxu0 0.0
  %1678 = vmatpush1.msra.mxu0 %v545
  %1679 = vmatprep.subr.mxu0 0.0
  %1680 = vmatpush1.msra.mxu0 %v546
  %1681 = vmatprep.subr.mxu0 0.0
  %1682 = vmatpush1.msra.mxu0 %v547
  %1683 = vmatprep.subr.mxu0 0.0
  %1684 = vmatpush1.msra.mxu0 %v548
  %1685 = vmatprep.subr.mxu0 0.0
  %1686 = vmatpush1.msra.mxu0 %v549
  %1687 = vmatprep.subr.mxu0 0.0
  %1688 = vmatpush1.msra.mxu0 %v550
  %1689 = vmatprep.subr.mxu0 0.0
  %1690 = vmatpush1.msra.mxu0 %v551
  %1691 = vmatprep.subr.mxu0 0.0
  %1692 = vmatpush1.msra.mxu0 %v552
  %1693 = vmatprep.subr.mxu0 0.0
  %1694 = vmatpush1.msra.mxu0 %v553
  %1695 = vmatprep.subr.mxu0 0.0
  %1696 = vmatpush1.msra.mxu0 %v554
  %1697 = vmatprep.subr.mxu0 0.0
  %1698 = vmatpush1.msra.mxu0 %v555
  %1699 = vmatprep.subr.mxu0 0.0
  %1700 = vmatpush1.msra.mxu0 %v556
  %1701 = vmatprep.subr.mxu0 0.0
  %1702 = vmatpush1.msra.mxu0 %v557
  %1703 = vmatprep.subr.mxu0 0.0
  %1704 = vmatpush1.msra.mxu0 %v558
  %1705 = vmatprep.subr.mxu0 0.0
  %1706 = vmatpush1.msra.mxu0 %v559
  %1707 = vmatprep.subr.mxu0 0.0
  %1708 = vmatpush1.msra.mxu0 %v560
  %1709 = vmatprep.subr.mxu0 0.0
  %1710 = vmatpush1.msra.mxu0 %v561
  %1711 = vmatprep.subr.mxu0 0.0
  %1712 = vmatpush1.msra.mxu0 %v562
  %1713 = vmatprep.subr.mxu0 0.0
  %1714 = vmatpush1.msra.mxu0 %v563
  %1715 = vmatprep.subr.mxu0 0.0
  %1716 = vmatpush1.msra.mxu0 %v564
  %1717 = vmatprep.subr.mxu0 0.0
  %1718 = vmatpush1.msra.mxu0 %v565
  %1719 = vmatprep.mubr.f32.mxu0 %v51
  %1720 = vmatmul.mubr.f32.gmra.mrb[0].mxu0 %v50
  %v1721 = vpop.f32.mrb[0].mxu0
  %v1722 = vadd.f32 %v1647, %v1721
  %v1723 = vpop.f32.mrb[0].mxu0
  %1724 = vmatprep.mubr.f32.mxu0 %v83
  %1725 = vmatmul.mubr.f32.gmra.mrb[0].mxu0 %v82
  %v1726 = vpop.f32.mrb[0].mxu0
  %v1727 = vadd.f32 %v1652, %v1726
  %v1728 = vpop.f32.mrb[0].mxu0
  %1729 = vdwg.mxu0
  %1730 = vmatprep.subr.mxu0 0.0
  %1731 = vmatpush1.msra.mxu0 %v566
  %1732 = vmatprep.subr.mxu0 0.0
  %1733 = vmatpush1.msra.mxu0 %v567
  %1734 = vmatprep.subr.mxu0 0.0
  %1735 = vmatpush1.msra.mxu0 %v568
  %1736 = vmatprep.subr.mxu0 0.0
  %1737 = vmatpush1.msra.mxu0 %v569
  %1738 = vmatprep.subr.mxu0 0.0
  %1739 = vmatpush1.msra.mxu0 %v570
  %1740 = vmatprep.subr.mxu0 0.0
  %1741 = vmatpush1.msra.mxu0 %v571
  %1742 = vmatprep.subr.mxu0 0.0
  %1743 = vmatpush1.msra.mxu0 %v572
  %1744 = vmatprep.subr.mxu0 0.0
  %1745 = vmatpush1.msra.mxu0 %v573
  %1746 = vmatprep.subr.mxu0 0.0
  %1747 = vmatpush1.msra.mxu0 %v574
  %1748 = vmatprep.subr.mxu0 0.0
  %1749 = vmatpush1.msra.mxu0 %v575
  %1750 = vmatprep.subr.mxu0 0.0
  %1751 = vmatpush1.msra.mxu0 %v576
  %1752 = vmatprep.subr.mxu0 0.0
  %1753 = vmatpush1.msra.mxu0 %v577
  %1754 = vmatprep.subr.mxu0 0.0
  %1755 = vmatpush1.msra.mxu0 %v578
  %1756 = vmatprep.subr.mxu0 0.0
  %1757 = vmatpush1.msra.mxu0 %v579
  %1758 = vmatprep.subr.mxu0 0.0
  %1759 = vmatpush1.msra.mxu0 %v580
  %1760 = vmatprep.subr.mxu0 0.0
  %1761 = vmatpush1.msra.mxu0 %v581
  %1762 = vmatprep.subr.mxu0 0.0
  %1763 = vmatpush1.msra.mxu0 %v582
  %1764 = vmatprep.subr.mxu0 0.0
  %1765 = vmatpush1.msra.mxu0 %v583
  %1766 = vmatprep.subr.mxu0 0.0
  %1767 = vmatpush1.msra.mxu0 %v584
  %1768 = vmatprep.subr.mxu0 0.0
  %1769 = vmatpush1.msra.mxu0 %v585
  %1770 = vmatprep.subr.mxu0 0.0
  %1771 = vmatpush1.msra.mxu0 %v586
  %1772 = vmatprep.subr.mxu0 0.0
  %1773 = vmatpush1.msra.mxu0 %v587
  %1774 = vmatprep.subr.mxu0 0.0
  %1775 = vmatpush1.msra.mxu0 %v588
  %1776 = vmatprep.subr.mxu0 0.0
  %1777 = vmatpush1.msra.mxu0 %v589
  %1778 = vmatprep.subr.mxu0 0.0
  %1779 = vmatpush1.msra.mxu0 %v590
  %1780 = vmatprep.subr.mxu0 0.0
  %1781 = vmatpush1.msra.mxu0 %v591
  %1782 = vmatprep.subr.mxu0 0.0
  %1783 = vmatpush1.msra.mxu0 %v592
  %1784 = vmatprep.subr.mxu0 0.0
  %1785 = vmatpush1.msra.mxu0 %v593
  %1786 = vmatprep.subr.mxu0 0.0
  %1787 = vmatpush1.msra.mxu0 %v594
  %1788 = vmatprep.subr.mxu0 0.0
  %1789 = vmatpush1.msra.mxu0 %v595
  %1790 = vmatprep.subr.mxu0 0.0
  %1791 = vmatpush1.msra.mxu0 %v596
  %1792 = vmatprep.subr.mxu0 0.0
  %1793 = vmatpush1.msra.mxu0 %v597
  %1794 = vmatprep.mubr.f32.mxu0 %v53
  %1795 = vmatmul.mubr.f32.gmra.mrb[0].mxu0 %v52
  %v1796 = vpop.f32.mrb[0].mxu0
  %v1797 = vadd.f32 %v1722, %v1796
  %v1798 = vpop.f32.mrb[0].mxu0
  %1799 = vmatprep.mubr.f32.mxu0 %v85
  %1800 = vmatmul.mubr.f32.gmra.mrb[0].mxu0 %v84
  %v1801 = vpop.f32.mrb[0].mxu0
  %v1802 = vadd.f32 %v1727, %v1801
  %v1803 = vpop.f32.mrb[0].mxu0
  %1804 = vdwg.mxu0
  %v1805 = vmax.f32 %v1797, 0.0
  %v1806 = vmax.f32 %v1802, 0.0
  %vm1807 = vcmask 261120
  %1808 = vst.msk [vmem:[%s5] sm:$0xff] %vm1807, %v1805
  %vm1809 = vcmask 257024
  %1810 = vst.msk [vmem:[%s5 + $0x8] sm:$0xf] %vm1809, %v1806
  %v1811 = vld [vmem:[%s3] sm:$0xff]
  %v1812 = vld [vmem:[%s3 + $0x8] sm:$0xff]
  %v1813 = vld [vmem:[%s3 + $0x10] sm:$0xff]
  %v1814 = vld [vmem:[%s3 + $0x18] sm:$0xff]
  %v1815 = vld [vmem:[%s4] sm:$0x1]
  %v1817 = vlaneseq
  %v1818 = vshrl.u32 %v1817, 7
  %v1819 = vsub.s32 0, %v1818
  %v1820 = vrot.slane %v1815, %v1819
  %v1823 = vsel %vm1807, %v1805, 0
  %v1826 = vsel %vm1807, %v1806, 0
  %1828 = vmatprep.subr.mxu0 0.0
  %1829 = vmatpush1.msra.mxu0 %v1811
  %1830 = vmatprep.subr.mxu0 0.0
  %1831 = vmatpush1.msra.mxu0 %v1812
  %1832 = vmatprep.subr.mxu0 0.0
  %1833 = vmatpush1.msra.mxu0 %v1813
  %1834 = vmatprep.subr.mxu0 0.0
  %1835 = vmatpush1.msra.mxu0 %v1814
  %1836 = vmatprep.subr.mxu0 0.0
  %1837 = vmatpush1.msra.mxu0 0.0
  %1838 = vmatprep.subr.mxu0 0.0
  %1839 = vmatpush1.msra.mxu0 0.0
  %1840 = vmatprep.subr.mxu0 0.0
  %1841 = vmatpush1.msra.mxu0 0.0
  %1842 = vmatprep.subr.mxu0 0.0
  %1843 = vmatpush1.msra.mxu0 0.0
  %1844 = vmatprep.subr.mxu0 0.0
  %1845 = vmatpush1.msra.mxu0 0.0
  %1846 = vmatprep.subr.mxu0 0.0
  %1847 = vmatpush1.msra.mxu0 0.0
  %1848 = vmatprep.subr.mxu0 0.0
  %1849 = vmatpush1.msra.mxu0 0.0
  %1850 = vmatprep.subr.mxu0 0.0
  %1851 = vmatpush1.msra.mxu0 0.0
  %1852 = vmatprep.subr.mxu0 0.0
  %1853 = vmatpush1.msra.mxu0 0.0
  %1854 = vmatprep.subr.mxu0 0.0
  %1855 = vmatpush1.msra.mxu0 0.0
  %1856 = vmatprep.subr.mxu0 0.0
  %1857 = vmatpush1.msra.mxu0 0.0
  %1858 = vmatprep.subr.mxu0 0.0
  %1859 = vmatpush1.msra.mxu0 0.0
  %1860 = vmatprep.subr.mxu0 0.0
  %1861 = vmatpush1.msra.mxu0 0.0
  %1862 = vmatprep.subr.mxu0 0.0
  %1863 = vmatpush1.msra.mxu0 0.0
  %1864 = vmatprep.subr.mxu0 0.0
  %1865 = vmatpush1.msra.mxu0 0.0
  %1866 = vmatprep.subr.mxu0 0.0
  %1867 = vmatpush1.msra.mxu0 0.0
  %1868 = vmatprep.subr.mxu0 0.0
  %1869 = vmatpush1.msra.mxu0 0.0
  %1870 = vmatprep.subr.mxu0 0.0
  %1871 = vmatpush1.msra.mxu0 0.0
  %1872 = vmatprep.subr.mxu0 0.0
  %1873 = vmatpush1.msra.mxu0 0.0
  %1874 = vmatprep.subr.mxu0 0.0
  %1875 = vmatpush1.msra.mxu0 0.0
  %1876 = vmatprep.subr.mxu0 0.0
  %1877 = vmatpush1.msra.mxu0 0.0
  %1878 = vmatprep.subr.mxu0 0.0
  %1879 = vmatpush1.msra.mxu0 0.0
  %1880 = vmatprep.subr.mxu0 0.0
  %1881 = vmatpush1.msra.mxu0 0.0
  %1882 = vmatprep.subr.mxu0 0.0
  %1883 = vmatpush1.msra.mxu0 0.0
  %1884 = vmatprep.subr.mxu0 0.0
  %1885 = vmatpush1.msra.mxu0 0.0
  %1886 = vmatprep.subr.mxu0 0.0
  %1887 = vmatpush1.msra.mxu0 0.0
  %1888 = vmatprep.subr.mxu0 0.0
  %1889 = vmatpush1.msra.mxu0 0.0
  %1890 = vmatprep.subr.mxu0 0.0
  %1891 = vmatpush1.msra.mxu0 0.0
  %1892 = vmatprep.mubr.f32.mxu0 0.0
  %1893 = vmatmul.mubr.f32.gmra.mrb[0].mxu0 %v1823
  %v1894 = vpop.f32.mrb[0].mxu0
  %v1895 = vadd.f32 %v1820, %v1894
  %v1896 = vpop.f32.mrb[0].mxu0
  %1897 = vmatprep.mubr.f32.mxu0 0.0
  %1898 = vmatmul.mubr.f32.gmra.mrb[0].mxu0 %v1826
  %v1899 = vpop.f32.mrb[0].mxu0
  %v1900 = vadd.f32 %v1820, %v1899
  %v1901 = vpop.f32.mrb[0].mxu0
  %1902 = vdwg.mxu0
  %vm1903 = vcmask 15360
  %1904 = vst.msk [vmem:[%s6] sm:$0xff] %vm1903, %v1895
  %vm1905 = vcmask 11264
  %1906 = vst.msk [vmem:[%s6 + $0x8] sm:$0xf] %vm1905, %v1900
  // Predicated region
  $region22: #{memory_network_forward.5} parent=0 // pred_check
    _
  $region23: #{memory_network_forward.5} parent=0 // pred_check_branch
    %1908 = sbr.rel (0) target = $region25
  $region24: #{memory_network_forward.5} parent=0 // pred_region
    _
  $region25: #{memory_network_forward.5} parent=0 // pred_fallthru
    _
  // Predicated region
  $region26: #{memory_network_forward.5} parent=0 // pred_check
    _
  $region27: #{memory_network_forward.5} parent=0 // pred_check_branch
    %1910 = sbr.rel (0) target = $region29
  $region28: #{memory_network_forward.5} parent=0 // pred_region
    _
  $region29: #{memory_network_forward.5} parent=0 // pred_fallthru
    _
  // Predicated region
  $region30: #{memory_network_forward.5} parent=0 // pred_check
    _
  $region31: #{memory_network_forward.5} parent=0 // pred_check_branch
    %1912 = sbr.rel (0) target = $region33
  $region32: #{memory_network_forward.5} parent=0 // pred_region
    _
  $region33: #{memory_network_forward.5} parent=0 // pred_fallthru
    _
  // Predicated region
  $region34: #{memory_network_forward.5} parent=0 // pred_check
    _
  $region35: #{memory_network_forward.5} parent=0 // pred_check_branch
    %1914 = sbr.rel (0) target = $region37
  $region36: #{memory_network_forward.5} parent=0 // pred_region
    _
  $region37: #{memory_network_forward.5} parent=0 // pred_fallthru
    _

// kernel: memory_network_forward.4
$region0: #{memory_network_forward.4}
  #allocation0 [shape = 'u32[]', space=smem, size = 0x4, offset = 0x4, fixed_abs, tag = 'smem constant byte address 0x4 - core index']
  #allocation1 [shape = 'u32[144,128]{1,0:T(1,128)}', space=vmem, size = 0x12000, scoped, tag = 'internal scratch']
  %s0 = inlined_call_operand.vmem [shape: bf16[2,8,768], index: 0, kind: input, shape index: {}]
  %s1 = inlined_call_operand.vmem [shape: bf16[2,8,768], index: 1, kind: input, shape index: {}]
  %s2 = inlined_call_operand.vmem [shape: bf16[2,8,1024], index: 2, kind: input, shape index: {}]
  %s3 = inlined_call_operand.vmem [shape: bf16[2,8,1024], index: 3, kind: input, shape index: {}]
  %s4 = inlined_call_operand.vmem [shape: f32[2,2,16,768], index: 4, kind: output, shape index: {}]
  %s5 = sld [smem:[#allocation0]]
  $region49: #{memory_network_forward.4} parent=0
    _
  %s7 = ssub.s32 1, %s5
  %s8 = scalar_select 0, %s7, %s5
  loop: start=0, step=1, limit=6
  $region2: #{memory_network_forward.4} parent=0 // loop_pre_header
    _
  $region3: #{memory_network_forward.4} parent=0 // loop_header
    %s10 = sphi 0, %s14
    %p11 = scmp.ge.s32.totalorder %s10, 6
    %s17 = sphi 0, %s29
    %s18 = sphi 0, %s25
    %s19 = sphi 0, %s17
    %s20 = sphi 0, %s18
    %s21 = sphi 0, %s19
    %s22 = sphi 0, %s20
    %s32 = sphi 0, %s34
    %s35 = sphi 0, %s32
    %s36 = sphi 0, %s35
    %s52 = sphi 0, %s36
    %s58 = sphi 0, %s60
    %s61 = sphi 0, %s58
    %s62 = sphi 0, %s61
    %s78 = sphi 0, %s62
    %s84 = sphi 0, %s86
    %s87 = sphi 0, %s84
    %s88 = sphi 0, %s87
    %s104 = sphi 0, %s88
    %s110 = sphi 0, %s112
    %s113 = sphi 0, %s110
    %s114 = sphi 0, %s113
    %s130 = sphi 0, %s114
    %s138 = sphi 0, %s140
    %s141 = sphi 0, %s138
    %s142 = sphi 0, %s141
    %s158 = sphi 0, %s142
  $region4: #{memory_network_forward.4} parent=0 // loop_header_branch
    %13 = sbr.rel (%p11) target = $region8
  $region5: #{memory_network_forward.4} parent=0 // loop_body
    %s15 = ssub.s32 %s10, 1
    %s16 = ssub.s32 %s10, 2
    %s23 = sadd.s32 1, %s18
    %p24 = scmp.ge.s32.totalorder %s23, 2
    %s25 = scalar_select %p24, 0, %s23
    %s26 = sadd.s32 1, %s17
    %s27 = scalar_select %p24, %s26, %s17
    %p28 = scmp.ge.s32.totalorder %s27, 2
    %s29 = scalar_select %p28, 0, %s27
    %s30 = ssub.s32 %s18, %s25
    %p31 = scmp.eq.s32.totalorder %s30, 0
    %s33 = sadd.s32 %s32, 1
    %s34 = scalar_select %p31, %s32, %s33
    %p37 = pneg %p31
    %p38 = scmp.eq.s32.totalorder %s10, 3
    %p39 = por %p37, %p38
    %p40 = scmp.ne.s32.totalorder %s32, %s35
    %p41 = scmp.eq.s32.totalorder %s10, 0
    %p42 = por %p40, %p41
    %p43 = scmp.ne.s32.totalorder %s32, %s35
    %p44 = scmp.eq.s32.totalorder %s15, 3
    %p45 = por %p43, %p44
    %p46 = scmp.ne.s32.totalorder %s35, %s36
    %p47 = scmp.eq.s32.totalorder %s15, 0
    %p48 = por %p46, %p47
    %p49 = scmp.ne.s32.totalorder %s35, %s36
    %p50 = scmp.eq.s32.totalorder %s16, 3
    %p51 = por %p49, %p50
    %p53 = scmp.ne.s32.totalorder %s36, %s52
    %p54 = scmp.eq.s32.totalorder %s16, 0
    %p55 = por %p53, %p54
    %s56 = ssub.s32 %s18, %s25
    %p57 = scmp.eq.s32.totalorder %s56, 0
    %s59 = sadd.s32 %s58, 1
    %s60 = scalar_select %p57, %s58, %s59
    %p63 = pneg %p57
    %p64 = scmp.eq.s32.totalorder %s10, 3
    %p65 = por %p63, %p64
    %p66 = scmp.ne.s32.totalorder %s58, %s61
    %p67 = scmp.eq.s32.totalorder %s10, 0
    %p68 = por %p66, %p67
    %p69 = scmp.ne.s32.totalorder %s58, %s61
    %p70 = scmp.eq.s32.totalorder %s15, 3
    %p71 = por %p69, %p70
    %p72 = scmp.ne.s32.totalorder %s61, %s62
    %p73 = scmp.eq.s32.totalorder %s15, 0
    %p74 = por %p72, %p73
    %p75 = scmp.ne.s32.totalorder %s61, %s62
    %p76 = scmp.eq.s32.totalorder %s16, 3
    %p77 = por %p75, %p76
    %p79 = scmp.ne.s32.totalorder %s62, %s78
    %p80 = scmp.eq.s32.totalorder %s16, 0
    %p81 = por %p79, %p80
    %s82 = ssub.s32 %s17, %s29
    %p83 = scmp.eq.s32.totalorder %s82, 0
    %s85 = sadd.s32 %s84, 1
    %s86 = scalar_select %p83, %s84, %s85
    %p89 = pneg %p83
    %p90 = scmp.eq.s32.totalorder %s10, 3
    %p91 = por %p89, %p90
    %p92 = scmp.ne.s32.totalorder %s84, %s87
    %p93 = scmp.eq.s32.totalorder %s10, 0
    %p94 = por %p92, %p93
    %p95 = scmp.ne.s32.totalorder %s84, %s87
    %p96 = scmp.eq.s32.totalorder %s15, 3
    %p97 = por %p95, %p96
    %p98 = scmp.ne.s32.totalorder %s87, %s88
    %p99 = scmp.eq.s32.totalorder %s15, 0
    %p100 = por %p98, %p99
    %p101 = scmp.ne.s32.totalorder %s87, %s88
    %p102 = scmp.eq.s32.totalorder %s16, 3
    %p103 = por %p101, %p102
    %p105 = scmp.ne.s32.totalorder %s88, %s104
    %p106 = scmp.eq.s32.totalorder %s16, 0
    %p107 = por %p105, %p106
    %s108 = ssub.s32 %s17, %s29
    %p109 = scmp.eq.s32.totalorder %s108, 0
    %s111 = sadd.s32 %s110, 1
    %s112 = scalar_select %p109, %s110, %s111
    %p115 = pneg %p109
    %p116 = scmp.eq.s32.totalorder %s10, 3
    %p117 = por %p115, %p116
    %p118 = scmp.ne.s32.totalorder %s110, %s113
    %p119 = scmp.eq.s32.totalorder %s10, 0
    %p120 = por %p118, %p119
    %p121 = scmp.ne.s32.totalorder %s110, %s113
    %p122 = scmp.eq.s32.totalorder %s15, 3
    %p123 = por %p121, %p122
    %p124 = scmp.ne.s32.totalorder %s113, %s114
    %p125 = scmp.eq.s32.totalorder %s15, 0
    %p126 = por %p124, %p125
    %p127 = scmp.ne.s32.totalorder %s113, %s114
    %p128 = scmp.eq.s32.totalorder %s16, 3
    %p129 = por %p127, %p128
    %p131 = scmp.ne.s32.totalorder %s114, %s130
    %p132 = scmp.eq.s32.totalorder %s16, 0
    %p133 = por %p131, %p132
    %s134 = ssub.s32 %s18, %s25
    %s135 = ssub.s32 %s17, %s29
    %s136 = sor.u32 %s134, %s135
    %p137 = scmp.eq.s32.totalorder %s136, 0
    %s139 = sadd.s32 %s138, 1
    %s140 = scalar_select %p137, %s138, %s139
    %p143 = pneg %p137
    %p144 = scmp.eq.s32.totalorder %s10, 3
    %p145 = por %p143, %p144
    %p146 = scmp.ne.s32.totalorder %s138, %s141
    %p147 = scmp.eq.s32.totalorder %s10, 0
    %p148 = por %p146, %p147
    %p149 = scmp.ne.s32.totalorder %s138, %s141
    %p150 = scmp.eq.s32.totalorder %s15, 3
    %p151 = por %p149, %p150
    %p152 = scmp.ne.s32.totalorder %s141, %s142
    %p153 = scmp.eq.s32.totalorder %s15, 0
    %p154 = por %p152, %p153
    %p155 = scmp.ne.s32.totalorder %s141, %s142
    %p156 = scmp.eq.s32.totalorder %s16, 3
    %p157 = por %p155, %p156
    %p159 = scmp.ne.s32.totalorder %s142, %s158
    %p160 = scmp.eq.s32.totalorder %s16, 0
    %p161 = por %p159, %p160
    %p162 = scmp.le.s32.totalorder 1, %s10
    %p163 = scmp.lt.s32.totalorder %s10, 5
    %p164 = pnand %p162, %p163
    %p165 = pneg %p164
    // Predicated region
    $region9: #{memory_network_forward.4} parent=5 // pred_check
      _
    $region10: #{memory_network_forward.4} parent=5 // pred_check_branch
      %167 = sbr.rel (%p164) target = $region12
    $region11: #{memory_network_forward.4} parent=5 // pred_region
      %s168 = ssub.s32 %s10, 1
    $region12: #{memory_network_forward.4} parent=5 // pred_fallthru
      _
    %p169 = scmp.lt.s32.totalorder %s10, 4
    // Predicated region
    $region13: #{memory_network_forward.4} parent=5 // pred_check
      %p170 = pneg %p169
    $region14: #{memory_network_forward.4} parent=5 // pred_check_branch
      %172 = sbr.rel (%p170) target = $region16
    $region15: #{memory_network_forward.4} parent=5 // pred_region
      // Predicated region
      $region17: #{memory_network_forward.4} parent=15 // pred_check
        %p173 = pneg %p42
      $region18: #{memory_network_forward.4} parent=15 // pred_check_branch
        %175 = sbr.rel (%p173) target = $region20
      $region19: #{memory_network_forward.4} parent=15 // pred_region
        %p176 = scmp.lt.s32.totalorder %s18, 1
        %s177 = scalar_select %p176, %s18, 1
        %s178 = smul.addr %s177, 6
        %s179 = smul.addr %s178, 4
        %s180 = scalar_lea.vmem %s0, %s179
      $region20: #{memory_network_forward.4} parent=15 // pred_fallthru
        _
      // Predicated region
      $region21: #{memory_network_forward.4} parent=15 // pred_check
        %p181 = pneg %p68
      $region22: #{memory_network_forward.4} parent=15 // pred_check_branch
        %183 = sbr.rel (%p181) target = $region24
      $region23: #{memory_network_forward.4} parent=15 // pred_region
        %p184 = scmp.lt.s32.totalorder %s18, 1
        %s185 = scalar_select %p184, %s18, 1
        %s186 = smul.addr %s185, 6
        %s187 = smul.addr %s186, 4
        %s188 = scalar_lea.vmem %s1, %s187
      $region24: #{memory_network_forward.4} parent=15 // pred_fallthru
        _
      // Predicated region
      $region25: #{memory_network_forward.4} parent=15 // pred_check
        %p189 = pneg %p94
      $region26: #{memory_network_forward.4} parent=15 // pred_check_branch
        %191 = sbr.rel (%p189) target = $region28
      $region27: #{memory_network_forward.4} parent=15 // pred_region
        %p192 = scmp.lt.s32.totalorder %s17, 1
        %s193 = scalar_select %p192, %s17, 1
        %s194 = smul.addr %s193, 8
        %s195 = smul.addr %s194, 4
        %s196 = scalar_lea.vmem %s2, %s195
      $region28: #{memory_network_forward.4} parent=15 // pred_fallthru
        _
      // Predicated region
      $region29: #{memory_network_forward.4} parent=15 // pred_check
        %p197 = pneg %p120
      $region30: #{memory_network_forward.4} parent=15 // pred_check_branch
        %199 = sbr.rel (%p197) target = $region32
      $region31: #{memory_network_forward.4} parent=15 // pred_region
        %p200 = scmp.lt.s32.totalorder %s17, 1
        %s201 = scalar_select %p200, %s17, 1
        %s202 = smul.addr %s201, 8
        %s203 = smul.addr %s202, 4
        %s204 = scalar_lea.vmem %s3, %s203
      $region32: #{memory_network_forward.4} parent=15 // pred_fallthru
        _
    $region16: #{memory_network_forward.4} parent=5 // pred_fallthru
      _
    %p205 = scmp.le.s32.totalorder 1, %s10
    %p206 = scmp.lt.s32.totalorder %s10, 5
    %p207 = pnand %p205, %p206
    %p208 = pneg %p207
    // Predicated region
    $region33: #{memory_network_forward.4} parent=5 // pred_check
      _
    $region34: #{memory_network_forward.4} parent=5 // pred_check_branch
      %210 = sbr.rel (%p207) target = $region36
    $region35: #{memory_network_forward.4} parent=5 // pred_region
      %s211 = ssub.s32 %s10, 1
      %p212 = scmp.lt.s32.totalorder %s20, 1
      %s213 = scalar_select %p212, %s20, 1
      %s214 = smul.addr %s213, 6
      %s215 = smul.addr %s214, 4
      %s216 = scalar_lea.vmem %s0, %s215
      %p217 = pneg %p48
      %p218 = pneg %p45
      %p219 = scmp.lt.s32.totalorder %s20, 1
      %s220 = scalar_select %p219, %s20, 1
      %s221 = smul.addr %s220, 6
      %s222 = smul.addr %s221, 4
      %s223 = scalar_lea.vmem %s1, %s222
      %p224 = pneg %p74
      %p225 = pneg %p71
      %p226 = scmp.lt.s32.totalorder %s19, 1
      %s227 = scalar_select %p226, %s19, 1
      %s228 = smul.addr %s227, 8
      %s229 = smul.addr %s228, 4
      %s230 = scalar_lea.vmem %s2, %s229
      %p231 = pneg %p100
      %p232 = pneg %p97
      %p233 = scmp.lt.s32.totalorder %s19, 1
      %s234 = scalar_select %p233, %s19, 1
      %s235 = smul.addr %s234, 8
      %s236 = smul.addr %s235, 4
      %s237 = scalar_lea.vmem %s3, %s236
      %p238 = pneg %p126
      %p239 = pneg %p123
      %p240 = pneg %p154
      %p241 = pneg %p151
      %p242 = scmp.lt.s32.totalorder %s20, 1
      %s243 = scalar_select %p242, %s20, 1
      %p244 = scmp.lt.s32.totalorder %s19, 1
      %s245 = scalar_select %p244, %s19, 1
      %s246 = smul.addr %s245, 12
      %s247 = smul.addr %s243, 24
      %s248 = sadd.s32 %s246, %s247
      %s249 = smul.addr %s248, 8
      %s250 = scalar_lea.vmem %s4, %s249
      %p251 = scmp.lt.s32.totalorder %s20, 1
      %s252 = scalar_select %p251, %s20, 1
      %s253 = smul.addr %s252, 6
      %s254 = smul.addr %s253, 4
      %s255 = scalar_lea.vmem %s0, %s254
      %p256 = scmp.lt.s32.totalorder %s20, 1
      %s257 = scalar_select %p256, %s20, 1
      %s258 = smul.addr %s257, 6
      %s259 = smul.addr %s258, 4
      %s260 = scalar_lea.vmem %s1, %s259
      %p261 = scmp.lt.s32.totalorder %s19, 1
      %s262 = scalar_select %p261, %s19, 1
      %s263 = smul.addr %s262, 8
      %s264 = smul.addr %s263, 4
      %s265 = scalar_lea.vmem %s2, %s264
      %p266 = scmp.lt.s32.totalorder %s19, 1
      %s267 = scalar_select %p266, %s19, 1
      %s268 = smul.addr %s267, 8
      %s269 = smul.addr %s268, 4
      %s270 = scalar_lea.vmem %s3, %s269
      %p271 = scmp.lt.s32.totalorder %s20, 1
      %s272 = scalar_select %p271, %s20, 1
      %p273 = scmp.lt.s32.totalorder %s19, 1
      %s274 = scalar_select %p273, %s19, 1
      %s275 = smul.addr %s274, 12
      %s276 = smul.addr %s272, 24
      %s277 = sadd.s32 %s275, %s276
      %s278 = smul.addr %s277, 8
      %s279 = scalar_lea.vmem %s4, %s278
      %v282 = vld [vmem:[%s255] sm:$0xff]
      %v283 = vld [vmem:[%s255 + $0x8] sm:$0xff]
      %v284 = vld [vmem:[%s255 + $0x10] sm:$0xff]
      %v285 = vmul.bf16 %v282, 1052065461
      %v286 = vmul.bf16 %v283, 1052065461
      %v287 = vmul.bf16 %v284, 1052065461
      %v288 = vld [vmem:[%s265] sm:$0xff]
      %v289 = vld [vmem:[%s270] sm:$0xff]
      %v291 = vunpack.c.l.b16 %v288
      %v292 = vunpack.c.h.b16 %v288
      %v293 = vpack.c.b16 %v291, %v291
      %v294 = vpack.c.b16 %v292, %v292
      %297 = vxpose.xlu0.c.b16.start [1/8] %v293, 128
      %298 = vxpose.xlu0.c.b16.cont [2/8] 0, 128
      %299 = vxpose.xlu0.c.b16.cont [3/8] 0, 128
      %300 = vxpose.xlu0.c.b16.cont [4/8] 0, 128
      %301 = vxpose.xlu0.c.b16.cont [5/8] 0, 128
      %302 = vxpose.xlu0.c.b16.cont [6/8] 0, 128
      %303 = vxpose.xlu0.c.b16.cont [7/8] 0, 128
      %304 = vxpose.xlu0.c.b16.end [8/8] 0, 128
      %v305 = vpop.trf.xlu0
      %v306 = vpop.trf.xlu0
      %v307 = vpop.trf.xlu0
      %v308 = vpop.trf.xlu0
      %v309 = vpop.trf.xlu0
      %v310 = vpop.trf.xlu0
      %v311 = vpop.trf.xlu0
      %v312 = vpop.trf.xlu0
      %313 = vxpose.xlu0.c.b16.start [1/8] %v294, 128
      %314 = vxpose.xlu0.c.b16.cont [2/8] 0, 128
      %315 = vxpose.xlu0.c.b16.cont [3/8] 0, 128
      %316 = vxpose.xlu0.c.b16.cont [4/8] 0, 128
      %317 = vxpose.xlu0.c.b16.cont [5/8] 0, 128
      %318 = vxpose.xlu0.c.b16.cont [6/8] 0, 128
      %319 = vxpose.xlu0.c.b16.cont [7/8] 0, 128
      %320 = vxpose.xlu0.c.b16.end [8/8] 0, 128
      %v321 = vpop.trf.xlu0
      %v322 = vpop.trf.xlu0
      %v323 = vpop.trf.xlu0
      %v324 = vpop.trf.xlu0
      %v325 = vpop.trf.xlu0
      %v326 = vpop.trf.xlu0
      %v327 = vpop.trf.xlu0
      %v328 = vpop.trf.xlu0
      %v332 = vunpack.c.l.b16 %v285
      %v333 = vunpack.c.h.b16 %v285
      %v334 = vunpack.c.l.b16 %v286
      %v335 = vunpack.c.h.b16 %v286
      %v336 = vunpack.c.l.b16 %v287
      %v337 = vunpack.c.h.b16 %v287
      %v338 = vpack.c.b16 %v332, %v332
      %v339 = vpack.c.b16 %v333, %v333
      %v340 = vpack.c.b16 %v334, %v334
      %v341 = vpack.c.b16 %v335, %v335
      %v342 = vpack.c.b16 %v336, %v336
      %v343 = vpack.c.b16 %v337, %v337
      %vm344 = vcmask 64512
      %v346 = vsel %vm344, %v305, 0
      %v349 = vsel %vm344, %v306, 0
      %v352 = vsel %vm344, %v307, 0
      %v355 = vsel %vm344, %v308, 0
      %v358 = vsel %vm344, %v309, 0
      %v361 = vsel %vm344, %v310, 0
      %v364 = vsel %vm344, %v311, 0
      %v367 = vsel %vm344, %v312, 0
      %v370 = vsel %vm344, %v321, 0
      %v373 = vsel %vm344, %v322, 0
      %v376 = vsel %vm344, %v323, 0
      %v379 = vsel %vm344, %v324, 0
      %v382 = vsel %vm344, %v325, 0
      %v385 = vsel %vm344, %v326, 0
      %v388 = vsel %vm344, %v327, 0
      %v391 = vsel %vm344, %v328, 0
      %vm393 = vcmask 1043456
      %v395 = vsel %vm393, %v338, 0
      %v398 = vsel %vm393, %v339, 0
      %v401 = vsel %vm393, %v340, 0
      %v404 = vsel %vm393, %v341, 0
      %v407 = vsel %vm393, %v342, 0
      %v410 = vsel %vm393, %v343, 0
      %412 = vmatprep.subr.bf16.mxu0 %v398
      %413 = vmatpush1.bf16.msra.mxu0 %v395
      %414 = vmatprep.subr.bf16.mxu0 0
      %415 = vmatpush1.bf16.msra.mxu0 0
      %416 = vmatprep.subr.bf16.mxu0 0
      %417 = vmatpush1.bf16.msra.mxu0 0
      %418 = vmatprep.subr.bf16.mxu0 0
      %419 = vmatpush1.bf16.msra.mxu0 0
      %420 = vmatprep.subr.bf16.mxu0 0
      %421 = vmatpush1.bf16.msra.mxu0 0
      %422 = vmatprep.subr.bf16.mxu0 0
      %423 = vmatpush1.bf16.msra.mxu0 0
      %424 = vmatprep.subr.bf16.mxu0 0
      %425 = vmatpush1.bf16.msra.mxu0 0
      %426 = vmatprep.subr.bf16.mxu0 0
      %427 = vmatpush1.bf16.msra.mxu0 0
      %428 = vmatprep.subr.bf16.mxu0 0
      %429 = vmatpush1.bf16.msra.mxu0 0
      %430 = vmatprep.subr.bf16.mxu0 0
      %431 = vmatpush1.bf16.msra.mxu0 0
      %432 = vmatprep.subr.bf16.mxu0 0
      %433 = vmatpush1.bf16.msra.mxu0 0
      %434 = vmatprep.subr.bf16.mxu0 0
      %435 = vmatpush1.bf16.msra.mxu0 0
      %436 = vmatprep.subr.bf16.mxu0 0
      %437 = vmatpush1.bf16.msra.mxu0 0
      %438 = vmatprep.subr.bf16.mxu0 0
      %439 = vmatpush1.bf16.msra.mxu0 0
      %440 = vmatprep.subr.bf16.mxu0 0
      %441 = vmatpush1.bf16.msra.mxu0 0
      %442 = vmatprep.subr.bf16.mxu0 0
      %443 = vmatpush1.bf16.msra.mxu0 0
      %444 = vmatprep.mubr.bf16.mxu0 0
      %445 = vmatmul.mubr.bf16.gmra.mrb[0].mxu0 %v346
      %v446 = vpop.f32.mrb[0].mxu0
      %v447 = vadd.f32 0.0, %v446
      %v448 = vpop.f32.mrb[0].mxu0
      %v449 = vadd.f32 0.0, %v448
      %v450 = vpop.f32.mrb[0].mxu0
      %v451 = vadd.f32 0.0, %v450
      %v452 = vpop.f32.mrb[0].mxu0
      %v453 = vadd.f32 0.0, %v452
      %454 = vmatprep.mubr.bf16.mxu0 0
      %455 = vmatmul.mubr.bf16.gmra.mrb[0].mxu0 %v349
      %v456 = vpop.f32.mrb[0].mxu0
      %v457 = vadd.f32 0.0, %v456
      %v458 = vpop.f32.mrb[0].mxu0
      %v459 = vadd.f32 0.0, %v458
      %v460 = vpop.f32.mrb[0].mxu0
      %v461 = vadd.f32 0.0, %v460
      %v462 = vpop.f32.mrb[0].mxu0
      %v463 = vadd.f32 0.0, %v462
      %464 = vmatprep.mubr.bf16.mxu0 0
      %465 = vmatmul.mubr.bf16.gmra.mrb[0].mxu0 %v352
      %v466 = vpop.f32.mrb[0].mxu0
      %v467 = vadd.f32 0.0, %v466
      %v468 = vpop.f32.mrb[0].mxu0
      %v469 = vadd.f32 0.0, %v468
      %v470 = vpop.f32.mrb[0].mxu0
      %v471 = vadd.f32 0.0, %v470
      %v472 = vpop.f32.mrb[0].mxu0
      %v473 = vadd.f32 0.0, %v472
      %474 = vmatprep.mubr.bf16.mxu0 0
      %475 = vmatmul.mubr.bf16.gmra.mrb[0].mxu0 %v355
      %v476 = vpop.f32.mrb[0].mxu0
      %v477 = vadd.f32 0.0, %v476
      %v478 = vpop.f32.mrb[0].mxu0
      %v479 = vadd.f32 0.0, %v478
      %v480 = vpop.f32.mrb[0].mxu0
      %v481 = vadd.f32 0.0, %v480
      %v482 = vpop.f32.mrb[0].mxu0
      %v483 = vadd.f32 0.0, %v482
      %484 = vmatprep.mubr.bf16.mxu0 0
      %485 = vmatmul.mubr.bf16.gmra.mrb[0].mxu0 %v358
      %v486 = vpop.f32.mrb[0].mxu0
      %v487 = vadd.f32 0.0, %v486
      %v488 = vpop.f32.mrb[0].mxu0
      %v489 = vadd.f32 0.0, %v488
      %v490 = vpop.f32.mrb[0].mxu0
      %v491 = vadd.f32 0.0, %v490
      %v492 = vpop.f32.mrb[0].mxu0
      %v493 = vadd.f32 0.0, %v492
      %494 = vmatprep.mubr.bf16.mxu0 0
      %495 = vmatmul.mubr.bf16.gmra.mrb[0].mxu0 %v361
      %v496 = vpop.f32.mrb[0].mxu0
      %v497 = vadd.f32 0.0, %v496
      %v498 = vpop.f32.mrb[0].mxu0
      %v499 = vadd.f32 0.0, %v498
      %v500 = vpop.f32.mrb[0].mxu0
      %v501 = vadd.f32 0.0, %v500
      %v502 = vpop.f32.mrb[0].mxu0
      %v503 = vadd.f32 0.0, %v502
      %504 = vmatprep.mubr.bf16.mxu0 0
      %505 = vmatmul.mubr.bf16.gmra.mrb[0].mxu0 %v364
      %v506 = vpop.f32.mrb[0].mxu0
      %v507 = vadd.f32 0.0, %v506
      %v508 = vpop.f32.mrb[0].mxu0
      %v509 = vadd.f32 0.0, %v508
      %v510 = vpop.f32.mrb[0].mxu0
      %v511 = vadd.f32 0.0, %v510
      %v512 = vpop.f32.mrb[0].mxu0
      %v513 = vadd.f32 0.0, %v512
      %514 = vmatprep.mubr.bf16.mxu0 0
      %515 = vmatmul.mubr.bf16.gmra.mrb[0].mxu0 %v367
      %v516 = vpop.f32.mrb[0].mxu0
      %v517 = vadd.f32 0.0, %v516
      %v518 = vpop.f32.mrb[0].mxu0
      %v519 = vadd.f32 0.0, %v518
      %v520 = vpop.f32.mrb[0].mxu0
      %v521 = vadd.f32 0.0, %v520
      %v522 = vpop.f32.mrb[0].mxu0
      %v523 = vadd.f32 0.0, %v522
      %524 = vmatprep.mubr.bf16.mxu0 0
      %525 = vmatmul.mubr.bf16.gmra.mrb[0].mxu0 %v370
      %v526 = vpop.f32.mrb[0].mxu0
      %v527 = vadd.f32 0.0, %v526
      %v528 = vpop.f32.mrb[0].mxu0
      %v529 = vadd.f32 0.0, %v528
      %v530 = vpop.f32.mrb[0].mxu0
      %v531 = vadd.f32 0.0, %v530
      %v532 = vpop.f32.mrb[0].mxu0
      %v533 = vadd.f32 0.0, %v532
      %534 = vmatprep.mubr.bf16.mxu0 0
      %535 = vmatmul.mubr.bf16.gmra.mrb[0].mxu0 %v373
      %v536 = vpop.f32.mrb[0].mxu0
      %v537 = vadd.f32 0.0, %v536
      %v538 = vpop.f32.mrb[0].mxu0
      %v539 = vadd.f32 0.0, %v538
      %v540 = vpop.f32.mrb[0].mxu0
      %v541 = vadd.f32 0.0, %v540
      %v542 = vpop.f32.mrb[0].mxu0
      %v543 = vadd.f32 0.0, %v542
      %544 = vmatprep.mubr.bf16.mxu0 0
      %545 = vmatmul.mubr.bf16.gmra.mrb[0].mxu0 %v376
      %v546 = vpop.f32.mrb[0].mxu0
      %v547 = vadd.f32 0.0, %v546
      %v548 = vpop.f32.mrb[0].mxu0
      %v549 = vadd.f32 0.0, %v548
      %v550 = vpop.f32.mrb[0].mxu0
      %v551 = vadd.f32 0.0, %v550
      %v552 = vpop.f32.mrb[0].mxu0
      %v553 = vadd.f32 0.0, %v552
      %554 = vmatprep.mubr.bf16.mxu0 0
      %555 = vmatmul.mubr.bf16.gmra.mrb[0].mxu0 %v379
      %v556 = vpop.f32.mrb[0].mxu0
      %v557 = vadd.f32 0.0, %v556
      %v558 = vpop.f32.mrb[0].mxu0
      %v559 = vadd.f32 0.0, %v558
      %v560 = vpop.f32.mrb[0].mxu0
      %v561 = vadd.f32 0.0, %v560
      %v562 = vpop.f32.mrb[0].mxu0
      %v563 = vadd.f32 0.0, %v562
      %564 = vmatprep.mubr.bf16.mxu0 0
      %565 = vmatmul.mubr.bf16.gmra.mrb[0].mxu0 %v382
      %v566 = vpop.f32.mrb[0].mxu0
      %v567 = vadd.f32 0.0, %v566
      %v568 = vpop.f32.mrb[0].mxu0
      %v569 = vadd.f32 0.0, %v568
      %v570 = vpop.f32.mrb[0].mxu0
      %v571 = vadd.f32 0.0, %v570
      %v572 = vpop.f32.mrb[0].mxu0
      %v573 = vadd.f32 0.0, %v572
      %574 = vmatprep.mubr.bf16.mxu0 0
      %575 = vmatmul.mubr.bf16.gmra.mrb[0].mxu0 %v385
      %v576 = vpop.f32.mrb[0].mxu0
      %v577 = vadd.f32 0.0, %v576
      %v578 = vpop.f32.mrb[0].mxu0
      %v579 = vadd.f32 0.0, %v578
      %v580 = vpop.f32.mrb[0].mxu0
      %v581 = vadd.f32 0.0, %v580
      %v582 = vpop.f32.mrb[0].mxu0
      %v583 = vadd.f32 0.0, %v582
      %584 = vmatprep.mubr.bf16.mxu0 0
      %585 = vmatmul.mubr.bf16.gmra.mrb[0].mxu0 %v388
      %v586 = vpop.f32.mrb[0].mxu0
      %v587 = vadd.f32 0.0, %v586
      %v588 = vpop.f32.mrb[0].mxu0
      %v589 = vadd.f32 0.0, %v588
      %v590 = vpop.f32.mrb[0].mxu0
      %v591 = vadd.f32 0.0, %v590
      %v592 = vpop.f32.mrb[0].mxu0
      %v593 = vadd.f32 0.0, %v592
      %594 = vmatprep.mubr.bf16.mxu0 0
      %595 = vmatmul.mubr.bf16.gmra.mrb[0].mxu0 %v391
      %v596 = vpop.f32.mrb[0].mxu0
      %v597 = vadd.f32 0.0, %v596
      %v598 = vpop.f32.mrb[0].mxu0
      %v599 = vadd.f32 0.0, %v598
      %v600 = vpop.f32.mrb[0].mxu0
      %v601 = vadd.f32 0.0, %v600
      %v602 = vpop.f32.mrb[0].mxu0
      %v603 = vadd.f32 0.0, %v602
      %604 = vdwg.mxu0
      %605 = vmatprep.subr.bf16.mxu0 %v404
      %606 = vmatpush1.bf16.msra.mxu0 %v401
      %607 = vmatprep.subr.bf16.mxu0 0
      %608 = vmatpush1.bf16.msra.mxu0 0
      %609 = vmatprep.subr.bf16.mxu0 0
      %610 = vmatpush1.bf16.msra.mxu0 0
      %611 = vmatprep.subr.bf16.mxu0 0
      %612 = vmatpush1.bf16.msra.mxu0 0
      %613 = vmatprep.subr.bf16.mxu0 0
      %614 = vmatpush1.bf16.msra.mxu0 0
      %615 = vmatprep.subr.bf16.mxu0 0
      %616 = vmatpush1.bf16.msra.mxu0 0
      %617 = vmatprep.subr.bf16.mxu0 0
      %618 = vmatpush1.bf16.msra.mxu0 0
      %619 = vmatprep.subr.bf16.mxu0 0
      %620 = vmatpush1.bf16.msra.mxu0 0
      %621 = vmatprep.subr.bf16.mxu0 0
      %622 = vmatpush1.bf16.msra.mxu0 0
      %623 = vmatprep.subr.bf16.mxu0 0
      %624 = vmatpush1.bf16.msra.mxu0 0
      %625 = vmatprep.subr.bf16.mxu0 0
      %626 = vmatpush1.bf16.msra.mxu0 0
      %627 = vmatprep.subr.bf16.mxu0 0
      %628 = vmatpush1.bf16.msra.mxu0 0
      %629 = vmatprep.subr.bf16.mxu0 0
      %630 = vmatpush1.bf16.msra.mxu0 0
      %631 = vmatprep.subr.bf16.mxu0 0
      %632 = vmatpush1.bf16.msra.mxu0 0
      %633 = vmatprep.subr.bf16.mxu0 0
      %634 = vmatpush1.bf16.msra.mxu0 0
      %635 = vmatprep.subr.bf16.mxu0 0
      %636 = vmatpush1.bf16.msra.mxu0 0
      %637 = vmatprep.mubr.bf16.mxu0 0
      %638 = vmatmul.mubr.bf16.gmra.mrb[0].mxu0 %v346
      %v639 = vpop.f32.mrb[0].mxu0
      %v640 = vadd.f32 0.0, %v639
      %v641 = vpop.f32.mrb[0].mxu0
      %v642 = vadd.f32 0.0, %v641
      %v643 = vpop.f32.mrb[0].mxu0
      %v644 = vadd.f32 0.0, %v643
      %v645 = vpop.f32.mrb[0].mxu0
      %v646 = vadd.f32 0.0, %v645
      %647 = vmatprep.mubr.bf16.mxu0 0
      %648 = vmatmul.mubr.bf16.gmra.mrb[0].mxu0 %v349
      %v649 = vpop.f32.mrb[0].mxu0
      %v650 = vadd.f32 0.0, %v649
      %v651 = vpop.f32.mrb[0].mxu0
      %v652 = vadd.f32 0.0, %v651
      %v653 = vpop.f32.mrb[0].mxu0
      %v654 = vadd.f32 0.0, %v653
      %v655 = vpop.f32.mrb[0].mxu0
      %v656 = vadd.f32 0.0, %v655
      %657 = vmatprep.mubr.bf16.mxu0 0
      %658 = vmatmul.mubr.bf16.gmra.mrb[0].mxu0 %v352
      %v659 = vpop.f32.mrb[0].mxu0
      %v660 = vadd.f32 0.0, %v659
      %v661 = vpop.f32.mrb[0].mxu0
      %v662 = vadd.f32 0.0, %v661
      %v663 = vpop.f32.mrb[0].mxu0
      %v664 = vadd.f32 0.0, %v663
      %v665 = vpop.f32.mrb[0].mxu0
      %v666 = vadd.f32 0.0, %v665
      %667 = vmatprep.mubr.bf16.mxu0 0
      %668 = vmatmul.mubr.bf16.gmra.mrb[0].mxu0 %v355
      %v669 = vpop.f32.mrb[0].mxu0
      %v670 = vadd.f32 0.0, %v669
      %v671 = vpop.f32.mrb[0].mxu0
      %v672 = vadd.f32 0.0, %v671
      %v673 = vpop.f32.mrb[0].mxu0
      %v674 = vadd.f32 0.0, %v673
      %v675 = vpop.f32.mrb[0].mxu0
      %v676 = vadd.f32 0.0, %v675
      %677 = vmatprep.mubr.bf16.mxu0 0
      %678 = vmatmul.mubr.bf16.gmra.mrb[0].mxu0 %v358
      %v679 = vpop.f32.mrb[0].mxu0
      %v680 = vadd.f32 0.0, %v679
      %v681 = vpop.f32.mrb[0].mxu0
      %v682 = vadd.f32 0.0, %v681
      %v683 = vpop.f32.mrb[0].mxu0
      %v684 = vadd.f32 0.0, %v683
      %v685 = vpop.f32.mrb[0].mxu0
      %v686 = vadd.f32 0.0, %v685
      %687 = vmatprep.mubr.bf16.mxu0 0
      %688 = vmatmul.mubr.bf16.gmra.mrb[0].mxu0 %v361
      %v689 = vpop.f32.mrb[0].mxu0
      %v690 = vadd.f32 0.0, %v689
      %v691 = vpop.f32.mrb[0].mxu0
      %v692 = vadd.f32 0.0, %v691
      %v693 = vpop.f32.mrb[0].mxu0
      %v694 = vadd.f32 0.0, %v693
      %v695 = vpop.f32.mrb[0].mxu0
      %v696 = vadd.f32 0.0, %v695
      %697 = vmatprep.mubr.bf16.mxu0 0
      %698 = vmatmul.mubr.bf16.gmra.mrb[0].mxu0 %v364
      %v699 = vpop.f32.mrb[0].mxu0
      %v700 = vadd.f32 0.0, %v699
      %v701 = vpop.f32.mrb[0].mxu0
      %v702 = vadd.f32 0.0, %v701
      %v703 = vpop.f32.mrb[0].mxu0
      %v704 = vadd.f32 0.0, %v703
      %v705 = vpop.f32.mrb[0].mxu0
      %v706 = vadd.f32 0.0, %v705
      %707 = vmatprep.mubr.bf16.mxu0 0
      %708 = vmatmul.mubr.bf16.gmra.mrb[0].mxu0 %v367
      %v709 = vpop.f32.mrb[0].mxu0
      %v710 = vadd.f32 0.0, %v709
      %v711 = vpop.f32.mrb[0].mxu0
      %v712 = vadd.f32 0.0, %v711
      %v713 = vpop.f32.mrb[0].mxu0
      %v714 = vadd.f32 0.0, %v713
      %v715 = vpop.f32.mrb[0].mxu0
      %v716 = vadd.f32 0.0, %v715
      %717 = vmatprep.mubr.bf16.mxu0 0
      %718 = vmatmul.mubr.bf16.gmra.mrb[0].mxu0 %v370
      %v719 = vpop.f32.mrb[0].mxu0
      %v720 = vadd.f32 0.0, %v719
      %v721 = vpop.f32.mrb[0].mxu0
      %v722 = vadd.f32 0.0, %v721
      %v723 = vpop.f32.mrb[0].mxu0
      %v724 = vadd.f32 0.0, %v723
      %v725 = vpop.f32.mrb[0].mxu0
      %v726 = vadd.f32 0.0, %v725
      %727 = vmatprep.mubr.bf16.mxu0 0
      %728 = vmatmul.mubr.bf16.gmra.mrb[0].mxu0 %v373
      %v729 = vpop.f32.mrb[0].mxu0
      %v730 = vadd.f32 0.0, %v729
      %v731 = vpop.f32.mrb[0].mxu0
      %v732 = vadd.f32 0.0, %v731
      %v733 = vpop.f32.mrb[0].mxu0
      %v734 = vadd.f32 0.0, %v733
      %v735 = vpop.f32.mrb[0].mxu0
      %v736 = vadd.f32 0.0, %v735
      %737 = vmatprep.mubr.bf16.mxu0 0
      %738 = vmatmul.mubr.bf16.gmra.mrb[0].mxu0 %v376
      %v739 = vpop.f32.mrb[0].mxu0
      %v740 = vadd.f32 0.0, %v739
      %v741 = vpop.f32.mrb[0].mxu0
      %v742 = vadd.f32 0.0, %v741
      %v743 = vpop.f32.mrb[0].mxu0
      %v744 = vadd.f32 0.0, %v743
      %v745 = vpop.f32.mrb[0].mxu0
      %v746 = vadd.f32 0.0, %v745
      %747 = vmatprep.mubr.bf16.mxu0 0
      %748 = vmatmul.mubr.bf16.gmra.mrb[0].mxu0 %v379
      %v749 = vpop.f32.mrb[0].mxu0
      %v750 = vadd.f32 0.0, %v749
      %v751 = vpop.f32.mrb[0].mxu0
      %v752 = vadd.f32 0.0, %v751
      %v753 = vpop.f32.mrb[0].mxu0
      %v754 = vadd.f32 0.0, %v753
      %v755 = vpop.f32.mrb[0].mxu0
      %v756 = vadd.f32 0.0, %v755
      %757 = vmatprep.mubr.bf16.mxu0 0
      %758 = vmatmul.mubr.bf16.gmra.mrb[0].mxu0 %v382
      %v759 = vpop.f32.mrb[0].mxu0
      %v760 = vadd.f32 0.0, %v759
      %v761 = vpop.f32.mrb[0].mxu0
      %v762 = vadd.f32 0.0, %v761
      %v763 = vpop.f32.mrb[0].mxu0
      %v764 = vadd.f32 0.0, %v763
      %v765 = vpop.f32.mrb[0].mxu0
      %v766 = vadd.f32 0.0, %v765
      %767 = vmatprep.mubr.bf16.mxu0 0
      %768 = vmatmul.mubr.bf16.gmra.mrb[0].mxu0 %v385
      %v769 = vpop.f32.mrb[0].mxu0
      %v770 = vadd.f32 0.0, %v769
      %v771 = vpop.f32.mrb[0].mxu0
      %v772 = vadd.f32 0.0, %v771
      %v773 = vpop.f32.mrb[0].mxu0
      %v774 = vadd.f32 0.0, %v773
      %v775 = vpop.f32.mrb[0].mxu0
      %v776 = vadd.f32 0.0, %v775
      %777 = vmatprep.mubr.bf16.mxu0 0
      %778 = vmatmul.mubr.bf16.gmra.mrb[0].mxu0 %v388
      %v779 = vpop.f32.mrb[0].mxu0
      %v780 = vadd.f32 0.0, %v779
      %v781 = vpop.f32.mrb[0].mxu0
      %v782 = vadd.f32 0.0, %v781
      %v783 = vpop.f32.mrb[0].mxu0
      %v784 = vadd.f32 0.0, %v783
      %v785 = vpop.f32.mrb[0].mxu0
      %v786 = vadd.f32 0.0, %v785
      %787 = vmatprep.mubr.bf16.mxu0 0
      %788 = vmatmul.mubr.bf16.gmra.mrb[0].mxu0 %v391
      %v789 = vpop.f32.mrb[0].mxu0
      %v790 = vadd.f32 0.0, %v789
      %v791 = vpop.f32.mrb[0].mxu0
      %v792 = vadd.f32 0.0, %v791
      %v793 = vpop.f32.mrb[0].mxu0
      %v794 = vadd.f32 0.0, %v793
      %v795 = vpop.f32.mrb[0].mxu0
      %v796 = vadd.f32 0.0, %v795
      %797 = vdwg.mxu0
      %798 = vmatprep.subr.bf16.mxu0 %v410
      %799 = vmatpush1.bf16.msra.mxu0 %v407
      %800 = vmatprep.subr.bf16.mxu0 0
      %801 = vmatpush1.bf16.msra.mxu0 0
      %802 = vmatprep.subr.bf16.mxu0 0
      %803 = vmatpush1.bf16.msra.mxu0 0
      %804 = vmatprep.subr.bf16.mxu0 0
      %805 = vmatpush1.bf16.msra.mxu0 0
      %806 = vmatprep.subr.bf16.mxu0 0
      %807 = vmatpush1.bf16.msra.mxu0 0
      %808 = vmatprep.subr.bf16.mxu0 0
      %809 = vmatpush1.bf16.msra.mxu0 0
      %810 = vmatprep.subr.bf16.mxu0 0
      %811 = vmatpush1.bf16.msra.mxu0 0
      %812 = vmatprep.subr.bf16.mxu0 0
      %813 = vmatpush1.bf16.msra.mxu0 0
      %814 = vmatprep.subr.bf16.mxu0 0
      %815 = vmatpush1.bf16.msra.mxu0 0
      %816 = vmatprep.subr.bf16.mxu0 0
      %817 = vmatpush1.bf16.msra.mxu0 0
      %818 = vmatprep.subr.bf16.mxu0 0
      %819 = vmatpush1.bf16.msra.mxu0 0
      %820 = vmatprep.subr.bf16.mxu0 0
      %821 = vmatpush1.bf16.msra.mxu0 0
      %822 = vmatprep.subr.bf16.mxu0 0
      %823 = vmatpush1.bf16.msra.mxu0 0
      %824 = vmatprep.subr.bf16.mxu0 0
      %825 = vmatpush1.bf16.msra.mxu0 0
      %826 = vmatprep.subr.bf16.mxu0 0
      %827 = vmatpush1.bf16.msra.mxu0 0
      %828 = vmatprep.subr.bf16.mxu0 0
      %829 = vmatpush1.bf16.msra.mxu0 0
      %830 = vmatprep.mubr.bf16.mxu0 0
      %831 = vmatmul.mubr.bf16.gmra.mrb[0].mxu0 %v346
      %v832 = vpop.f32.mrb[0].mxu0
      %v833 = vadd.f32 0.0, %v832
      %v834 = vpop.f32.mrb[0].mxu0
      %v835 = vadd.f32 0.0, %v834
      %v836 = vpop.f32.mrb[0].mxu0
      %v837 = vadd.f32 0.0, %v836
      %v838 = vpop.f32.mrb[0].mxu0
      %v839 = vadd.f32 0.0, %v838
      %840 = vmatprep.mubr.bf16.mxu0 0
      %841 = vmatmul.mubr.bf16.gmra.mrb[0].mxu0 %v349
      %v842 = vpop.f32.mrb[0].mxu0
      %v843 = vadd.f32 0.0, %v842
      %v844 = vpop.f32.mrb[0].mxu0
      %v845 = vadd.f32 0.0, %v844
      %v846 = vpop.f32.mrb[0].mxu0
      %v847 = vadd.f32 0.0, %v846
      %v848 = vpop.f32.mrb[0].mxu0
      %v849 = vadd.f32 0.0, %v848
      %850 = vmatprep.mubr.bf16.mxu0 0
      %851 = vmatmul.mubr.bf16.gmra.mrb[0].mxu0 %v352
      %v852 = vpop.f32.mrb[0].mxu0
      %v853 = vadd.f32 0.0, %v852
      %v854 = vpop.f32.mrb[0].mxu0
      %v855 = vadd.f32 0.0, %v854
      %v856 = vpop.f32.mrb[0].mxu0
      %v857 = vadd.f32 0.0, %v856
      %v858 = vpop.f32.mrb[0].mxu0
      %v859 = vadd.f32 0.0, %v858
      %860 = vmatprep.mubr.bf16.mxu0 0
      %861 = vmatmul.mubr.bf16.gmra.mrb[0].mxu0 %v355
      %v862 = vpop.f32.mrb[0].mxu0
      %v863 = vadd.f32 0.0, %v862
      %v864 = vpop.f32.mrb[0].mxu0
      %v865 = vadd.f32 0.0, %v864
      %v866 = vpop.f32.mrb[0].mxu0
      %v867 = vadd.f32 0.0, %v866
      %v868 = vpop.f32.mrb[0].mxu0
      %v869 = vadd.f32 0.0, %v868
      %870 = vmatprep.mubr.bf16.mxu0 0
      %871 = vmatmul.mubr.bf16.gmra.mrb[0].mxu0 %v358
      %v872 = vpop.f32.mrb[0].mxu0
      %v873 = vadd.f32 0.0, %v872
      %v874 = vpop.f32.mrb[0].mxu0
      %v875 = vadd.f32 0.0, %v874
      %v876 = vpop.f32.mrb[0].mxu0
      %v877 = vadd.f32 0.0, %v876
      %v878 = vpop.f32.mrb[0].mxu0
      %v879 = vadd.f32 0.0, %v878
      %880 = vmatprep.mubr.bf16.mxu0 0
      %881 = vmatmul.mubr.bf16.gmra.mrb[0].mxu0 %v361
      %v882 = vpop.f32.mrb[0].mxu0
      %v883 = vadd.f32 0.0, %v882
      %v884 = vpop.f32.mrb[0].mxu0
      %v885 = vadd.f32 0.0, %v884
      %v886 = vpop.f32.mrb[0].mxu0
      %v887 = vadd.f32 0.0, %v886
      %v888 = vpop.f32.mrb[0].mxu0
      %v889 = vadd.f32 0.0, %v888
      %890 = vmatprep.mubr.bf16.mxu0 0
      %891 = vmatmul.mubr.bf16.gmra.mrb[0].mxu0 %v364
      %v892 = vpop.f32.mrb[0].mxu0
      %v893 = vadd.f32 0.0, %v892
      %v894 = vpop.f32.mrb[0].mxu0
      %v895 = vadd.f32 0.0, %v894
      %v896 = vpop.f32.mrb[0].mxu0
      %v897 = vadd.f32 0.0, %v896
      %v898 = vpop.f32.mrb[0].mxu0
      %v899 = vadd.f32 0.0, %v898
      %900 = vmatprep.mubr.bf16.mxu0 0
      %901 = vmatmul.mubr.bf16.gmra.mrb[0].mxu0 %v367
      %v902 = vpop.f32.mrb[0].mxu0
      %v903 = vadd.f32 0.0, %v902
      %v904 = vpop.f32.mrb[0].mxu0
      %v905 = vadd.f32 0.0, %v904
      %v906 = vpop.f32.mrb[0].mxu0
      %v907 = vadd.f32 0.0, %v906
      %v908 = vpop.f32.mrb[0].mxu0
      %v909 = vadd.f32 0.0, %v908
      %910 = vmatprep.mubr.bf16.mxu0 0
      %911 = vmatmul.mubr.bf16.gmra.mrb[0].mxu0 %v370
      %v912 = vpop.f32.mrb[0].mxu0
      %v913 = vadd.f32 0.0, %v912
      %v914 = vpop.f32.mrb[0].mxu0
      %v915 = vadd.f32 0.0, %v914
      %v916 = vpop.f32.mrb[0].mxu0
      %v917 = vadd.f32 0.0, %v916
      %v918 = vpop.f32.mrb[0].mxu0
      %v919 = vadd.f32 0.0, %v918
      %920 = vmatprep.mubr.bf16.mxu0 0
      %921 = vmatmul.mubr.bf16.gmra.mrb[0].mxu0 %v373
      %v922 = vpop.f32.mrb[0].mxu0
      %v923 = vadd.f32 0.0, %v922
      %v924 = vpop.f32.mrb[0].mxu0
      %v925 = vadd.f32 0.0, %v924
      %v926 = vpop.f32.mrb[0].mxu0
      %v927 = vadd.f32 0.0, %v926
      %v928 = vpop.f32.mrb[0].mxu0
      %v929 = vadd.f32 0.0, %v928
      %930 = vmatprep.mubr.bf16.mxu0 0
      %931 = vmatmul.mubr.bf16.gmra.mrb[0].mxu0 %v376
      %v932 = vpop.f32.mrb[0].mxu0
      %v933 = vadd.f32 0.0, %v932
      %v934 = vpop.f32.mrb[0].mxu0
      %v935 = vadd.f32 0.0, %v934
      %v936 = vpop.f32.mrb[0].mxu0
      %v937 = vadd.f32 0.0, %v936
      %v938 = vpop.f32.mrb[0].mxu0
      %v939 = vadd.f32 0.0, %v938
      %940 = vmatprep.mubr.bf16.mxu0 0
      %941 = vmatmul.mubr.bf16.gmra.mrb[0].mxu0 %v379
      %v942 = vpop.f32.mrb[0].mxu0
      %v943 = vadd.f32 0.0, %v942
      %v944 = vpop.f32.mrb[0].mxu0
      %v945 = vadd.f32 0.0, %v944
      %v946 = vpop.f32.mrb[0].mxu0
      %v947 = vadd.f32 0.0, %v946
      %v948 = vpop.f32.mrb[0].mxu0
      %v949 = vadd.f32 0.0, %v948
      %950 = vmatprep.mubr.bf16.mxu0 0
      %951 = vmatmul.mubr.bf16.gmra.mrb[0].mxu0 %v382
      %v952 = vpop.f32.mrb[0].mxu0
      %v953 = vadd.f32 0.0, %v952
      %v954 = vpop.f32.mrb[0].mxu0
      %v955 = vadd.f32 0.0, %v954
      %v956 = vpop.f32.mrb[0].mxu0
      %v957 = vadd.f32 0.0, %v956
      %v958 = vpop.f32.mrb[0].mxu0
      %v959 = vadd.f32 0.0, %v958
      %960 = vmatprep.mubr.bf16.mxu0 0
      %961 = vmatmul.mubr.bf16.gmra.mrb[0].mxu0 %v385
      %v962 = vpop.f32.mrb[0].mxu0
      %v963 = vadd.f32 0.0, %v962
      %v964 = vpop.f32.mrb[0].mxu0
      %v965 = vadd.f32 0.0, %v964
      %v966 = vpop.f32.mrb[0].mxu0
      %v967 = vadd.f32 0.0, %v966
      %v968 = vpop.f32.mrb[0].mxu0
      %v969 = vadd.f32 0.0, %v968
      %970 = vmatprep.mubr.bf16.mxu0 0
      %971 = vmatmul.mubr.bf16.gmra.mrb[0].mxu0 %v388
      %v972 = vpop.f32.mrb[0].mxu0
      %v973 = vadd.f32 0.0, %v972
      %v974 = vpop.f32.mrb[0].mxu0
      %v975 = vadd.f32 0.0, %v974
      %v976 = vpop.f32.mrb[0].mxu0
      %v977 = vadd.f32 0.0, %v976
      %v978 = vpop.f32.mrb[0].mxu0
      %v979 = vadd.f32 0.0, %v978
      %980 = vmatprep.mubr.bf16.mxu0 0
      %981 = vmatmul.mubr.bf16.gmra.mrb[0].mxu0 %v391
      %v982 = vpop.f32.mrb[0].mxu0
      %v983 = vadd.f32 0.0, %v982
      %v984 = vpop.f32.mrb[0].mxu0
      %v985 = vadd.f32 0.0, %v984
      %v986 = vpop.f32.mrb[0].mxu0
      %v987 = vadd.f32 0.0, %v986
      %v988 = vpop.f32.mrb[0].mxu0
      %v989 = vadd.f32 0.0, %v988
      %990 = vdwg.mxu0
      %v991 = vmax.f32 %v447, %v451
      %v992 = vmax.f32 %v991, %v457
      %v993 = vmax.f32 %v992, %v461
      %v994 = vmax.f32 %v993, %v467
      %v995 = vmax.f32 %v994, %v471
      %v996 = vmax.f32 %v995, %v477
      %v997 = vmax.f32 %v996, %v481
      %v998 = vmax.f32 %v997, %v487
      %v999 = vmax.f32 %v998, %v491
      %v1000 = vmax.f32 %v999, %v497
      %v1001 = vmax.f32 %v1000, %v501
      %v1002 = vmax.f32 %v1001, %v507
      %v1003 = vmax.f32 %v1002, %v511
      %v1004 = vmax.f32 %v1003, %v517
      %v1005 = vmax.f32 %v1004, %v521
      %v1006 = vmax.f32 %v1005, %v527
      %v1007 = vmax.f32 %v1006, %v531
      %v1008 = vmax.f32 %v1007, %v537
      %v1009 = vmax.f32 %v1008, %v541
      %v1010 = vmax.f32 %v1009, %v547
      %v1011 = vmax.f32 %v1010, %v551
      %v1012 = vmax.f32 %v1011, %v557
      %v1013 = vmax.f32 %v1012, %v561
      %v1014 = vmax.f32 %v1013, %v567
      %v1015 = vmax.f32 %v1014, %v571
      %v1016 = vmax.f32 %v1015, %v577
      %v1017 = vmax.f32 %v1016, %v581
      %v1018 = vmax.f32 %v1017, %v587
      %v1019 = vmax.f32 %v1018, %v591
      %v1020 = vmax.f32 %v1019, %v597
      %v1021 = vmax.f32 %v1020, %v601
      %v1022 = vrot.slane %v1021, 4
      %v1023 = vmax.f32 %v1021, %v1022
      %v1024 = vrot.slane %v1023, 2
      %v1025 = vmax.f32 %v1023, %v1024
      %v1026 = vrot.slane %v1025, 1
      %v1027 = vmax.f32 %v1025, %v1026
      %v1028 = vmax.f32 %v449, %v453
      %v1029 = vmax.f32 %v1028, %v459
      %v1030 = vmax.f32 %v1029, %v463
      %v1031 = vmax.f32 %v1030, %v469
      %v1032 = vmax.f32 %v1031, %v473
      %v1033 = vmax.f32 %v1032, %v479
      %v1034 = vmax.f32 %v1033, %v483
      %v1035 = vmax.f32 %v1034, %v489
      %v1036 = vmax.f32 %v1035, %v493
      %v1037 = vmax.f32 %v1036, %v499
      %v1038 = vmax.f32 %v1037, %v503
      %v1039 = vmax.f32 %v1038, %v509
      %v1040 = vmax.f32 %v1039, %v513
      %v1041 = vmax.f32 %v1040, %v519
      %v1042 = vmax.f32 %v1041, %v523
      %v1043 = vmax.f32 %v1042, %v529
      %v1044 = vmax.f32 %v1043, %v533
      %v1045 = vmax.f32 %v1044, %v539
      %v1046 = vmax.f32 %v1045, %v543
      %v1047 = vmax.f32 %v1046, %v549
      %v1048 = vmax.f32 %v1047, %v553
      %v1049 = vmax.f32 %v1048, %v559
      %v1050 = vmax.f32 %v1049, %v563
      %v1051 = vmax.f32 %v1050, %v569
      %v1052 = vmax.f32 %v1051, %v573
      %v1053 = vmax.f32 %v1052, %v579
      %v1054 = vmax.f32 %v1053, %v583
      %v1055 = vmax.f32 %v1054, %v589
      %v1056 = vmax.f32 %v1055, %v593
      %v1057 = vmax.f32 %v1056, %v599
      %v1058 = vmax.f32 %v1057, %v603
      %v1059 = vrot.slane %v1058, 4
      %v1060 = vmax.f32 %v1058, %v1059
      %v1061 = vrot.slane %v1060, 2
      %v1062 = vmax.f32 %v1060, %v1061
      %v1063 = vrot.slane %v1062, 1
      %v1064 = vmax.f32 %v1062, %v1063
      %v1065 = vmax.f32 %v640, %v644
      %v1066 = vmax.f32 %v1065, %v650
      %v1067 = vmax.f32 %v1066, %v654
      %v1068 = vmax.f32 %v1067, %v660
      %v1069 = vmax.f32 %v1068, %v664
      %v1070 = vmax.f32 %v1069, %v670
      %v1071 = vmax.f32 %v1070, %v674
      %v1072 = vmax.f32 %v1071, %v680
      %v1073 = vmax.f32 %v1072, %v684
      %v1074 = vmax.f32 %v1073, %v690
      %v1075 = vmax.f32 %v1074, %v694
      %v1076 = vmax.f32 %v1075, %v700
      %v1077 = vmax.f32 %v1076, %v704
      %v1078 = vmax.f32 %v1077, %v710
      %v1079 = vmax.f32 %v1078, %v714
      %v1080 = vmax.f32 %v1079, %v720
      %v1081 = vmax.f32 %v1080, %v724
      %v1082 = vmax.f32 %v1081, %v730
      %v1083 = vmax.f32 %v1082, %v734
      %v1084 = vmax.f32 %v1083, %v740
      %v1085 = vmax.f32 %v1084, %v744
      %v1086 = vmax.f32 %v1085, %v750
      %v1087 = vmax.f32 %v1086, %v754
      %v1088 = vmax.f32 %v1087, %v760
      %v1089 = vmax.f32 %v1088, %v764
      %v1090 = vmax.f32 %v1089, %v770
      %v1091 = vmax.f32 %v1090, %v774
      %v1092 = vmax.f32 %v1091, %v780
      %v1093 = vmax.f32 %v1092, %v784
      %v1094 = vmax.f32 %v1093, %v790
      %v1095 = vmax.f32 %v1094, %v794
      %v1096 = vrot.slane %v1095, 4
      %v1097 = vmax.f32 %v1095, %v1096
      %v1098 = vrot.slane %v1097, 2
      %v1099 = vmax.f32 %v1097, %v1098
      %v1100 = vrot.slane %v1099, 1
      %v1101 = vmax.f32 %v1099, %v1100
      %v1102 = vmax.f32 %v642, %v646
      %v1103 = vmax.f32 %v1102, %v652
      %v1104 = vmax.f32 %v1103, %v656
      %v1105 = vmax.f32 %v1104, %v662
      %v1106 = vmax.f32 %v1105, %v666
      %v1107 = vmax.f32 %v1106, %v672
      %v1108 = vmax.f32 %v1107, %v676
      %v1109 = vmax.f32 %v1108, %v682
      %v1110 = vmax.f32 %v1109, %v686
      %v1111 = vmax.f32 %v1110, %v692
      %v1112 = vmax.f32 %v1111, %v696
      %v1113 = vmax.f32 %v1112, %v702
      %v1114 = vmax.f32 %v1113, %v706
      %v1115 = vmax.f32 %v1114, %v712
      %v1116 = vmax.f32 %v1115, %v716
      %v1117 = vmax.f32 %v1116, %v722
      %v1118 = vmax.f32 %v1117, %v726
      %v1119 = vmax.f32 %v1118, %v732
      %v1120 = vmax.f32 %v1119, %v736
      %v1121 = vmax.f32 %v1120, %v742
      %v1122 = vmax.f32 %v1121, %v746
      %v1123 = vmax.f32 %v1122, %v752
      %v1124 = vmax.f32 %v1123, %v756
      %v1125 = vmax.f32 %v1124, %v762
      %v1126 = vmax.f32 %v1125, %v766
      %v1127 = vmax.f32 %v1126, %v772
      %v1128 = vmax.f32 %v1127, %v776
      %v1129 = vmax.f32 %v1128, %v782
      %v1130 = vmax.f32 %v1129, %v786
      %v1131 = vmax.f32 %v1130, %v792
      %v1132 = vmax.f32 %v1131, %v796
      %v1133 = vrot.slane %v1132, 4
      %v1134 = vmax.f32 %v1132, %v1133
      %v1135 = vrot.slane %v1134, 2
      %v1136 = vmax.f32 %v1134, %v1135
      %v1137 = vrot.slane %v1136, 1
      %v1138 = vmax.f32 %v1136, %v1137
      %v1139 = vmax.f32 %v833, %v837
      %v1140 = vmax.f32 %v1139, %v843
      %v1141 = vmax.f32 %v1140, %v847
      %v1142 = vmax.f32 %v1141, %v853
      %v1143 = vmax.f32 %v1142, %v857
      %v1144 = vmax.f32 %v1143, %v863
      %v1145 = vmax.f32 %v1144, %v867
      %v1146 = vmax.f32 %v1145, %v873
      %v1147 = vmax.f32 %v1146, %v877
      %v1148 = vmax.f32 %v1147, %v883
      %v1149 = vmax.f32 %v1148, %v887
      %v1150 = vmax.f32 %v1149, %v893
      %v1151 = vmax.f32 %v1150, %v897
      %v1152 = vmax.f32 %v1151, %v903
      %v1153 = vmax.f32 %v1152, %v907
      %v1154 = vmax.f32 %v1153, %v913
      %v1155 = vmax.f32 %v1154, %v917
      %v1156 = vmax.f32 %v1155, %v923
      %v1157 = vmax.f32 %v1156, %v927
      %v1158 = vmax.f32 %v1157, %v933
      %v1159 = vmax.f32 %v1158, %v937
      %v1160 = vmax.f32 %v1159, %v943
      %v1161 = vmax.f32 %v1160, %v947
      %v1162 = vmax.f32 %v1161, %v953
      %v1163 = vmax.f32 %v1162, %v957
      %v1164 = vmax.f32 %v1163, %v963
      %v1165 = vmax.f32 %v1164, %v967
      %v1166 = vmax.f32 %v1165, %v973
      %v1167 = vmax.f32 %v1166, %v977
      %v1168 = vmax.f32 %v1167, %v983
      %v1169 = vmax.f32 %v1168, %v987
      %v1170 = vrot.slane %v1169, 4
      %v1171 = vmax.f32 %v1169, %v1170
      %v1172 = vrot.slane %v1171, 2
      %v1173 = vmax.f32 %v1171, %v1172
      %v1174 = vrot.slane %v1173, 1
      %v1175 = vmax.f32 %v1173, %v1174
      %v1176 = vmax.f32 %v835, %v839
      %v1177 = vmax.f32 %v1176, %v845
      %v1178 = vmax.f32 %v1177, %v849
      %v1179 = vmax.f32 %v1178, %v855
      %v1180 = vmax.f32 %v1179, %v859
      %v1181 = vmax.f32 %v1180, %v865
      %v1182 = vmax.f32 %v1181, %v869
      %v1183 = vmax.f32 %v1182, %v875
      %v1184 = vmax.f32 %v1183, %v879
      %v1185 = vmax.f32 %v1184, %v885
      %v1186 = vmax.f32 %v1185, %v889
      %v1187 = vmax.f32 %v1186, %v895
      %v1188 = vmax.f32 %v1187, %v899
      %v1189 = vmax.f32 %v1188, %v905
      %v1190 = vmax.f32 %v1189, %v909
      %v1191 = vmax.f32 %v1190, %v915
      %v1192 = vmax.f32 %v1191, %v919
      %v1193 = vmax.f32 %v1192, %v925
      %v1194 = vmax.f32 %v1193, %v929
      %v1195 = vmax.f32 %v1194, %v935
      %v1196 = vmax.f32 %v1195, %v939
      %v1197 = vmax.f32 %v1196, %v945
      %v1198 = vmax.f32 %v1197, %v949
      %v1199 = vmax.f32 %v1198, %v955
      %v1200 = vmax.f32 %v1199, %v959
      %v1201 = vmax.f32 %v1200, %v965
      %v1202 = vmax.f32 %v1201, %v969
      %v1203 = vmax.f32 %v1202, %v975
      %v1204 = vmax.f32 %v1203, %v979
      %v1205 = vmax.f32 %v1204, %v985
      %v1206 = vmax.f32 %v1205, %v989
      %v1207 = vrot.slane %v1206, 4
      %v1208 = vmax.f32 %v1206, %v1207
      %v1209 = vrot.slane %v1208, 2
      %v1210 = vmax.f32 %v1208, %v1209
      %v1211 = vrot.slane %v1210, 1
      %v1212 = vmax.f32 %v1210, %v1211
      %v1213 = vsub.f32 -inf, %v1027
      %v1214 = vsub.f32 -inf, %v1064
      %v1215 = vsub.f32 -inf, %v1101
      %v1216 = vsub.f32 -inf, %v1138
      %v1217 = vsub.f32 -inf, %v1175
      %v1218 = vsub.f32 -inf, %v1212
      %v1219 = vmul.f32 %v1213, 1.442695
      %v1220 = vpow.pop %v1219
      %v1221 = vmul.f32 %v1214, 1.442695
      %v1222 = vpow.pop %v1221
      %v1223 = vmul.f32 %v1215, 1.442695
      %v1224 = vpow.pop %v1223
      %v1225 = vmul.f32 %v1216, 1.442695
      %v1226 = vpow.pop %v1225
      %v1227 = vmul.f32 %v1217, 1.442695
      %v1228 = vpow.pop %v1227
      %v1229 = vmul.f32 %v1218, 1.442695
      %v1230 = vpow.pop %v1229
      %v1231 = vsub.f32 %v447, %v1027
      %v1232 = vsub.f32 %v449, %v1064
      %v1233 = vsub.f32 %v640, %v1101
      %v1234 = vsub.f32 %v642, %v1138
      %v1235 = vsub.f32 %v833, %v1175
      %v1236 = vsub.f32 %v835, %v1212
      %v1237 = vsub.f32 %v451, %v1027
      %v1238 = vsub.f32 %v453, %v1064
      %v1239 = vsub.f32 %v644, %v1101
      %v1240 = vsub.f32 %v646, %v1138
      %v1241 = vsub.f32 %v837, %v1175
      %v1242 = vsub.f32 %v839, %v1212
      %v1243 = vsub.f32 %v457, %v1027
      %v1244 = vsub.f32 %v459, %v1064
      %v1245 = vsub.f32 %v650, %v1101
      %v1246 = vsub.f32 %v652, %v1138
      %v1247 = vsub.f32 %v843, %v1175
      %v1248 = vsub.f32 %v845, %v1212
      %v1249 = vsub.f32 %v461, %v1027
      %v1250 = vsub.f32 %v463, %v1064
      %v1251 = vsub.f32 %v654, %v1101
      %v1252 = vsub.f32 %v656, %v1138
      %v1253 = vsub.f32 %v847, %v1175
      %v1254 = vsub.f32 %v849, %v1212
      %v1255 = vsub.f32 %v467, %v1027
      %v1256 = vsub.f32 %v469, %v1064
      %v1257 = vsub.f32 %v660, %v1101
      %v1258 = vsub.f32 %v662, %v1138
      %v1259 = vsub.f32 %v853, %v1175
      %v1260 = vsub.f32 %v855, %v1212
      %v1261 = vsub.f32 %v471, %v1027
      %v1262 = vsub.f32 %v473, %v1064
      %v1263 = vsub.f32 %v664, %v1101
      %v1264 = vsub.f32 %v666, %v1138
      %v1265 = vsub.f32 %v857, %v1175
      %v1266 = vsub.f32 %v859, %v1212
      %v1267 = vsub.f32 %v477, %v1027
      %v1268 = vsub.f32 %v479, %v1064
      %v1269 = vsub.f32 %v670, %v1101
      %v1270 = vsub.f32 %v672, %v1138
      %v1271 = vsub.f32 %v863, %v1175
      %v1272 = vsub.f32 %v865, %v1212
      %v1273 = vsub.f32 %v481, %v1027
      %v1274 = vsub.f32 %v483, %v1064
      %v1275 = vsub.f32 %v674, %v1101
      %v1276 = vsub.f32 %v676, %v1138
      %v1277 = vsub.f32 %v867, %v1175
      %v1278 = vsub.f32 %v869, %v1212
      %v1279 = vsub.f32 %v487, %v1027
      %v1280 = vsub.f32 %v489, %v1064
      %v1281 = vsub.f32 %v680, %v1101
      %v1282 = vsub.f32 %v682, %v1138
      %v1283 = vsub.f32 %v873, %v1175
      %v1284 = vsub.f32 %v875, %v1212
      %v1285 = vsub.f32 %v491, %v1027
      %v1286 = vsub.f32 %v493, %v1064
      %v1287 = vsub.f32 %v684, %v1101
      %v1288 = vsub.f32 %v686, %v1138
      %v1289 = vsub.f32 %v877, %v1175
      %v1290 = vsub.f32 %v879, %v1212
      %v1291 = vsub.f32 %v497, %v1027
      %v1292 = vsub.f32 %v499, %v1064
      %v1293 = vsub.f32 %v690, %v1101
      %v1294 = vsub.f32 %v692, %v1138
      %v1295 = vsub.f32 %v883, %v1175
      %v1296 = vsub.f32 %v885, %v1212
      %v1297 = vsub.f32 %v501, %v1027
      %v1298 = vsub.f32 %v503, %v1064
      %v1299 = vsub.f32 %v694, %v1101
      %v1300 = vsub.f32 %v696, %v1138
      %v1301 = vsub.f32 %v887, %v1175
      %v1302 = vsub.f32 %v889, %v1212
      %v1303 = vsub.f32 %v507, %v1027
      %v1304 = vsub.f32 %v509, %v1064
      %v1305 = vsub.f32 %v700, %v1101
      %v1306 = vsub.f32 %v702, %v1138
      %v1307 = vsub.f32 %v893, %v1175
      %v1308 = vsub.f32 %v895, %v1212
      %v1309 = vsub.f32 %v511, %v1027
      %v1310 = vsub.f32 %v513, %v1064
      %v1311 = vsub.f32 %v704, %v1101
      %v1312 = vsub.f32 %v706, %v1138
      %v1313 = vsub.f32 %v897, %v1175
      %v1314 = vsub.f32 %v899, %v1212
      %v1315 = vsub.f32 %v517, %v1027
      %v1316 = vsub.f32 %v519, %v1064
      %v1317 = vsub.f32 %v710, %v1101
      %v1318 = vsub.f32 %v712, %v1138
      %v1319 = vsub.f32 %v903, %v1175
      %v1320 = vsub.f32 %v905, %v1212
      %v1321 = vsub.f32 %v521, %v1027
      %v1322 = vsub.f32 %v523, %v1064
      %v1323 = vsub.f32 %v714, %v1101
      %v1324 = vsub.f32 %v716, %v1138
      %v1325 = vsub.f32 %v907, %v1175
      %v1326 = vsub.f32 %v909, %v1212
      %v1327 = vsub.f32 %v527, %v1027
      %v1328 = vsub.f32 %v529, %v1064
      %v1329 = vsub.f32 %v720, %v1101
      %v1330 = vsub.f32 %v722, %v1138
      %v1331 = vsub.f32 %v913, %v1175
      %v1332 = vsub.f32 %v915, %v1212
      %v1333 = vsub.f32 %v531, %v1027
      %v1334 = vsub.f32 %v533, %v1064
      %v1335 = vsub.f32 %v724, %v1101
      %v1336 = vsub.f32 %v726, %v1138
      %v1337 = vsub.f32 %v917, %v1175
      %v1338 = vsub.f32 %v919, %v1212
      %v1339 = vsub.f32 %v537, %v1027
      %v1340 = vsub.f32 %v539, %v1064
      %v1341 = vsub.f32 %v730, %v1101
      %v1342 = vsub.f32 %v732, %v1138
      %v1343 = vsub.f32 %v923, %v1175
      %v1344 = vsub.f32 %v925, %v1212
      %v1345 = vsub.f32 %v541, %v1027
      %v1346 = vsub.f32 %v543, %v1064
      %v1347 = vsub.f32 %v734, %v1101
      %v1348 = vsub.f32 %v736, %v1138
      %v1349 = vsub.f32 %v927, %v1175
      %v1350 = vsub.f32 %v929, %v1212
      %v1351 = vsub.f32 %v547, %v1027
      %v1352 = vsub.f32 %v549, %v1064
      %v1353 = vsub.f32 %v740, %v1101
      %v1354 = vsub.f32 %v742, %v1138
      %v1355 = vsub.f32 %v933, %v1175
      %v1356 = vsub.f32 %v935, %v1212
      %v1357 = vsub.f32 %v551, %v1027
      %v1358 = vsub.f32 %v553, %v1064
      %v1359 = vsub.f32 %v744, %v1101
      %v1360 = vsub.f32 %v746, %v1138
      %v1361 = vsub.f32 %v937, %v1175
      %v1362 = vsub.f32 %v939, %v1212
      %v1363 = vsub.f32 %v557, %v1027
      %v1364 = vsub.f32 %v559, %v1064
      %v1365 = vsub.f32 %v750, %v1101
      %v1366 = vsub.f32 %v752, %v1138
      %v1367 = vsub.f32 %v943, %v1175
      %v1368 = vsub.f32 %v945, %v1212
      %v1369 = vsub.f32 %v561, %v1027
      %v1370 = vsub.f32 %v563, %v1064
      %v1371 = vsub.f32 %v754, %v1101
      %v1372 = vsub.f32 %v756, %v1138
      %v1373 = vsub.f32 %v947, %v1175
      %v1374 = vsub.f32 %v949, %v1212
      %v1375 = vsub.f32 %v567, %v1027
      %v1376 = vsub.f32 %v569, %v1064
      %v1377 = vsub.f32 %v760, %v1101
      %v1378 = vsub.f32 %v762, %v1138
      %v1379 = vsub.f32 %v953, %v1175
      %v1380 = vsub.f32 %v955, %v1212
      %v1381 = vsub.f32 %v571, %v1027
      %v1382 = vsub.f32 %v573, %v1064
      %v1383 = vsub.f32 %v764, %v1101
      %v1384 = vsub.f32 %v766, %v1138
      %v1385 = vsub.f32 %v957, %v1175
      %v1386 = vsub.f32 %v959, %v1212
      %v1387 = vsub.f32 %v577, %v1027
      %v1388 = vsub.f32 %v579, %v1064
      %v1389 = vsub.f32 %v770, %v1101
      %v1390 = vsub.f32 %v772, %v1138
      %v1391 = vsub.f32 %v963, %v1175
      %v1392 = vsub.f32 %v965, %v1212
      %v1393 = vsub.f32 %v581, %v1027
      %v1394 = vsub.f32 %v583, %v1064
      %v1395 = vsub.f32 %v774, %v1101
      %v1396 = vsub.f32 %v776, %v1138
      %v1397 = vsub.f32 %v967, %v1175
      %v1398 = vsub.f32 %v969, %v1212
      %v1399 = vsub.f32 %v587, %v1027
      %v1400 = vsub.f32 %v589, %v1064
      %v1401 = vsub.f32 %v780, %v1101
      %v1402 = vsub.f32 %v782, %v1138
      %v1403 = vsub.f32 %v973, %v1175
      %v1404 = vsub.f32 %v975, %v1212
      %v1405 = vsub.f32 %v591, %v1027
      %v1406 = vsub.f32 %v593, %v1064
      %v1407 = vsub.f32 %v784, %v1101
      %v1408 = vsub.f32 %v786, %v1138
      %v1409 = vsub.f32 %v977, %v1175
      %v1410 = vsub.f32 %v979, %v1212
      %v1411 = vsub.f32 %v597, %v1027
      %v1412 = vsub.f32 %v599, %v1064
      %v1413 = vsub.f32 %v790, %v1101
      %v1414 = vsub.f32 %v792, %v1138
      %v1415 = vsub.f32 %v983, %v1175
      %v1416 = vsub.f32 %v985, %v1212
      %v1417 = vsub.f32 %v601, %v1027
      %v1418 = vsub.f32 %v603, %v1064
      %v1419 = vsub.f32 %v794, %v1101
      %v1420 = vsub.f32 %v796, %v1138
      %v1421 = vsub.f32 %v987, %v1175
      %v1422 = vsub.f32 %v989, %v1212
      %v1423 = vmul.f32 %v1231, 1.442695
      %v1424 = vpow.pop %v1423
      %v1425 = vmul.f32 %v1232, 1.442695
      %v1426 = vpow.pop %v1425
      %v1427 = vmul.f32 %v1233, 1.442695
      %v1428 = vpow.pop %v1427
      %v1429 = vmul.f32 %v1234, 1.442695
      %v1430 = vpow.pop %v1429
      %v1431 = vmul.f32 %v1235, 1.442695
      %v1432 = vpow.pop %v1431
      %v1433 = vmul.f32 %v1236, 1.442695
      %v1434 = vpow.pop %v1433
      %v1435 = vmul.f32 %v1237, 1.442695
      %v1436 = vpow.pop %v1435
      %v1437 = vmul.f32 %v1238, 1.442695
      %v1438 = vpow.pop %v1437
      %v1439 = vmul.f32 %v1239, 1.442695
      %v1440 = vpow.pop %v1439
      %v1441 = vmul.f32 %v1240, 1.442695
      %v1442 = vpow.pop %v1441
      %v1443 = vmul.f32 %v1241, 1.442695
      %v1444 = vpow.pop %v1443
      %v1445 = vmul.f32 %v1242, 1.442695
      %v1446 = vpow.pop %v1445
      %v1447 = vmul.f32 %v1243, 1.442695
      %v1448 = vpow.pop %v1447
      %v1449 = vmul.f32 %v1244, 1.442695
      %v1450 = vpow.pop %v1449
      %v1451 = vmul.f32 %v1245, 1.442695
      %v1452 = vpow.pop %v1451
      %v1453 = vmul.f32 %v1246, 1.442695
      %v1454 = vpow.pop %v1453
      %v1455 = vmul.f32 %v1247, 1.442695
      %v1456 = vpow.pop %v1455
      %v1457 = vmul.f32 %v1248, 1.442695
      %v1458 = vpow.pop %v1457
      %v1459 = vmul.f32 %v1249, 1.442695
      %v1460 = vpow.pop %v1459
      %v1461 = vmul.f32 %v1250, 1.442695
      %v1462 = vpow.pop %v1461
      %v1463 = vmul.f32 %v1251, 1.442695
      %v1464 = vpow.pop %v1463
      %v1465 = vmul.f32 %v1252, 1.442695
      %v1466 = vpow.pop %v1465
      %v1467 = vmul.f32 %v1253, 1.442695
      %v1468 = vpow.pop %v1467
      %v1469 = vmul.f32 %v1254, 1.442695
      %v1470 = vpow.pop %v1469
      %v1471 = vmul.f32 %v1255, 1.442695
      %v1472 = vpow.pop %v1471
      %v1473 = vmul.f32 %v1256, 1.442695
      %v1474 = vpow.pop %v1473
      %v1475 = vmul.f32 %v1257, 1.442695
      %v1476 = vpow.pop %v1475
      %v1477 = vmul.f32 %v1258, 1.442695
      %v1478 = vpow.pop %v1477
      %v1479 = vmul.f32 %v1259, 1.442695
      %v1480 = vpow.pop %v1479
      %v1481 = vmul.f32 %v1260, 1.442695
      %v1482 = vpow.pop %v1481
      %v1483 = vmul.f32 %v1261, 1.442695
      %v1484 = vpow.pop %v1483
      %v1485 = vmul.f32 %v1262, 1.442695
      %v1486 = vpow.pop %v1485
      %v1487 = vmul.f32 %v1263, 1.442695
      %v1488 = vpow.pop %v1487
      %v1489 = vmul.f32 %v1264, 1.442695
      %v1490 = vpow.pop %v1489
      %v1491 = vmul.f32 %v1265, 1.442695
      %v1492 = vpow.pop %v1491
      %v1493 = vmul.f32 %v1266, 1.442695
      %v1494 = vpow.pop %v1493
      %v1495 = vmul.f32 %v1267, 1.442695
      %v1496 = vpow.pop %v1495
      %v1497 = vmul.f32 %v1268, 1.442695
      %v1498 = vpow.pop %v1497
      %v1499 = vmul.f32 %v1269, 1.442695
      %v1500 = vpow.pop %v1499
      %v1501 = vmul.f32 %v1270, 1.442695
      %v1502 = vpow.pop %v1501
      %v1503 = vmul.f32 %v1271, 1.442695
      %v1504 = vpow.pop %v1503
      %v1505 = vmul.f32 %v1272, 1.442695
      %v1506 = vpow.pop %v1505
      %v1507 = vmul.f32 %v1273, 1.442695
      %v1508 = vpow.pop %v1507
      %v1509 = vmul.f32 %v1274, 1.442695
      %v1510 = vpow.pop %v1509
      %v1511 = vmul.f32 %v1275, 1.442695
      %v1512 = vpow.pop %v1511
      %v1513 = vmul.f32 %v1276, 1.442695
      %v1514 = vpow.pop %v1513
      %v1515 = vmul.f32 %v1277, 1.442695
      %v1516 = vpow.pop %v1515
      %v1517 = vmul.f32 %v1278, 1.442695
      %v1518 = vpow.pop %v1517
      %v1519 = vmul.f32 %v1279, 1.442695
      %v1520 = vpow.pop %v1519
      %v1521 = vmul.f32 %v1280, 1.442695
      %v1522 = vpow.pop %v1521
      %v1523 = vmul.f32 %v1281, 1.442695
      %v1524 = vpow.pop %v1523
      %v1525 = vmul.f32 %v1282, 1.442695
      %v1526 = vpow.pop %v1525
      %v1527 = vmul.f32 %v1283, 1.442695
      %v1528 = vpow.pop %v1527
      %v1529 = vmul.f32 %v1284, 1.442695
      %v1530 = vpow.pop %v1529
      %v1531 = vmul.f32 %v1285, 1.442695
      %v1532 = vpow.pop %v1531
      %v1533 = vmul.f32 %v1286, 1.442695
      %v1534 = vpow.pop %v1533
      %v1535 = vmul.f32 %v1287, 1.442695
      %v1536 = vpow.pop %v1535
      %v1537 = vmul.f32 %v1288, 1.442695
      %v1538 = vpow.pop %v1537
      %v1539 = vmul.f32 %v1289, 1.442695
      %v1540 = vpow.pop %v1539
      %v1541 = vmul.f32 %v1290, 1.442695
      %v1542 = vpow.pop %v1541
      %v1543 = vmul.f32 %v1291, 1.442695
      %v1544 = vpow.pop %v1543
      %v1545 = vmul.f32 %v1292, 1.442695
      %v1546 = vpow.pop %v1545
      %v1547 = vmul.f32 %v1293, 1.442695
      %v1548 = vpow.pop %v1547
      %v1549 = vmul.f32 %v1294, 1.442695
      %v1550 = vpow.pop %v1549
      %v1551 = vmul.f32 %v1295, 1.442695
      %v1552 = vpow.pop %v1551
      %v1553 = vmul.f32 %v1296, 1.442695
      %v1554 = vpow.pop %v1553
      %v1555 = vmul.f32 %v1297, 1.442695
      %v1556 = vpow.pop %v1555
      %v1557 = vmul.f32 %v1298, 1.442695
      %v1558 = vpow.pop %v1557
      %v1559 = vmul.f32 %v1299, 1.442695
      %v1560 = vpow.pop %v1559
      %v1561 = vmul.f32 %v1300, 1.442695
      %v1562 = vpow.pop %v1561
      %v1563 = vmul.f32 %v1301, 1.442695
      %v1564 = vpow.pop %v1563
      %v1565 = vmul.f32 %v1302, 1.442695
      %v1566 = vpow.pop %v1565
      %v1567 = vmul.f32 %v1303, 1.442695
      %v1568 = vpow.pop %v1567
      %v1569 = vmul.f32 %v1304, 1.442695
      %v1570 = vpow.pop %v1569
      %v1571 = vmul.f32 %v1305, 1.442695
      %v1572 = vpow.pop %v1571
      %v1573 = vmul.f32 %v1306, 1.442695
      %v1574 = vpow.pop %v1573
      %v1575 = vmul.f32 %v1307, 1.442695
      %v1576 = vpow.pop %v1575
      %v1577 = vmul.f32 %v1308, 1.442695
      %v1578 = vpow.pop %v1577
      %v1579 = vmul.f32 %v1309, 1.442695
      %v1580 = vpow.pop %v1579
      %v1581 = vmul.f32 %v1310, 1.442695
      %v1582 = vpow.pop %v1581
      %v1583 = vmul.f32 %v1311, 1.442695
      %v1584 = vpow.pop %v1583
      %v1585 = vmul.f32 %v1312, 1.442695
      %v1586 = vpow.pop %v1585
      %v1587 = vmul.f32 %v1313, 1.442695
      %v1588 = vpow.pop %v1587
      %v1589 = vmul.f32 %v1314, 1.442695
      %v1590 = vpow.pop %v1589
      %v1591 = vmul.f32 %v1315, 1.442695
      %v1592 = vpow.pop %v1591
      %v1593 = vmul.f32 %v1316, 1.442695
      %v1594 = vpow.pop %v1593
      %v1595 = vmul.f32 %v1317, 1.442695
      %v1596 = vpow.pop %v1595
      %v1597 = vmul.f32 %v1318, 1.442695
      %v1598 = vpow.pop %v1597
      %v1599 = vmul.f32 %v1319, 1.442695
      %v1600 = vpow.pop %v1599
      %v1601 = vmul.f32 %v1320, 1.442695
      %v1602 = vpow.pop %v1601
      %v1603 = vmul.f32 %v1321, 1.442695
      %v1604 = vpow.pop %v1603
      %v1605 = vmul.f32 %v1322, 1.442695
      %v1606 = vpow.pop %v1605
      %v1607 = vmul.f32 %v1323, 1.442695
      %v1608 = vpow.pop %v1607
      %v1609 = vmul.f32 %v1324, 1.442695
      %v1610 = vpow.pop %v1609
      %v1611 = vmul.f32 %v1325, 1.442695
      %v1612 = vpow.pop %v1611
      %v1613 = vmul.f32 %v1326, 1.442695
      %v1614 = vpow.pop %v1613
      %v1615 = vmul.f32 %v1327, 1.442695
      %v1616 = vpow.pop %v1615
      %v1617 = vmul.f32 %v1328, 1.442695
      %v1618 = vpow.pop %v1617
      %v1619 = vmul.f32 %v1329, 1.442695
      %v1620 = vpow.pop %v1619
      %v1621 = vmul.f32 %v1330, 1.442695
      %v1622 = vpow.pop %v1621
      %v1623 = vmul.f32 %v1331, 1.442695
      %v1624 = vpow.pop %v1623
      %v1625 = vmul.f32 %v1332, 1.442695
      %v1626 = vpow.pop %v1625
      %v1627 = vmul.f32 %v1333, 1.442695
      %v1628 = vpow.pop %v1627
      %v1629 = vmul.f32 %v1334, 1.442695
      %v1630 = vpow.pop %v1629
      %v1631 = vmul.f32 %v1335, 1.442695
      %v1632 = vpow.pop %v1631
      %v1633 = vmul.f32 %v1336, 1.442695
      %v1634 = vpow.pop %v1633
      %v1635 = vmul.f32 %v1337, 1.442695
      %v1636 = vpow.pop %v1635
      %v1637 = vmul.f32 %v1338, 1.442695
      %v1638 = vpow.pop %v1637
      %v1639 = vmul.f32 %v1339, 1.442695
      %v1640 = vpow.pop %v1639
      %v1641 = vmul.f32 %v1340, 1.442695
      %v1642 = vpow.pop %v1641
      %v1643 = vmul.f32 %v1341, 1.442695
      %v1644 = vpow.pop %v1643
      %v1645 = vmul.f32 %v1342, 1.442695
      %v1646 = vpow.pop %v1645
      %v1647 = vmul.f32 %v1343, 1.442695
      %v1648 = vpow.pop %v1647
      %v1649 = vmul.f32 %v1344, 1.442695
      %v1650 = vpow.pop %v1649
      %v1651 = vmul.f32 %v1345, 1.442695
      %v1652 = vpow.pop %v1651
      %v1653 = vmul.f32 %v1346, 1.442695
      %v1654 = vpow.pop %v1653
      %v1655 = vmul.f32 %v1347, 1.442695
      %v1656 = vpow.pop %v1655
      %v1657 = vmul.f32 %v1348, 1.442695
      %v1658 = vpow.pop %v1657
      %v1659 = vmul.f32 %v1349, 1.442695
      %v1660 = vpow.pop %v1659
      %v1661 = vmul.f32 %v1350, 1.442695
      %v1662 = vpow.pop %v1661
      %v1663 = vmul.f32 %v1351, 1.442695
      %v1664 = vpow.pop %v1663
      %v1665 = vmul.f32 %v1352, 1.442695
      %v1666 = vpow.pop %v1665
      %v1667 = vmul.f32 %v1353, 1.442695
      %v1668 = vpow.pop %v1667
      %v1669 = vmul.f32 %v1354, 1.442695
      %v1670 = vpow.pop %v1669
      %v1671 = vmul.f32 %v1355, 1.442695
      %v1672 = vpow.pop %v1671
      %v1673 = vmul.f32 %v1356, 1.442695
      %v1674 = vpow.pop %v1673
      %v1675 = vmul.f32 %v1357, 1.442695
      %v1676 = vpow.pop %v1675
      %v1677 = vmul.f32 %v1358, 1.442695
      %v1678 = vpow.pop %v1677
      %v1679 = vmul.f32 %v1359, 1.442695
      %v1680 = vpow.pop %v1679
      %v1681 = vmul.f32 %v1360, 1.442695
      %v1682 = vpow.pop %v1681
      %v1683 = vmul.f32 %v1361, 1.442695
      %v1684 = vpow.pop %v1683
      %v1685 = vmul.f32 %v1362, 1.442695
      %v1686 = vpow.pop %v1685
      %v1687 = vmul.f32 %v1363, 1.442695
      %v1688 = vpow.pop %v1687
      %v1689 = vmul.f32 %v1364, 1.442695
      %v1690 = vpow.pop %v1689
      %v1691 = vmul.f32 %v1365, 1.442695
      %v1692 = vpow.pop %v1691
      %v1693 = vmul.f32 %v1366, 1.442695
      %v1694 = vpow.pop %v1693
      %v1695 = vmul.f32 %v1367, 1.442695
      %v1696 = vpow.pop %v1695
      %v1697 = vmul.f32 %v1368, 1.442695
      %v1698 = vpow.pop %v1697
      %v1699 = vmul.f32 %v1369, 1.442695
      %v1700 = vpow.pop %v1699
      %v1701 = vmul.f32 %v1370, 1.442695
      %v1702 = vpow.pop %v1701
      %v1703 = vmul.f32 %v1371, 1.442695
      %v1704 = vpow.pop %v1703
      %v1705 = vmul.f32 %v1372, 1.442695
      %v1706 = vpow.pop %v1705
      %v1707 = vmul.f32 %v1373, 1.442695
      %v1708 = vpow.pop %v1707
      %v1709 = vmul.f32 %v1374, 1.442695
      %v1710 = vpow.pop %v1709
      %v1711 = vmul.f32 %v1375, 1.442695
      %v1712 = vpow.pop %v1711
      %v1713 = vmul.f32 %v1376, 1.442695
      %v1714 = vpow.pop %v1713
      %v1715 = vmul.f32 %v1377, 1.442695
      %v1716 = vpow.pop %v1715
      %v1717 = vmul.f32 %v1378, 1.442695
      %v1718 = vpow.pop %v1717
      %v1719 = vmul.f32 %v1379, 1.442695
      %v1720 = vpow.pop %v1719
      %v1721 = vmul.f32 %v1380, 1.442695
      %v1722 = vpow.pop %v1721
      %v1723 = vmul.f32 %v1381, 1.442695
      %v1724 = vpow.pop %v1723
      %v1725 = vmul.f32 %v1382, 1.442695
      %v1726 = vpow.pop %v1725
      %v1727 = vmul.f32 %v1383, 1.442695
      %v1728 = vpow.pop %v1727
      %v1729 = vmul.f32 %v1384, 1.442695
      %v1730 = vpow.pop %v1729
      %v1731 = vmul.f32 %v1385, 1.442695
      %v1732 = vpow.pop %v1731
      %v1733 = vmul.f32 %v1386, 1.442695
      %v1734 = vpow.pop %v1733
      %v1735 = vmul.f32 %v1387, 1.442695
      %v1736 = vpow.pop %v1735
      %v1737 = vmul.f32 %v1388, 1.442695
      %v1738 = vpow.pop %v1737
      %v1739 = vmul.f32 %v1389, 1.442695
      %v1740 = vpow.pop %v1739
      %v1741 = vmul.f32 %v1390, 1.442695
      %v1742 = vpow.pop %v1741
      %v1743 = vmul.f32 %v1391, 1.442695
      %v1744 = vpow.pop %v1743
      %v1745 = vmul.f32 %v1392, 1.442695
      %v1746 = vpow.pop %v1745
      %v1747 = vmul.f32 %v1393, 1.442695
      %v1748 = vpow.pop %v1747
      %v1749 = vmul.f32 %v1394, 1.442695
      %v1750 = vpow.pop %v1749
      %v1751 = vmul.f32 %v1395, 1.442695
      %v1752 = vpow.pop %v1751
      %v1753 = vmul.f32 %v1396, 1.442695
      %v1754 = vpow.pop %v1753
      %v1755 = vmul.f32 %v1397, 1.442695
      %v1756 = vpow.pop %v1755
      %v1757 = vmul.f32 %v1398, 1.442695
      %v1758 = vpow.pop %v1757
      %v1759 = vmul.f32 %v1399, 1.442695
      %v1760 = vpow.pop %v1759
      %v1761 = vmul.f32 %v1400, 1.442695
      %v1762 = vpow.pop %v1761
      %v1763 = vmul.f32 %v1401, 1.442695
      %v1764 = vpow.pop %v1763
      %v1765 = vmul.f32 %v1402, 1.442695
      %v1766 = vpow.pop %v1765
      %v1767 = vmul.f32 %v1403, 1.442695
      %v1768 = vpow.pop %v1767
      %v1769 = vmul.f32 %v1404, 1.442695
      %v1770 = vpow.pop %v1769
      %v1771 = vmul.f32 %v1405, 1.442695
      %v1772 = vpow.pop %v1771
      %v1773 = vmul.f32 %v1406, 1.442695
      %v1774 = vpow.pop %v1773
      %v1775 = vmul.f32 %v1407, 1.442695
      %v1776 = vpow.pop %v1775
      %v1777 = vmul.f32 %v1408, 1.442695
      %v1778 = vpow.pop %v1777
      %v1779 = vmul.f32 %v1409, 1.442695
      %v1780 = vpow.pop %v1779
      %v1781 = vmul.f32 %v1410, 1.442695
      %v1782 = vpow.pop %v1781
      %v1783 = vmul.f32 %v1411, 1.442695
      %v1784 = vpow.pop %v1783
      %v1785 = vmul.f32 %v1412, 1.442695
      %v1786 = vpow.pop %v1785
      %v1787 = vmul.f32 %v1413, 1.442695
      %v1788 = vpow.pop %v1787
      %v1789 = vmul.f32 %v1414, 1.442695
      %v1790 = vpow.pop %v1789
      %v1791 = vmul.f32 %v1415, 1.442695
      %v1792 = vpow.pop %v1791
      %v1793 = vmul.f32 %v1416, 1.442695
      %v1794 = vpow.pop %v1793
      %v1795 = vmul.f32 %v1417, 1.442695
      %v1796 = vpow.pop %v1795
      %v1797 = vmul.f32 %v1418, 1.442695
      %v1798 = vpow.pop %v1797
      %v1799 = vmul.f32 %v1419, 1.442695
      %v1800 = vpow.pop %v1799
      %v1801 = vmul.f32 %v1420, 1.442695
      %v1802 = vpow.pop %v1801
      %v1803 = vmul.f32 %v1421, 1.442695
      %v1804 = vpow.pop %v1803
      %v1805 = vmul.f32 %v1422, 1.442695
      %v1806 = vpow.pop %v1805
      %v1807 = vmul.f32 %v1220, 0.0
      %v1808 = vmul.f32 %v1222, 0.0
      %v1809 = vmul.f32 %v1224, 0.0
      %v1810 = vmul.f32 %v1226, 0.0
      %v1811 = vmul.f32 %v1228, 0.0
      %v1812 = vmul.f32 %v1230, 0.0
      %v1813 = vadd.f32 %v1424, %v1436
      %v1814 = vadd.f32 %v1813, %v1448
      %v1815 = vadd.f32 %v1814, %v1460
      %v1816 = vadd.f32 %v1815, %v1472
      %v1817 = vadd.f32 %v1816, %v1484
      %v1818 = vadd.f32 %v1817, %v1496
      %v1819 = vadd.f32 %v1818, %v1508
      %v1820 = vadd.f32 %v1819, %v1520
      %v1821 = vadd.f32 %v1820, %v1532
      %v1822 = vadd.f32 %v1821, %v1544
      %v1823 = vadd.f32 %v1822, %v1556
      %v1824 = vadd.f32 %v1823, %v1568
      %v1825 = vadd.f32 %v1824, %v1580
      %v1826 = vadd.f32 %v1825, %v1592
      %v1827 = vadd.f32 %v1826, %v1604
      %v1828 = vadd.f32 %v1827, %v1616
      %v1829 = vadd.f32 %v1828, %v1628
      %v1830 = vadd.f32 %v1829, %v1640
      %v1831 = vadd.f32 %v1830, %v1652
      %v1832 = vadd.f32 %v1831, %v1664
      %v1833 = vadd.f32 %v1832, %v1676
      %v1834 = vadd.f32 %v1833, %v1688
      %v1835 = vadd.f32 %v1834, %v1700
      %v1836 = vadd.f32 %v1835, %v1712
      %v1837 = vadd.f32 %v1836, %v1724
      %v1838 = vadd.f32 %v1837, %v1736
      %v1839 = vadd.f32 %v1838, %v1748
      %v1840 = vadd.f32 %v1839, %v1760
      %v1841 = vadd.f32 %v1840, %v1772
      %v1842 = vadd.f32 %v1841, %v1784
      %v1843 = vadd.f32 %v1842, %v1796
      %v1844 = vrot.slane %v1843, 4
      %v1845 = vadd.f32 %v1843, %v1844
      %v1846 = vrot.slane %v1845, 2
      %v1847 = vadd.f32 %v1845, %v1846
      %v1848 = vrot.slane %v1847, 1
      %v1849 = vadd.f32 %v1847, %v1848
      %v1850 = vadd.f32 %v1426, %v1438
      %v1851 = vadd.f32 %v1850, %v1450
      %v1852 = vadd.f32 %v1851, %v1462
      %v1853 = vadd.f32 %v1852, %v1474
      %v1854 = vadd.f32 %v1853, %v1486
      %v1855 = vadd.f32 %v1854, %v1498
      %v1856 = vadd.f32 %v1855, %v1510
      %v1857 = vadd.f32 %v1856, %v1522
      %v1858 = vadd.f32 %v1857, %v1534
      %v1859 = vadd.f32 %v1858, %v1546
      %v1860 = vadd.f32 %v1859, %v1558
      %v1861 = vadd.f32 %v1860, %v1570
      %v1862 = vadd.f32 %v1861, %v1582
      %v1863 = vadd.f32 %v1862, %v1594
      %v1864 = vadd.f32 %v1863, %v1606
      %v1865 = vadd.f32 %v1864, %v1618
      %v1866 = vadd.f32 %v1865, %v1630
      %v1867 = vadd.f32 %v1866, %v1642
      %v1868 = vadd.f32 %v1867, %v1654
      %v1869 = vadd.f32 %v1868, %v1666
      %v1870 = vadd.f32 %v1869, %v1678
      %v1871 = vadd.f32 %v1870, %v1690
      %v1872 = vadd.f32 %v1871, %v1702
      %v1873 = vadd.f32 %v1872, %v1714
      %v1874 = vadd.f32 %v1873, %v1726
      %v1875 = vadd.f32 %v1874, %v1738
      %v1876 = vadd.f32 %v1875, %v1750
      %v1877 = vadd.f32 %v1876, %v1762
      %v1878 = vadd.f32 %v1877, %v1774
      %v1879 = vadd.f32 %v1878, %v1786
      %v1880 = vadd.f32 %v1879, %v1798
      %v1881 = vrot.slane %v1880, 4
      %v1882 = vadd.f32 %v1880, %v1881
      %v1883 = vrot.slane %v1882, 2
      %v1884 = vadd.f32 %v1882, %v1883
      %v1885 = vrot.slane %v1884, 1
      %v1886 = vadd.f32 %v1884, %v1885
      %v1887 = vadd.f32 %v1428, %v1440
      %v1888 = vadd.f32 %v1887, %v1452
      %v1889 = vadd.f32 %v1888, %v1464
      %v1890 = vadd.f32 %v1889, %v1476
      %v1891 = vadd.f32 %v1890, %v1488
      %v1892 = vadd.f32 %v1891, %v1500
      %v1893 = vadd.f32 %v1892, %v1512
      %v1894 = vadd.f32 %v1893, %v1524
      %v1895 = vadd.f32 %v1894, %v1536
      %v1896 = vadd.f32 %v1895, %v1548
      %v1897 = vadd.f32 %v1896, %v1560
      %v1898 = vadd.f32 %v1897, %v1572
      %v1899 = vadd.f32 %v1898, %v1584
      %v1900 = vadd.f32 %v1899, %v1596
      %v1901 = vadd.f32 %v1900, %v1608
      %v1902 = vadd.f32 %v1901, %v1620
      %v1903 = vadd.f32 %v1902, %v1632
      %v1904 = vadd.f32 %v1903, %v1644
      %v1905 = vadd.f32 %v1904, %v1656
      %v1906 = vadd.f32 %v1905, %v1668
      %v1907 = vadd.f32 %v1906, %v1680
      %v1908 = vadd.f32 %v1907, %v1692
      %v1909 = vadd.f32 %v1908, %v1704
      %v1910 = vadd.f32 %v1909, %v1716
      %v1911 = vadd.f32 %v1910, %v1728
      %v1912 = vadd.f32 %v1911, %v1740
      %v1913 = vadd.f32 %v1912, %v1752
      %v1914 = vadd.f32 %v1913, %v1764
      %v1915 = vadd.f32 %v1914, %v1776
      %v1916 = vadd.f32 %v1915, %v1788
      %v1917 = vadd.f32 %v1916, %v1800
      %v1918 = vrot.slane %v1917, 4
      %v1919 = vadd.f32 %v1917, %v1918
      %v1920 = vrot.slane %v1919, 2
      %v1921 = vadd.f32 %v1919, %v1920
      %v1922 = vrot.slane %v1921, 1
      %v1923 = vadd.f32 %v1921, %v1922
      %v1924 = vadd.f32 %v1430, %v1442
      %v1925 = vadd.f32 %v1924, %v1454
      %v1926 = vadd.f32 %v1925, %v1466
      %v1927 = vadd.f32 %v1926, %v1478
      %v1928 = vadd.f32 %v1927, %v1490
      %v1929 = vadd.f32 %v1928, %v1502
      %v1930 = vadd.f32 %v1929, %v1514
      %v1931 = vadd.f32 %v1930, %v1526
      %v1932 = vadd.f32 %v1931, %v1538
      %v1933 = vadd.f32 %v1932, %v1550
      %v1934 = vadd.f32 %v1933, %v1562
      %v1935 = vadd.f32 %v1934, %v1574
      %v1936 = vadd.f32 %v1935, %v1586
      %v1937 = vadd.f32 %v1936, %v1598
      %v1938 = vadd.f32 %v1937, %v1610
      %v1939 = vadd.f32 %v1938, %v1622
      %v1940 = vadd.f32 %v1939, %v1634
      %v1941 = vadd.f32 %v1940, %v1646
      %v1942 = vadd.f32 %v1941, %v1658
      %v1943 = vadd.f32 %v1942, %v1670
      %v1944 = vadd.f32 %v1943, %v1682
      %v1945 = vadd.f32 %v1944, %v1694
      %v1946 = vadd.f32 %v1945, %v1706
      %v1947 = vadd.f32 %v1946, %v1718
      %v1948 = vadd.f32 %v1947, %v1730
      %v1949 = vadd.f32 %v1948, %v1742
      %v1950 = vadd.f32 %v1949, %v1754
      %v1951 = vadd.f32 %v1950, %v1766
      %v1952 = vadd.f32 %v1951, %v1778
      %v1953 = vadd.f32 %v1952, %v1790
      %v1954 = vadd.f32 %v1953, %v1802
      %v1955 = vrot.slane %v1954, 4
      %v1956 = vadd.f32 %v1954, %v1955
      %v1957 = vrot.slane %v1956, 2
      %v1958 = vadd.f32 %v1956, %v1957
      %v1959 = vrot.slane %v1958, 1
      %v1960 = vadd.f32 %v1958, %v1959
      %v1961 = vadd.f32 %v1432, %v1444
      %v1962 = vadd.f32 %v1961, %v1456
      %v1963 = vadd.f32 %v1962, %v1468
      %v1964 = vadd.f32 %v1963, %v1480
      %v1965 = vadd.f32 %v1964, %v1492
      %v1966 = vadd.f32 %v1965, %v1504
      %v1967 = vadd.f32 %v1966, %v1516
      %v1968 = vadd.f32 %v1967, %v1528
      %v1969 = vadd.f32 %v1968, %v1540
      %v1970 = vadd.f32 %v1969, %v1552
      %v1971 = vadd.f32 %v1970, %v1564
      %v1972 = vadd.f32 %v1971, %v1576
      %v1973 = vadd.f32 %v1972, %v1588
      %v1974 = vadd.f32 %v1973, %v1600
      %v1975 = vadd.f32 %v1974, %v1612
      %v1976 = vadd.f32 %v1975, %v1624
      %v1977 = vadd.f32 %v1976, %v1636
      %v1978 = vadd.f32 %v1977, %v1648
      %v1979 = vadd.f32 %v1978, %v1660
      %v1980 = vadd.f32 %v1979, %v1672
      %v1981 = vadd.f32 %v1980, %v1684
      %v1982 = vadd.f32 %v1981, %v1696
      %v1983 = vadd.f32 %v1982, %v1708
      %v1984 = vadd.f32 %v1983, %v1720
      %v1985 = vadd.f32 %v1984, %v1732
      %v1986 = vadd.f32 %v1985, %v1744
      %v1987 = vadd.f32 %v1986, %v1756
      %v1988 = vadd.f32 %v1987, %v1768
      %v1989 = vadd.f32 %v1988, %v1780
      %v1990 = vadd.f32 %v1989, %v1792
      %v1991 = vadd.f32 %v1990, %v1804
      %v1992 = vrot.slane %v1991, 4
      %v1993 = vadd.f32 %v1991, %v1992
      %v1994 = vrot.slane %v1993, 2
      %v1995 = vadd.f32 %v1993, %v1994
      %v1996 = vrot.slane %v1995, 1
      %v1997 = vadd.f32 %v1995, %v1996
      %v1998 = vadd.f32 %v1434, %v1446
      %v1999 = vadd.f32 %v1998, %v1458
      %v2000 = vadd.f32 %v1999, %v1470
      %v2001 = vadd.f32 %v2000, %v1482
      %v2002 = vadd.f32 %v2001, %v1494
      %v2003 = vadd.f32 %v2002, %v1506
      %v2004 = vadd.f32 %v2003, %v1518
      %v2005 = vadd.f32 %v2004, %v1530
      %v2006 = vadd.f32 %v2005, %v1542
      %v2007 = vadd.f32 %v2006, %v1554
      %v2008 = vadd.f32 %v2007, %v1566
      %v2009 = vadd.f32 %v2008, %v1578
      %v2010 = vadd.f32 %v2009, %v1590
      %v2011 = vadd.f32 %v2010, %v1602
      %v2012 = vadd.f32 %v2011, %v1614
      %v2013 = vadd.f32 %v2012, %v1626
      %v2014 = vadd.f32 %v2013, %v1638
      %v2015 = vadd.f32 %v2014, %v1650
      %v2016 = vadd.f32 %v2015, %v1662
      %v2017 = vadd.f32 %v2016, %v1674
      %v2018 = vadd.f32 %v2017, %v1686
      %v2019 = vadd.f32 %v2018, %v1698
      %v2020 = vadd.f32 %v2019, %v1710
      %v2021 = vadd.f32 %v2020, %v1722
      %v2022 = vadd.f32 %v2021, %v1734
      %v2023 = vadd.f32 %v2022, %v1746
      %v2024 = vadd.f32 %v2023, %v1758
      %v2025 = vadd.f32 %v2024, %v1770
      %v2026 = vadd.f32 %v2025, %v1782
      %v2027 = vadd.f32 %v2026, %v1794
      %v2028 = vadd.f32 %v2027, %v1806
      %v2029 = vrot.slane %v2028, 4
      %v2030 = vadd.f32 %v2028, %v2029
      %v2031 = vrot.slane %v2030, 2
      %v2032 = vadd.f32 %v2030, %v2031
      %v2033 = vrot.slane %v2032, 1
      %v2034 = vadd.f32 %v2032, %v2033
      %v2035 = vadd.f32 %v1807, %v1849
      %v2036 = vadd.f32 %v1808, %v1886
      %v2037 = vadd.f32 %v1809, %v1923
      %v2038 = vadd.f32 %v1810, %v1960
      %v2039 = vadd.f32 %v1811, %v1997
      %v2040 = vadd.f32 %v1812, %v2034
      %v2041 = vpack.c.bf16 %v1436, %v1424
      %v2042 = vpack.c.bf16 %v1438, %v1426
      %v2043 = vpack.c.bf16 %v1440, %v1428
      %v2044 = vpack.c.bf16 %v1442, %v1430
      %v2045 = vpack.c.bf16 %v1444, %v1432
      %v2046 = vpack.c.bf16 %v1446, %v1434
      %v2047 = vpack.c.bf16 %v1460, %v1448
      %v2048 = vpack.c.bf16 %v1462, %v1450
      %v2049 = vpack.c.bf16 %v1464, %v1452
      %v2050 = vpack.c.bf16 %v1466, %v1454
      %v2051 = vpack.c.bf16 %v1468, %v1456
      %v2052 = vpack.c.bf16 %v1470, %v1458
      %v2053 = vpack.c.bf16 %v1484, %v1472
      %v2054 = vpack.c.bf16 %v1486, %v1474
      %v2055 = vpack.c.bf16 %v1488, %v1476
      %v2056 = vpack.c.bf16 %v1490, %v1478
      %v2057 = vpack.c.bf16 %v1492, %v1480
      %v2058 = vpack.c.bf16 %v1494, %v1482
      %v2059 = vpack.c.bf16 %v1508, %v1496
      %v2060 = vpack.c.bf16 %v1510, %v1498
      %v2061 = vpack.c.bf16 %v1512, %v1500
      %v2062 = vpack.c.bf16 %v1514, %v1502
      %v2063 = vpack.c.bf16 %v1516, %v1504
      %v2064 = vpack.c.bf16 %v1518, %v1506
      %v2065 = vpack.c.bf16 %v1532, %v1520
      %v2066 = vpack.c.bf16 %v1534, %v1522
      %v2067 = vpack.c.bf16 %v1536, %v1524
      %v2068 = vpack.c.bf16 %v1538, %v1526
      %v2069 = vpack.c.bf16 %v1540, %v1528
      %v2070 = vpack.c.bf16 %v1542, %v1530
      %v2071 = vpack.c.bf16 %v1556, %v1544
      %v2072 = vpack.c.bf16 %v1558, %v1546
      %v2073 = vpack.c.bf16 %v1560, %v1548
      %v2074 = vpack.c.bf16 %v1562, %v1550
      %v2075 = vpack.c.bf16 %v1564, %v1552
      %v2076 = vpack.c.bf16 %v1566, %v1554
      %v2077 = vpack.c.bf16 %v1580, %v1568
      %v2078 = vpack.c.bf16 %v1582, %v1570
      %v2079 = vpack.c.bf16 %v1584, %v1572
      %v2080 = vpack.c.bf16 %v1586, %v1574
      %v2081 = vpack.c.bf16 %v1588, %v1576
      %v2082 = vpack.c.bf16 %v1590, %v1578
      %v2083 = vpack.c.bf16 %v1604, %v1592
      %v2084 = vpack.c.bf16 %v1606, %v1594
      %v2085 = vpack.c.bf16 %v1608, %v1596
      %v2086 = vpack.c.bf16 %v1610, %v1598
      %v2087 = vpack.c.bf16 %v1612, %v1600
      %v2088 = vpack.c.bf16 %v1614, %v1602
      %v2089 = vpack.c.bf16 %v1628, %v1616
      %v2090 = vpack.c.bf16 %v1630, %v1618
      %v2091 = vpack.c.bf16 %v1632, %v1620
      %v2092 = vpack.c.bf16 %v1634, %v1622
      %v2093 = vpack.c.bf16 %v1636, %v1624
      %v2094 = vpack.c.bf16 %v1638, %v1626
      %v2095 = vpack.c.bf16 %v1652, %v1640
      %v2096 = vpack.c.bf16 %v1654, %v1642
      %v2097 = vpack.c.bf16 %v1656, %v1644
      %v2098 = vpack.c.bf16 %v1658, %v1646
      %v2099 = vpack.c.bf16 %v1660, %v1648
      %v2100 = vpack.c.bf16 %v1662, %v1650
      %v2101 = vpack.c.bf16 %v1676, %v1664
      %v2102 = vpack.c.bf16 %v1678, %v1666
      %v2103 = vpack.c.bf16 %v1680, %v1668
      %v2104 = vpack.c.bf16 %v1682, %v1670
      %v2105 = vpack.c.bf16 %v1684, %v1672
      %v2106 = vpack.c.bf16 %v1686, %v1674
      %v2107 = vpack.c.bf16 %v1700, %v1688
      %v2108 = vpack.c.bf16 %v1702, %v1690
      %v2109 = vpack.c.bf16 %v1704, %v1692
      %v2110 = vpack.c.bf16 %v1706, %v1694
      %v2111 = vpack.c.bf16 %v1708, %v1696
      %v2112 = vpack.c.bf16 %v1710, %v1698
      %v2113 = vpack.c.bf16 %v1724, %v1712
      %v2114 = vpack.c.bf16 %v1726, %v1714
      %v2115 = vpack.c.bf16 %v1728, %v1716
      %v2116 = vpack.c.bf16 %v1730, %v1718
      %v2117 = vpack.c.bf16 %v1732, %v1720
      %v2118 = vpack.c.bf16 %v1734, %v1722
      %v2119 = vpack.c.bf16 %v1748, %v1736
      %v2120 = vpack.c.bf16 %v1750, %v1738
      %v2121 = vpack.c.bf16 %v1752, %v1740
      %v2122 = vpack.c.bf16 %v1754, %v1742
      %v2123 = vpack.c.bf16 %v1756, %v1744
      %v2124 = vpack.c.bf16 %v1758, %v1746
      %v2125 = vpack.c.bf16 %v1772, %v1760
      %v2126 = vpack.c.bf16 %v1774, %v1762
      %v2127 = vpack.c.bf16 %v1776, %v1764
      %v2128 = vpack.c.bf16 %v1778, %v1766
      %v2129 = vpack.c.bf16 %v1780, %v1768
      %v2130 = vpack.c.bf16 %v1782, %v1770
      %v2131 = vpack.c.bf16 %v1796, %v1784
      %v2132 = vpack.c.bf16 %v1798, %v1786
      %v2133 = vpack.c.bf16 %v1800, %v1788
      %v2134 = vpack.c.bf16 %v1802, %v1790
      %v2135 = vpack.c.bf16 %v1804, %v1792
      %v2136 = vpack.c.bf16 %v1806, %v1794
      %v2138 = vunpack.c.l.b16 %v289
      %v2139 = vunpack.c.h.b16 %v289
      %v2140 = vpack.c.b16 %v2138, %v2138
      %v2141 = vpack.c.b16 %v2139, %v2139
      %2144 = vmatprep.subr.bf16.mxu0 %v2042
      %2145 = vmatpush1.bf16.msra.mxu0 %v2041
      %2146 = vmatprep.subr.bf16.mxu0 %v2048
      %2147 = vmatpush1.bf16.msra.mxu0 %v2047
      %2148 = vmatprep.subr.bf16.mxu0 %v2054
      %2149 = vmatpush1.bf16.msra.mxu0 %v2053
      %2150 = vmatprep.subr.bf16.mxu0 %v2060
      %2151 = vmatpush1.bf16.msra.mxu0 %v2059
      %2152 = vmatprep.subr.bf16.mxu0 %v2066
      %2153 = vmatpush1.bf16.msra.mxu0 %v2065
      %2154 = vmatprep.subr.bf16.mxu0 %v2072
      %2155 = vmatpush1.bf16.msra.mxu0 %v2071
      %2156 = vmatprep.subr.bf16.mxu0 %v2078
      %2157 = vmatpush1.bf16.msra.mxu0 %v2077
      %2158 = vmatprep.subr.bf16.mxu0 %v2084
      %2159 = vmatpush1.bf16.msra.mxu0 %v2083
      %2160 = vmatprep.subr.bf16.mxu0 %v2090
      %2161 = vmatpush1.bf16.msra.mxu0 %v2089
      %2162 = vmatprep.subr.bf16.mxu0 %v2096
      %2163 = vmatpush1.bf16.msra.mxu0 %v2095
      %2164 = vmatprep.subr.bf16.mxu0 %v2102
      %2165 = vmatpush1.bf16.msra.mxu0 %v2101
      %2166 = vmatprep.subr.bf16.mxu0 %v2108
      %2167 = vmatpush1.bf16.msra.mxu0 %v2107
      %2168 = vmatprep.subr.bf16.mxu0 %v2114
      %2169 = vmatpush1.bf16.msra.mxu0 %v2113
      %2170 = vmatprep.subr.bf16.mxu0 %v2120
      %2171 = vmatpush1.bf16.msra.mxu0 %v2119
      %2172 = vmatprep.subr.bf16.mxu0 %v2126
      %2173 = vmatpush1.bf16.msra.mxu0 %v2125
      %2174 = vmatprep.subr.bf16.mxu0 %v2132
      %2175 = vmatpush1.bf16.msra.mxu0 %v2131
      %2176 = vmatprep.mubr.bf16.mxu0 %v2141
      %2177 = vmatmul.mubr.bf16.gmra.mrb[0].mxu0 %v2140
      %v2178 = vpop.f32.mrb[0].mxu0
      %v2179 = vadd.f32 0.0, %v2178
      %v2180 = vpop.f32.mrb[0].mxu0
      %v2181 = vadd.f32 0.0, %v2180
      %v2182 = vpop.f32.mrb[0].mxu0
      %v2183 = vpop.f32.mrb[0].mxu0
      %2184 = vdwg.mxu0
      %2185 = vmatprep.subr.bf16.mxu0 %v2044
      %2186 = vmatpush1.bf16.msra.mxu0 %v2043
      %2187 = vmatprep.subr.bf16.mxu0 %v2050
      %2188 = vmatpush1.bf16.msra.mxu0 %v2049
      %2189 = vmatprep.subr.bf16.mxu0 %v2056
      %2190 = vmatpush1.bf16.msra.mxu0 %v2055
      %2191 = vmatprep.subr.bf16.mxu0 %v2062
      %2192 = vmatpush1.bf16.msra.mxu0 %v2061
      %2193 = vmatprep.subr.bf16.mxu0 %v2068
      %2194 = vmatpush1.bf16.msra.mxu0 %v2067
      %2195 = vmatprep.subr.bf16.mxu0 %v2074
      %2196 = vmatpush1.bf16.msra.mxu0 %v2073
      %2197 = vmatprep.subr.bf16.mxu0 %v2080
      %2198 = vmatpush1.bf16.msra.mxu0 %v2079
      %2199 = vmatprep.subr.bf16.mxu0 %v2086
      %2200 = vmatpush1.bf16.msra.mxu0 %v2085
      %2201 = vmatprep.subr.bf16.mxu0 %v2092
      %2202 = vmatpush1.bf16.msra.mxu0 %v2091
      %2203 = vmatprep.subr.bf16.mxu0 %v2098
      %2204 = vmatpush1.bf16.msra.mxu0 %v2097
      %2205 = vmatprep.subr.bf16.mxu0 %v2104
      %2206 = vmatpush1.bf16.msra.mxu0 %v2103
      %2207 = vmatprep.subr.bf16.mxu0 %v2110
      %2208 = vmatpush1.bf16.msra.mxu0 %v2109
      %2209 = vmatprep.subr.bf16.mxu0 %v2116
      %2210 = vmatpush1.bf16.msra.mxu0 %v2115
      %2211 = vmatprep.subr.bf16.mxu0 %v2122
      %2212 = vmatpush1.bf16.msra.mxu0 %v2121
      %2213 = vmatprep.subr.bf16.mxu0 %v2128
      %2214 = vmatpush1.bf16.msra.mxu0 %v2127
      %2215 = vmatprep.subr.bf16.mxu0 %v2134
      %2216 = vmatpush1.bf16.msra.mxu0 %v2133
      %2217 = vmatprep.mubr.bf16.mxu0 %v2141
      %2218 = vmatmul.mubr.bf16.gmra.mrb[0].mxu0 %v2140
      %v2219 = vpop.f32.mrb[0].mxu0
      %v2220 = vadd.f32 0.0, %v2219
      %v2221 = vpop.f32.mrb[0].mxu0
      %v2222 = vadd.f32 0.0, %v2221
      %v2223 = vpop.f32.mrb[0].mxu0
      %v2224 = vpop.f32.mrb[0].mxu0
      %2225 = vdwg.mxu0
      %2226 = vmatprep.subr.bf16.mxu0 %v2046
      %2227 = vmatpush1.bf16.msra.mxu0 %v2045
      %2228 = vmatprep.subr.bf16.mxu0 %v2052
      %2229 = vmatpush1.bf16.msra.mxu0 %v2051
      %2230 = vmatprep.subr.bf16.mxu0 %v2058
      %2231 = vmatpush1.bf16.msra.mxu0 %v2057
      %2232 = vmatprep.subr.bf16.mxu0 %v2064
      %2233 = vmatpush1.bf16.msra.mxu0 %v2063
      %2234 = vmatprep.subr.bf16.mxu0 %v2070
      %2235 = vmatpush1.bf16.msra.mxu0 %v2069
      %2236 = vmatprep.subr.bf16.mxu0 %v2076
      %2237 = vmatpush1.bf16.msra.mxu0 %v2075
      %2238 = vmatprep.subr.bf16.mxu0 %v2082
      %2239 = vmatpush1.bf16.msra.mxu0 %v2081
      %2240 = vmatprep.subr.bf16.mxu0 %v2088
      %2241 = vmatpush1.bf16.msra.mxu0 %v2087
      %2242 = vmatprep.subr.bf16.mxu0 %v2094
      %2243 = vmatpush1.bf16.msra.mxu0 %v2093
      %2244 = vmatprep.subr.bf16.mxu0 %v2100
      %2245 = vmatpush1.bf16.msra.mxu0 %v2099
      %2246 = vmatprep.subr.bf16.mxu0 %v2106
      %2247 = vmatpush1.bf16.msra.mxu0 %v2105
      %2248 = vmatprep.subr.bf16.mxu0 %v2112
      %2249 = vmatpush1.bf16.msra.mxu0 %v2111
      %2250 = vmatprep.subr.bf16.mxu0 %v2118
      %2251 = vmatpush1.bf16.msra.mxu0 %v2117
      %2252 = vmatprep.subr.bf16.mxu0 %v2124
      %2253 = vmatpush1.bf16.msra.mxu0 %v2123
      %2254 = vmatprep.subr.bf16.mxu0 %v2130
      %2255 = vmatpush1.bf16.msra.mxu0 %v2129
      %2256 = vmatprep.subr.bf16.mxu0 %v2136
      %2257 = vmatpush1.bf16.msra.mxu0 %v2135
      %2258 = vmatprep.mubr.bf16.mxu0 %v2141
      %2259 = vmatmul.mubr.bf16.gmra.mrb[0].mxu0 %v2140
      %v2260 = vpop.f32.mrb[0].mxu0
      %v2261 = vadd.f32 0.0, %v2260
      %v2262 = vpop.f32.mrb[0].mxu0
      %v2263 = vadd.f32 0.0, %v2262
      %v2264 = vpop.f32.mrb[0].mxu0
      %v2265 = vpop.f32.mrb[0].mxu0
      %2266 = vdwg.mxu0
      %v2267 = vadd.f32 %v1807, %v2179
      %v2268 = vadd.f32 %v1808, %v2181
      %v2269 = vadd.f32 %v1809, %v2220
      %v2270 = vadd.f32 %v1810, %v2222
      %v2271 = vadd.f32 %v1811, %v2261
      %v2272 = vadd.f32 %v1812, %v2263
      %s2273 = scalar_lea.vmem %s265, 8
      %v2274 = vld [vmem:[%s2273] sm:$0xff]
      %s2275 = scalar_lea.vmem %s270, 8
      %v2276 = vld [vmem:[%s2275] sm:$0xff]
      %v2278 = vunpack.c.l.b16 %v2274
      %v2279 = vunpack.c.h.b16 %v2274
      %v2280 = vpack.c.b16 %v2278, %v2278
      %v2281 = vpack.c.b16 %v2279, %v2279
      %2284 = vxpose.xlu0.c.b16.start [1/8] %v2280, 128
      %2285 = vxpose.xlu0.c.b16.cont [2/8] 0, 128
      %2286 = vxpose.xlu0.c.b16.cont [3/8] 0, 128
      %2287 = vxpose.xlu0.c.b16.cont [4/8] 0, 128
      %2288 = vxpose.xlu0.c.b16.cont [5/8] 0, 128
      %2289 = vxpose.xlu0.c.b16.cont [6/8] 0, 128
      %2290 = vxpose.xlu0.c.b16.cont [7/8] 0, 128
      %2291 = vxpose.xlu0.c.b16.end [8/8] 0, 128
      %v2292 = vpop.trf.xlu0
      %v2293 = vpop.trf.xlu0
      %v2294 = vpop.trf.xlu0
      %v2295 = vpop.trf.xlu0
      %v2296 = vpop.trf.xlu0
      %v2297 = vpop.trf.xlu0
      %v2298 = vpop.trf.xlu0
      %v2299 = vpop.trf.xlu0
      %2300 = vxpose.xlu0.c.b16.start [1/8] %v2281, 128
      %2301 = vxpose.xlu0.c.b16.cont [2/8] 0, 128
      %2302 = vxpose.xlu0.c.b16.cont [3/8] 0, 128
      %2303 = vxpose.xlu0.c.b16.cont [4/8] 0, 128
      %2304 = vxpose.xlu0.c.b16.cont [5/8] 0, 128
      %2305 = vxpose.xlu0.c.b16.cont [6/8] 0, 128
      %2306 = vxpose.xlu0.c.b16.cont [7/8] 0, 128
      %2307 = vxpose.xlu0.c.b16.end [8/8] 0, 128
      %v2308 = vpop.trf.xlu0
      %v2309 = vpop.trf.xlu0
      %v2310 = vpop.trf.xlu0
      %v2311 = vpop.trf.xlu0
      %v2312 = vpop.trf.xlu0
      %v2313 = vpop.trf.xlu0
      %v2314 = vpop.trf.xlu0
      %v2315 = vpop.trf.xlu0
      %v2317 = vsel %vm344, %v2292, 0
      %v2320 = vsel %vm344, %v2293, 0
      %v2323 = vsel %vm344, %v2294, 0
      %v2326 = vsel %vm344, %v2295, 0
      %v2329 = vsel %vm344, %v2296, 0
      %v2332 = vsel %vm344, %v2297, 0
      %v2335 = vsel %vm344, %v2298, 0
      %v2338 = vsel %vm344, %v2299, 0
      %v2341 = vsel %vm344, %v2308, 0
      %v2344 = vsel %vm344, %v2309, 0
      %v2347 = vsel %vm344, %v2310, 0
      %v2350 = vsel %vm344, %v2311, 0
      %v2353 = vsel %vm344, %v2312, 0
      %v2356 = vsel %vm344, %v2313, 0
      %v2359 = vsel %vm344, %v2314, 0
      %v2362 = vsel %vm344, %v2315, 0
      %2364 = vmatprep.subr.bf16.mxu0 %v398
      %2365 = vmatpush1.bf16.msra.mxu0 %v395
      %2366 = vmatprep.subr.bf16.mxu0 0
      %2367 = vmatpush1.bf16.msra.mxu0 0
      %2368 = vmatprep.subr.bf16.mxu0 0
      %2369 = vmatpush1.bf16.msra.mxu0 0
      %2370 = vmatprep.subr.bf16.mxu0 0
      %2371 = vmatpush1.bf16.msra.mxu0 0
      %2372 = vmatprep.subr.bf16.mxu0 0
      %2373 = vmatpush1.bf16.msra.mxu0 0
      %2374 = vmatprep.subr.bf16.mxu0 0
      %2375 = vmatpush1.bf16.msra.mxu0 0
      %2376 = vmatprep.subr.bf16.mxu0 0
      %2377 = vmatpush1.bf16.msra.mxu0 0
      %2378 = vmatprep.subr.bf16.mxu0 0
      %2379 = vmatpush1.bf16.msra.mxu0 0
      %2380 = vmatprep.subr.bf16.mxu0 0
      %2381 = vmatpush1.bf16.msra.mxu0 0
      %2382 = vmatprep.subr.bf16.mxu0 0
      %2383 = vmatpush1.bf16.msra.mxu0 0
      %2384 = vmatprep.subr.bf16.mxu0 0
      %2385 = vmatpush1.bf16.msra.mxu0 0
      %2386 = vmatprep.subr.bf16.mxu0 0
      %2387 = vmatpush1.bf16.msra.mxu0 0
      %2388 = vmatprep.subr.bf16.mxu0 0
      %2389 = vmatpush1.bf16.msra.mxu0 0
      %2390 = vmatprep.subr.bf16.mxu0 0
      %2391 = vmatpush1.bf16.msra.mxu0 0
      %2392 = vmatprep.subr.bf16.mxu0 0
      %2393 = vmatpush1.bf16.msra.mxu0 0
      %2394 = vmatprep.subr.bf16.mxu0 0
      %2395 = vmatpush1.bf16.msra.mxu0 0
      %2396 = vmatprep.mubr.bf16.mxu0 0
      %2397 = vmatmul.mubr.bf16.gmra.mrb[0].mxu0 %v2317
      %v2398 = vpop.f32.mrb[0].mxu0
      %v2399 = vadd.f32 0.0, %v2398
      %v2400 = vpop.f32.mrb[0].mxu0
      %v2401 = vadd.f32 0.0, %v2400
      %v2402 = vpop.f32.mrb[0].mxu0
      %v2403 = vadd.f32 0.0, %v2402
      %v2404 = vpop.f32.mrb[0].mxu0
      %v2405 = vadd.f32 0.0, %v2404
      %2406 = vmatprep.mubr.bf16.mxu0 0
      %2407 = vmatmul.mubr.bf16.gmra.mrb[0].mxu0 %v2320
      %v2408 = vpop.f32.mrb[0].mxu0
      %v2409 = vadd.f32 0.0, %v2408
      %v2410 = vpop.f32.mrb[0].mxu0
      %v2411 = vadd.f32 0.0, %v2410
      %v2412 = vpop.f32.mrb[0].mxu0
      %v2413 = vadd.f32 0.0, %v2412
      %v2414 = vpop.f32.mrb[0].mxu0
      %v2415 = vadd.f32 0.0, %v2414
      %2416 = vmatprep.mubr.bf16.mxu0 0
      %2417 = vmatmul.mubr.bf16.gmra.mrb[0].mxu0 %v2323
      %v2418 = vpop.f32.mrb[0].mxu0
      %v2419 = vadd.f32 0.0, %v2418
      %v2420 = vpop.f32.mrb[0].mxu0
      %v2421 = vadd.f32 0.0, %v2420
      %v2422 = vpop.f32.mrb[0].mxu0
      %v2423 = vadd.f32 0.0, %v2422
      %v2424 = vpop.f32.mrb[0].mxu0
      %v2425 = vadd.f32 0.0, %v2424
      %2426 = vmatprep.mubr.bf16.mxu0 0
      %2427 = vmatmul.mubr.bf16.gmra.mrb[0].mxu0 %v2326
      %v2428 = vpop.f32.mrb[0].mxu0
      %v2429 = vadd.f32 0.0, %v2428
      %v2430 = vpop.f32.mrb[0].mxu0
      %v2431 = vadd.f32 0.0, %v2430
      %v2432 = vpop.f32.mrb[0].mxu0
      %v2433 = vadd.f32 0.0, %v2432
      %v2434 = vpop.f32.mrb[0].mxu0
      %v2435 = vadd.f32 0.0, %v2434
      %2436 = vmatprep.mubr.bf16.mxu0 0
      %2437 = vmatmul.mubr.bf16.gmra.mrb[0].mxu0 %v2329
      %v2438 = vpop.f32.mrb[0].mxu0
      %v2439 = vadd.f32 0.0, %v2438
      %v2440 = vpop.f32.mrb[0].mxu0
      %v2441 = vadd.f32 0.0, %v2440
      %v2442 = vpop.f32.mrb[0].mxu0
      %v2443 = vadd.f32 0.0, %v2442
      %v2444 = vpop.f32.mrb[0].mxu0
      %v2445 = vadd.f32 0.0, %v2444
      %2446 = vmatprep.mubr.bf16.mxu0 0
      %2447 = vmatmul.mubr.bf16.gmra.mrb[0].mxu0 %v2332
      %v2448 = vpop.f32.mrb[0].mxu0
      %v2449 = vadd.f32 0.0, %v2448
      %v2450 = vpop.f32.mrb[0].mxu0
      %v2451 = vadd.f32 0.0, %v2450
      %v2452 = vpop.f32.mrb[0].mxu0
      %v2453 = vadd.f32 0.0, %v2452
      %v2454 = vpop.f32.mrb[0].mxu0
      %v2455 = vadd.f32 0.0, %v2454
      %2456 = vmatprep.mubr.bf16.mxu0 0
      %2457 = vmatmul.mubr.bf16.gmra.mrb[0].mxu0 %v2335
      %v2458 = vpop.f32.mrb[0].mxu0
      %v2459 = vadd.f32 0.0, %v2458
      %v2460 = vpop.f32.mrb[0].mxu0
      %v2461 = vadd.f32 0.0, %v2460
      %v2462 = vpop.f32.mrb[0].mxu0
      %v2463 = vadd.f32 0.0, %v2462
      %v2464 = vpop.f32.mrb[0].mxu0
      %v2465 = vadd.f32 0.0, %v2464
      %2466 = vmatprep.mubr.bf16.mxu0 0
      %2467 = vmatmul.mubr.bf16.gmra.mrb[0].mxu0 %v2338
      %v2468 = vpop.f32.mrb[0].mxu0
      %v2469 = vadd.f32 0.0, %v2468
      %v2470 = vpop.f32.mrb[0].mxu0
      %v2471 = vadd.f32 0.0, %v2470
      %v2472 = vpop.f32.mrb[0].mxu0
      %v2473 = vadd.f32 0.0, %v2472
      %v2474 = vpop.f32.mrb[0].mxu0
      %v2475 = vadd.f32 0.0, %v2474
      %2476 = vmatprep.mubr.bf16.mxu0 0
      %2477 = vmatmul.mubr.bf16.gmra.mrb[0].mxu0 %v2341
      %v2478 = vpop.f32.mrb[0].mxu0
      %v2479 = vadd.f32 0.0, %v2478
      %v2480 = vpop.f32.mrb[0].mxu0
      %v2481 = vadd.f32 0.0, %v2480
      %v2482 = vpop.f32.mrb[0].mxu0
      %v2483 = vadd.f32 0.0, %v2482
      %v2484 = vpop.f32.mrb[0].mxu0
      %v2485 = vadd.f32 0.0, %v2484
      %2486 = vmatprep.mubr.bf16.mxu0 0
      %2487 = vmatmul.mubr.bf16.gmra.mrb[0].mxu0 %v2344
      %v2488 = vpop.f32.mrb[0].mxu0
      %v2489 = vadd.f32 0.0, %v2488
      %v2490 = vpop.f32.mrb[0].mxu0
      %v2491 = vadd.f32 0.0, %v2490
      %v2492 = vpop.f32.mrb[0].mxu0
      %v2493 = vadd.f32 0.0, %v2492
      %v2494 = vpop.f32.mrb[0].mxu0
      %v2495 = vadd.f32 0.0, %v2494
      %2496 = vmatprep.mubr.bf16.mxu0 0
      %2497 = vmatmul.mubr.bf16.gmra.mrb[0].mxu0 %v2347
      %v2498 = vpop.f32.mrb[0].mxu0
      %v2499 = vadd.f32 0.0, %v2498
      %v2500 = vpop.f32.mrb[0].mxu0
      %v2501 = vadd.f32 0.0, %v2500
      %v2502 = vpop.f32.mrb[0].mxu0
      %v2503 = vadd.f32 0.0, %v2502
      %v2504 = vpop.f32.mrb[0].mxu0
      %v2505 = vadd.f32 0.0, %v2504
      %2506 = vmatprep.mubr.bf16.mxu0 0
      %2507 = vmatmul.mubr.bf16.gmra.mrb[0].mxu0 %v2350
      %v2508 = vpop.f32.mrb[0].mxu0
      %v2509 = vadd.f32 0.0, %v2508
      %v2510 = vpop.f32.mrb[0].mxu0
      %v2511 = vadd.f32 0.0, %v2510
      %v2512 = vpop.f32.mrb[0].mxu0
      %v2513 = vadd.f32 0.0, %v2512
      %v2514 = vpop.f32.mrb[0].mxu0
      %v2515 = vadd.f32 0.0, %v2514
      %2516 = vmatprep.mubr.bf16.mxu0 0
      %2517 = vmatmul.mubr.bf16.gmra.mrb[0].mxu0 %v2353
      %v2518 = vpop.f32.mrb[0].mxu0
      %v2519 = vadd.f32 0.0, %v2518
      %v2520 = vpop.f32.mrb[0].mxu0
      %v2521 = vadd.f32 0.0, %v2520
      %v2522 = vpop.f32.mrb[0].mxu0
      %v2523 = vadd.f32 0.0, %v2522
      %v2524 = vpop.f32.mrb[0].mxu0
      %v2525 = vadd.f32 0.0, %v2524
      %2526 = vmatprep.mubr.bf16.mxu0 0
      %2527 = vmatmul.mubr.bf16.gmra.mrb[0].mxu0 %v2356
      %v2528 = vpop.f32.mrb[0].mxu0
      %v2529 = vadd.f32 0.0, %v2528
      %v2530 = vpop.f32.mrb[0].mxu0
      %v2531 = vadd.f32 0.0, %v2530
      %v2532 = vpop.f32.mrb[0].mxu0
      %v2533 = vadd.f32 0.0, %v2532
      %v2534 = vpop.f32.mrb[0].mxu0
      %v2535 = vadd.f32 0.0, %v2534
      %2536 = vmatprep.mubr.bf16.mxu0 0
      %2537 = vmatmul.mubr.bf16.gmra.mrb[0].mxu0 %v2359
      %v2538 = vpop.f32.mrb[0].mxu0
      %v2539 = vadd.f32 0.0, %v2538
      %v2540 = vpop.f32.mrb[0].mxu0
      %v2541 = vadd.f32 0.0, %v2540
      %v2542 = vpop.f32.mrb[0].mxu0
      %v2543 = vadd.f32 0.0, %v2542
      %v2544 = vpop.f32.mrb[0].mxu0
      %v2545 = vadd.f32 0.0, %v2544
      %2546 = vmatprep.mubr.bf16.mxu0 0
      %2547 = vmatmul.mubr.bf16.gmra.mrb[0].mxu0 %v2362
      %v2548 = vpop.f32.mrb[0].mxu0
      %v2549 = vadd.f32 0.0, %v2548
      %v2550 = vpop.f32.mrb[0].mxu0
      %v2551 = vadd.f32 0.0, %v2550
      %v2552 = vpop.f32.mrb[0].mxu0
      %v2553 = vadd.f32 0.0, %v2552
      %v2554 = vpop.f32.mrb[0].mxu0
      %v2555 = vadd.f32 0.0, %v2554
      %2556 = vdwg.mxu0
      %2557 = vmatprep.subr.bf16.mxu0 %v404
      %2558 = vmatpush1.bf16.msra.mxu0 %v401
      %2559 = vmatprep.subr.bf16.mxu0 0
      %2560 = vmatpush1.bf16.msra.mxu0 0
      %2561 = vmatprep.subr.bf16.mxu0 0
      %2562 = vmatpush1.bf16.msra.mxu0 0
      %2563 = vmatprep.subr.bf16.mxu0 0
      %2564 = vmatpush1.bf16.msra.mxu0 0
      %2565 = vmatprep.subr.bf16.mxu0 0
      %2566 = vmatpush1.bf16.msra.mxu0 0
      %2567 = vmatprep.subr.bf16.mxu0 0
      %2568 = vmatpush1.bf16.msra.mxu0 0
      %2569 = vmatprep.subr.bf16.mxu0 0
      %2570 = vmatpush1.bf16.msra.mxu0 0
      %2571 = vmatprep.subr.bf16.mxu0 0
      %2572 = vmatpush1.bf16.msra.mxu0 0
      %2573 = vmatprep.subr.bf16.mxu0 0
      %2574 = vmatpush1.bf16.msra.mxu0 0
      %2575 = vmatprep.subr.bf16.mxu0 0
      %2576 = vmatpush1.bf16.msra.mxu0 0
      %2577 = vmatprep.subr.bf16.mxu0 0
      %2578 = vmatpush1.bf16.msra.mxu0 0
      %2579 = vmatprep.subr.bf16.mxu0 0
      %2580 = vmatpush1.bf16.msra.mxu0 0
      %2581 = vmatprep.subr.bf16.mxu0 0
      %2582 = vmatpush1.bf16.msra.mxu0 0
      %2583 = vmatprep.subr.bf16.mxu0 0
      %2584 = vmatpush1.bf16.msra.mxu0 0
      %2585 = vmatprep.subr.bf16.mxu0 0
      %2586 = vmatpush1.bf16.msra.mxu0 0
      %2587 = vmatprep.subr.bf16.mxu0 0
      %2588 = vmatpush1.bf16.msra.mxu0 0
      %2589 = vmatprep.mubr.bf16.mxu0 0
      %2590 = vmatmul.mubr.bf16.gmra.mrb[0].mxu0 %v2317
      %v2591 = vpop.f32.mrb[0].mxu0
      %v2592 = vadd.f32 0.0, %v2591
      %v2593 = vpop.f32.mrb[0].mxu0
      %v2594 = vadd.f32 0.0, %v2593
      %v2595 = vpop.f32.mrb[0].mxu0
      %v2596 = vadd.f32 0.0, %v2595
      %v2597 = vpop.f32.mrb[0].mxu0
      %v2598 = vadd.f32 0.0, %v2597
      %2599 = vmatprep.mubr.bf16.mxu0 0
      %2600 = vmatmul.mubr.bf16.gmra.mrb[0].mxu0 %v2320
      %v2601 = vpop.f32.mrb[0].mxu0
      %v2602 = vadd.f32 0.0, %v2601
      %v2603 = vpop.f32.mrb[0].mxu0
      %v2604 = vadd.f32 0.0, %v2603
      %v2605 = vpop.f32.mrb[0].mxu0
      %v2606 = vadd.f32 0.0, %v2605
      %v2607 = vpop.f32.mrb[0].mxu0
      %v2608 = vadd.f32 0.0, %v2607
      %2609 = vmatprep.mubr.bf16.mxu0 0
      %2610 = vmatmul.mubr.bf16.gmra.mrb[0].mxu0 %v2323
      %v2611 = vpop.f32.mrb[0].mxu0
      %v2612 = vadd.f32 0.0, %v2611
      %v2613 = vpop.f32.mrb[0].mxu0
      %v2614 = vadd.f32 0.0, %v2613
      %v2615 = vpop.f32.mrb[0].mxu0
      %v2616 = vadd.f32 0.0, %v2615
      %v2617 = vpop.f32.mrb[0].mxu0
      %v2618 = vadd.f32 0.0, %v2617
      %2619 = vmatprep.mubr.bf16.mxu0 0
      %2620 = vmatmul.mubr.bf16.gmra.mrb[0].mxu0 %v2326
      %v2621 = vpop.f32.mrb[0].mxu0
      %v2622 = vadd.f32 0.0, %v2621
      %v2623 = vpop.f32.mrb[0].mxu0
      %v2624 = vadd.f32 0.0, %v2623
      %v2625 = vpop.f32.mrb[0].mxu0
      %v2626 = vadd.f32 0.0, %v2625
      %v2627 = vpop.f32.mrb[0].mxu0
      %v2628 = vadd.f32 0.0, %v2627
      %2629 = vmatprep.mubr.bf16.mxu0 0
      %2630 = vmatmul.mubr.bf16.gmra.mrb[0].mxu0 %v2329
      %v2631 = vpop.f32.mrb[0].mxu0
      %v2632 = vadd.f32 0.0, %v2631
      %v2633 = vpop.f32.mrb[0].mxu0
      %v2634 = vadd.f32 0.0, %v2633
      %v2635 = vpop.f32.mrb[0].mxu0
      %v2636 = vadd.f32 0.0, %v2635
      %v2637 = vpop.f32.mrb[0].mxu0
      %v2638 = vadd.f32 0.0, %v2637
      %2639 = vmatprep.mubr.bf16.mxu0 0
      %2640 = vmatmul.mubr.bf16.gmra.mrb[0].mxu0 %v2332
      %v2641 = vpop.f32.mrb[0].mxu0
      %v2642 = vadd.f32 0.0, %v2641
      %v2643 = vpop.f32.mrb[0].mxu0
      %v2644 = vadd.f32 0.0, %v2643
      %v2645 = vpop.f32.mrb[0].mxu0
      %v2646 = vadd.f32 0.0, %v2645
      %v2647 = vpop.f32.mrb[0].mxu0
      %v2648 = vadd.f32 0.0, %v2647
      %2649 = vmatprep.mubr.bf16.mxu0 0
      %2650 = vmatmul.mubr.bf16.gmra.mrb[0].mxu0 %v2335
      %v2651 = vpop.f32.mrb[0].mxu0
      %v2652 = vadd.f32 0.0, %v2651
      %v2653 = vpop.f32.mrb[0].mxu0
      %v2654 = vadd.f32 0.0, %v2653
      %v2655 = vpop.f32.mrb[0].mxu0
      %v2656 = vadd.f32 0.0, %v2655
      %v2657 = vpop.f32.mrb[0].mxu0
      %v2658 = vadd.f32 0.0, %v2657
      %2659 = vmatprep.mubr.bf16.mxu0 0
      %2660 = vmatmul.mubr.bf16.gmra.mrb[0].mxu0 %v2338
      %v2661 = vpop.f32.mrb[0].mxu0
      %v2662 = vadd.f32 0.0, %v2661
      %v2663 = vpop.f32.mrb[0].mxu0
      %v2664 = vadd.f32 0.0, %v2663
      %v2665 = vpop.f32.mrb[0].mxu0
      %v2666 = vadd.f32 0.0, %v2665
      %v2667 = vpop.f32.mrb[0].mxu0
      %v2668 = vadd.f32 0.0, %v2667
      %2669 = vmatprep.mubr.bf16.mxu0 0
      %2670 = vmatmul.mubr.bf16.gmra.mrb[0].mxu0 %v2341
      %v2671 = vpop.f32.mrb[0].mxu0
      %v2672 = vadd.f32 0.0, %v2671
      %v2673 = vpop.f32.mrb[0].mxu0
      %v2674 = vadd.f32 0.0, %v2673
      %v2675 = vpop.f32.mrb[0].mxu0
      %v2676 = vadd.f32 0.0, %v2675
      %v2677 = vpop.f32.mrb[0].mxu0
      %v2678 = vadd.f32 0.0, %v2677
      %2679 = vmatprep.mubr.bf16.mxu0 0
      %2680 = vmatmul.mubr.bf16.gmra.mrb[0].mxu0 %v2344
      %v2681 = vpop.f32.mrb[0].mxu0
      %v2682 = vadd.f32 0.0, %v2681
      %v2683 = vpop.f32.mrb[0].mxu0
      %v2684 = vadd.f32 0.0, %v2683
      %v2685 = vpop.f32.mrb[0].mxu0
      %v2686 = vadd.f32 0.0, %v2685
      %v2687 = vpop.f32.mrb[0].mxu0
      %v2688 = vadd.f32 0.0, %v2687
      %2689 = vmatprep.mubr.bf16.mxu0 0
      %2690 = vmatmul.mubr.bf16.gmra.mrb[0].mxu0 %v2347
      %v2691 = vpop.f32.mrb[0].mxu0
      %v2692 = vadd.f32 0.0, %v2691
      %v2693 = vpop.f32.mrb[0].mxu0
      %v2694 = vadd.f32 0.0, %v2693
      %v2695 = vpop.f32.mrb[0].mxu0
      %v2696 = vadd.f32 0.0, %v2695
      %v2697 = vpop.f32.mrb[0].mxu0
      %v2698 = vadd.f32 0.0, %v2697
      %2699 = vmatprep.mubr.bf16.mxu0 0
      %2700 = vmatmul.mubr.bf16.gmra.mrb[0].mxu0 %v2350
      %v2701 = vpop.f32.mrb[0].mxu0
      %v2702 = vadd.f32 0.0, %v2701
      %v2703 = vpop.f32.mrb[0].mxu0
      %v2704 = vadd.f32 0.0, %v2703
      %v2705 = vpop.f32.mrb[0].mxu0
      %v2706 = vadd.f32 0.0, %v2705
      %v2707 = vpop.f32.mrb[0].mxu0
      %v2708 = vadd.f32 0.0, %v2707
      %2709 = vmatprep.mubr.bf16.mxu0 0
      %2710 = vmatmul.mubr.bf16.gmra.mrb[0].mxu0 %v2353
      %v2711 = vpop.f32.mrb[0].mxu0
      %v2712 = vadd.f32 0.0, %v2711
      %v2713 = vpop.f32.mrb[0].mxu0
      %v2714 = vadd.f32 0.0, %v2713
      %v2715 = vpop.f32.mrb[0].mxu0
      %v2716 = vadd.f32 0.0, %v2715
      %v2717 = vpop.f32.mrb[0].mxu0
      %v2718 = vadd.f32 0.0, %v2717
      %2719 = vmatprep.mubr.bf16.mxu0 0
      %2720 = vmatmul.mubr.bf16.gmra.mrb[0].mxu0 %v2356
      %v2721 = vpop.f32.mrb[0].mxu0
      %v2722 = vadd.f32 0.0, %v2721
      %v2723 = vpop.f32.mrb[0].mxu0
      %v2724 = vadd.f32 0.0, %v2723
      %v2725 = vpop.f32.mrb[0].mxu0
      %v2726 = vadd.f32 0.0, %v2725
      %v2727 = vpop.f32.mrb[0].mxu0
      %v2728 = vadd.f32 0.0, %v2727
      %2729 = vmatprep.mubr.bf16.mxu0 0
      %2730 = vmatmul.mubr.bf16.gmra.mrb[0].mxu0 %v2359
      %v2731 = vpop.f32.mrb[0].mxu0
      %v2732 = vadd.f32 0.0, %v2731
      %v2733 = vpop.f32.mrb[0].mxu0
      %v2734 = vadd.f32 0.0, %v2733
      %v2735 = vpop.f32.mrb[0].mxu0
      %v2736 = vadd.f32 0.0, %v2735
      %v2737 = vpop.f32.mrb[0].mxu0
      %v2738 = vadd.f32 0.0, %v2737
      %2739 = vmatprep.mubr.bf16.mxu0 0
      %2740 = vmatmul.mubr.bf16.gmra.mrb[0].mxu0 %v2362
      %v2741 = vpop.f32.mrb[0].mxu0
      %v2742 = vadd.f32 0.0, %v2741
      %v2743 = vpop.f32.mrb[0].mxu0
      %v2744 = vadd.f32 0.0, %v2743
      %v2745 = vpop.f32.mrb[0].mxu0
      %v2746 = vadd.f32 0.0, %v2745
      %v2747 = vpop.f32.mrb[0].mxu0
      %v2748 = vadd.f32 0.0, %v2747
      %2749 = vdwg.mxu0
      %2750 = vmatprep.subr.bf16.mxu0 %v410
      %2751 = vmatpush1.bf16.msra.mxu0 %v407
      %2752 = vmatprep.subr.bf16.mxu0 0
      %2753 = vmatpush1.bf16.msra.mxu0 0
      %2754 = vmatprep.subr.bf16.mxu0 0
      %2755 = vmatpush1.bf16.msra.mxu0 0
      %2756 = vmatprep.subr.bf16.mxu0 0
      %2757 = vmatpush1.bf16.msra.mxu0 0
      %2758 = vmatprep.subr.bf16.mxu0 0
      %2759 = vmatpush1.bf16.msra.mxu0 0
      %2760 = vmatprep.subr.bf16.mxu0 0
      %2761 = vmatpush1.bf16.msra.mxu0 0
      %2762 = vmatprep.subr.bf16.mxu0 0
      %2763 = vmatpush1.bf16.msra.mxu0 0
      %2764 = vmatprep.subr.bf16.mxu0 0
      %2765 = vmatpush1.bf16.msra.mxu0 0
      %2766 = vmatprep.subr.bf16.mxu0 0
      %2767 = vmatpush1.bf16.msra.mxu0 0
      %2768 = vmatprep.subr.bf16.mxu0 0
      %2769 = vmatpush1.bf16.msra.mxu0 0
      %2770 = vmatprep.subr.bf16.mxu0 0
      %2771 = vmatpush1.bf16.msra.mxu0 0
      %2772 = vmatprep.subr.bf16.mxu0 0
      %2773 = vmatpush1.bf16.msra.mxu0 0
      %2774 = vmatprep.subr.bf16.mxu0 0
      %2775 = vmatpush1.bf16.msra.mxu0 0
      %2776 = vmatprep.subr.bf16.mxu0 0
      %2777 = vmatpush1.bf16.msra.mxu0 0
      %2778 = vmatprep.subr.bf16.mxu0 0
      %2779 = vmatpush1.bf16.msra.mxu0 0
      %2780 = vmatprep.subr.bf16.mxu0 0
      %2781 = vmatpush1.bf16.msra.mxu0 0
      %2782 = vmatprep.mubr.bf16.mxu0 0
      %2783 = vmatmul.mubr.bf16.gmra.mrb[0].mxu0 %v2317
      %v2784 = vpop.f32.mrb[0].mxu0
      %v2785 = vadd.f32 0.0, %v2784
      %v2786 = vpop.f32.mrb[0].mxu0
      %v2787 = vadd.f32 0.0, %v2786
      %v2788 = vpop.f32.mrb[0].mxu0
      %v2789 = vadd.f32 0.0, %v2788
      %v2790 = vpop.f32.mrb[0].mxu0
      %v2791 = vadd.f32 0.0, %v2790
      %2792 = vmatprep.mubr.bf16.mxu0 0
      %2793 = vmatmul.mubr.bf16.gmra.mrb[0].mxu0 %v2320
      %v2794 = vpop.f32.mrb[0].mxu0
      %v2795 = vadd.f32 0.0, %v2794
      %v2796 = vpop.f32.mrb[0].mxu0
      %v2797 = vadd.f32 0.0, %v2796
      %v2798 = vpop.f32.mrb[0].mxu0
      %v2799 = vadd.f32 0.0, %v2798
      %v2800 = vpop.f32.mrb[0].mxu0
      %v2801 = vadd.f32 0.0, %v2800
      %2802 = vmatprep.mubr.bf16.mxu0 0
      %2803 = vmatmul.mubr.bf16.gmra.mrb[0].mxu0 %v2323
      %v2804 = vpop.f32.mrb[0].mxu0
      %v2805 = vadd.f32 0.0, %v2804
      %v2806 = vpop.f32.mrb[0].mxu0
      %v2807 = vadd.f32 0.0, %v2806
      %v2808 = vpop.f32.mrb[0].mxu0
      %v2809 = vadd.f32 0.0, %v2808
      %v2810 = vpop.f32.mrb[0].mxu0
      %v2811 = vadd.f32 0.0, %v2810
      %2812 = vmatprep.mubr.bf16.mxu0 0
      %2813 = vmatmul.mubr.bf16.gmra.mrb[0].mxu0 %v2326
      %v2814 = vpop.f32.mrb[0].mxu0
      %v2815 = vadd.f32 0.0, %v2814
      %v2816 = vpop.f32.mrb[0].mxu0
      %v2817 = vadd.f32 0.0, %v2816
      %v2818 = vpop.f32.mrb[0].mxu0
      %v2819 = vadd.f32 0.0, %v2818
      %v2820 = vpop.f32.mrb[0].mxu0
      %v2821 = vadd.f32 0.0, %v2820
      %2822 = vmatprep.mubr.bf16.mxu0 0
      %2823 = vmatmul.mubr.bf16.gmra.mrb[0].mxu0 %v2329
      %v2824 = vpop.f32.mrb[0].mxu0
      %v2825 = vadd.f32 0.0, %v2824
      %v2826 = vpop.f32.mrb[0].mxu0
      %v2827 = vadd.f32 0.0, %v2826
      %v2828 = vpop.f32.mrb[0].mxu0
      %v2829 = vadd.f32 0.0, %v2828
      %v2830 = vpop.f32.mrb[0].mxu0
      %v2831 = vadd.f32 0.0, %v2830
      %2832 = vmatprep.mubr.bf16.mxu0 0
      %2833 = vmatmul.mubr.bf16.gmra.mrb[0].mxu0 %v2332
      %v2834 = vpop.f32.mrb[0].mxu0
      %v2835 = vadd.f32 0.0, %v2834
      %v2836 = vpop.f32.mrb[0].mxu0
      %v2837 = vadd.f32 0.0, %v2836
      %v2838 = vpop.f32.mrb[0].mxu0
      %v2839 = vadd.f32 0.0, %v2838
      %v2840 = vpop.f32.mrb[0].mxu0
      %v2841 = vadd.f32 0.0, %v2840
      %2842 = vmatprep.mubr.bf16.mxu0 0
      %2843 = vmatmul.mubr.bf16.gmra.mrb[0].mxu0 %v2335
      %v2844 = vpop.f32.mrb[0].mxu0
      %v2845 = vadd.f32 0.0, %v2844
      %v2846 = vpop.f32.mrb[0].mxu0
      %v2847 = vadd.f32 0.0, %v2846
      %v2848 = vpop.f32.mrb[0].mxu0
      %v2849 = vadd.f32 0.0, %v2848
      %v2850 = vpop.f32.mrb[0].mxu0
      %v2851 = vadd.f32 0.0, %v2850
      %2852 = vmatprep.mubr.bf16.mxu0 0
      %2853 = vmatmul.mubr.bf16.gmra.mrb[0].mxu0 %v2338
      %v2854 = vpop.f32.mrb[0].mxu0
      %v2855 = vadd.f32 0.0, %v2854
      %v2856 = vpop.f32.mrb[0].mxu0
      %v2857 = vadd.f32 0.0, %v2856
      %v2858 = vpop.f32.mrb[0].mxu0
      %v2859 = vadd.f32 0.0, %v2858
      %v2860 = vpop.f32.mrb[0].mxu0
      %v2861 = vadd.f32 0.0, %v2860
      %2862 = vmatprep.mubr.bf16.mxu0 0
      %2863 = vmatmul.mubr.bf16.gmra.mrb[0].mxu0 %v2341
      %v2864 = vpop.f32.mrb[0].mxu0
      %v2865 = vadd.f32 0.0, %v2864
      %v2866 = vpop.f32.mrb[0].mxu0
      %v2867 = vadd.f32 0.0, %v2866
      %v2868 = vpop.f32.mrb[0].mxu0
      %v2869 = vadd.f32 0.0, %v2868
      %v2870 = vpop.f32.mrb[0].mxu0
      %v2871 = vadd.f32 0.0, %v2870
      %2872 = vmatprep.mubr.bf16.mxu0 0
      %2873 = vmatmul.mubr.bf16.gmra.mrb[0].mxu0 %v2344
      %v2874 = vpop.f32.mrb[0].mxu0
      %v2875 = vadd.f32 0.0, %v2874
      %v2876 = vpop.f32.mrb[0].mxu0
      %v2877 = vadd.f32 0.0, %v2876
      %v2878 = vpop.f32.mrb[0].mxu0
      %v2879 = vadd.f32 0.0, %v2878
      %v2880 = vpop.f32.mrb[0].mxu0
      %v2881 = vadd.f32 0.0, %v2880
      %2882 = vmatprep.mubr.bf16.mxu0 0
      %2883 = vmatmul.mubr.bf16.gmra.mrb[0].mxu0 %v2347
      %v2884 = vpop.f32.mrb[0].mxu0
      %v2885 = vadd.f32 0.0, %v2884
      %v2886 = vpop.f32.mrb[0].mxu0
      %v2887 = vadd.f32 0.0, %v2886
      %v2888 = vpop.f32.mrb[0].mxu0
      %v2889 = vadd.f32 0.0, %v2888
      %v2890 = vpop.f32.mrb[0].mxu0
      %v2891 = vadd.f32 0.0, %v2890
      %2892 = vmatprep.mubr.bf16.mxu0 0
      %2893 = vmatmul.mubr.bf16.gmra.mrb[0].mxu0 %v2350
      %v2894 = vpop.f32.mrb[0].mxu0
      %v2895 = vadd.f32 0.0, %v2894
      %v2896 = vpop.f32.mrb[0].mxu0
      %v2897 = vadd.f32 0.0, %v2896
      %v2898 = vpop.f32.mrb[0].mxu0
      %v2899 = vadd.f32 0.0, %v2898
      %v2900 = vpop.f32.mrb[0].mxu0
      %v2901 = vadd.f32 0.0, %v2900
      %2902 = vmatprep.mubr.bf16.mxu0 0
      %2903 = vmatmul.mubr.bf16.gmra.mrb[0].mxu0 %v2353
      %v2904 = vpop.f32.mrb[0].mxu0
      %v2905 = vadd.f32 0.0, %v2904
      %v2906 = vpop.f32.mrb[0].mxu0
      %v2907 = vadd.f32 0.0, %v2906
      %v2908 = vpop.f32.mrb[0].mxu0
      %v2909 = vadd.f32 0.0, %v2908
      %v2910 = vpop.f32.mrb[0].mxu0
      %v2911 = vadd.f32 0.0, %v2910
      %2912 = vmatprep.mubr.bf16.mxu0 0
      %2913 = vmatmul.mubr.bf16.gmra.mrb[0].mxu0 %v2356
      %v2914 = vpop.f32.mrb[0].mxu0
      %v2915 = vadd.f32 0.0, %v2914
      %v2916 = vpop.f32.mrb[0].mxu0
      %v2917 = vadd.f32 0.0, %v2916
      %v2918 = vpop.f32.mrb[0].mxu0
      %v2919 = vadd.f32 0.0, %v2918
      %v2920 = vpop.f32.mrb[0].mxu0
      %v2921 = vadd.f32 0.0, %v2920
      %2922 = vmatprep.mubr.bf16.mxu0 0
      %2923 = vmatmul.mubr.bf16.gmra.mrb[0].mxu0 %v2359
      %v2924 = vpop.f32.mrb[0].mxu0
      %v2925 = vadd.f32 0.0, %v2924
      %v2926 = vpop.f32.mrb[0].mxu0
      %v2927 = vadd.f32 0.0, %v2926
      %v2928 = vpop.f32.mrb[0].mxu0
      %v2929 = vadd.f32 0.0, %v2928
      %v2930 = vpop.f32.mrb[0].mxu0
      %v2931 = vadd.f32 0.0, %v2930
      %2932 = vmatprep.mubr.bf16.mxu0 0
      %2933 = vmatmul.mubr.bf16.gmra.mrb[0].mxu0 %v2362
      %v2934 = vpop.f32.mrb[0].mxu0
      %v2935 = vadd.f32 0.0, %v2934
      %v2936 = vpop.f32.mrb[0].mxu0
      %v2937 = vadd.f32 0.0, %v2936
      %v2938 = vpop.f32.mrb[0].mxu0
      %v2939 = vadd.f32 0.0, %v2938
      %v2940 = vpop.f32.mrb[0].mxu0
      %v2941 = vadd.f32 0.0, %v2940
      %2942 = vdwg.mxu0
      %v2943 = vmax.f32 %v2399, %v2403
      %v2944 = vmax.f32 %v2943, %v2409
      %v2945 = vmax.f32 %v2944, %v2413
      %v2946 = vmax.f32 %v2945, %v2419
      %v2947 = vmax.f32 %v2946, %v2423
      %v2948 = vmax.f32 %v2947, %v2429
      %v2949 = vmax.f32 %v2948, %v2433
      %v2950 = vmax.f32 %v2949, %v2439
      %v2951 = vmax.f32 %v2950, %v2443
      %v2952 = vmax.f32 %v2951, %v2449
      %v2953 = vmax.f32 %v2952, %v2453
      %v2954 = vmax.f32 %v2953, %v2459
      %v2955 = vmax.f32 %v2954, %v2463
      %v2956 = vmax.f32 %v2955, %v2469
      %v2957 = vmax.f32 %v2956, %v2473
      %v2958 = vmax.f32 %v2957, %v2479
      %v2959 = vmax.f32 %v2958, %v2483
      %v2960 = vmax.f32 %v2959, %v2489
      %v2961 = vmax.f32 %v2960, %v2493
      %v2962 = vmax.f32 %v2961, %v2499
      %v2963 = vmax.f32 %v2962, %v2503
      %v2964 = vmax.f32 %v2963, %v2509
      %v2965 = vmax.f32 %v2964, %v2513
      %v2966 = vmax.f32 %v2965, %v2519
      %v2967 = vmax.f32 %v2966, %v2523
      %v2968 = vmax.f32 %v2967, %v2529
      %v2969 = vmax.f32 %v2968, %v2533
      %v2970 = vmax.f32 %v2969, %v2539
      %v2971 = vmax.f32 %v2970, %v2543
      %v2972 = vmax.f32 %v2971, %v2549
      %v2973 = vmax.f32 %v2972, %v2553
      %v2974 = vrot.slane %v2973, 4
      %v2975 = vmax.f32 %v2973, %v2974
      %v2976 = vrot.slane %v2975, 2
      %v2977 = vmax.f32 %v2975, %v2976
      %v2978 = vrot.slane %v2977, 1
      %v2979 = vmax.f32 %v2977, %v2978
      %v2980 = vmax.f32 %v2401, %v2405
      %v2981 = vmax.f32 %v2980, %v2411
      %v2982 = vmax.f32 %v2981, %v2415
      %v2983 = vmax.f32 %v2982, %v2421
      %v2984 = vmax.f32 %v2983, %v2425
      %v2985 = vmax.f32 %v2984, %v2431
      %v2986 = vmax.f32 %v2985, %v2435
      %v2987 = vmax.f32 %v2986, %v2441
      %v2988 = vmax.f32 %v2987, %v2445
      %v2989 = vmax.f32 %v2988, %v2451
      %v2990 = vmax.f32 %v2989, %v2455
      %v2991 = vmax.f32 %v2990, %v2461
      %v2992 = vmax.f32 %v2991, %v2465
      %v2993 = vmax.f32 %v2992, %v2471
      %v2994 = vmax.f32 %v2993, %v2475
      %v2995 = vmax.f32 %v2994, %v2481
      %v2996 = vmax.f32 %v2995, %v2485
      %v2997 = vmax.f32 %v2996, %v2491
      %v2998 = vmax.f32 %v2997, %v2495
      %v2999 = vmax.f32 %v2998, %v2501
      %v3000 = vmax.f32 %v2999, %v2505
      %v3001 = vmax.f32 %v3000, %v2511
      %v3002 = vmax.f32 %v3001, %v2515
      %v3003 = vmax.f32 %v3002, %v2521
      %v3004 = vmax.f32 %v3003, %v2525
      %v3005 = vmax.f32 %v3004, %v2531
      %v3006 = vmax.f32 %v3005, %v2535
      %v3007 = vmax.f32 %v3006, %v2541
      %v3008 = vmax.f32 %v3007, %v2545
      %v3009 = vmax.f32 %v3008, %v2551
      %v3010 = vmax.f32 %v3009, %v2555
      %v3011 = vrot.slane %v3010, 4
      %v3012 = vmax.f32 %v3010, %v3011
      %v3013 = vrot.slane %v3012, 2
      %v3014 = vmax.f32 %v3012, %v3013
      %v3015 = vrot.slane %v3014, 1
      %v3016 = vmax.f32 %v3014, %v3015
      %v3017 = vmax.f32 %v2592, %v2596
      %v3018 = vmax.f32 %v3017, %v2602
      %v3019 = vmax.f32 %v3018, %v2606
      %v3020 = vmax.f32 %v3019, %v2612
      %v3021 = vmax.f32 %v3020, %v2616
      %v3022 = vmax.f32 %v3021, %v2622
      %v3023 = vmax.f32 %v3022, %v2626
      %v3024 = vmax.f32 %v3023, %v2632
      %v3025 = vmax.f32 %v3024, %v2636
      %v3026 = vmax.f32 %v3025, %v2642
      %v3027 = vmax.f32 %v3026, %v2646
      %v3028 = vmax.f32 %v3027, %v2652
      %v3029 = vmax.f32 %v3028, %v2656
      %v3030 = vmax.f32 %v3029, %v2662
      %v3031 = vmax.f32 %v3030, %v2666
      %v3032 = vmax.f32 %v3031, %v2672
      %v3033 = vmax.f32 %v3032, %v2676
      %v3034 = vmax.f32 %v3033, %v2682
      %v3035 = vmax.f32 %v3034, %v2686
      %v3036 = vmax.f32 %v3035, %v2692
      %v3037 = vmax.f32 %v3036, %v2696
      %v3038 = vmax.f32 %v3037, %v2702
      %v3039 = vmax.f32 %v3038, %v2706
      %v3040 = vmax.f32 %v3039, %v2712
      %v3041 = vmax.f32 %v3040, %v2716
      %v3042 = vmax.f32 %v3041, %v2722
      %v3043 = vmax.f32 %v3042, %v2726
      %v3044 = vmax.f32 %v3043, %v2732
      %v3045 = vmax.f32 %v3044, %v2736
      %v3046 = vmax.f32 %v3045, %v2742
      %v3047 = vmax.f32 %v3046, %v2746
      %v3048 = vrot.slane %v3047, 4
      %v3049 = vmax.f32 %v3047, %v3048
      %v3050 = vrot.slane %v3049, 2
      %v3051 = vmax.f32 %v3049, %v3050
      %v3052 = vrot.slane %v3051, 1
      %v3053 = vmax.f32 %v3051, %v3052
      %v3054 = vmax.f32 %v2594, %v2598
      %v3055 = vmax.f32 %v3054, %v2604
      %v3056 = vmax.f32 %v3055, %v2608
      %v3057 = vmax.f32 %v3056, %v2614
      %v3058 = vmax.f32 %v3057, %v2618
      %v3059 = vmax.f32 %v3058, %v2624
      %v3060 = vmax.f32 %v3059, %v2628
      %v3061 = vmax.f32 %v3060, %v2634
      %v3062 = vmax.f32 %v3061, %v2638
      %v3063 = vmax.f32 %v3062, %v2644
      %v3064 = vmax.f32 %v3063, %v2648
      %v3065 = vmax.f32 %v3064, %v2654
      %v3066 = vmax.f32 %v3065, %v2658
      %v3067 = vmax.f32 %v3066, %v2664
      %v3068 = vmax.f32 %v3067, %v2668
      %v3069 = vmax.f32 %v3068, %v2674
      %v3070 = vmax.f32 %v3069, %v2678
      %v3071 = vmax.f32 %v3070, %v2684
      %v3072 = vmax.f32 %v3071, %v2688
      %v3073 = vmax.f32 %v3072, %v2694
      %v3074 = vmax.f32 %v3073, %v2698
      %v3075 = vmax.f32 %v3074, %v2704
      %v3076 = vmax.f32 %v3075, %v2708
      %v3077 = vmax.f32 %v3076, %v2714
      %v3078 = vmax.f32 %v3077, %v2718
      %v3079 = vmax.f32 %v3078, %v2724
      %v3080 = vmax.f32 %v3079, %v2728
      %v3081 = vmax.f32 %v3080, %v2734
      %v3082 = vmax.f32 %v3081, %v2738
      %v3083 = vmax.f32 %v3082, %v2744
      %v3084 = vmax.f32 %v3083, %v2748
      %v3085 = vrot.slane %v3084, 4
      %v3086 = vmax.f32 %v3084, %v3085
      %v3087 = vrot.slane %v3086, 2
      %v3088 = vmax.f32 %v3086, %v3087
      %v3089 = vrot.slane %v3088, 1
      %v3090 = vmax.f32 %v3088, %v3089
      %v3091 = vmax.f32 %v2785, %v2789
      %v3092 = vmax.f32 %v3091, %v2795
      %v3093 = vmax.f32 %v3092, %v2799
      %v3094 = vmax.f32 %v3093, %v2805
      %v3095 = vmax.f32 %v3094, %v2809
      %v3096 = vmax.f32 %v3095, %v2815
      %v3097 = vmax.f32 %v3096, %v2819
      %v3098 = vmax.f32 %v3097, %v2825
      %v3099 = vmax.f32 %v3098, %v2829
      %v3100 = vmax.f32 %v3099, %v2835
      %v3101 = vmax.f32 %v3100, %v2839
      %v3102 = vmax.f32 %v3101, %v2845
      %v3103 = vmax.f32 %v3102, %v2849
      %v3104 = vmax.f32 %v3103, %v2855
      %v3105 = vmax.f32 %v3104, %v2859
      %v3106 = vmax.f32 %v3105, %v2865
      %v3107 = vmax.f32 %v3106, %v2869
      %v3108 = vmax.f32 %v3107, %v2875
      %v3109 = vmax.f32 %v3108, %v2879
      %v3110 = vmax.f32 %v3109, %v2885
      %v3111 = vmax.f32 %v3110, %v2889
      %v3112 = vmax.f32 %v3111, %v2895
      %v3113 = vmax.f32 %v3112, %v2899
      %v3114 = vmax.f32 %v3113, %v2905
      %v3115 = vmax.f32 %v3114, %v2909
      %v3116 = vmax.f32 %v3115, %v2915
      %v3117 = vmax.f32 %v3116, %v2919
      %v3118 = vmax.f32 %v3117, %v2925
      %v3119 = vmax.f32 %v3118, %v2929
      %v3120 = vmax.f32 %v3119, %v2935
      %v3121 = vmax.f32 %v3120, %v2939
      %v3122 = vrot.slane %v3121, 4
      %v3123 = vmax.f32 %v3121, %v3122
      %v3124 = vrot.slane %v3123, 2
      %v3125 = vmax.f32 %v3123, %v3124
      %v3126 = vrot.slane %v3125, 1
      %v3127 = vmax.f32 %v3125, %v3126
      %v3128 = vmax.f32 %v2787, %v2791
      %v3129 = vmax.f32 %v3128, %v2797
      %v3130 = vmax.f32 %v3129, %v2801
      %v3131 = vmax.f32 %v3130, %v2807
      %v3132 = vmax.f32 %v3131, %v2811
      %v3133 = vmax.f32 %v3132, %v2817
      %v3134 = vmax.f32 %v3133, %v2821
      %v3135 = vmax.f32 %v3134, %v2827
      %v3136 = vmax.f32 %v3135, %v2831
      %v3137 = vmax.f32 %v3136, %v2837
      %v3138 = vmax.f32 %v3137, %v2841
      %v3139 = vmax.f32 %v3138, %v2847
      %v3140 = vmax.f32 %v3139, %v2851
      %v3141 = vmax.f32 %v3140, %v2857
      %v3142 = vmax.f32 %v3141, %v2861
      %v3143 = vmax.f32 %v3142, %v2867
      %v3144 = vmax.f32 %v3143, %v2871
      %v3145 = vmax.f32 %v3144, %v2877
      %v3146 = vmax.f32 %v3145, %v2881
      %v3147 = vmax.f32 %v3146, %v2887
      %v3148 = vmax.f32 %v3147, %v2891
      %v3149 = vmax.f32 %v3148, %v2897
      %v3150 = vmax.f32 %v3149, %v2901
      %v3151 = vmax.f32 %v3150, %v2907
      %v3152 = vmax.f32 %v3151, %v2911
      %v3153 = vmax.f32 %v3152, %v2917
      %v3154 = vmax.f32 %v3153, %v2921
      %v3155 = vmax.f32 %v3154, %v2927
      %v3156 = vmax.f32 %v3155, %v2931
      %v3157 = vmax.f32 %v3156, %v2937
      %v3158 = vmax.f32 %v3157, %v2941
      %v3159 = vrot.slane %v3158, 4
      %v3160 = vmax.f32 %v3158, %v3159
      %v3161 = vrot.slane %v3160, 2
      %v3162 = vmax.f32 %v3160, %v3161
      %v3163 = vrot.slane %v3162, 1
      %v3164 = vmax.f32 %v3162, %v3163
      %v3165 = vmax.f32 %v1027, %v2979
      %v3166 = vmax.f32 %v1064, %v3016
      %v3167 = vmax.f32 %v1101, %v3053
      %v3168 = vmax.f32 %v1138, %v3090
      %v3169 = vmax.f32 %v1175, %v3127
      %v3170 = vmax.f32 %v1212, %v3164
      %v3171 = vsub.f32 %v1027, %v3165
      %v3172 = vsub.f32 %v1064, %v3166
      %v3173 = vsub.f32 %v1101, %v3167
      %v3174 = vsub.f32 %v1138, %v3168
      %v3175 = vsub.f32 %v1175, %v3169
      %v3176 = vsub.f32 %v1212, %v3170
      %v3177 = vmul.f32 %v3171, 1.442695
      %v3178 = vpow.pop %v3177
      %v3179 = vmul.f32 %v3172, 1.442695
      %v3180 = vpow.pop %v3179
      %v3181 = vmul.f32 %v3173, 1.442695
      %v3182 = vpow.pop %v3181
      %v3183 = vmul.f32 %v3174, 1.442695
      %v3184 = vpow.pop %v3183
      %v3185 = vmul.f32 %v3175, 1.442695
      %v3186 = vpow.pop %v3185
      %v3187 = vmul.f32 %v3176, 1.442695
      %v3188 = vpow.pop %v3187
      %v3189 = vsub.f32 %v2399, %v3165
      %v3190 = vsub.f32 %v2401, %v3166
      %v3191 = vsub.f32 %v2592, %v3167
      %v3192 = vsub.f32 %v2594, %v3168
      %v3193 = vsub.f32 %v2785, %v3169
      %v3194 = vsub.f32 %v2787, %v3170
      %v3195 = vsub.f32 %v2403, %v3165
      %v3196 = vsub.f32 %v2405, %v3166
      %v3197 = vsub.f32 %v2596, %v3167
      %v3198 = vsub.f32 %v2598, %v3168
      %v3199 = vsub.f32 %v2789, %v3169
      %v3200 = vsub.f32 %v2791, %v3170
      %v3201 = vsub.f32 %v2409, %v3165
      %v3202 = vsub.f32 %v2411, %v3166
      %v3203 = vsub.f32 %v2602, %v3167
      %v3204 = vsub.f32 %v2604, %v3168
      %v3205 = vsub.f32 %v2795, %v3169
      %v3206 = vsub.f32 %v2797, %v3170
      %v3207 = vsub.f32 %v2413, %v3165
      %v3208 = vsub.f32 %v2415, %v3166
      %v3209 = vsub.f32 %v2606, %v3167
      %v3210 = vsub.f32 %v2608, %v3168
      %v3211 = vsub.f32 %v2799, %v3169
      %v3212 = vsub.f32 %v2801, %v3170
      %v3213 = vsub.f32 %v2419, %v3165
      %v3214 = vsub.f32 %v2421, %v3166
      %v3215 = vsub.f32 %v2612, %v3167
      %v3216 = vsub.f32 %v2614, %v3168
      %v3217 = vsub.f32 %v2805, %v3169
      %v3218 = vsub.f32 %v2807, %v3170
      %v3219 = vsub.f32 %v2423, %v3165
      %v3220 = vsub.f32 %v2425, %v3166
      %v3221 = vsub.f32 %v2616, %v3167
      %v3222 = vsub.f32 %v2618, %v3168
      %v3223 = vsub.f32 %v2809, %v3169
      %v3224 = vsub.f32 %v2811, %v3170
      %v3225 = vsub.f32 %v2429, %v3165
      %v3226 = vsub.f32 %v2431, %v3166
      %v3227 = vsub.f32 %v2622, %v3167
      %v3228 = vsub.f32 %v2624, %v3168
      %v3229 = vsub.f32 %v2815, %v3169
      %v3230 = vsub.f32 %v2817, %v3170
      %v3231 = vsub.f32 %v2433, %v3165
      %v3232 = vsub.f32 %v2435, %v3166
      %v3233 = vsub.f32 %v2626, %v3167
      %v3234 = vsub.f32 %v2628, %v3168
      %v3235 = vsub.f32 %v2819, %v3169
      %v3236 = vsub.f32 %v2821, %v3170
      %v3237 = vsub.f32 %v2439, %v3165
      %v3238 = vsub.f32 %v2441, %v3166
      %v3239 = vsub.f32 %v2632, %v3167
      %v3240 = vsub.f32 %v2634, %v3168
      %v3241 = vsub.f32 %v2825, %v3169
      %v3242 = vsub.f32 %v2827, %v3170
      %v3243 = vsub.f32 %v2443, %v3165
      %v3244 = vsub.f32 %v2445, %v3166
      %v3245 = vsub.f32 %v2636, %v3167
      %v3246 = vsub.f32 %v2638, %v3168
      %v3247 = vsub.f32 %v2829, %v3169
      %v3248 = vsub.f32 %v2831, %v3170
      %v3249 = vsub.f32 %v2449, %v3165
      %v3250 = vsub.f32 %v2451, %v3166
      %v3251 = vsub.f32 %v2642, %v3167
      %v3252 = vsub.f32 %v2644, %v3168
      %v3253 = vsub.f32 %v2835, %v3169
      %v3254 = vsub.f32 %v2837, %v3170
      %v3255 = vsub.f32 %v2453, %v3165
      %v3256 = vsub.f32 %v2455, %v3166
      %v3257 = vsub.f32 %v2646, %v3167
      %v3258 = vsub.f32 %v2648, %v3168
      %v3259 = vsub.f32 %v2839, %v3169
      %v3260 = vsub.f32 %v2841, %v3170
      %v3261 = vsub.f32 %v2459, %v3165
      %v3262 = vsub.f32 %v2461, %v3166
      %v3263 = vsub.f32 %v2652, %v3167
      %v3264 = vsub.f32 %v2654, %v3168
      %v3265 = vsub.f32 %v2845, %v3169
      %v3266 = vsub.f32 %v2847, %v3170
      %v3267 = vsub.f32 %v2463, %v3165
      %v3268 = vsub.f32 %v2465, %v3166
      %v3269 = vsub.f32 %v2656, %v3167
      %v3270 = vsub.f32 %v2658, %v3168
      %v3271 = vsub.f32 %v2849, %v3169
      %v3272 = vsub.f32 %v2851, %v3170
      %v3273 = vsub.f32 %v2469, %v3165
      %v3274 = vsub.f32 %v2471, %v3166
      %v3275 = vsub.f32 %v2662, %v3167
      %v3276 = vsub.f32 %v2664, %v3168
      %v3277 = vsub.f32 %v2855, %v3169
      %v3278 = vsub.f32 %v2857, %v3170
      %v3279 = vsub.f32 %v2473, %v3165
      %v3280 = vsub.f32 %v2475, %v3166
      %v3281 = vsub.f32 %v2666, %v3167
      %v3282 = vsub.f32 %v2668, %v3168
      %v3283 = vsub.f32 %v2859, %v3169
      %v3284 = vsub.f32 %v2861, %v3170
      %v3285 = vsub.f32 %v2479, %v3165
      %v3286 = vsub.f32 %v2481, %v3166
      %v3287 = vsub.f32 %v2672, %v3167
      %v3288 = vsub.f32 %v2674, %v3168
      %v3289 = vsub.f32 %v2865, %v3169
      %v3290 = vsub.f32 %v2867, %v3170
      %v3291 = vsub.f32 %v2483, %v3165
      %v3292 = vsub.f32 %v2485, %v3166
      %v3293 = vsub.f32 %v2676, %v3167
      %v3294 = vsub.f32 %v2678, %v3168
      %v3295 = vsub.f32 %v2869, %v3169
      %v3296 = vsub.f32 %v2871, %v3170
      %v3297 = vsub.f32 %v2489, %v3165
      %v3298 = vsub.f32 %v2491, %v3166
      %v3299 = vsub.f32 %v2682, %v3167
      %v3300 = vsub.f32 %v2684, %v3168
      %v3301 = vsub.f32 %v2875, %v3169
      %v3302 = vsub.f32 %v2877, %v3170
      %v3303 = vsub.f32 %v2493, %v3165
      %v3304 = vsub.f32 %v2495, %v3166
      %v3305 = vsub.f32 %v2686, %v3167
      %v3306 = vsub.f32 %v2688, %v3168
      %v3307 = vsub.f32 %v2879, %v3169
      %v3308 = vsub.f32 %v2881, %v3170
      %v3309 = vsub.f32 %v2499, %v3165
      %v3310 = vsub.f32 %v2501, %v3166
      %v3311 = vsub.f32 %v2692, %v3167
      %v3312 = vsub.f32 %v2694, %v3168
      %v3313 = vsub.f32 %v2885, %v3169
      %v3314 = vsub.f32 %v2887, %v3170
      %v3315 = vsub.f32 %v2503, %v3165
      %v3316 = vsub.f32 %v2505, %v3166
      %v3317 = vsub.f32 %v2696, %v3167
      %v3318 = vsub.f32 %v2698, %v3168
      %v3319 = vsub.f32 %v2889, %v3169
      %v3320 = vsub.f32 %v2891, %v3170
      %v3321 = vsub.f32 %v2509, %v3165
      %v3322 = vsub.f32 %v2511, %v3166
      %v3323 = vsub.f32 %v2702, %v3167
      %v3324 = vsub.f32 %v2704, %v3168
      %v3325 = vsub.f32 %v2895, %v3169
      %v3326 = vsub.f32 %v2897, %v3170
      %v3327 = vsub.f32 %v2513, %v3165
      %v3328 = vsub.f32 %v2515, %v3166
      %v3329 = vsub.f32 %v2706, %v3167
      %v3330 = vsub.f32 %v2708, %v3168
      %v3331 = vsub.f32 %v2899, %v3169
      %v3332 = vsub.f32 %v2901, %v3170
      %v3333 = vsub.f32 %v2519, %v3165
      %v3334 = vsub.f32 %v2521, %v3166
      %v3335 = vsub.f32 %v2712, %v3167
      %v3336 = vsub.f32 %v2714, %v3168
      %v3337 = vsub.f32 %v2905, %v3169
      %v3338 = vsub.f32 %v2907, %v3170
      %v3339 = vsub.f32 %v2523, %v3165
      %v3340 = vsub.f32 %v2525, %v3166
      %v3341 = vsub.f32 %v2716, %v3167
      %v3342 = vsub.f32 %v2718, %v3168
      %v3343 = vsub.f32 %v2909, %v3169
      %v3344 = vsub.f32 %v2911, %v3170
      %v3345 = vsub.f32 %v2529, %v3165
      %v3346 = vsub.f32 %v2531, %v3166
      %v3347 = vsub.f32 %v2722, %v3167
      %v3348 = vsub.f32 %v2724, %v3168
      %v3349 = vsub.f32 %v2915, %v3169
      %v3350 = vsub.f32 %v2917, %v3170
      %v3351 = vsub.f32 %v2533, %v3165
      %v3352 = vsub.f32 %v2535, %v3166
      %v3353 = vsub.f32 %v2726, %v3167
      %v3354 = vsub.f32 %v2728, %v3168
      %v3355 = vsub.f32 %v2919, %v3169
      %v3356 = vsub.f32 %v2921, %v3170
      %v3357 = vsub.f32 %v2539, %v3165
      %v3358 = vsub.f32 %v2541, %v3166
      %v3359 = vsub.f32 %v2732, %v3167
      %v3360 = vsub.f32 %v2734, %v3168
      %v3361 = vsub.f32 %v2925, %v3169
      %v3362 = vsub.f32 %v2927, %v3170
      %v3363 = vsub.f32 %v2543, %v3165
      %v3364 = vsub.f32 %v2545, %v3166
      %v3365 = vsub.f32 %v2736, %v3167
      %v3366 = vsub.f32 %v2738, %v3168
      %v3367 = vsub.f32 %v2929, %v3169
      %v3368 = vsub.f32 %v2931, %v3170
      %v3369 = vsub.f32 %v2549, %v3165
      %v3370 = vsub.f32 %v2551, %v3166
      %v3371 = vsub.f32 %v2742, %v3167
      %v3372 = vsub.f32 %v2744, %v3168
      %v3373 = vsub.f32 %v2935, %v3169
      %v3374 = vsub.f32 %v2937, %v3170
      %v3375 = vsub.f32 %v2553, %v3165
      %v3376 = vsub.f32 %v2555, %v3166
      %v3377 = vsub.f32 %v2746, %v3167
      %v3378 = vsub.f32 %v2748, %v3168
      %v3379 = vsub.f32 %v2939, %v3169
      %v3380 = vsub.f32 %v2941, %v3170
      %v3381 = vmul.f32 %v3189, 1.442695
      %v3382 = vpow.pop %v3381
      %v3383 = vmul.f32 %v3190, 1.442695
      %v3384 = vpow.pop %v3383
      %v3385 = vmul.f32 %v3191, 1.442695
      %v3386 = vpow.pop %v3385
      %v3387 = vmul.f32 %v3192, 1.442695
      %v3388 = vpow.pop %v3387
      %v3389 = vmul.f32 %v3193, 1.442695
      %v3390 = vpow.pop %v3389
      %v3391 = vmul.f32 %v3194, 1.442695
      %v3392 = vpow.pop %v3391
      %v3393 = vmul.f32 %v3195, 1.442695
      %v3394 = vpow.pop %v3393
      %v3395 = vmul.f32 %v3196, 1.442695
      %v3396 = vpow.pop %v3395
      %v3397 = vmul.f32 %v3197, 1.442695
      %v3398 = vpow.pop %v3397
      %v3399 = vmul.f32 %v3198, 1.442695
      %v3400 = vpow.pop %v3399
      %v3401 = vmul.f32 %v3199, 1.442695
      %v3402 = vpow.pop %v3401
      %v3403 = vmul.f32 %v3200, 1.442695
      %v3404 = vpow.pop %v3403
      %v3405 = vmul.f32 %v3201, 1.442695
      %v3406 = vpow.pop %v3405
      %v3407 = vmul.f32 %v3202, 1.442695
      %v3408 = vpow.pop %v3407
      %v3409 = vmul.f32 %v3203, 1.442695
      %v3410 = vpow.pop %v3409
      %v3411 = vmul.f32 %v3204, 1.442695
      %v3412 = vpow.pop %v3411
      %v3413 = vmul.f32 %v3205, 1.442695
      %v3414 = vpow.pop %v3413
      %v3415 = vmul.f32 %v3206, 1.442695
      %v3416 = vpow.pop %v3415
      %v3417 = vmul.f32 %v3207, 1.442695
      %v3418 = vpow.pop %v3417
      %v3419 = vmul.f32 %v3208, 1.442695
      %v3420 = vpow.pop %v3419
      %v3421 = vmul.f32 %v3209, 1.442695
      %v3422 = vpow.pop %v3421
      %v3423 = vmul.f32 %v3210, 1.442695
      %v3424 = vpow.pop %v3423
      %v3425 = vmul.f32 %v3211, 1.442695
      %v3426 = vpow.pop %v3425
      %v3427 = vmul.f32 %v3212, 1.442695
      %v3428 = vpow.pop %v3427
      %v3429 = vmul.f32 %v3213, 1.442695
      %v3430 = vpow.pop %v3429
      %v3431 = vmul.f32 %v3214, 1.442695
      %v3432 = vpow.pop %v3431
      %v3433 = vmul.f32 %v3215, 1.442695
      %v3434 = vpow.pop %v3433
      %v3435 = vmul.f32 %v3216, 1.442695
      %v3436 = vpow.pop %v3435
      %v3437 = vmul.f32 %v3217, 1.442695
      %v3438 = vpow.pop %v3437
      %v3439 = vmul.f32 %v3218, 1.442695
      %v3440 = vpow.pop %v3439
      %v3441 = vmul.f32 %v3219, 1.442695
      %v3442 = vpow.pop %v3441
      %v3443 = vmul.f32 %v3220, 1.442695
      %v3444 = vpow.pop %v3443
      %v3445 = vmul.f32 %v3221, 1.442695
      %v3446 = vpow.pop %v3445
      %v3447 = vmul.f32 %v3222, 1.442695
      %v3448 = vpow.pop %v3447
      %v3449 = vmul.f32 %v3223, 1.442695
      %v3450 = vpow.pop %v3449
      %v3451 = vmul.f32 %v3224, 1.442695
      %v3452 = vpow.pop %v3451
      %v3453 = vmul.f32 %v3225, 1.442695
      %v3454 = vpow.pop %v3453
      %v3455 = vmul.f32 %v3226, 1.442695
      %v3456 = vpow.pop %v3455
      %v3457 = vmul.f32 %v3227, 1.442695
      %v3458 = vpow.pop %v3457
      %v3459 = vmul.f32 %v3228, 1.442695
      %v3460 = vpow.pop %v3459
      %v3461 = vmul.f32 %v3229, 1.442695
      %v3462 = vpow.pop %v3461
      %v3463 = vmul.f32 %v3230, 1.442695
      %v3464 = vpow.pop %v3463
      %v3465 = vmul.f32 %v3231, 1.442695
      %v3466 = vpow.pop %v3465
      %v3467 = vmul.f32 %v3232, 1.442695
      %v3468 = vpow.pop %v3467
      %v3469 = vmul.f32 %v3233, 1.442695
      %v3470 = vpow.pop %v3469
      %v3471 = vmul.f32 %v3234, 1.442695
      %v3472 = vpow.pop %v3471
      %v3473 = vmul.f32 %v3235, 1.442695
      %v3474 = vpow.pop %v3473
      %v3475 = vmul.f32 %v3236, 1.442695
      %v3476 = vpow.pop %v3475
      %v3477 = vmul.f32 %v3237, 1.442695
      %v3478 = vpow.pop %v3477
      %v3479 = vmul.f32 %v3238, 1.442695
      %v3480 = vpow.pop %v3479
      %v3481 = vmul.f32 %v3239, 1.442695
      %v3482 = vpow.pop %v3481
      %v3483 = vmul.f32 %v3240, 1.442695
      %v3484 = vpow.pop %v3483
      %v3485 = vmul.f32 %v3241, 1.442695
      %v3486 = vpow.pop %v3485
      %v3487 = vmul.f32 %v3242, 1.442695
      %v3488 = vpow.pop %v3487
      %v3489 = vmul.f32 %v3243, 1.442695
      %v3490 = vpow.pop %v3489
      %v3491 = vmul.f32 %v3244, 1.442695
      %v3492 = vpow.pop %v3491
      %v3493 = vmul.f32 %v3245, 1.442695
      %v3494 = vpow.pop %v3493
      %v3495 = vmul.f32 %v3246, 1.442695
      %v3496 = vpow.pop %v3495
      %v3497 = vmul.f32 %v3247, 1.442695
      %v3498 = vpow.pop %v3497
      %v3499 = vmul.f32 %v3248, 1.442695
      %v3500 = vpow.pop %v3499
      %v3501 = vmul.f32 %v3249, 1.442695
      %v3502 = vpow.pop %v3501
      %v3503 = vmul.f32 %v3250, 1.442695
      %v3504 = vpow.pop %v3503
      %v3505 = vmul.f32 %v3251, 1.442695
      %v3506 = vpow.pop %v3505
      %v3507 = vmul.f32 %v3252, 1.442695
      %v3508 = vpow.pop %v3507
      %v3509 = vmul.f32 %v3253, 1.442695
      %v3510 = vpow.pop %v3509
      %v3511 = vmul.f32 %v3254, 1.442695
      %v3512 = vpow.pop %v3511
      %v3513 = vmul.f32 %v3255, 1.442695
      %v3514 = vpow.pop %v3513
      %v3515 = vmul.f32 %v3256, 1.442695
      %v3516 = vpow.pop %v3515
      %v3517 = vmul.f32 %v3257, 1.442695
      %v3518 = vpow.pop %v3517
      %v3519 = vmul.f32 %v3258, 1.442695
      %v3520 = vpow.pop %v3519
      %v3521 = vmul.f32 %v3259, 1.442695
      %v3522 = vpow.pop %v3521
      %v3523 = vmul.f32 %v3260, 1.442695
      %v3524 = vpow.pop %v3523
      %v3525 = vmul.f32 %v3261, 1.442695
      %v3526 = vpow.pop %v3525
      %v3527 = vmul.f32 %v3262, 1.442695
      %v3528 = vpow.pop %v3527
      %v3529 = vmul.f32 %v3263, 1.442695
      %v3530 = vpow.pop %v3529
      %v3531 = vmul.f32 %v3264, 1.442695
      %v3532 = vpow.pop %v3531
      %v3533 = vmul.f32 %v3265, 1.442695
      %v3534 = vpow.pop %v3533
      %v3535 = vmul.f32 %v3266, 1.442695
      %v3536 = vpow.pop %v3535
      %v3537 = vmul.f32 %v3267, 1.442695
      %v3538 = vpow.pop %v3537
      %v3539 = vmul.f32 %v3268, 1.442695
      %v3540 = vpow.pop %v3539
      %v3541 = vmul.f32 %v3269, 1.442695
      %v3542 = vpow.pop %v3541
      %v3543 = vmul.f32 %v3270, 1.442695
      %v3544 = vpow.pop %v3543
      %v3545 = vmul.f32 %v3271, 1.442695
      %v3546 = vpow.pop %v3545
      %v3547 = vmul.f32 %v3272, 1.442695
      %v3548 = vpow.pop %v3547
      %v3549 = vmul.f32 %v3273, 1.442695
      %v3550 = vpow.pop %v3549
      %v3551 = vmul.f32 %v3274, 1.442695
      %v3552 = vpow.pop %v3551
      %v3553 = vmul.f32 %v3275, 1.442695
      %v3554 = vpow.pop %v3553
      %v3555 = vmul.f32 %v3276, 1.442695
      %v3556 = vpow.pop %v3555
      %v3557 = vmul.f32 %v3277, 1.442695
      %v3558 = vpow.pop %v3557
      %v3559 = vmul.f32 %v3278, 1.442695
      %v3560 = vpow.pop %v3559
      %v3561 = vmul.f32 %v3279, 1.442695
      %v3562 = vpow.pop %v3561
      %v3563 = vmul.f32 %v3280, 1.442695
      %v3564 = vpow.pop %v3563
      %v3565 = vmul.f32 %v3281, 1.442695
      %v3566 = vpow.pop %v3565
      %v3567 = vmul.f32 %v3282, 1.442695
      %v3568 = vpow.pop %v3567
      %v3569 = vmul.f32 %v3283, 1.442695
      %v3570 = vpow.pop %v3569
      %v3571 = vmul.f32 %v3284, 1.442695
      %v3572 = vpow.pop %v3571
      %v3573 = vmul.f32 %v3285, 1.442695
      %v3574 = vpow.pop %v3573
      %v3575 = vmul.f32 %v3286, 1.442695
      %v3576 = vpow.pop %v3575
      %v3577 = vmul.f32 %v3287, 1.442695
      %v3578 = vpow.pop %v3577
      %v3579 = vmul.f32 %v3288, 1.442695
      %v3580 = vpow.pop %v3579
      %v3581 = vmul.f32 %v3289, 1.442695
      %v3582 = vpow.pop %v3581
      %v3583 = vmul.f32 %v3290, 1.442695
      %v3584 = vpow.pop %v3583
      %v3585 = vmul.f32 %v3291, 1.442695
      %v3586 = vpow.pop %v3585
      %v3587 = vmul.f32 %v3292, 1.442695
      %v3588 = vpow.pop %v3587
      %v3589 = vmul.f32 %v3293, 1.442695
      %v3590 = vpow.pop %v3589
      %v3591 = vmul.f32 %v3294, 1.442695
      %v3592 = vpow.pop %v3591
      %v3593 = vmul.f32 %v3295, 1.442695
      %v3594 = vpow.pop %v3593
      %v3595 = vmul.f32 %v3296, 1.442695
      %v3596 = vpow.pop %v3595
      %v3597 = vmul.f32 %v3297, 1.442695
      %v3598 = vpow.pop %v3597
      %v3599 = vmul.f32 %v3298, 1.442695
      %v3600 = vpow.pop %v3599
      %v3601 = vmul.f32 %v3299, 1.442695
      %v3602 = vpow.pop %v3601
      %v3603 = vmul.f32 %v3300, 1.442695
      %v3604 = vpow.pop %v3603
      %v3605 = vmul.f32 %v3301, 1.442695
      %v3606 = vpow.pop %v3605
      %v3607 = vmul.f32 %v3302, 1.442695
      %v3608 = vpow.pop %v3607
      %v3609 = vmul.f32 %v3303, 1.442695
      %v3610 = vpow.pop %v3609
      %v3611 = vmul.f32 %v3304, 1.442695
      %v3612 = vpow.pop %v3611
      %v3613 = vmul.f32 %v3305, 1.442695
      %v3614 = vpow.pop %v3613
      %v3615 = vmul.f32 %v3306, 1.442695
      %v3616 = vpow.pop %v3615
      %v3617 = vmul.f32 %v3307, 1.442695
      %v3618 = vpow.pop %v3617
      %v3619 = vmul.f32 %v3308, 1.442695
      %v3620 = vpow.pop %v3619
      %v3621 = vmul.f32 %v3309, 1.442695
      %v3622 = vpow.pop %v3621
      %v3623 = vmul.f32 %v3310, 1.442695
      %v3624 = vpow.pop %v3623
      %v3625 = vmul.f32 %v3311, 1.442695
      %v3626 = vpow.pop %v3625
      %v3627 = vmul.f32 %v3312, 1.442695
      %v3628 = vpow.pop %v3627
      %v3629 = vmul.f32 %v3313, 1.442695
      %v3630 = vpow.pop %v3629
      %v3631 = vmul.f32 %v3314, 1.442695
      %v3632 = vpow.pop %v3631
      %v3633 = vmul.f32 %v3315, 1.442695
      %v3634 = vpow.pop %v3633
      %v3635 = vmul.f32 %v3316, 1.442695
      %v3636 = vpow.pop %v3635
      %v3637 = vmul.f32 %v3317, 1.442695
      %v3638 = vpow.pop %v3637
      %v3639 = vmul.f32 %v3318, 1.442695
      %v3640 = vpow.pop %v3639
      %v3641 = vmul.f32 %v3319, 1.442695
      %v3642 = vpow.pop %v3641
      %v3643 = vmul.f32 %v3320, 1.442695
      %v3644 = vpow.pop %v3643
      %v3645 = vmul.f32 %v3321, 1.442695
      %v3646 = vpow.pop %v3645
      %v3647 = vmul.f32 %v3322, 1.442695
      %v3648 = vpow.pop %v3647
      %v3649 = vmul.f32 %v3323, 1.442695
      %v3650 = vpow.pop %v3649
      %v3651 = vmul.f32 %v3324, 1.442695
      %v3652 = vpow.pop %v3651
      %v3653 = vmul.f32 %v3325, 1.442695
      %v3654 = vpow.pop %v3653
      %v3655 = vmul.f32 %v3326, 1.442695
      %v3656 = vpow.pop %v3655
      %v3657 = vmul.f32 %v3327, 1.442695
      %v3658 = vpow.pop %v3657
      %v3659 = vmul.f32 %v3328, 1.442695
      %v3660 = vpow.pop %v3659
      %v3661 = vmul.f32 %v3329, 1.442695
      %v3662 = vpow.pop %v3661
      %v3663 = vmul.f32 %v3330, 1.442695
      %v3664 = vpow.pop %v3663
      %v3665 = vmul.f32 %v3331, 1.442695
      %v3666 = vpow.pop %v3665
      %v3667 = vmul.f32 %v3332, 1.442695
      %v3668 = vpow.pop %v3667
      %v3669 = vmul.f32 %v3333, 1.442695
      %v3670 = vpow.pop %v3669
      %v3671 = vmul.f32 %v3334, 1.442695
      %v3672 = vpow.pop %v3671
      %v3673 = vmul.f32 %v3335, 1.442695
      %v3674 = vpow.pop %v3673
      %v3675 = vmul.f32 %v3336, 1.442695
      %v3676 = vpow.pop %v3675
      %v3677 = vmul.f32 %v3337, 1.442695
      %v3678 = vpow.pop %v3677
      %v3679 = vmul.f32 %v3338, 1.442695
      %v3680 = vpow.pop %v3679
      %v3681 = vmul.f32 %v3339, 1.442695
      %v3682 = vpow.pop %v3681
      %v3683 = vmul.f32 %v3340, 1.442695
      %v3684 = vpow.pop %v3683
      %v3685 = vmul.f32 %v3341, 1.442695
      %v3686 = vpow.pop %v3685
      %v3687 = vmul.f32 %v3342, 1.442695
      %v3688 = vpow.pop %v3687
      %v3689 = vmul.f32 %v3343, 1.442695
      %v3690 = vpow.pop %v3689
      %v3691 = vmul.f32 %v3344, 1.442695
      %v3692 = vpow.pop %v3691
      %v3693 = vmul.f32 %v3345, 1.442695
      %v3694 = vpow.pop %v3693
      %v3695 = vmul.f32 %v3346, 1.442695
      %v3696 = vpow.pop %v3695
      %v3697 = vmul.f32 %v3347, 1.442695
      %v3698 = vpow.pop %v3697
      %v3699 = vmul.f32 %v3348, 1.442695
      %v3700 = vpow.pop %v3699
      %v3701 = vmul.f32 %v3349, 1.442695
      %v3702 = vpow.pop %v3701
      %v3703 = vmul.f32 %v3350, 1.442695
      %v3704 = vpow.pop %v3703
      %v3705 = vmul.f32 %v3351, 1.442695
      %v3706 = vpow.pop %v3705
      %v3707 = vmul.f32 %v3352, 1.442695
      %v3708 = vpow.pop %v3707
      %v3709 = vmul.f32 %v3353, 1.442695
      %v3710 = vpow.pop %v3709
      %v3711 = vmul.f32 %v3354, 1.442695
      %v3712 = vpow.pop %v3711
      %v3713 = vmul.f32 %v3355, 1.442695
      %v3714 = vpow.pop %v3713
      %v3715 = vmul.f32 %v3356, 1.442695
      %v3716 = vpow.pop %v3715
      %v3717 = vmul.f32 %v3357, 1.442695
      %v3718 = vpow.pop %v3717
      %v3719 = vmul.f32 %v3358, 1.442695
      %v3720 = vpow.pop %v3719
      %v3721 = vmul.f32 %v3359, 1.442695
      %v3722 = vpow.pop %v3721
      %v3723 = vmul.f32 %v3360, 1.442695
      %v3724 = vpow.pop %v3723
      %v3725 = vmul.f32 %v3361, 1.442695
      %v3726 = vpow.pop %v3725
      %v3727 = vmul.f32 %v3362, 1.442695
      %v3728 = vpow.pop %v3727
      %v3729 = vmul.f32 %v3363, 1.442695
      %v3730 = vpow.pop %v3729
      %v3731 = vmul.f32 %v3364, 1.442695
      %v3732 = vpow.pop %v3731
      %v3733 = vmul.f32 %v3365, 1.442695
      %v3734 = vpow.pop %v3733
      %v3735 = vmul.f32 %v3366, 1.442695
      %v3736 = vpow.pop %v3735
      %v3737 = vmul.f32 %v3367, 1.442695
      %v3738 = vpow.pop %v3737
      %v3739 = vmul.f32 %v3368, 1.442695
      %v3740 = vpow.pop %v3739
      %v3741 = vmul.f32 %v3369, 1.442695
      %v3742 = vpow.pop %v3741
      %v3743 = vmul.f32 %v3370, 1.442695
      %v3744 = vpow.pop %v3743
      %v3745 = vmul.f32 %v3371, 1.442695
      %v3746 = vpow.pop %v3745
      %v3747 = vmul.f32 %v3372, 1.442695
      %v3748 = vpow.pop %v3747
      %v3749 = vmul.f32 %v3373, 1.442695
      %v3750 = vpow.pop %v3749
      %v3751 = vmul.f32 %v3374, 1.442695
      %v3752 = vpow.pop %v3751
      %v3753 = vmul.f32 %v3375, 1.442695
      %v3754 = vpow.pop %v3753
      %v3755 = vmul.f32 %v3376, 1.442695
      %v3756 = vpow.pop %v3755
      %v3757 = vmul.f32 %v3377, 1.442695
      %v3758 = vpow.pop %v3757
      %v3759 = vmul.f32 %v3378, 1.442695
      %v3760 = vpow.pop %v3759
      %v3761 = vmul.f32 %v3379, 1.442695
      %v3762 = vpow.pop %v3761
      %v3763 = vmul.f32 %v3380, 1.442695
      %v3764 = vpow.pop %v3763
      %v3765 = vmul.f32 %v3178, %v2035
      %v3766 = vmul.f32 %v3180, %v2036
      %v3767 = vmul.f32 %v3182, %v2037
      %v3768 = vmul.f32 %v3184, %v2038
      %v3769 = vmul.f32 %v3186, %v2039
      %v3770 = vmul.f32 %v3188, %v2040
      %v3771 = vadd.f32 %v3382, %v3394
      %v3772 = vadd.f32 %v3771, %v3406
      %v3773 = vadd.f32 %v3772, %v3418
      %v3774 = vadd.f32 %v3773, %v3430
      %v3775 = vadd.f32 %v3774, %v3442
      %v3776 = vadd.f32 %v3775, %v3454
      %v3777 = vadd.f32 %v3776, %v3466
      %v3778 = vadd.f32 %v3777, %v3478
      %v3779 = vadd.f32 %v3778, %v3490
      %v3780 = vadd.f32 %v3779, %v3502
      %v3781 = vadd.f32 %v3780, %v3514
      %v3782 = vadd.f32 %v3781, %v3526
      %v3783 = vadd.f32 %v3782, %v3538
      %v3784 = vadd.f32 %v3783, %v3550
      %v3785 = vadd.f32 %v3784, %v3562
      %v3786 = vadd.f32 %v3785, %v3574
      %v3787 = vadd.f32 %v3786, %v3586
      %v3788 = vadd.f32 %v3787, %v3598
      %v3789 = vadd.f32 %v3788, %v3610
      %v3790 = vadd.f32 %v3789, %v3622
      %v3791 = vadd.f32 %v3790, %v3634
      %v3792 = vadd.f32 %v3791, %v3646
      %v3793 = vadd.f32 %v3792, %v3658
      %v3794 = vadd.f32 %v3793, %v3670
      %v3795 = vadd.f32 %v3794, %v3682
      %v3796 = vadd.f32 %v3795, %v3694
      %v3797 = vadd.f32 %v3796, %v3706
      %v3798 = vadd.f32 %v3797, %v3718
      %v3799 = vadd.f32 %v3798, %v3730
      %v3800 = vadd.f32 %v3799, %v3742
      %v3801 = vadd.f32 %v3800, %v3754
      %v3802 = vrot.slane %v3801, 4
      %v3803 = vadd.f32 %v3801, %v3802
      %v3804 = vrot.slane %v3803, 2
      %v3805 = vadd.f32 %v3803, %v3804
      %v3806 = vrot.slane %v3805, 1
      %v3807 = vadd.f32 %v3805, %v3806
      %v3808 = vadd.f32 %v3384, %v3396
      %v3809 = vadd.f32 %v3808, %v3408
      %v3810 = vadd.f32 %v3809, %v3420
      %v3811 = vadd.f32 %v3810, %v3432
      %v3812 = vadd.f32 %v3811, %v3444
      %v3813 = vadd.f32 %v3812, %v3456
      %v3814 = vadd.f32 %v3813, %v3468
      %v3815 = vadd.f32 %v3814, %v3480
      %v3816 = vadd.f32 %v3815, %v3492
      %v3817 = vadd.f32 %v3816, %v3504
      %v3818 = vadd.f32 %v3817, %v3516
      %v3819 = vadd.f32 %v3818, %v3528
      %v3820 = vadd.f32 %v3819, %v3540
      %v3821 = vadd.f32 %v3820, %v3552
      %v3822 = vadd.f32 %v3821, %v3564
      %v3823 = vadd.f32 %v3822, %v3576
      %v3824 = vadd.f32 %v3823, %v3588
      %v3825 = vadd.f32 %v3824, %v3600
      %v3826 = vadd.f32 %v3825, %v3612
      %v3827 = vadd.f32 %v3826, %v3624
      %v3828 = vadd.f32 %v3827, %v3636
      %v3829 = vadd.f32 %v3828, %v3648
      %v3830 = vadd.f32 %v3829, %v3660
      %v3831 = vadd.f32 %v3830, %v3672
      %v3832 = vadd.f32 %v3831, %v3684
      %v3833 = vadd.f32 %v3832, %v3696
      %v3834 = vadd.f32 %v3833, %v3708
      %v3835 = vadd.f32 %v3834, %v3720
      %v3836 = vadd.f32 %v3835, %v3732
      %v3837 = vadd.f32 %v3836, %v3744
      %v3838 = vadd.f32 %v3837, %v3756
      %v3839 = vrot.slane %v3838, 4
      %v3840 = vadd.f32 %v3838, %v3839
      %v3841 = vrot.slane %v3840, 2
      %v3842 = vadd.f32 %v3840, %v3841
      %v3843 = vrot.slane %v3842, 1
      %v3844 = vadd.f32 %v3842, %v3843
      %v3845 = vadd.f32 %v3386, %v3398
      %v3846 = vadd.f32 %v3845, %v3410
      %v3847 = vadd.f32 %v3846, %v3422
      %v3848 = vadd.f32 %v3847, %v3434
      %v3849 = vadd.f32 %v3848, %v3446
      %v3850 = vadd.f32 %v3849, %v3458
      %v3851 = vadd.f32 %v3850, %v3470
      %v3852 = vadd.f32 %v3851, %v3482
      %v3853 = vadd.f32 %v3852, %v3494
      %v3854 = vadd.f32 %v3853, %v3506
      %v3855 = vadd.f32 %v3854, %v3518
      %v3856 = vadd.f32 %v3855, %v3530
      %v3857 = vadd.f32 %v3856, %v3542
      %v3858 = vadd.f32 %v3857, %v3554
      %v3859 = vadd.f32 %v3858, %v3566
      %v3860 = vadd.f32 %v3859, %v3578
      %v3861 = vadd.f32 %v3860, %v3590
      %v3862 = vadd.f32 %v3861, %v3602
      %v3863 = vadd.f32 %v3862, %v3614
      %v3864 = vadd.f32 %v3863, %v3626
      %v3865 = vadd.f32 %v3864, %v3638
      %v3866 = vadd.f32 %v3865, %v3650
      %v3867 = vadd.f32 %v3866, %v3662
      %v3868 = vadd.f32 %v3867, %v3674
      %v3869 = vadd.f32 %v3868, %v3686
      %v3870 = vadd.f32 %v3869, %v3698
      %v3871 = vadd.f32 %v3870, %v3710
      %v3872 = vadd.f32 %v3871, %v3722
      %v3873 = vadd.f32 %v3872, %v3734
      %v3874 = vadd.f32 %v3873, %v3746
      %v3875 = vadd.f32 %v3874, %v3758
      %v3876 = vrot.slane %v3875, 4
      %v3877 = vadd.f32 %v3875, %v3876
      %v3878 = vrot.slane %v3877, 2
      %v3879 = vadd.f32 %v3877, %v3878
      %v3880 = vrot.slane %v3879, 1
      %v3881 = vadd.f32 %v3879, %v3880
      %v3882 = vadd.f32 %v3388, %v3400
      %v3883 = vadd.f32 %v3882, %v3412
      %v3884 = vadd.f32 %v3883, %v3424
      %v3885 = vadd.f32 %v3884, %v3436
      %v3886 = vadd.f32 %v3885, %v3448
      %v3887 = vadd.f32 %v3886, %v3460
      %v3888 = vadd.f32 %v3887, %v3472
      %v3889 = vadd.f32 %v3888, %v3484
      %v3890 = vadd.f32 %v3889, %v3496
      %v3891 = vadd.f32 %v3890, %v3508
      %v3892 = vadd.f32 %v3891, %v3520
      %v3893 = vadd.f32 %v3892, %v3532
      %v3894 = vadd.f32 %v3893, %v3544
      %v3895 = vadd.f32 %v3894, %v3556
      %v3896 = vadd.f32 %v3895, %v3568
      %v3897 = vadd.f32 %v3896, %v3580
      %v3898 = vadd.f32 %v3897, %v3592
      %v3899 = vadd.f32 %v3898, %v3604
      %v3900 = vadd.f32 %v3899, %v3616
      %v3901 = vadd.f32 %v3900, %v3628
      %v3902 = vadd.f32 %v3901, %v3640
      %v3903 = vadd.f32 %v3902, %v3652
      %v3904 = vadd.f32 %v3903, %v3664
      %v3905 = vadd.f32 %v3904, %v3676
      %v3906 = vadd.f32 %v3905, %v3688
      %v3907 = vadd.f32 %v3906, %v3700
      %v3908 = vadd.f32 %v3907, %v3712
      %v3909 = vadd.f32 %v3908, %v3724
      %v3910 = vadd.f32 %v3909, %v3736
      %v3911 = vadd.f32 %v3910, %v3748
      %v3912 = vadd.f32 %v3911, %v3760
      %v3913 = vrot.slane %v3912, 4
      %v3914 = vadd.f32 %v3912, %v3913
      %v3915 = vrot.slane %v3914, 2
      %v3916 = vadd.f32 %v3914, %v3915
      %v3917 = vrot.slane %v3916, 1
      %v3918 = vadd.f32 %v3916, %v3917
      %v3919 = vadd.f32 %v3390, %v3402
      %v3920 = vadd.f32 %v3919, %v3414
      %v3921 = vadd.f32 %v3920, %v3426
      %v3922 = vadd.f32 %v3921, %v3438
      %v3923 = vadd.f32 %v3922, %v3450
      %v3924 = vadd.f32 %v3923, %v3462
      %v3925 = vadd.f32 %v3924, %v3474
      %v3926 = vadd.f32 %v3925, %v3486
      %v3927 = vadd.f32 %v3926, %v3498
      %v3928 = vadd.f32 %v3927, %v3510
      %v3929 = vadd.f32 %v3928, %v3522
      %v3930 = vadd.f32 %v3929, %v3534
      %v3931 = vadd.f32 %v3930, %v3546
      %v3932 = vadd.f32 %v3931, %v3558
      %v3933 = vadd.f32 %v3932, %v3570
      %v3934 = vadd.f32 %v3933, %v3582
      %v3935 = vadd.f32 %v3934, %v3594
      %v3936 = vadd.f32 %v3935, %v3606
      %v3937 = vadd.f32 %v3936, %v3618
      %v3938 = vadd.f32 %v3937, %v3630
      %v3939 = vadd.f32 %v3938, %v3642
      %v3940 = vadd.f32 %v3939, %v3654
      %v3941 = vadd.f32 %v3940, %v3666
      %v3942 = vadd.f32 %v3941, %v3678
      %v3943 = vadd.f32 %v3942, %v3690
      %v3944 = vadd.f32 %v3943, %v3702
      %v3945 = vadd.f32 %v3944, %v3714
      %v3946 = vadd.f32 %v3945, %v3726
      %v3947 = vadd.f32 %v3946, %v3738
      %v3948 = vadd.f32 %v3947, %v3750
      %v3949 = vadd.f32 %v3948, %v3762
      %v3950 = vrot.slane %v3949, 4
      %v3951 = vadd.f32 %v3949, %v3950
      %v3952 = vrot.slane %v3951, 2
      %v3953 = vadd.f32 %v3951, %v3952
      %v3954 = vrot.slane %v3953, 1
      %v3955 = vadd.f32 %v3953, %v3954
      %v3956 = vadd.f32 %v3392, %v3404
      %v3957 = vadd.f32 %v3956, %v3416
      %v3958 = vadd.f32 %v3957, %v3428
      %v3959 = vadd.f32 %v3958, %v3440
      %v3960 = vadd.f32 %v3959, %v3452
      %v3961 = vadd.f32 %v3960, %v3464
      %v3962 = vadd.f32 %v3961, %v3476
      %v3963 = vadd.f32 %v3962, %v3488
      %v3964 = vadd.f32 %v3963, %v3500
      %v3965 = vadd.f32 %v3964, %v3512
      %v3966 = vadd.f32 %v3965, %v3524
      %v3967 = vadd.f32 %v3966, %v3536
      %v3968 = vadd.f32 %v3967, %v3548
      %v3969 = vadd.f32 %v3968, %v3560
      %v3970 = vadd.f32 %v3969, %v3572
      %v3971 = vadd.f32 %v3970, %v3584
      %v3972 = vadd.f32 %v3971, %v3596
      %v3973 = vadd.f32 %v3972, %v3608
      %v3974 = vadd.f32 %v3973, %v3620
      %v3975 = vadd.f32 %v3974, %v3632
      %v3976 = vadd.f32 %v3975, %v3644
      %v3977 = vadd.f32 %v3976, %v3656
      %v3978 = vadd.f32 %v3977, %v3668
      %v3979 = vadd.f32 %v3978, %v3680
      %v3980 = vadd.f32 %v3979, %v3692
      %v3981 = vadd.f32 %v3980, %v3704
      %v3982 = vadd.f32 %v3981, %v3716
      %v3983 = vadd.f32 %v3982, %v3728
      %v3984 = vadd.f32 %v3983, %v3740
      %v3985 = vadd.f32 %v3984, %v3752
      %v3986 = vadd.f32 %v3985, %v3764
      %v3987 = vrot.slane %v3986, 4
      %v3988 = vadd.f32 %v3986, %v3987
      %v3989 = vrot.slane %v3988, 2
      %v3990 = vadd.f32 %v3988, %v3989
      %v3991 = vrot.slane %v3990, 1
      %v3992 = vadd.f32 %v3990, %v3991
      %v3993 = vadd.f32 %v3765, %v3807
      %v3994 = vadd.f32 %v3766, %v3844
      %v3995 = vadd.f32 %v3767, %v3881
      %v3996 = vadd.f32 %v3768, %v3918
      %v3997 = vadd.f32 %v3769, %v3955
      %v3998 = vadd.f32 %v3770, %v3992
      %v3999 = vpack.c.bf16 %v3394, %v3382
      %v4000 = vpack.c.bf16 %v3396, %v3384
      %v4001 = vpack.c.bf16 %v3398, %v3386
      %v4002 = vpack.c.bf16 %v3400, %v3388
      %v4003 = vpack.c.bf16 %v3402, %v3390
      %v4004 = vpack.c.bf16 %v3404, %v3392
      %v4005 = vpack.c.bf16 %v3418, %v3406
      %v4006 = vpack.c.bf16 %v3420, %v3408
      %v4007 = vpack.c.bf16 %v3422, %v3410
      %v4008 = vpack.c.bf16 %v3424, %v3412
      %v4009 = vpack.c.bf16 %v3426, %v3414
      %v4010 = vpack.c.bf16 %v3428, %v3416
      %v4011 = vpack.c.bf16 %v3442, %v3430
      %v4012 = vpack.c.bf16 %v3444, %v3432
      %v4013 = vpack.c.bf16 %v3446, %v3434
      %v4014 = vpack.c.bf16 %v3448, %v3436
      %v4015 = vpack.c.bf16 %v3450, %v3438
      %v4016 = vpack.c.bf16 %v3452, %v3440
      %v4017 = vpack.c.bf16 %v3466, %v3454
      %v4018 = vpack.c.bf16 %v3468, %v3456
      %v4019 = vpack.c.bf16 %v3470, %v3458
      %v4020 = vpack.c.bf16 %v3472, %v3460
      %v4021 = vpack.c.bf16 %v3474, %v3462
      %v4022 = vpack.c.bf16 %v3476, %v3464
      %v4023 = vpack.c.bf16 %v3490, %v3478
      %v4024 = vpack.c.bf16 %v3492, %v3480
      %v4025 = vpack.c.bf16 %v3494, %v3482
      %v4026 = vpack.c.bf16 %v3496, %v3484
      %v4027 = vpack.c.bf16 %v3498, %v3486
      %v4028 = vpack.c.bf16 %v3500, %v3488
      %v4029 = vpack.c.bf16 %v3514, %v3502
      %v4030 = vpack.c.bf16 %v3516, %v3504
      %v4031 = vpack.c.bf16 %v3518, %v3506
      %v4032 = vpack.c.bf16 %v3520, %v3508
      %v4033 = vpack.c.bf16 %v3522, %v3510
      %v4034 = vpack.c.bf16 %v3524, %v3512
      %v4035 = vpack.c.bf16 %v3538, %v3526
      %v4036 = vpack.c.bf16 %v3540, %v3528
      %v4037 = vpack.c.bf16 %v3542, %v3530
      %v4038 = vpack.c.bf16 %v3544, %v3532
      %v4039 = vpack.c.bf16 %v3546, %v3534
      %v4040 = vpack.c.bf16 %v3548, %v3536
      %v4041 = vpack.c.bf16 %v3562, %v3550
      %v4042 = vpack.c.bf16 %v3564, %v3552
      %v4043 = vpack.c.bf16 %v3566, %v3554
      %v4044 = vpack.c.bf16 %v3568, %v3556
      %v4045 = vpack.c.bf16 %v3570, %v3558
      %v4046 = vpack.c.bf16 %v3572, %v3560
      %v4047 = vpack.c.bf16 %v3586, %v3574
      %v4048 = vpack.c.bf16 %v3588, %v3576
      %v4049 = vpack.c.bf16 %v3590, %v3578
      %v4050 = vpack.c.bf16 %v3592, %v3580
      %v4051 = vpack.c.bf16 %v3594, %v3582
      %v4052 = vpack.c.bf16 %v3596, %v3584
      %v4053 = vpack.c.bf16 %v3610, %v3598
      %v4054 = vpack.c.bf16 %v3612, %v3600
      %v4055 = vpack.c.bf16 %v3614, %v3602
      %v4056 = vpack.c.bf16 %v3616, %v3604
      %v4057 = vpack.c.bf16 %v3618, %v3606
      %v4058 = vpack.c.bf16 %v3620, %v3608
      %v4059 = vpack.c.bf16 %v3634, %v3622
      %v4060 = vpack.c.bf16 %v3636, %v3624
      %v4061 = vpack.c.bf16 %v3638, %v3626
      %v4062 = vpack.c.bf16 %v3640, %v3628
      %v4063 = vpack.c.bf16 %v3642, %v3630
      %v4064 = vpack.c.bf16 %v3644, %v3632
      %v4065 = vpack.c.bf16 %v3658, %v3646
      %v4066 = vpack.c.bf16 %v3660, %v3648
      %v4067 = vpack.c.bf16 %v3662, %v3650
      %v4068 = vpack.c.bf16 %v3664, %v3652
      %v4069 = vpack.c.bf16 %v3666, %v3654
      %v4070 = vpack.c.bf16 %v3668, %v3656
      %v4071 = vpack.c.bf16 %v3682, %v3670
      %v4072 = vpack.c.bf16 %v3684, %v3672
      %v4073 = vpack.c.bf16 %v3686, %v3674
      %v4074 = vpack.c.bf16 %v3688, %v3676
      %v4075 = vpack.c.bf16 %v3690, %v3678
      %v4076 = vpack.c.bf16 %v3692, %v3680
      %v4077 = vpack.c.bf16 %v3706, %v3694
      %v4078 = vpack.c.bf16 %v3708, %v3696
      %v4079 = vpack.c.bf16 %v3710, %v3698
      %v4080 = vpack.c.bf16 %v3712, %v3700
      %v4081 = vpack.c.bf16 %v3714, %v3702
      %v4082 = vpack.c.bf16 %v3716, %v3704
      %v4083 = vpack.c.bf16 %v3730, %v3718
      %v4084 = vpack.c.bf16 %v3732, %v3720
      %v4085 = vpack.c.bf16 %v3734, %v3722
      %v4086 = vpack.c.bf16 %v3736, %v3724
      %v4087 = vpack.c.bf16 %v3738, %v3726
      %v4088 = vpack.c.bf16 %v3740, %v3728
      %v4089 = vpack.c.bf16 %v3754, %v3742
      %v4090 = vpack.c.bf16 %v3756, %v3744
      %v4091 = vpack.c.bf16 %v3758, %v3746
      %v4092 = vpack.c.bf16 %v3760, %v3748
      %v4093 = vpack.c.bf16 %v3762, %v3750
      %v4094 = vpack.c.bf16 %v3764, %v3752
      %v4096 = vunpack.c.l.b16 %v2276
      %v4097 = vunpack.c.h.b16 %v2276
      %v4098 = vpack.c.b16 %v4096, %v4096
      %v4099 = vpack.c.b16 %v4097, %v4097
      %4102 = vmatprep.subr.bf16.mxu0 %v4000
      %4103 = vmatpush1.bf16.msra.mxu0 %v3999
      %4104 = vmatprep.subr.bf16.mxu0 %v4006
      %4105 = vmatpush1.bf16.msra.mxu0 %v4005
      %4106 = vmatprep.subr.bf16.mxu0 %v4012
      %4107 = vmatpush1.bf16.msra.mxu0 %v4011
      %4108 = vmatprep.subr.bf16.mxu0 %v4018
      %4109 = vmatpush1.bf16.msra.mxu0 %v4017
      %4110 = vmatprep.subr.bf16.mxu0 %v4024
      %4111 = vmatpush1.bf16.msra.mxu0 %v4023
      %4112 = vmatprep.subr.bf16.mxu0 %v4030
      %4113 = vmatpush1.bf16.msra.mxu0 %v4029
      %4114 = vmatprep.subr.bf16.mxu0 %v4036
      %4115 = vmatpush1.bf16.msra.mxu0 %v4035
      %4116 = vmatprep.subr.bf16.mxu0 %v4042
      %4117 = vmatpush1.bf16.msra.mxu0 %v4041
      %4118 = vmatprep.subr.bf16.mxu0 %v4048
      %4119 = vmatpush1.bf16.msra.mxu0 %v4047
      %4120 = vmatprep.subr.bf16.mxu0 %v4054
      %4121 = vmatpush1.bf16.msra.mxu0 %v4053
      %4122 = vmatprep.subr.bf16.mxu0 %v4060
      %4123 = vmatpush1.bf16.msra.mxu0 %v4059
      %4124 = vmatprep.subr.bf16.mxu0 %v4066
      %4125 = vmatpush1.bf16.msra.mxu0 %v4065
      %4126 = vmatprep.subr.bf16.mxu0 %v4072
      %4127 = vmatpush1.bf16.msra.mxu0 %v4071
      %4128 = vmatprep.subr.bf16.mxu0 %v4078
      %4129 = vmatpush1.bf16.msra.mxu0 %v4077
      %4130 = vmatprep.subr.bf16.mxu0 %v4084
      %4131 = vmatpush1.bf16.msra.mxu0 %v4083
      %4132 = vmatprep.subr.bf16.mxu0 %v4090
      %4133 = vmatpush1.bf16.msra.mxu0 %v4089
      %4134 = vmatprep.mubr.bf16.mxu0 %v4099
      %4135 = vmatmul.mubr.bf16.gmra.mrb[0].mxu0 %v4098
      %v4136 = vpop.f32.mrb[0].mxu0
      %v4137 = vadd.f32 0.0, %v4136
      %v4138 = vpop.f32.mrb[0].mxu0
      %v4139 = vadd.f32 0.0, %v4138
      %v4140 = vpop.f32.mrb[0].mxu0
      %v4141 = vpop.f32.mrb[0].mxu0
      %4142 = vdwg.mxu0
      %4143 = vmatprep.subr.bf16.mxu0 %v4002
      %4144 = vmatpush1.bf16.msra.mxu0 %v4001
      %4145 = vmatprep.subr.bf16.mxu0 %v4008
      %4146 = vmatpush1.bf16.msra.mxu0 %v4007
      %4147 = vmatprep.subr.bf16.mxu0 %v4014
      %4148 = vmatpush1.bf16.msra.mxu0 %v4013
      %4149 = vmatprep.subr.bf16.mxu0 %v4020
      %4150 = vmatpush1.bf16.msra.mxu0 %v4019
      %4151 = vmatprep.subr.bf16.mxu0 %v4026
      %4152 = vmatpush1.bf16.msra.mxu0 %v4025
      %4153 = vmatprep.subr.bf16.mxu0 %v4032
      %4154 = vmatpush1.bf16.msra.mxu0 %v4031
      %4155 = vmatprep.subr.bf16.mxu0 %v4038
      %4156 = vmatpush1.bf16.msra.mxu0 %v4037
      %4157 = vmatprep.subr.bf16.mxu0 %v4044
      %4158 = vmatpush1.bf16.msra.mxu0 %v4043
      %4159 = vmatprep.subr.bf16.mxu0 %v4050
      %4160 = vmatpush1.bf16.msra.mxu0 %v4049
      %4161 = vmatprep.subr.bf16.mxu0 %v4056
      %4162 = vmatpush1.bf16.msra.mxu0 %v4055
      %4163 = vmatprep.subr.bf16.mxu0 %v4062
      %4164 = vmatpush1.bf16.msra.mxu0 %v4061
      %4165 = vmatprep.subr.bf16.mxu0 %v4068
      %4166 = vmatpush1.bf16.msra.mxu0 %v4067
      %4167 = vmatprep.subr.bf16.mxu0 %v4074
      %4168 = vmatpush1.bf16.msra.mxu0 %v4073
      %4169 = vmatprep.subr.bf16.mxu0 %v4080
      %4170 = vmatpush1.bf16.msra.mxu0 %v4079
      %4171 = vmatprep.subr.bf16.mxu0 %v4086
      %4172 = vmatpush1.bf16.msra.mxu0 %v4085
      %4173 = vmatprep.subr.bf16.mxu0 %v4092
      %4174 = vmatpush1.bf16.msra.mxu0 %v4091
      %4175 = vmatprep.mubr.bf16.mxu0 %v4099
      %4176 = vmatmul.mubr.bf16.gmra.mrb[0].mxu0 %v4098
      %v4177 = vpop.f32.mrb[0].mxu0
      %v4178 = vadd.f32 0.0, %v4177
      %v4179 = vpop.f32.mrb[0].mxu0
      %v4180 = vadd.f32 0.0, %v4179
      %v4181 = vpop.f32.mrb[0].mxu0
      %v4182 = vpop.f32.mrb[0].mxu0
      %4183 = vdwg.mxu0
      %4184 = vmatprep.subr.bf16.mxu0 %v4004
      %4185 = vmatpush1.bf16.msra.mxu0 %v4003
      %4186 = vmatprep.subr.bf16.mxu0 %v4010
      %4187 = vmatpush1.bf16.msra.mxu0 %v4009
      %4188 = vmatprep.subr.bf16.mxu0 %v4016
      %4189 = vmatpush1.bf16.msra.mxu0 %v4015
      %4190 = vmatprep.subr.bf16.mxu0 %v4022
      %4191 = vmatpush1.bf16.msra.mxu0 %v4021
      %4192 = vmatprep.subr.bf16.mxu0 %v4028
      %4193 = vmatpush1.bf16.msra.mxu0 %v4027
      %4194 = vmatprep.subr.bf16.mxu0 %v4034
      %4195 = vmatpush1.bf16.msra.mxu0 %v4033
      %4196 = vmatprep.subr.bf16.mxu0 %v4040
      %4197 = vmatpush1.bf16.msra.mxu0 %v4039
      %4198 = vmatprep.subr.bf16.mxu0 %v4046
      %4199 = vmatpush1.bf16.msra.mxu0 %v4045
      %4200 = vmatprep.subr.bf16.mxu0 %v4052
      %4201 = vmatpush1.bf16.msra.mxu0 %v4051
      %4202 = vmatprep.subr.bf16.mxu0 %v4058
      %4203 = vmatpush1.bf16.msra.mxu0 %v4057
      %4204 = vmatprep.subr.bf16.mxu0 %v4064
      %4205 = vmatpush1.bf16.msra.mxu0 %v4063
      %4206 = vmatprep.subr.bf16.mxu0 %v4070
      %4207 = vmatpush1.bf16.msra.mxu0 %v4069
      %4208 = vmatprep.subr.bf16.mxu0 %v4076
      %4209 = vmatpush1.bf16.msra.mxu0 %v4075
      %4210 = vmatprep.subr.bf16.mxu0 %v4082
      %4211 = vmatpush1.bf16.msra.mxu0 %v4081
      %4212 = vmatprep.subr.bf16.mxu0 %v4088
      %4213 = vmatpush1.bf16.msra.mxu0 %v4087
      %4214 = vmatprep.subr.bf16.mxu0 %v4094
      %4215 = vmatpush1.bf16.msra.mxu0 %v4093
      %4216 = vmatprep.mubr.bf16.mxu0 %v4099
      %4217 = vmatmul.mubr.bf16.gmra.mrb[0].mxu0 %v4098
      %v4218 = vpop.f32.mrb[0].mxu0
      %v4219 = vadd.f32 0.0, %v4218
      %v4220 = vpop.f32.mrb[0].mxu0
      %v4221 = vadd.f32 0.0, %v4220
      %v4222 = vpop.f32.mrb[0].mxu0
      %v4223 = vpop.f32.mrb[0].mxu0
      %4224 = vdwg.mxu0
      %v4225 = vmul.f32 %v3178, %v2267
      %v4226 = vmul.f32 %v3180, %v2268
      %v4227 = vmul.f32 %v3182, %v2269
      %v4228 = vmul.f32 %v3184, %v2270
      %v4229 = vmul.f32 %v3186, %v2271
      %v4230 = vmul.f32 %v3188, %v2272
      %v4231 = vadd.f32 %v4225, %v4137
      %v4232 = vadd.f32 %v4226, %v4139
      %v4233 = vadd.f32 %v4227, %v4178
      %v4234 = vadd.f32 %v4228, %v4180
      %v4235 = vadd.f32 %v4229, %v4219
      %v4236 = vadd.f32 %v4230, %v4221
      %s4237 = scalar_lea.vmem %s265, 16
      %v4238 = vld [vmem:[%s4237] sm:$0xff]
      %s4239 = scalar_lea.vmem %s270, 16
      %v4240 = vld [vmem:[%s4239] sm:$0xff]
      %v4242 = vunpack.c.l.b16 %v4238
      %v4243 = vunpack.c.h.b16 %v4238
      %v4244 = vpack.c.b16 %v4242, %v4242
      %v4245 = vpack.c.b16 %v4243, %v4243
      %4248 = vxpose.xlu0.c.b16.start [1/8] %v4244, 128
      %4249 = vxpose.xlu0.c.b16.cont [2/8] 0, 128
      %4250 = vxpose.xlu0.c.b16.cont [3/8] 0, 128
      %4251 = vxpose.xlu0.c.b16.cont [4/8] 0, 128
      %4252 = vxpose.xlu0.c.b16.cont [5/8] 0, 128
      %4253 = vxpose.xlu0.c.b16.cont [6/8] 0, 128
      %4254 = vxpose.xlu0.c.b16.cont [7/8] 0, 128
      %4255 = vxpose.xlu0.c.b16.end [8/8] 0, 128
      %v4256 = vpop.trf.xlu0
      %v4257 = vpop.trf.xlu0
      %v4258 = vpop.trf.xlu0
      %v4259 = vpop.trf.xlu0
      %v4260 = vpop.trf.xlu0
      %v4261 = vpop.trf.xlu0
      %v4262 = vpop.trf.xlu0
      %v4263 = vpop.trf.xlu0
      %4264 = vxpose.xlu0.c.b16.start [1/8] %v4245, 128
      %4265 = vxpose.xlu0.c.b16.cont [2/8] 0, 128
      %4266 = vxpose.xlu0.c.b16.cont [3/8] 0, 128
      %4267 = vxpose.xlu0.c.b16.cont [4/8] 0, 128
      %4268 = vxpose.xlu0.c.b16.cont [5/8] 0, 128
      %4269 = vxpose.xlu0.c.b16.cont [6/8] 0, 128
      %4270 = vxpose.xlu0.c.b16.cont [7/8] 0, 128
      %4271 = vxpose.xlu0.c.b16.end [8/8] 0, 128
      %v4272 = vpop.trf.xlu0
      %v4273 = vpop.trf.xlu0
      %v4274 = vpop.trf.xlu0
      %v4275 = vpop.trf.xlu0
      %v4276 = vpop.trf.xlu0
      %v4277 = vpop.trf.xlu0
      %v4278 = vpop.trf.xlu0
      %v4279 = vpop.trf.xlu0
      %v4281 = vsel %vm344, %v4256, 0
      %v4284 = vsel %vm344, %v4257, 0
      %v4287 = vsel %vm344, %v4258, 0
      %v4290 = vsel %vm344, %v4259, 0
      %v4293 = vsel %vm344, %v4260, 0
      %v4296 = vsel %vm344, %v4261, 0
      %v4299 = vsel %vm344, %v4262, 0
      %v4302 = vsel %vm344, %v4263, 0
      %v4305 = vsel %vm344, %v4272, 0
      %v4308 = vsel %vm344, %v4273, 0
      %v4311 = vsel %vm344, %v4274, 0
      %v4314 = vsel %vm344, %v4275, 0
      %v4317 = vsel %vm344, %v4276, 0
      %v4320 = vsel %vm344, %v4277, 0
      %v4323 = vsel %vm344, %v4278, 0
      %v4326 = vsel %vm344, %v4279, 0
      %4328 = vmatprep.subr.bf16.mxu0 %v398
      %4329 = vmatpush1.bf16.msra.mxu0 %v395
      %4330 = vmatprep.subr.bf16.mxu0 0
      %4331 = vmatpush1.bf16.msra.mxu0 0
      %4332 = vmatprep.subr.bf16.mxu0 0
      %4333 = vmatpush1.bf16.msra.mxu0 0
      %4334 = vmatprep.subr.bf16.mxu0 0
      %4335 = vmatpush1.bf16.msra.mxu0 0
      %4336 = vmatprep.subr.bf16.mxu0 0
      %4337 = vmatpush1.bf16.msra.mxu0 0
      %4338 = vmatprep.subr.bf16.mxu0 0
      %4339 = vmatpush1.bf16.msra.mxu0 0
      %4340 = vmatprep.subr.bf16.mxu0 0
      %4341 = vmatpush1.bf16.msra.mxu0 0
      %4342 = vmatprep.subr.bf16.mxu0 0
      %4343 = vmatpush1.bf16.msra.mxu0 0
      %4344 = vmatprep.subr.bf16.mxu0 0
      %4345 = vmatpush1.bf16.msra.mxu0 0
      %4346 = vmatprep.subr.bf16.mxu0 0
      %4347 = vmatpush1.bf16.msra.mxu0 0
      %4348 = vmatprep.subr.bf16.mxu0 0
      %4349 = vmatpush1.bf16.msra.mxu0 0
      %4350 = vmatprep.subr.bf16.mxu0 0
      %4351 = vmatpush1.bf16.msra.mxu0 0
      %4352 = vmatprep.subr.bf16.mxu0 0
      %4353 = vmatpush1.bf16.msra.mxu0 0
      %4354 = vmatprep.subr.bf16.mxu0 0
      %4355 = vmatpush1.bf16.msra.mxu0 0
      %4356 = vmatprep.subr.bf16.mxu0 0
      %4357 = vmatpush1.bf16.msra.mxu0 0
      %4358 = vmatprep.subr.bf16.mxu0 0
      %4359 = vmatpush1.bf16.msra.mxu0 0
      %4360 = vmatprep.mubr.bf16.mxu0 0
      %4361 = vmatmul.mubr.bf16.gmra.mrb[0].mxu0 %v4281
      %v4362 = vpop.f32.mrb[0].mxu0
      %v4363 = vadd.f32 0.0, %v4362
      %v4364 = vpop.f32.mrb[0].mxu0
      %v4365 = vadd.f32 0.0, %v4364
      %v4366 = vpop.f32.mrb[0].mxu0
      %v4367 = vadd.f32 0.0, %v4366
      %v4368 = vpop.f32.mrb[0].mxu0
      %v4369 = vadd.f32 0.0, %v4368
      %4370 = vmatprep.mubr.bf16.mxu0 0
      %4371 = vmatmul.mubr.bf16.gmra.mrb[0].mxu0 %v4284
      %v4372 = vpop.f32.mrb[0].mxu0
      %v4373 = vadd.f32 0.0, %v4372
      %v4374 = vpop.f32.mrb[0].mxu0
      %v4375 = vadd.f32 0.0, %v4374
      %v4376 = vpop.f32.mrb[0].mxu0
      %v4377 = vadd.f32 0.0, %v4376
      %v4378 = vpop.f32.mrb[0].mxu0
      %v4379 = vadd.f32 0.0, %v4378
      %4380 = vmatprep.mubr.bf16.mxu0 0
      %4381 = vmatmul.mubr.bf16.gmra.mrb[0].mxu0 %v4287
      %v4382 = vpop.f32.mrb[0].mxu0
      %v4383 = vadd.f32 0.0, %v4382
      %v4384 = vpop.f32.mrb[0].mxu0
      %v4385 = vadd.f32 0.0, %v4384
      %v4386 = vpop.f32.mrb[0].mxu0
      %v4387 = vadd.f32 0.0, %v4386
      %v4388 = vpop.f32.mrb[0].mxu0
      %v4389 = vadd.f32 0.0, %v4388
      %4390 = vmatprep.mubr.bf16.mxu0 0
      %4391 = vmatmul.mubr.bf16.gmra.mrb[0].mxu0 %v4290
      %v4392 = vpop.f32.mrb[0].mxu0
      %v4393 = vadd.f32 0.0, %v4392
      %v4394 = vpop.f32.mrb[0].mxu0
      %v4395 = vadd.f32 0.0, %v4394
      %v4396 = vpop.f32.mrb[0].mxu0
      %v4397 = vadd.f32 0.0, %v4396
      %v4398 = vpop.f32.mrb[0].mxu0
      %v4399 = vadd.f32 0.0, %v4398
      %4400 = vmatprep.mubr.bf16.mxu0 0
      %4401 = vmatmul.mubr.bf16.gmra.mrb[0].mxu0 %v4293
      %v4402 = vpop.f32.mrb[0].mxu0
      %v4403 = vadd.f32 0.0, %v4402
      %v4404 = vpop.f32.mrb[0].mxu0
      %v4405 = vadd.f32 0.0, %v4404
      %v4406 = vpop.f32.mrb[0].mxu0
      %v4407 = vadd.f32 0.0, %v4406
      %v4408 = vpop.f32.mrb[0].mxu0
      %v4409 = vadd.f32 0.0, %v4408
      %4410 = vmatprep.mubr.bf16.mxu0 0
      %4411 = vmatmul.mubr.bf16.gmra.mrb[0].mxu0 %v4296
      %v4412 = vpop.f32.mrb[0].mxu0
      %v4413 = vadd.f32 0.0, %v4412
      %v4414 = vpop.f32.mrb[0].mxu0
      %v4415 = vadd.f32 0.0, %v4414
      %v4416 = vpop.f32.mrb[0].mxu0
      %v4417 = vadd.f32 0.0, %v4416
      %v4418 = vpop.f32.mrb[0].mxu0
      %v4419 = vadd.f32 0.0, %v4418
      %4420 = vmatprep.mubr.bf16.mxu0 0
      %4421 = vmatmul.mubr.bf16.gmra.mrb[0].mxu0 %v4299
      %v4422 = vpop.f32.mrb[0].mxu0
      %v4423 = vadd.f32 0.0, %v4422
      %v4424 = vpop.f32.mrb[0].mxu0
      %v4425 = vadd.f32 0.0, %v4424
      %v4426 = vpop.f32.mrb[0].mxu0
      %v4427 = vadd.f32 0.0, %v4426
      %v4428 = vpop.f32.mrb[0].mxu0
      %v4429 = vadd.f32 0.0, %v4428
      %4430 = vmatprep.mubr.bf16.mxu0 0
      %4431 = vmatmul.mubr.bf16.gmra.mrb[0].mxu0 %v4302
      %v4432 = vpop.f32.mrb[0].mxu0
      %v4433 = vadd.f32 0.0, %v4432
      %v4434 = vpop.f32.mrb[0].mxu0
      %v4435 = vadd.f32 0.0, %v4434
      %v4436 = vpop.f32.mrb[0].mxu0
      %v4437 = vadd.f32 0.0, %v4436
      %v4438 = vpop.f32.mrb[0].mxu0
      %v4439 = vadd.f32 0.0, %v4438
      %4440 = vmatprep.mubr.bf16.mxu0 0
      %4441 = vmatmul.mubr.bf16.gmra.mrb[0].mxu0 %v4305
      %v4442 = vpop.f32.mrb[0].mxu0
      %v4443 = vadd.f32 0.0, %v4442
      %v4444 = vpop.f32.mrb[0].mxu0
      %v4445 = vadd.f32 0.0, %v4444
      %v4446 = vpop.f32.mrb[0].mxu0
      %v4447 = vadd.f32 0.0, %v4446
      %v4448 = vpop.f32.mrb[0].mxu0
      %v4449 = vadd.f32 0.0, %v4448
      %4450 = vmatprep.mubr.bf16.mxu0 0
      %4451 = vmatmul.mubr.bf16.gmra.mrb[0].mxu0 %v4308
      %v4452 = vpop.f32.mrb[0].mxu0
      %v4453 = vadd.f32 0.0, %v4452
      %v4454 = vpop.f32.mrb[0].mxu0
      %v4455 = vadd.f32 0.0, %v4454
      %v4456 = vpop.f32.mrb[0].mxu0
      %v4457 = vadd.f32 0.0, %v4456
      %v4458 = vpop.f32.mrb[0].mxu0
      %v4459 = vadd.f32 0.0, %v4458
      %4460 = vmatprep.mubr.bf16.mxu0 0
      %4461 = vmatmul.mubr.bf16.gmra.mrb[0].mxu0 %v4311
      %v4462 = vpop.f32.mrb[0].mxu0
      %v4463 = vadd.f32 0.0, %v4462
      %v4464 = vpop.f32.mrb[0].mxu0
      %v4465 = vadd.f32 0.0, %v4464
      %v4466 = vpop.f32.mrb[0].mxu0
      %v4467 = vadd.f32 0.0, %v4466
      %v4468 = vpop.f32.mrb[0].mxu0
      %v4469 = vadd.f32 0.0, %v4468
      %4470 = vmatprep.mubr.bf16.mxu0 0
      %4471 = vmatmul.mubr.bf16.gmra.mrb[0].mxu0 %v4314
      %v4472 = vpop.f32.mrb[0].mxu0
      %v4473 = vadd.f32 0.0, %v4472
      %v4474 = vpop.f32.mrb[0].mxu0
      %v4475 = vadd.f32 0.0, %v4474
      %v4476 = vpop.f32.mrb[0].mxu0
      %v4477 = vadd.f32 0.0, %v4476
      %v4478 = vpop.f32.mrb[0].mxu0
      %v4479 = vadd.f32 0.0, %v4478
      %4480 = vmatprep.mubr.bf16.mxu0 0
      %4481 = vmatmul.mubr.bf16.gmra.mrb[0].mxu0 %v4317
      %v4482 = vpop.f32.mrb[0].mxu0
      %v4483 = vadd.f32 0.0, %v4482
      %v4484 = vpop.f32.mrb[0].mxu0
      %v4485 = vadd.f32 0.0, %v4484
      %v4486 = vpop.f32.mrb[0].mxu0
      %v4487 = vadd.f32 0.0, %v4486
      %v4488 = vpop.f32.mrb[0].mxu0
      %v4489 = vadd.f32 0.0, %v4488
      %4490 = vmatprep.mubr.bf16.mxu0 0
      %4491 = vmatmul.mubr.bf16.gmra.mrb[0].mxu0 %v4320
      %v4492 = vpop.f32.mrb[0].mxu0
      %v4493 = vadd.f32 0.0, %v4492
      %v4494 = vpop.f32.mrb[0].mxu0
      %v4495 = vadd.f32 0.0, %v4494
      %v4496 = vpop.f32.mrb[0].mxu0
      %v4497 = vadd.f32 0.0, %v4496
      %v4498 = vpop.f32.mrb[0].mxu0
      %v4499 = vadd.f32 0.0, %v4498
      %4500 = vmatprep.mubr.bf16.mxu0 0
      %4501 = vmatmul.mubr.bf16.gmra.mrb[0].mxu0 %v4323
      %v4502 = vpop.f32.mrb[0].mxu0
      %v4503 = vadd.f32 0.0, %v4502
      %v4504 = vpop.f32.mrb[0].mxu0
      %v4505 = vadd.f32 0.0, %v4504
      %v4506 = vpop.f32.mrb[0].mxu0
      %v4507 = vadd.f32 0.0, %v4506
      %v4508 = vpop.f32.mrb[0].mxu0
      %v4509 = vadd.f32 0.0, %v4508
      %4510 = vmatprep.mubr.bf16.mxu0 0
      %4511 = vmatmul.mubr.bf16.gmra.mrb[0].mxu0 %v4326
      %v4512 = vpop.f32.mrb[0].mxu0
      %v4513 = vadd.f32 0.0, %v4512
      %v4514 = vpop.f32.mrb[0].mxu0
      %v4515 = vadd.f32 0.0, %v4514
      %v4516 = vpop.f32.mrb[0].mxu0
      %v4517 = vadd.f32 0.0, %v4516
      %v4518 = vpop.f32.mrb[0].mxu0
      %v4519 = vadd.f32 0.0, %v4518
      %4520 = vdwg.mxu0
      %4521 = vmatprep.subr.bf16.mxu0 %v404
      %4522 = vmatpush1.bf16.msra.mxu0 %v401
      %4523 = vmatprep.subr.bf16.mxu0 0
      %4524 = vmatpush1.bf16.msra.mxu0 0
      %4525 = vmatprep.subr.bf16.mxu0 0
      %4526 = vmatpush1.bf16.msra.mxu0 0
      %4527 = vmatprep.subr.bf16.mxu0 0
      %4528 = vmatpush1.bf16.msra.mxu0 0
      %4529 = vmatprep.subr.bf16.mxu0 0
      %4530 = vmatpush1.bf16.msra.mxu0 0
      %4531 = vmatprep.subr.bf16.mxu0 0
      %4532 = vmatpush1.bf16.msra.mxu0 0
      %4533 = vmatprep.subr.bf16.mxu0 0
      %4534 = vmatpush1.bf16.msra.mxu0 0
      %4535 = vmatprep.subr.bf16.mxu0 0
      %4536 = vmatpush1.bf16.msra.mxu0 0
      %4537 = vmatprep.subr.bf16.mxu0 0
      %4538 = vmatpush1.bf16.msra.mxu0 0
      %4539 = vmatprep.subr.bf16.mxu0 0
      %4540 = vmatpush1.bf16.msra.mxu0 0
      %4541 = vmatprep.subr.bf16.mxu0 0
      %4542 = vmatpush1.bf16.msra.mxu0 0
      %4543 = vmatprep.subr.bf16.mxu0 0
      %4544 = vmatpush1.bf16.msra.mxu0 0
      %4545 = vmatprep.subr.bf16.mxu0 0
      %4546 = vmatpush1.bf16.msra.mxu0 0
      %4547 = vmatprep.subr.bf16.mxu0 0
      %4548 = vmatpush1.bf16.msra.mxu0 0
      %4549 = vmatprep.subr.bf16.mxu0 0
      %4550 = vmatpush1.bf16.msra.mxu0 0
      %4551 = vmatprep.subr.bf16.mxu0 0
      %4552 = vmatpush1.bf16.msra.mxu0 0
      %4553 = vmatprep.mubr.bf16.mxu0 0
      %4554 = vmatmul.mubr.bf16.gmra.mrb[0].mxu0 %v4281
      %v4555 = vpop.f32.mrb[0].mxu0
      %v4556 = vadd.f32 0.0, %v4555
      %v4557 = vpop.f32.mrb[0].mxu0
      %v4558 = vadd.f32 0.0, %v4557
      %v4559 = vpop.f32.mrb[0].mxu0
      %v4560 = vadd.f32 0.0, %v4559
      %v4561 = vpop.f32.mrb[0].mxu0
      %v4562 = vadd.f32 0.0, %v4561
      %4563 = vmatprep.mubr.bf16.mxu0 0
      %4564 = vmatmul.mubr.bf16.gmra.mrb[0].mxu0 %v4284
      %v4565 = vpop.f32.mrb[0].mxu0
      %v4566 = vadd.f32 0.0, %v4565
      %v4567 = vpop.f32.mrb[0].mxu0
      %v4568 = vadd.f32 0.0, %v4567
      %v4569 = vpop.f32.mrb[0].mxu0
      %v4570 = vadd.f32 0.0, %v4569
      %v4571 = vpop.f32.mrb[0].mxu0
      %v4572 = vadd.f32 0.0, %v4571
      %4573 = vmatprep.mubr.bf16.mxu0 0
      %4574 = vmatmul.mubr.bf16.gmra.mrb[0].mxu0 %v4287
      %v4575 = vpop.f32.mrb[0].mxu0
      %v4576 = vadd.f32 0.0, %v4575
      %v4577 = vpop.f32.mrb[0].mxu0
      %v4578 = vadd.f32 0.0, %v4577
      %v4579 = vpop.f32.mrb[0].mxu0
      %v4580 = vadd.f32 0.0, %v4579
      %v4581 = vpop.f32.mrb[0].mxu0
      %v4582 = vadd.f32 0.0, %v4581
      %4583 = vmatprep.mubr.bf16.mxu0 0
      %4584 = vmatmul.mubr.bf16.gmra.mrb[0].mxu0 %v4290
      %v4585 = vpop.f32.mrb[0].mxu0
      %v4586 = vadd.f32 0.0, %v4585
      %v4587 = vpop.f32.mrb[0].mxu0
      %v4588 = vadd.f32 0.0, %v4587
      %v4589 = vpop.f32.mrb[0].mxu0
      %v4590 = vadd.f32 0.0, %v4589
      %v4591 = vpop.f32.mrb[0].mxu0
      %v4592 = vadd.f32 0.0, %v4591
      %4593 = vmatprep.mubr.bf16.mxu0 0
      %4594 = vmatmul.mubr.bf16.gmra.mrb[0].mxu0 %v4293
      %v4595 = vpop.f32.mrb[0].mxu0
      %v4596 = vadd.f32 0.0, %v4595
      %v4597 = vpop.f32.mrb[0].mxu0
      %v4598 = vadd.f32 0.0, %v4597
      %v4599 = vpop.f32.mrb[0].mxu0
      %v4600 = vadd.f32 0.0, %v4599
      %v4601 = vpop.f32.mrb[0].mxu0
      %v4602 = vadd.f32 0.0, %v4601
      %4603 = vmatprep.mubr.bf16.mxu0 0
      %4604 = vmatmul.mubr.bf16.gmra.mrb[0].mxu0 %v4296
      %v4605 = vpop.f32.mrb[0].mxu0
      %v4606 = vadd.f32 0.0, %v4605
      %v4607 = vpop.f32.mrb[0].mxu0
      %v4608 = vadd.f32 0.0, %v4607
      %v4609 = vpop.f32.mrb[0].mxu0
      %v4610 = vadd.f32 0.0, %v4609
      %v4611 = vpop.f32.mrb[0].mxu0
      %v4612 = vadd.f32 0.0, %v4611
      %4613 = vmatprep.mubr.bf16.mxu0 0
      %4614 = vmatmul.mubr.bf16.gmra.mrb[0].mxu0 %v4299
      %v4615 = vpop.f32.mrb[0].mxu0
      %v4616 = vadd.f32 0.0, %v4615
      %v4617 = vpop.f32.mrb[0].mxu0
      %v4618 = vadd.f32 0.0, %v4617
      %v4619 = vpop.f32.mrb[0].mxu0
      %v4620 = vadd.f32 0.0, %v4619
      %v4621 = vpop.f32.mrb[0].mxu0
      %v4622 = vadd.f32 0.0, %v4621
      %4623 = vmatprep.mubr.bf16.mxu0 0
      %4624 = vmatmul.mubr.bf16.gmra.mrb[0].mxu0 %v4302
      %v4625 = vpop.f32.mrb[0].mxu0
      %v4626 = vadd.f32 0.0, %v4625
      %v4627 = vpop.f32.mrb[0].mxu0
      %v4628 = vadd.f32 0.0, %v4627
      %v4629 = vpop.f32.mrb[0].mxu0
      %v4630 = vadd.f32 0.0, %v4629
      %v4631 = vpop.f32.mrb[0].mxu0
      %v4632 = vadd.f32 0.0, %v4631
      %4633 = vmatprep.mubr.bf16.mxu0 0
      %4634 = vmatmul.mubr.bf16.gmra.mrb[0].mxu0 %v4305
      %v4635 = vpop.f32.mrb[0].mxu0
      %v4636 = vadd.f32 0.0, %v4635
      %v4637 = vpop.f32.mrb[0].mxu0
      %v4638 = vadd.f32 0.0, %v4637
      %v4639 = vpop.f32.mrb[0].mxu0
      %v4640 = vadd.f32 0.0, %v4639
      %v4641 = vpop.f32.mrb[0].mxu0
      %v4642 = vadd.f32 0.0, %v4641
      %4643 = vmatprep.mubr.bf16.mxu0 0
      %4644 = vmatmul.mubr.bf16.gmra.mrb[0].mxu0 %v4308
      %v4645 = vpop.f32.mrb[0].mxu0
      %v4646 = vadd.f32 0.0, %v4645
      %v4647 = vpop.f32.mrb[0].mxu0
      %v4648 = vadd.f32 0.0, %v4647
      %v4649 = vpop.f32.mrb[0].mxu0
      %v4650 = vadd.f32 0.0, %v4649
      %v4651 = vpop.f32.mrb[0].mxu0
      %v4652 = vadd.f32 0.0, %v4651
      %4653 = vmatprep.mubr.bf16.mxu0 0
      %4654 = vmatmul.mubr.bf16.gmra.mrb[0].mxu0 %v4311
      %v4655 = vpop.f32.mrb[0].mxu0
      %v4656 = vadd.f32 0.0, %v4655
      %v4657 = vpop.f32.mrb[0].mxu0
      %v4658 = vadd.f32 0.0, %v4657
      %v4659 = vpop.f32.mrb[0].mxu0
      %v4660 = vadd.f32 0.0, %v4659
      %v4661 = vpop.f32.mrb[0].mxu0
      %v4662 = vadd.f32 0.0, %v4661
      %4663 = vmatprep.mubr.bf16.mxu0 0
      %4664 = vmatmul.mubr.bf16.gmra.mrb[0].mxu0 %v4314
      %v4665 = vpop.f32.mrb[0].mxu0
      %v4666 = vadd.f32 0.0, %v4665
      %v4667 = vpop.f32.mrb[0].mxu0
      %v4668 = vadd.f32 0.0, %v4667
      %v4669 = vpop.f32.mrb[0].mxu0
      %v4670 = vadd.f32 0.0, %v4669
      %v4671 = vpop.f32.mrb[0].mxu0
      %v4672 = vadd.f32 0.0, %v4671
      %4673 = vmatprep.mubr.bf16.mxu0 0
      %4674 = vmatmul.mubr.bf16.gmra.mrb[0].mxu0 %v4317
      %v4675 = vpop.f32.mrb[0].mxu0
      %v4676 = vadd.f32 0.0, %v4675
      %v4677 = vpop.f32.mrb[0].mxu0
      %v4678 = vadd.f32 0.0, %v4677
      %v4679 = vpop.f32.mrb[0].mxu0
      %v4680 = vadd.f32 0.0, %v4679
      %v4681 = vpop.f32.mrb[0].mxu0
      %v4682 = vadd.f32 0.0, %v4681
      %4683 = vmatprep.mubr.bf16.mxu0 0
      %4684 = vmatmul.mubr.bf16.gmra.mrb[0].mxu0 %v4320
      %v4685 = vpop.f32.mrb[0].mxu0
      %v4686 = vadd.f32 0.0, %v4685
      %v4687 = vpop.f32.mrb[0].mxu0
      %v4688 = vadd.f32 0.0, %v4687
      %v4689 = vpop.f32.mrb[0].mxu0
      %v4690 = vadd.f32 0.0, %v4689
      %v4691 = vpop.f32.mrb[0].mxu0
      %v4692 = vadd.f32 0.0, %v4691
      %4693 = vmatprep.mubr.bf16.mxu0 0
      %4694 = vmatmul.mubr.bf16.gmra.mrb[0].mxu0 %v4323
      %v4695 = vpop.f32.mrb[0].mxu0
      %v4696 = vadd.f32 0.0, %v4695
      %v4697 = vpop.f32.mrb[0].mxu0
      %v4698 = vadd.f32 0.0, %v4697
      %v4699 = vpop.f32.mrb[0].mxu0
      %v4700 = vadd.f32 0.0, %v4699
      %v4701 = vpop.f32.mrb[0].mxu0
      %v4702 = vadd.f32 0.0, %v4701
      %4703 = vmatprep.mubr.bf16.mxu0 0
      %4704 = vmatmul.mubr.bf16.gmra.mrb[0].mxu0 %v4326
      %v4705 = vpop.f32.mrb[0].mxu0
      %v4706 = vadd.f32 0.0, %v4705
      %v4707 = vpop.f32.mrb[0].mxu0
      %v4708 = vadd.f32 0.0, %v4707
      %v4709 = vpop.f32.mrb[0].mxu0
      %v4710 = vadd.f32 0.0, %v4709
      %v4711 = vpop.f32.mrb[0].mxu0
      %v4712 = vadd.f32 0.0, %v4711
      %4713 = vdwg.mxu0
      %4714 = vmatprep.subr.bf16.mxu0 %v410
      %4715 = vmatpush1.bf16.msra.mxu0 %v407
      %4716 = vmatprep.subr.bf16.mxu0 0
      %4717 = vmatpush1.bf16.msra.mxu0 0
      %4718 = vmatprep.subr.bf16.mxu0 0
      %4719 = vmatpush1.bf16.msra.mxu0 0
      %4720 = vmatprep.subr.bf16.mxu0 0
      %4721 = vmatpush1.bf16.msra.mxu0 0
      %4722 = vmatprep.subr.bf16.mxu0 0
      %4723 = vmatpush1.bf16.msra.mxu0 0
      %4724 = vmatprep.subr.bf16.mxu0 0
      %4725 = vmatpush1.bf16.msra.mxu0 0
      %4726 = vmatprep.subr.bf16.mxu0 0
      %4727 = vmatpush1.bf16.msra.mxu0 0
      %4728 = vmatprep.subr.bf16.mxu0 0
      %4729 = vmatpush1.bf16.msra.mxu0 0
      %4730 = vmatprep.subr.bf16.mxu0 0
      %4731 = vmatpush1.bf16.msra.mxu0 0
      %4732 = vmatprep.subr.bf16.mxu0 0
      %4733 = vmatpush1.bf16.msra.mxu0 0
      %4734 = vmatprep.subr.bf16.mxu0 0
      %4735 = vmatpush1.bf16.msra.mxu0 0
      %4736 = vmatprep.subr.bf16.mxu0 0
      %4737 = vmatpush1.bf16.msra.mxu0 0
      %4738 = vmatprep.subr.bf16.mxu0 0
      %4739 = vmatpush1.bf16.msra.mxu0 0
      %4740 = vmatprep.subr.bf16.mxu0 0
      %4741 = vmatpush1.bf16.msra.mxu0 0
      %4742 = vmatprep.subr.bf16.mxu0 0
      %4743 = vmatpush1.bf16.msra.mxu0 0
      %4744 = vmatprep.subr.bf16.mxu0 0
      %4745 = vmatpush1.bf16.msra.mxu0 0
      %4746 = vmatprep.mubr.bf16.mxu0 0
      %4747 = vmatmul.mubr.bf16.gmra.mrb[0].mxu0 %v4281
      %v4748 = vpop.f32.mrb[0].mxu0
      %v4749 = vadd.f32 0.0, %v4748
      %v4750 = vpop.f32.mrb[0].mxu0
      %v4751 = vadd.f32 0.0, %v4750
      %v4752 = vpop.f32.mrb[0].mxu0
      %v4753 = vadd.f32 0.0, %v4752
      %v4754 = vpop.f32.mrb[0].mxu0
      %v4755 = vadd.f32 0.0, %v4754
      %4756 = vmatprep.mubr.bf16.mxu0 0
      %4757 = vmatmul.mubr.bf16.gmra.mrb[0].mxu0 %v4284
      %v4758 = vpop.f32.mrb[0].mxu0
      %v4759 = vadd.f32 0.0, %v4758
      %v4760 = vpop.f32.mrb[0].mxu0
      %v4761 = vadd.f32 0.0, %v4760
      %v4762 = vpop.f32.mrb[0].mxu0
      %v4763 = vadd.f32 0.0, %v4762
      %v4764 = vpop.f32.mrb[0].mxu0
      %v4765 = vadd.f32 0.0, %v4764
      %4766 = vmatprep.mubr.bf16.mxu0 0
      %4767 = vmatmul.mubr.bf16.gmra.mrb[0].mxu0 %v4287
      %v4768 = vpop.f32.mrb[0].mxu0
      %v4769 = vadd.f32 0.0, %v4768
      %v4770 = vpop.f32.mrb[0].mxu0
      %v4771 = vadd.f32 0.0, %v4770
      %v4772 = vpop.f32.mrb[0].mxu0
      %v4773 = vadd.f32 0.0, %v4772
      %v4774 = vpop.f32.mrb[0].mxu0
      %v4775 = vadd.f32 0.0, %v4774
      %4776 = vmatprep.mubr.bf16.mxu0 0
      %4777 = vmatmul.mubr.bf16.gmra.mrb[0].mxu0 %v4290
      %v4778 = vpop.f32.mrb[0].mxu0
      %v4779 = vadd.f32 0.0, %v4778
      %v4780 = vpop.f32.mrb[0].mxu0
      %v4781 = vadd.f32 0.0, %v4780
      %v4782 = vpop.f32.mrb[0].mxu0
      %v4783 = vadd.f32 0.0, %v4782
      %v4784 = vpop.f32.mrb[0].mxu0
      %v4785 = vadd.f32 0.0, %v4784
      %4786 = vmatprep.mubr.bf16.mxu0 0
      %4787 = vmatmul.mubr.bf16.gmra.mrb[0].mxu0 %v4293
      %v4788 = vpop.f32.mrb[0].mxu0
      %v4789 = vadd.f32 0.0, %v4788
      %v4790 = vpop.f32.mrb[0].mxu0
      %v4791 = vadd.f32 0.0, %v4790
      %v4792 = vpop.f32.mrb[0].mxu0
      %v4793 = vadd.f32 0.0, %v4792
      %v4794 = vpop.f32.mrb[0].mxu0
      %v4795 = vadd.f32 0.0, %v4794
      %4796 = vmatprep.mubr.bf16.mxu0 0
      %4797 = vmatmul.mubr.bf16.gmra.mrb[0].mxu0 %v4296
      %v4798 = vpop.f32.mrb[0].mxu0
      %v4799 = vadd.f32 0.0, %v4798
      %v4800 = vpop.f32.mrb[0].mxu0
      %v4801 = vadd.f32 0.0, %v4800
      %v4802 = vpop.f32.mrb[0].mxu0
      %v4803 = vadd.f32 0.0, %v4802
      %v4804 = vpop.f32.mrb[0].mxu0
      %v4805 = vadd.f32 0.0, %v4804
      %4806 = vmatprep.mubr.bf16.mxu0 0
      %4807 = vmatmul.mubr.bf16.gmra.mrb[0].mxu0 %v4299
      %v4808 = vpop.f32.mrb[0].mxu0
      %v4809 = vadd.f32 0.0, %v4808
      %v4810 = vpop.f32.mrb[0].mxu0
      %v4811 = vadd.f32 0.0, %v4810
      %v4812 = vpop.f32.mrb[0].mxu0
      %v4813 = vadd.f32 0.0, %v4812
      %v4814 = vpop.f32.mrb[0].mxu0
      %v4815 = vadd.f32 0.0, %v4814
      %4816 = vmatprep.mubr.bf16.mxu0 0
      %4817 = vmatmul.mubr.bf16.gmra.mrb[0].mxu0 %v4302
      %v4818 = vpop.f32.mrb[0].mxu0
      %v4819 = vadd.f32 0.0, %v4818
      %v4820 = vpop.f32.mrb[0].mxu0
      %v4821 = vadd.f32 0.0, %v4820
      %v4822 = vpop.f32.mrb[0].mxu0
      %v4823 = vadd.f32 0.0, %v4822
      %v4824 = vpop.f32.mrb[0].mxu0
      %v4825 = vadd.f32 0.0, %v4824
      %4826 = vmatprep.mubr.bf16.mxu0 0
      %4827 = vmatmul.mubr.bf16.gmra.mrb[0].mxu0 %v4305
      %v4828 = vpop.f32.mrb[0].mxu0
      %v4829 = vadd.f32 0.0, %v4828
      %v4830 = vpop.f32.mrb[0].mxu0
      %v4831 = vadd.f32 0.0, %v4830
      %v4832 = vpop.f32.mrb[0].mxu0
      %v4833 = vadd.f32 0.0, %v4832
      %v4834 = vpop.f32.mrb[0].mxu0
      %v4835 = vadd.f32 0.0, %v4834
      %4836 = vmatprep.mubr.bf16.mxu0 0
      %4837 = vmatmul.mubr.bf16.gmra.mrb[0].mxu0 %v4308
      %v4838 = vpop.f32.mrb[0].mxu0
      %v4839 = vadd.f32 0.0, %v4838
      %v4840 = vpop.f32.mrb[0].mxu0
      %v4841 = vadd.f32 0.0, %v4840
      %v4842 = vpop.f32.mrb[0].mxu0
      %v4843 = vadd.f32 0.0, %v4842
      %v4844 = vpop.f32.mrb[0].mxu0
      %v4845 = vadd.f32 0.0, %v4844
      %4846 = vmatprep.mubr.bf16.mxu0 0
      %4847 = vmatmul.mubr.bf16.gmra.mrb[0].mxu0 %v4311
      %v4848 = vpop.f32.mrb[0].mxu0
      %v4849 = vadd.f32 0.0, %v4848
      %v4850 = vpop.f32.mrb[0].mxu0
      %v4851 = vadd.f32 0.0, %v4850
      %v4852 = vpop.f32.mrb[0].mxu0
      %v4853 = vadd.f32 0.0, %v4852
      %v4854 = vpop.f32.mrb[0].mxu0
      %v4855 = vadd.f32 0.0, %v4854
      %4856 = vmatprep.mubr.bf16.mxu0 0
      %4857 = vmatmul.mubr.bf16.gmra.mrb[0].mxu0 %v4314
      %v4858 = vpop.f32.mrb[0].mxu0
      %v4859 = vadd.f32 0.0, %v4858
      %v4860 = vpop.f32.mrb[0].mxu0
      %v4861 = vadd.f32 0.0, %v4860
      %v4862 = vpop.f32.mrb[0].mxu0
      %v4863 = vadd.f32 0.0, %v4862
      %v4864 = vpop.f32.mrb[0].mxu0
      %v4865 = vadd.f32 0.0, %v4864
      %4866 = vmatprep.mubr.bf16.mxu0 0
      %4867 = vmatmul.mubr.bf16.gmra.mrb[0].mxu0 %v4317
      %v4868 = vpop.f32.mrb[0].mxu0
      %v4869 = vadd.f32 0.0, %v4868
      %v4870 = vpop.f32.mrb[0].mxu0
      %v4871 = vadd.f32 0.0, %v4870
      %v4872 = vpop.f32.mrb[0].mxu0
      %v4873 = vadd.f32 0.0, %v4872
      %v4874 = vpop.f32.mrb[0].mxu0
      %v4875 = vadd.f32 0.0, %v4874
      %4876 = vmatprep.mubr.bf16.mxu0 0
      %4877 = vmatmul.mubr.bf16.gmra.mrb[0].mxu0 %v4320
      %v4878 = vpop.f32.mrb[0].mxu0
      %v4879 = vadd.f32 0.0, %v4878
      %v4880 = vpop.f32.mrb[0].mxu0
      %v4881 = vadd.f32 0.0, %v4880
      %v4882 = vpop.f32.mrb[0].mxu0
      %v4883 = vadd.f32 0.0, %v4882
      %v4884 = vpop.f32.mrb[0].mxu0
      %v4885 = vadd.f32 0.0, %v4884
      %4886 = vmatprep.mubr.bf16.mxu0 0
      %4887 = vmatmul.mubr.bf16.gmra.mrb[0].mxu0 %v4323
      %v4888 = vpop.f32.mrb[0].mxu0
      %v4889 = vadd.f32 0.0, %v4888
      %v4890 = vpop.f32.mrb[0].mxu0
      %v4891 = vadd.f32 0.0, %v4890
      %v4892 = vpop.f32.mrb[0].mxu0
      %v4893 = vadd.f32 0.0, %v4892
      %v4894 = vpop.f32.mrb[0].mxu0
      %v4895 = vadd.f32 0.0, %v4894
      %4896 = vmatprep.mubr.bf16.mxu0 0
      %4897 = vmatmul.mubr.bf16.gmra.mrb[0].mxu0 %v4326
      %v4898 = vpop.f32.mrb[0].mxu0
      %v4899 = vadd.f32 0.0, %v4898
      %v4900 = vpop.f32.mrb[0].mxu0
      %v4901 = vadd.f32 0.0, %v4900
      %v4902 = vpop.f32.mrb[0].mxu0
      %v4903 = vadd.f32 0.0, %v4902
      %v4904 = vpop.f32.mrb[0].mxu0
      %v4905 = vadd.f32 0.0, %v4904
      %4906 = vdwg.mxu0
      %v4907 = vmax.f32 %v4363, %v4367
      %v4908 = vmax.f32 %v4907, %v4373
      %v4909 = vmax.f32 %v4908, %v4377
      %v4910 = vmax.f32 %v4909, %v4383
      %v4911 = vmax.f32 %v4910, %v4387
      %v4912 = vmax.f32 %v4911, %v4393
      %v4913 = vmax.f32 %v4912, %v4397
      %v4914 = vmax.f32 %v4913, %v4403
      %v4915 = vmax.f32 %v4914, %v4407
      %v4916 = vmax.f32 %v4915, %v4413
      %v4917 = vmax.f32 %v4916, %v4417
      %v4918 = vmax.f32 %v4917, %v4423
      %v4919 = vmax.f32 %v4918, %v4427
      %v4920 = vmax.f32 %v4919, %v4433
      %v4921 = vmax.f32 %v4920, %v4437
      %v4922 = vmax.f32 %v4921, %v4443
      %v4923 = vmax.f32 %v4922, %v4447
      %v4924 = vmax.f32 %v4923, %v4453
      %v4925 = vmax.f32 %v4924, %v4457
      %v4926 = vmax.f32 %v4925, %v4463
      %v4927 = vmax.f32 %v4926, %v4467
      %v4928 = vmax.f32 %v4927, %v4473
      %v4929 = vmax.f32 %v4928, %v4477
      %v4930 = vmax.f32 %v4929, %v4483
      %v4931 = vmax.f32 %v4930, %v4487
      %v4932 = vmax.f32 %v4931, %v4493
      %v4933 = vmax.f32 %v4932, %v4497
      %v4934 = vmax.f32 %v4933, %v4503
      %v4935 = vmax.f32 %v4934, %v4507
      %v4936 = vmax.f32 %v4935, %v4513
      %v4937 = vmax.f32 %v4936, %v4517
      %v4938 = vrot.slane %v4937, 4
      %v4939 = vmax.f32 %v4937, %v4938
      %v4940 = vrot.slane %v4939, 2
      %v4941 = vmax.f32 %v4939, %v4940
      %v4942 = vrot.slane %v4941, 1
      %v4943 = vmax.f32 %v4941, %v4942
      %v4944 = vmax.f32 %v4365, %v4369
      %v4945 = vmax.f32 %v4944, %v4375
      %v4946 = vmax.f32 %v4945, %v4379
      %v4947 = vmax.f32 %v4946, %v4385
      %v4948 = vmax.f32 %v4947, %v4389
      %v4949 = vmax.f32 %v4948, %v4395
      %v4950 = vmax.f32 %v4949, %v4399
      %v4951 = vmax.f32 %v4950, %v4405
      %v4952 = vmax.f32 %v4951, %v4409
      %v4953 = vmax.f32 %v4952, %v4415
      %v4954 = vmax.f32 %v4953, %v4419
      %v4955 = vmax.f32 %v4954, %v4425
      %v4956 = vmax.f32 %v4955, %v4429
      %v4957 = vmax.f32 %v4956, %v4435
      %v4958 = vmax.f32 %v4957, %v4439
      %v4959 = vmax.f32 %v4958, %v4445
      %v4960 = vmax.f32 %v4959, %v4449
      %v4961 = vmax.f32 %v4960, %v4455
      %v4962 = vmax.f32 %v4961, %v4459
      %v4963 = vmax.f32 %v4962, %v4465
      %v4964 = vmax.f32 %v4963, %v4469
      %v4965 = vmax.f32 %v4964, %v4475
      %v4966 = vmax.f32 %v4965, %v4479
      %v4967 = vmax.f32 %v4966, %v4485
      %v4968 = vmax.f32 %v4967, %v4489
      %v4969 = vmax.f32 %v4968, %v4495
      %v4970 = vmax.f32 %v4969, %v4499
      %v4971 = vmax.f32 %v4970, %v4505
      %v4972 = vmax.f32 %v4971, %v4509
      %v4973 = vmax.f32 %v4972, %v4515
      %v4974 = vmax.f32 %v4973, %v4519
      %v4975 = vrot.slane %v4974, 4
      %v4976 = vmax.f32 %v4974, %v4975
      %v4977 = vrot.slane %v4976, 2
      %v4978 = vmax.f32 %v4976, %v4977
      %v4979 = vrot.slane %v4978, 1
      %v4980 = vmax.f32 %v4978, %v4979
      %v4981 = vmax.f32 %v4556, %v4560
      %v4982 = vmax.f32 %v4981, %v4566
      %v4983 = vmax.f32 %v4982, %v4570
      %v4984 = vmax.f32 %v4983, %v4576
      %v4985 = vmax.f32 %v4984, %v4580
      %v4986 = vmax.f32 %v4985, %v4586
      %v4987 = vmax.f32 %v4986, %v4590
      %v4988 = vmax.f32 %v4987, %v4596
      %v4989 = vmax.f32 %v4988, %v4600
      %v4990 = vmax.f32 %v4989, %v4606
      %v4991 = vmax.f32 %v4990, %v4610
      %v4992 = vmax.f32 %v4991, %v4616
      %v4993 = vmax.f32 %v4992, %v4620
      %v4994 = vmax.f32 %v4993, %v4626
      %v4995 = vmax.f32 %v4994, %v4630
      %v4996 = vmax.f32 %v4995, %v4636
      %v4997 = vmax.f32 %v4996, %v4640
      %v4998 = vmax.f32 %v4997, %v4646
      %v4999 = vmax.f32 %v4998, %v4650
      %v5000 = vmax.f32 %v4999, %v4656
      %v5001 = vmax.f32 %v5000, %v4660
      %v5002 = vmax.f32 %v5001, %v4666
      %v5003 = vmax.f32 %v5002, %v4670
      %v5004 = vmax.f32 %v5003, %v4676
      %v5005 = vmax.f32 %v5004, %v4680
      %v5006 = vmax.f32 %v5005, %v4686
      %v5007 = vmax.f32 %v5006, %v4690
      %v5008 = vmax.f32 %v5007, %v4696
      %v5009 = vmax.f32 %v5008, %v4700
      %v5010 = vmax.f32 %v5009, %v4706
      %v5011 = vmax.f32 %v5010, %v4710
      %v5012 = vrot.slane %v5011, 4
      %v5013 = vmax.f32 %v5011, %v5012
      %v5014 = vrot.slane %v5013, 2
      %v5015 = vmax.f32 %v5013, %v5014
      %v5016 = vrot.slane %v5015, 1
      %v5017 = vmax.f32 %v5015, %v5016
      %v5018 = vmax.f32 %v4558, %v4562
      %v5019 = vmax.f32 %v5018, %v4568
      %v5020 = vmax.f32 %v5019, %v4572
      %v5021 = vmax.f32 %v5020, %v4578
      %v5022 = vmax.f32 %v5021, %v4582
      %v5023 = vmax.f32 %v5022, %v4588
      %v5024 = vmax.f32 %v5023, %v4592
      %v5025 = vmax.f32 %v5024, %v4598
      %v5026 = vmax.f32 %v5025, %v4602
      %v5027 = vmax.f32 %v5026, %v4608
      %v5028 = vmax.f32 %v5027, %v4612
      %v5029 = vmax.f32 %v5028, %v4618
      %v5030 = vmax.f32 %v5029, %v4622
      %v5031 = vmax.f32 %v5030, %v4628
      %v5032 = vmax.f32 %v5031, %v4632
      %v5033 = vmax.f32 %v5032, %v4638
      %v5034 = vmax.f32 %v5033, %v4642
      %v5035 = vmax.f32 %v5034, %v4648
      %v5036 = vmax.f32 %v5035, %v4652
      %v5037 = vmax.f32 %v5036, %v4658
      %v5038 = vmax.f32 %v5037, %v4662
      %v5039 = vmax.f32 %v5038, %v4668
      %v5040 = vmax.f32 %v5039, %v4672
      %v5041 = vmax.f32 %v5040, %v4678
      %v5042 = vmax.f32 %v5041, %v4682
      %v5043 = vmax.f32 %v5042, %v4688
      %v5044 = vmax.f32 %v5043, %v4692
      %v5045 = vmax.f32 %v5044, %v4698
      %v5046 = vmax.f32 %v5045, %v4702
      %v5047 = vmax.f32 %v5046, %v4708
      %v5048 = vmax.f32 %v5047, %v4712
      %v5049 = vrot.slane %v5048, 4
      %v5050 = vmax.f32 %v5048, %v5049
      %v5051 = vrot.slane %v5050, 2
      %v5052 = vmax.f32 %v5050, %v5051
      %v5053 = vrot.slane %v5052, 1
      %v5054 = vmax.f32 %v5052, %v5053
      %v5055 = vmax.f32 %v4749, %v4753
      %v5056 = vmax.f32 %v5055, %v4759
      %v5057 = vmax.f32 %v5056, %v4763
      %v5058 = vmax.f32 %v5057, %v4769
      %v5059 = vmax.f32 %v5058, %v4773
      %v5060 = vmax.f32 %v5059, %v4779
      %v5061 = vmax.f32 %v5060, %v4783
      %v5062 = vmax.f32 %v5061, %v4789
      %v5063 = vmax.f32 %v5062, %v4793
      %v5064 = vmax.f32 %v5063, %v4799
      %v5065 = vmax.f32 %v5064, %v4803
      %v5066 = vmax.f32 %v5065, %v4809
      %v5067 = vmax.f32 %v5066, %v4813
      %v5068 = vmax.f32 %v5067, %v4819
      %v5069 = vmax.f32 %v5068, %v4823
      %v5070 = vmax.f32 %v5069, %v4829
      %v5071 = vmax.f32 %v5070, %v4833
      %v5072 = vmax.f32 %v5071, %v4839
      %v5073 = vmax.f32 %v5072, %v4843
      %v5074 = vmax.f32 %v5073, %v4849
      %v5075 = vmax.f32 %v5074, %v4853
      %v5076 = vmax.f32 %v5075, %v4859
      %v5077 = vmax.f32 %v5076, %v4863
      %v5078 = vmax.f32 %v5077, %v4869
      %v5079 = vmax.f32 %v5078, %v4873
      %v5080 = vmax.f32 %v5079, %v4879
      %v5081 = vmax.f32 %v5080, %v4883
      %v5082 = vmax.f32 %v5081, %v4889
      %v5083 = vmax.f32 %v5082, %v4893
      %v5084 = vmax.f32 %v5083, %v4899
      %v5085 = vmax.f32 %v5084, %v4903
      %v5086 = vrot.slane %v5085, 4
      %v5087 = vmax.f32 %v5085, %v5086
      %v5088 = vrot.slane %v5087, 2
      %v5089 = vmax.f32 %v5087, %v5088
      %v5090 = vrot.slane %v5089, 1
      %v5091 = vmax.f32 %v5089, %v5090
      %v5092 = vmax.f32 %v4751, %v4755
      %v5093 = vmax.f32 %v5092, %v4761
      %v5094 = vmax.f32 %v5093, %v4765
      %v5095 = vmax.f32 %v5094, %v4771
      %v5096 = vmax.f32 %v5095, %v4775
      %v5097 = vmax.f32 %v5096, %v4781
      %v5098 = vmax.f32 %v5097, %v4785
      %v5099 = vmax.f32 %v5098, %v4791
      %v5100 = vmax.f32 %v5099, %v4795
      %v5101 = vmax.f32 %v5100, %v4801
      %v5102 = vmax.f32 %v5101, %v4805
      %v5103 = vmax.f32 %v5102, %v4811
      %v5104 = vmax.f32 %v5103, %v4815
      %v5105 = vmax.f32 %v5104, %v4821
      %v5106 = vmax.f32 %v5105, %v4825
      %v5107 = vmax.f32 %v5106, %v4831
      %v5108 = vmax.f32 %v5107, %v4835
      %v5109 = vmax.f32 %v5108, %v4841
      %v5110 = vmax.f32 %v5109, %v4845
      %v5111 = vmax.f32 %v5110, %v4851
      %v5112 = vmax.f32 %v5111, %v4855
      %v5113 = vmax.f32 %v5112, %v4861
      %v5114 = vmax.f32 %v5113, %v4865
      %v5115 = vmax.f32 %v5114, %v4871
      %v5116 = vmax.f32 %v5115, %v4875
      %v5117 = vmax.f32 %v5116, %v4881
      %v5118 = vmax.f32 %v5117, %v4885
      %v5119 = vmax.f32 %v5118, %v4891
      %v5120 = vmax.f32 %v5119, %v4895
      %v5121 = vmax.f32 %v5120, %v4901
      %v5122 = vmax.f32 %v5121, %v4905
      %v5123 = vrot.slane %v5122, 4
      %v5124 = vmax.f32 %v5122, %v5123
      %v5125 = vrot.slane %v5124, 2
      %v5126 = vmax.f32 %v5124, %v5125
      %v5127 = vrot.slane %v5126, 1
      %v5128 = vmax.f32 %v5126, %v5127
      %v5129 = vmax.f32 %v3165, %v4943
      %v5130 = vmax.f32 %v3166, %v4980
      %v5131 = vmax.f32 %v3167, %v5017
      %v5132 = vmax.f32 %v3168, %v5054
      %v5133 = vmax.f32 %v3169, %v5091
      %v5134 = vmax.f32 %v3170, %v5128
      %v5135 = vsub.f32 %v3165, %v5129
      %v5136 = vsub.f32 %v3166, %v5130
      %v5137 = vsub.f32 %v3167, %v5131
      %v5138 = vsub.f32 %v3168, %v5132
      %v5139 = vsub.f32 %v3169, %v5133
      %v5140 = vsub.f32 %v3170, %v5134
      %v5141 = vmul.f32 %v5135, 1.442695
      %v5142 = vpow.pop %v5141
      %v5143 = vmul.f32 %v5136, 1.442695
      %v5144 = vpow.pop %v5143
      %v5145 = vmul.f32 %v5137, 1.442695
      %v5146 = vpow.pop %v5145
      %v5147 = vmul.f32 %v5138, 1.442695
      %v5148 = vpow.pop %v5147
      %v5149 = vmul.f32 %v5139, 1.442695
      %v5150 = vpow.pop %v5149
      %v5151 = vmul.f32 %v5140, 1.442695
      %v5152 = vpow.pop %v5151
      %v5153 = vsub.f32 %v4363, %v5129
      %v5154 = vsub.f32 %v4365, %v5130
      %v5155 = vsub.f32 %v4556, %v5131
      %v5156 = vsub.f32 %v4558, %v5132
      %v5157 = vsub.f32 %v4749, %v5133
      %v5158 = vsub.f32 %v4751, %v5134
      %v5159 = vsub.f32 %v4367, %v5129
      %v5160 = vsub.f32 %v4369, %v5130
      %v5161 = vsub.f32 %v4560, %v5131
      %v5162 = vsub.f32 %v4562, %v5132
      %v5163 = vsub.f32 %v4753, %v5133
      %v5164 = vsub.f32 %v4755, %v5134
      %v5165 = vsub.f32 %v4373, %v5129
      %v5166 = vsub.f32 %v4375, %v5130
      %v5167 = vsub.f32 %v4566, %v5131
      %v5168 = vsub.f32 %v4568, %v5132
      %v5169 = vsub.f32 %v4759, %v5133
      %v5170 = vsub.f32 %v4761, %v5134
      %v5171 = vsub.f32 %v4377, %v5129
      %v5172 = vsub.f32 %v4379, %v5130
      %v5173 = vsub.f32 %v4570, %v5131
      %v5174 = vsub.f32 %v4572, %v5132
      %v5175 = vsub.f32 %v4763, %v5133
      %v5176 = vsub.f32 %v4765, %v5134
      %v5177 = vsub.f32 %v4383, %v5129
      %v5178 = vsub.f32 %v4385, %v5130
      %v5179 = vsub.f32 %v4576, %v5131
      %v5180 = vsub.f32 %v4578, %v5132
      %v5181 = vsub.f32 %v4769, %v5133
      %v5182 = vsub.f32 %v4771, %v5134
      %v5183 = vsub.f32 %v4387, %v5129
      %v5184 = vsub.f32 %v4389, %v5130
      %v5185 = vsub.f32 %v4580, %v5131
      %v5186 = vsub.f32 %v4582, %v5132
      %v5187 = vsub.f32 %v4773, %v5133
      %v5188 = vsub.f32 %v4775, %v5134
      %v5189 = vsub.f32 %v4393, %v5129
      %v5190 = vsub.f32 %v4395, %v5130
      %v5191 = vsub.f32 %v4586, %v5131
      %v5192 = vsub.f32 %v4588, %v5132
      %v5193 = vsub.f32 %v4779, %v5133
      %v5194 = vsub.f32 %v4781, %v5134
      %v5195 = vsub.f32 %v4397, %v5129
      %v5196 = vsub.f32 %v4399, %v5130
      %v5197 = vsub.f32 %v4590, %v5131
      %v5198 = vsub.f32 %v4592, %v5132
      %v5199 = vsub.f32 %v4783, %v5133
      %v5200 = vsub.f32 %v4785, %v5134
      %v5201 = vsub.f32 %v4403, %v5129
      %v5202 = vsub.f32 %v4405, %v5130
      %v5203 = vsub.f32 %v4596, %v5131
      %v5204 = vsub.f32 %v4598, %v5132
      %v5205 = vsub.f32 %v4789, %v5133
      %v5206 = vsub.f32 %v4791, %v5134
      %v5207 = vsub.f32 %v4407, %v5129
      %v5208 = vsub.f32 %v4409, %v5130
      %v5209 = vsub.f32 %v4600, %v5131
      %v5210 = vsub.f32 %v4602, %v5132
      %v5211 = vsub.f32 %v4793, %v5133
      %v5212 = vsub.f32 %v4795, %v5134
      %v5213 = vsub.f32 %v4413, %v5129
      %v5214 = vsub.f32 %v4415, %v5130
      %v5215 = vsub.f32 %v4606, %v5131
      %v5216 = vsub.f32 %v4608, %v5132
      %v5217 = vsub.f32 %v4799, %v5133
      %v5218 = vsub.f32 %v4801, %v5134
      %v5219 = vsub.f32 %v4417, %v5129
      %v5220 = vsub.f32 %v4419, %v5130
      %v5221 = vsub.f32 %v4610, %v5131
      %v5222 = vsub.f32 %v4612, %v5132
      %v5223 = vsub.f32 %v4803, %v5133
      %v5224 = vsub.f32 %v4805, %v5134
      %v5225 = vsub.f32 %v4423, %v5129
      %v5226 = vsub.f32 %v4425, %v5130
      %v5227 = vsub.f32 %v4616, %v5131
      %v5228 = vsub.f32 %v4618, %v5132
      %v5229 = vsub.f32 %v4809, %v5133
      %v5230 = vsub.f32 %v4811, %v5134
      %v5231 = vsub.f32 %v4427, %v5129
      %v5232 = vsub.f32 %v4429, %v5130
      %v5233 = vsub.f32 %v4620, %v5131
      %v5234 = vsub.f32 %v4622, %v5132
      %v5235 = vsub.f32 %v4813, %v5133
      %v5236 = vsub.f32 %v4815, %v5134
      %v5237 = vsub.f32 %v4433, %v5129
      %v5238 = vsub.f32 %v4435, %v5130
      %v5239 = vsub.f32 %v4626, %v5131
      %v5240 = vsub.f32 %v4628, %v5132
      %v5241 = vsub.f32 %v4819, %v5133
      %v5242 = vsub.f32 %v4821, %v5134
      %v5243 = vsub.f32 %v4437, %v5129
      %v5244 = vsub.f32 %v4439, %v5130
      %v5245 = vsub.f32 %v4630, %v5131
      %v5246 = vsub.f32 %v4632, %v5132
      %v5247 = vsub.f32 %v4823, %v5133
      %v5248 = vsub.f32 %v4825, %v5134
      %v5249 = vsub.f32 %v4443, %v5129
      %v5250 = vsub.f32 %v4445, %v5130
      %v5251 = vsub.f32 %v4636, %v5131
      %v5252 = vsub.f32 %v4638, %v5132
      %v5253 = vsub.f32 %v4829, %v5133
      %v5254 = vsub.f32 %v4831, %v5134
      %v5255 = vsub.f32 %v4447, %v5129
      %v5256 = vsub.f32 %v4449, %v5130
      %v5257 = vsub.f32 %v4640, %v5131
      %v5258 = vsub.f32 %v4642, %v5132
      %v5259 = vsub.f32 %v4833, %v5133
      %v5260 = vsub.f32 %v4835, %v5134
      %v5261 = vsub.f32 %v4453, %v5129
      %v5262 = vsub.f32 %v4455, %v5130
      %v5263 = vsub.f32 %v4646, %v5131
      %v5264 = vsub.f32 %v4648, %v5132
      %v5265 = vsub.f32 %v4839, %v5133
      %v5266 = vsub.f32 %v4841, %v5134
      %v5267 = vsub.f32 %v4457, %v5129
      %v5268 = vsub.f32 %v4459, %v5130
      %v5269 = vsub.f32 %v4650, %v5131
      %v5270 = vsub.f32 %v4652, %v5132
      %v5271 = vsub.f32 %v4843, %v5133
      %v5272 = vsub.f32 %v4845, %v5134
      %v5273 = vsub.f32 %v4463, %v5129
      %v5274 = vsub.f32 %v4465, %v5130
      %v5275 = vsub.f32 %v4656, %v5131
      %v5276 = vsub.f32 %v4658, %v5132
      %v5277 = vsub.f32 %v4849, %v5133
      %v5278 = vsub.f32 %v4851, %v5134
      %v5279 = vsub.f32 %v4467, %v5129
      %v5280 = vsub.f32 %v4469, %v5130
      %v5281 = vsub.f32 %v4660, %v5131
      %v5282 = vsub.f32 %v4662, %v5132
      %v5283 = vsub.f32 %v4853, %v5133
      %v5284 = vsub.f32 %v4855, %v5134
      %v5285 = vsub.f32 %v4473, %v5129
      %v5286 = vsub.f32 %v4475, %v5130
      %v5287 = vsub.f32 %v4666, %v5131
      %v5288 = vsub.f32 %v4668, %v5132
      %v5289 = vsub.f32 %v4859, %v5133
      %v5290 = vsub.f32 %v4861, %v5134
      %v5291 = vsub.f32 %v4477, %v5129
      %v5292 = vsub.f32 %v4479, %v5130
      %v5293 = vsub.f32 %v4670, %v5131
      %v5294 = vsub.f32 %v4672, %v5132
      %v5295 = vsub.f32 %v4863, %v5133
      %v5296 = vsub.f32 %v4865, %v5134
      %v5297 = vsub.f32 %v4483, %v5129
      %v5298 = vsub.f32 %v4485, %v5130
      %v5299 = vsub.f32 %v4676, %v5131
      %v5300 = vsub.f32 %v4678, %v5132
      %v5301 = vsub.f32 %v4869, %v5133
      %v5302 = vsub.f32 %v4871, %v5134
      %v5303 = vsub.f32 %v4487, %v5129
      %v5304 = vsub.f32 %v4489, %v5130
      %v5305 = vsub.f32 %v4680, %v5131
      %v5306 = vsub.f32 %v4682, %v5132
      %v5307 = vsub.f32 %v4873, %v5133
      %v5308 = vsub.f32 %v4875, %v5134
      %v5309 = vsub.f32 %v4493, %v5129
      %v5310 = vsub.f32 %v4495, %v5130
      %v5311 = vsub.f32 %v4686, %v5131
      %v5312 = vsub.f32 %v4688, %v5132
      %v5313 = vsub.f32 %v4879, %v5133
      %v5314 = vsub.f32 %v4881, %v5134
      %v5315 = vsub.f32 %v4497, %v5129
      %v5316 = vsub.f32 %v4499, %v5130
      %v5317 = vsub.f32 %v4690, %v5131
      %v5318 = vsub.f32 %v4692, %v5132
      %v5319 = vsub.f32 %v4883, %v5133
      %v5320 = vsub.f32 %v4885, %v5134
      %v5321 = vsub.f32 %v4503, %v5129
      %v5322 = vsub.f32 %v4505, %v5130
      %v5323 = vsub.f32 %v4696, %v5131
      %v5324 = vsub.f32 %v4698, %v5132
      %v5325 = vsub.f32 %v4889, %v5133
      %v5326 = vsub.f32 %v4891, %v5134
      %v5327 = vsub.f32 %v4507, %v5129
      %v5328 = vsub.f32 %v4509, %v5130
      %v5329 = vsub.f32 %v4700, %v5131
      %v5330 = vsub.f32 %v4702, %v5132
      %v5331 = vsub.f32 %v4893, %v5133
      %v5332 = vsub.f32 %v4895, %v5134
      %v5333 = vsub.f32 %v4513, %v5129
      %v5334 = vsub.f32 %v4515, %v5130
      %v5335 = vsub.f32 %v4706, %v5131
      %v5336 = vsub.f32 %v4708, %v5132
      %v5337 = vsub.f32 %v4899, %v5133
      %v5338 = vsub.f32 %v4901, %v5134
      %v5339 = vsub.f32 %v4517, %v5129
      %v5340 = vsub.f32 %v4519, %v5130
      %v5341 = vsub.f32 %v4710, %v5131
      %v5342 = vsub.f32 %v4712, %v5132
      %v5343 = vsub.f32 %v4903, %v5133
      %v5344 = vsub.f32 %v4905, %v5134
      %v5345 = vmul.f32 %v5153, 1.442695
      %v5346 = vpow.pop %v5345
      %v5347 = vmul.f32 %v5154, 1.442695
      %v5348 = vpow.pop %v5347
      %v5349 = vmul.f32 %v5155, 1.442695
      %v5350 = vpow.pop %v5349
      %v5351 = vmul.f32 %v5156, 1.442695
      %v5352 = vpow.pop %v5351
      %v5353 = vmul.f32 %v5157, 1.442695
      %v5354 = vpow.pop %v5353
      %v5355 = vmul.f32 %v5158, 1.442695
      %v5356 = vpow.pop %v5355
      %v5357 = vmul.f32 %v5159, 1.442695
      %v5358 = vpow.pop %v5357
      %v5359 = vmul.f32 %v5160, 1.442695
      %v5360 = vpow.pop %v5359
      %v5361 = vmul.f32 %v5161, 1.442695
      %v5362 = vpow.pop %v5361
      %v5363 = vmul.f32 %v5162, 1.442695
      %v5364 = vpow.pop %v5363
      %v5365 = vmul.f32 %v5163, 1.442695
      %v5366 = vpow.pop %v5365
      %v5367 = vmul.f32 %v5164, 1.442695
      %v5368 = vpow.pop %v5367
      %v5369 = vmul.f32 %v5165, 1.442695
      %v5370 = vpow.pop %v5369
      %v5371 = vmul.f32 %v5166, 1.442695
      %v5372 = vpow.pop %v5371
      %v5373 = vmul.f32 %v5167, 1.442695
      %v5374 = vpow.pop %v5373
      %v5375 = vmul.f32 %v5168, 1.442695
      %v5376 = vpow.pop %v5375
      %v5377 = vmul.f32 %v5169, 1.442695
      %v5378 = vpow.pop %v5377
      %v5379 = vmul.f32 %v5170, 1.442695
      %v5380 = vpow.pop %v5379
      %v5381 = vmul.f32 %v5171, 1.442695
      %v5382 = vpow.pop %v5381
      %v5383 = vmul.f32 %v5172, 1.442695
      %v5384 = vpow.pop %v5383
      %v5385 = vmul.f32 %v5173, 1.442695
      %v5386 = vpow.pop %v5385
      %v5387 = vmul.f32 %v5174, 1.442695
      %v5388 = vpow.pop %v5387
      %v5389 = vmul.f32 %v5175, 1.442695
      %v5390 = vpow.pop %v5389
      %v5391 = vmul.f32 %v5176, 1.442695
      %v5392 = vpow.pop %v5391
      %v5393 = vmul.f32 %v5177, 1.442695
      %v5394 = vpow.pop %v5393
      %v5395 = vmul.f32 %v5178, 1.442695
      %v5396 = vpow.pop %v5395
      %v5397 = vmul.f32 %v5179, 1.442695
      %v5398 = vpow.pop %v5397
      %v5399 = vmul.f32 %v5180, 1.442695
      %v5400 = vpow.pop %v5399
      %v5401 = vmul.f32 %v5181, 1.442695
      %v5402 = vpow.pop %v5401
      %v5403 = vmul.f32 %v5182, 1.442695
      %v5404 = vpow.pop %v5403
      %v5405 = vmul.f32 %v5183, 1.442695
      %v5406 = vpow.pop %v5405
      %v5407 = vmul.f32 %v5184, 1.442695
      %v5408 = vpow.pop %v5407
      %v5409 = vmul.f32 %v5185, 1.442695
      %v5410 = vpow.pop %v5409
      %v5411 = vmul.f32 %v5186, 1.442695
      %v5412 = vpow.pop %v5411
      %v5413 = vmul.f32 %v5187, 1.442695
      %v5414 = vpow.pop %v5413
      %v5415 = vmul.f32 %v5188, 1.442695
      %v5416 = vpow.pop %v5415
      %v5417 = vmul.f32 %v5189, 1.442695
      %v5418 = vpow.pop %v5417
      %v5419 = vmul.f32 %v5190, 1.442695
      %v5420 = vpow.pop %v5419
      %v5421 = vmul.f32 %v5191, 1.442695
      %v5422 = vpow.pop %v5421
      %v5423 = vmul.f32 %v5192, 1.442695
      %v5424 = vpow.pop %v5423
      %v5425 = vmul.f32 %v5193, 1.442695
      %v5426 = vpow.pop %v5425
      %v5427 = vmul.f32 %v5194, 1.442695
      %v5428 = vpow.pop %v5427
      %v5429 = vmul.f32 %v5195, 1.442695
      %v5430 = vpow.pop %v5429
      %v5431 = vmul.f32 %v5196, 1.442695
      %v5432 = vpow.pop %v5431
      %v5433 = vmul.f32 %v5197, 1.442695
      %v5434 = vpow.pop %v5433
      %v5435 = vmul.f32 %v5198, 1.442695
      %v5436 = vpow.pop %v5435
      %v5437 = vmul.f32 %v5199, 1.442695
      %v5438 = vpow.pop %v5437
      %v5439 = vmul.f32 %v5200, 1.442695
      %v5440 = vpow.pop %v5439
      %v5441 = vmul.f32 %v5201, 1.442695
      %v5442 = vpow.pop %v5441
      %v5443 = vmul.f32 %v5202, 1.442695
      %v5444 = vpow.pop %v5443
      %v5445 = vmul.f32 %v5203, 1.442695
      %v5446 = vpow.pop %v5445
      %v5447 = vmul.f32 %v5204, 1.442695
      %v5448 = vpow.pop %v5447
      %v5449 = vmul.f32 %v5205, 1.442695
      %v5450 = vpow.pop %v5449
      %v5451 = vmul.f32 %v5206, 1.442695
      %v5452 = vpow.pop %v5451
      %v5453 = vmul.f32 %v5207, 1.442695
      %v5454 = vpow.pop %v5453
      %v5455 = vmul.f32 %v5208, 1.442695
      %v5456 = vpow.pop %v5455
      %v5457 = vmul.f32 %v5209, 1.442695
      %v5458 = vpow.pop %v5457
      %v5459 = vmul.f32 %v5210, 1.442695
      %v5460 = vpow.pop %v5459
      %v5461 = vmul.f32 %v5211, 1.442695
      %v5462 = vpow.pop %v5461
      %v5463 = vmul.f32 %v5212, 1.442695
      %v5464 = vpow.pop %v5463
      %v5465 = vmul.f32 %v5213, 1.442695
      %v5466 = vpow.pop %v5465
      %v5467 = vmul.f32 %v5214, 1.442695
      %v5468 = vpow.pop %v5467
      %v5469 = vmul.f32 %v5215, 1.442695
      %v5470 = vpow.pop %v5469
      %v5471 = vmul.f32 %v5216, 1.442695
      %v5472 = vpow.pop %v5471
      %v5473 = vmul.f32 %v5217, 1.442695
      %v5474 = vpow.pop %v5473
      %v5475 = vmul.f32 %v5218, 1.442695
      %v5476 = vpow.pop %v5475
      %v5477 = vmul.f32 %v5219, 1.442695
      %v5478 = vpow.pop %v5477
      %v5479 = vmul.f32 %v5220, 1.442695
      %v5480 = vpow.pop %v5479
      %v5481 = vmul.f32 %v5221, 1.442695
      %v5482 = vpow.pop %v5481
      %v5483 = vmul.f32 %v5222, 1.442695
      %v5484 = vpow.pop %v5483
      %v5485 = vmul.f32 %v5223, 1.442695
      %v5486 = vpow.pop %v5485
      %v5487 = vmul.f32 %v5224, 1.442695
      %v5488 = vpow.pop %v5487
      %v5489 = vmul.f32 %v5225, 1.442695
      %v5490 = vpow.pop %v5489
      %v5491 = vmul.f32 %v5226, 1.442695
      %v5492 = vpow.pop %v5491
      %v5493 = vmul.f32 %v5227, 1.442695
      %v5494 = vpow.pop %v5493
      %v5495 = vmul.f32 %v5228, 1.442695
      %v5496 = vpow.pop %v5495
      %v5497 = vmul.f32 %v5229, 1.442695
      %v5498 = vpow.pop %v5497
      %v5499 = vmul.f32 %v5230, 1.442695
      %v5500 = vpow.pop %v5499
      %v5501 = vmul.f32 %v5231, 1.442695
      %v5502 = vpow.pop %v5501
      %v5503 = vmul.f32 %v5232, 1.442695
      %v5504 = vpow.pop %v5503
      %v5505 = vmul.f32 %v5233, 1.442695
      %v5506 = vpow.pop %v5505
      %v5507 = vmul.f32 %v5234, 1.442695
      %v5508 = vpow.pop %v5507
      %v5509 = vmul.f32 %v5235, 1.442695
      %v5510 = vpow.pop %v5509
      %v5511 = vmul.f32 %v5236, 1.442695
      %v5512 = vpow.pop %v5511
      %v5513 = vmul.f32 %v5237, 1.442695
      %v5514 = vpow.pop %v5513
      %v5515 = vmul.f32 %v5238, 1.442695
      %v5516 = vpow.pop %v5515
      %v5517 = vmul.f32 %v5239, 1.442695
      %v5518 = vpow.pop %v5517
      %v5519 = vmul.f32 %v5240, 1.442695
      %v5520 = vpow.pop %v5519
      %v5521 = vmul.f32 %v5241, 1.442695
      %v5522 = vpow.pop %v5521
      %v5523 = vmul.f32 %v5242, 1.442695
      %v5524 = vpow.pop %v5523
      %v5525 = vmul.f32 %v5243, 1.442695
      %v5526 = vpow.pop %v5525
      %v5527 = vmul.f32 %v5244, 1.442695
      %v5528 = vpow.pop %v5527
      %v5529 = vmul.f32 %v5245, 1.442695
      %v5530 = vpow.pop %v5529
      %v5531 = vmul.f32 %v5246, 1.442695
      %v5532 = vpow.pop %v5531
      %v5533 = vmul.f32 %v5247, 1.442695
      %v5534 = vpow.pop %v5533
      %v5535 = vmul.f32 %v5248, 1.442695
      %v5536 = vpow.pop %v5535
      %v5537 = vmul.f32 %v5249, 1.442695
      %v5538 = vpow.pop %v5537
      %v5539 = vmul.f32 %v5250, 1.442695
      %v5540 = vpow.pop %v5539
      %v5541 = vmul.f32 %v5251, 1.442695
      %v5542 = vpow.pop %v5541
      %v5543 = vmul.f32 %v5252, 1.442695
      %v5544 = vpow.pop %v5543
      %v5545 = vmul.f32 %v5253, 1.442695
      %v5546 = vpow.pop %v5545
      %v5547 = vmul.f32 %v5254, 1.442695
      %v5548 = vpow.pop %v5547
      %v5549 = vmul.f32 %v5255, 1.442695
      %v5550 = vpow.pop %v5549
      %v5551 = vmul.f32 %v5256, 1.442695
      %v5552 = vpow.pop %v5551
      %v5553 = vmul.f32 %v5257, 1.442695
      %v5554 = vpow.pop %v5553
      %v5555 = vmul.f32 %v5258, 1.442695
      %v5556 = vpow.pop %v5555
      %v5557 = vmul.f32 %v5259, 1.442695
      %v5558 = vpow.pop %v5557
      %v5559 = vmul.f32 %v5260, 1.442695
      %v5560 = vpow.pop %v5559
      %v5561 = vmul.f32 %v5261, 1.442695
      %v5562 = vpow.pop %v5561
      %v5563 = vmul.f32 %v5262, 1.442695
      %v5564 = vpow.pop %v5563
      %v5565 = vmul.f32 %v5263, 1.442695
      %v5566 = vpow.pop %v5565
      %v5567 = vmul.f32 %v5264, 1.442695
      %v5568 = vpow.pop %v5567
      %v5569 = vmul.f32 %v5265, 1.442695
      %v5570 = vpow.pop %v5569
      %v5571 = vmul.f32 %v5266, 1.442695
      %v5572 = vpow.pop %v5571
      %v5573 = vmul.f32 %v5267, 1.442695
      %v5574 = vpow.pop %v5573
      %v5575 = vmul.f32 %v5268, 1.442695
      %v5576 = vpow.pop %v5575
      %v5577 = vmul.f32 %v5269, 1.442695
      %v5578 = vpow.pop %v5577
      %v5579 = vmul.f32 %v5270, 1.442695
      %v5580 = vpow.pop %v5579
      %v5581 = vmul.f32 %v5271, 1.442695
      %v5582 = vpow.pop %v5581
      %v5583 = vmul.f32 %v5272, 1.442695
      %v5584 = vpow.pop %v5583
      %v5585 = vmul.f32 %v5273, 1.442695
      %v5586 = vpow.pop %v5585
      %v5587 = vmul.f32 %v5274, 1.442695
      %v5588 = vpow.pop %v5587
      %v5589 = vmul.f32 %v5275, 1.442695
      %v5590 = vpow.pop %v5589
      %v5591 = vmul.f32 %v5276, 1.442695
      %v5592 = vpow.pop %v5591
      %v5593 = vmul.f32 %v5277, 1.442695
      %v5594 = vpow.pop %v5593
      %v5595 = vmul.f32 %v5278, 1.442695
      %v5596 = vpow.pop %v5595
      %v5597 = vmul.f32 %v5279, 1.442695
      %v5598 = vpow.pop %v5597
      %v5599 = vmul.f32 %v5280, 1.442695
      %v5600 = vpow.pop %v5599
      %v5601 = vmul.f32 %v5281, 1.442695
      %v5602 = vpow.pop %v5601
      %v5603 = vmul.f32 %v5282, 1.442695
      %v5604 = vpow.pop %v5603
      %v5605 = vmul.f32 %v5283, 1.442695
      %v5606 = vpow.pop %v5605
      %v5607 = vmul.f32 %v5284, 1.442695
      %v5608 = vpow.pop %v5607
      %v5609 = vmul.f32 %v5285, 1.442695
      %v5610 = vpow.pop %v5609
      %v5611 = vmul.f32 %v5286, 1.442695
      %v5612 = vpow.pop %v5611
      %v5613 = vmul.f32 %v5287, 1.442695
      %v5614 = vpow.pop %v5613
      %v5615 = vmul.f32 %v5288, 1.442695
      %v5616 = vpow.pop %v5615
      %v5617 = vmul.f32 %v5289, 1.442695
      %v5618 = vpow.pop %v5617
      %v5619 = vmul.f32 %v5290, 1.442695
      %v5620 = vpow.pop %v5619
      %v5621 = vmul.f32 %v5291, 1.442695
      %v5622 = vpow.pop %v5621
      %v5623 = vmul.f32 %v5292, 1.442695
      %v5624 = vpow.pop %v5623
      %v5625 = vmul.f32 %v5293, 1.442695
      %v5626 = vpow.pop %v5625
      %v5627 = vmul.f32 %v5294, 1.442695
      %v5628 = vpow.pop %v5627
      %v5629 = vmul.f32 %v5295, 1.442695
      %v5630 = vpow.pop %v5629
      %v5631 = vmul.f32 %v5296, 1.442695
      %v5632 = vpow.pop %v5631
      %v5633 = vmul.f32 %v5297, 1.442695
      %v5634 = vpow.pop %v5633
      %v5635 = vmul.f32 %v5298, 1.442695
      %v5636 = vpow.pop %v5635
      %v5637 = vmul.f32 %v5299, 1.442695
      %v5638 = vpow.pop %v5637
      %v5639 = vmul.f32 %v5300, 1.442695
      %v5640 = vpow.pop %v5639
      %v5641 = vmul.f32 %v5301, 1.442695
      %v5642 = vpow.pop %v5641
      %v5643 = vmul.f32 %v5302, 1.442695
      %v5644 = vpow.pop %v5643
      %v5645 = vmul.f32 %v5303, 1.442695
      %v5646 = vpow.pop %v5645
      %v5647 = vmul.f32 %v5304, 1.442695
      %v5648 = vpow.pop %v5647
      %v5649 = vmul.f32 %v5305, 1.442695
      %v5650 = vpow.pop %v5649
      %v5651 = vmul.f32 %v5306, 1.442695
      %v5652 = vpow.pop %v5651
      %v5653 = vmul.f32 %v5307, 1.442695
      %v5654 = vpow.pop %v5653
      %v5655 = vmul.f32 %v5308, 1.442695
      %v5656 = vpow.pop %v5655
      %v5657 = vmul.f32 %v5309, 1.442695
      %v5658 = vpow.pop %v5657
      %v5659 = vmul.f32 %v5310, 1.442695
      %v5660 = vpow.pop %v5659
      %v5661 = vmul.f32 %v5311, 1.442695
      %v5662 = vpow.pop %v5661
      %v5663 = vmul.f32 %v5312, 1.442695
      %v5664 = vpow.pop %v5663
      %v5665 = vmul.f32 %v5313, 1.442695
      %v5666 = vpow.pop %v5665
      %v5667 = vmul.f32 %v5314, 1.442695
      %v5668 = vpow.pop %v5667
      %v5669 = vmul.f32 %v5315, 1.442695
      %v5670 = vpow.pop %v5669
      %v5671 = vmul.f32 %v5316, 1.442695
      %v5672 = vpow.pop %v5671
      %v5673 = vmul.f32 %v5317, 1.442695
      %v5674 = vpow.pop %v5673
      %v5675 = vmul.f32 %v5318, 1.442695
      %v5676 = vpow.pop %v5675
      %v5677 = vmul.f32 %v5319, 1.442695
      %v5678 = vpow.pop %v5677
      %v5679 = vmul.f32 %v5320, 1.442695
      %v5680 = vpow.pop %v5679
      %v5681 = vmul.f32 %v5321, 1.442695
      %v5682 = vpow.pop %v5681
      %v5683 = vmul.f32 %v5322, 1.442695
      %v5684 = vpow.pop %v5683
      %v5685 = vmul.f32 %v5323, 1.442695
      %v5686 = vpow.pop %v5685
      %v5687 = vmul.f32 %v5324, 1.442695
      %v5688 = vpow.pop %v5687
      %v5689 = vmul.f32 %v5325, 1.442695
      %v5690 = vpow.pop %v5689
      %v5691 = vmul.f32 %v5326, 1.442695
      %v5692 = vpow.pop %v5691
      %v5693 = vmul.f32 %v5327, 1.442695
      %v5694 = vpow.pop %v5693
      %v5695 = vmul.f32 %v5328, 1.442695
      %v5696 = vpow.pop %v5695
      %v5697 = vmul.f32 %v5329, 1.442695
      %v5698 = vpow.pop %v5697
      %v5699 = vmul.f32 %v5330, 1.442695
      %v5700 = vpow.pop %v5699
      %v5701 = vmul.f32 %v5331, 1.442695
      %v5702 = vpow.pop %v5701
      %v5703 = vmul.f32 %v5332, 1.442695
      %v5704 = vpow.pop %v5703
      %v5705 = vmul.f32 %v5333, 1.442695
      %v5706 = vpow.pop %v5705
      %v5707 = vmul.f32 %v5334, 1.442695
      %v5708 = vpow.pop %v5707
      %v5709 = vmul.f32 %v5335, 1.442695
      %v5710 = vpow.pop %v5709
      %v5711 = vmul.f32 %v5336, 1.442695
      %v5712 = vpow.pop %v5711
      %v5713 = vmul.f32 %v5337, 1.442695
      %v5714 = vpow.pop %v5713
      %v5715 = vmul.f32 %v5338, 1.442695
      %v5716 = vpow.pop %v5715
      %v5717 = vmul.f32 %v5339, 1.442695
      %v5718 = vpow.pop %v5717
      %v5719 = vmul.f32 %v5340, 1.442695
      %v5720 = vpow.pop %v5719
      %v5721 = vmul.f32 %v5341, 1.442695
      %v5722 = vpow.pop %v5721
      %v5723 = vmul.f32 %v5342, 1.442695
      %v5724 = vpow.pop %v5723
      %v5725 = vmul.f32 %v5343, 1.442695
      %v5726 = vpow.pop %v5725
      %v5727 = vmul.f32 %v5344, 1.442695
      %v5728 = vpow.pop %v5727
      %v5729 = vmul.f32 %v5142, %v3993
      %v5730 = vmul.f32 %v5144, %v3994
      %v5731 = vmul.f32 %v5146, %v3995
      %v5732 = vmul.f32 %v5148, %v3996
      %v5733 = vmul.f32 %v5150, %v3997
      %v5734 = vmul.f32 %v5152, %v3998
      %v5735 = vadd.f32 %v5346, %v5358
      %v5736 = vadd.f32 %v5735, %v5370
      %v5737 = vadd.f32 %v5736, %v5382
      %v5738 = vadd.f32 %v5737, %v5394
      %v5739 = vadd.f32 %v5738, %v5406
      %v5740 = vadd.f32 %v5739, %v5418
      %v5741 = vadd.f32 %v5740, %v5430
      %v5742 = vadd.f32 %v5741, %v5442
      %v5743 = vadd.f32 %v5742, %v5454
      %v5744 = vadd.f32 %v5743, %v5466
      %v5745 = vadd.f32 %v5744, %v5478
      %v5746 = vadd.f32 %v5745, %v5490
      %v5747 = vadd.f32 %v5746, %v5502
      %v5748 = vadd.f32 %v5747, %v5514
      %v5749 = vadd.f32 %v5748, %v5526
      %v5750 = vadd.f32 %v5749, %v5538
      %v5751 = vadd.f32 %v5750, %v5550
      %v5752 = vadd.f32 %v5751, %v5562
      %v5753 = vadd.f32 %v5752, %v5574
      %v5754 = vadd.f32 %v5753, %v5586
      %v5755 = vadd.f32 %v5754, %v5598
      %v5756 = vadd.f32 %v5755, %v5610
      %v5757 = vadd.f32 %v5756, %v5622
      %v5758 = vadd.f32 %v5757, %v5634
      %v5759 = vadd.f32 %v5758, %v5646
      %v5760 = vadd.f32 %v5759, %v5658
      %v5761 = vadd.f32 %v5760, %v5670
      %v5762 = vadd.f32 %v5761, %v5682
      %v5763 = vadd.f32 %v5762, %v5694
      %v5764 = vadd.f32 %v5763, %v5706
      %v5765 = vadd.f32 %v5764, %v5718
      %v5766 = vrot.slane %v5765, 4
      %v5767 = vadd.f32 %v5765, %v5766
      %v5768 = vrot.slane %v5767, 2
      %v5769 = vadd.f32 %v5767, %v5768
      %v5770 = vrot.slane %v5769, 1
      %v5771 = vadd.f32 %v5769, %v5770
      %v5772 = vadd.f32 %v5348, %v5360
      %v5773 = vadd.f32 %v5772, %v5372
      %v5774 = vadd.f32 %v5773, %v5384
      %v5775 = vadd.f32 %v5774, %v5396
      %v5776 = vadd.f32 %v5775, %v5408
      %v5777 = vadd.f32 %v5776, %v5420
      %v5778 = vadd.f32 %v5777, %v5432
      %v5779 = vadd.f32 %v5778, %v5444
      %v5780 = vadd.f32 %v5779, %v5456
      %v5781 = vadd.f32 %v5780, %v5468
      %v5782 = vadd.f32 %v5781, %v5480
      %v5783 = vadd.f32 %v5782, %v5492
      %v5784 = vadd.f32 %v5783, %v5504
      %v5785 = vadd.f32 %v5784, %v5516
      %v5786 = vadd.f32 %v5785, %v5528
      %v5787 = vadd.f32 %v5786, %v5540
      %v5788 = vadd.f32 %v5787, %v5552
      %v5789 = vadd.f32 %v5788, %v5564
      %v5790 = vadd.f32 %v5789, %v5576
      %v5791 = vadd.f32 %v5790, %v5588
      %v5792 = vadd.f32 %v5791, %v5600
      %v5793 = vadd.f32 %v5792, %v5612
      %v5794 = vadd.f32 %v5793, %v5624
      %v5795 = vadd.f32 %v5794, %v5636
      %v5796 = vadd.f32 %v5795, %v5648
      %v5797 = vadd.f32 %v5796, %v5660
      %v5798 = vadd.f32 %v5797, %v5672
      %v5799 = vadd.f32 %v5798, %v5684
      %v5800 = vadd.f32 %v5799, %v5696
      %v5801 = vadd.f32 %v5800, %v5708
      %v5802 = vadd.f32 %v5801, %v5720
      %v5803 = vrot.slane %v5802, 4
      %v5804 = vadd.f32 %v5802, %v5803
      %v5805 = vrot.slane %v5804, 2
      %v5806 = vadd.f32 %v5804, %v5805
      %v5807 = vrot.slane %v5806, 1
      %v5808 = vadd.f32 %v5806, %v5807
      %v5809 = vadd.f32 %v5350, %v5362
      %v5810 = vadd.f32 %v5809, %v5374
      %v5811 = vadd.f32 %v5810, %v5386
      %v5812 = vadd.f32 %v5811, %v5398
      %v5813 = vadd.f32 %v5812, %v5410
      %v5814 = vadd.f32 %v5813, %v5422
      %v5815 = vadd.f32 %v5814, %v5434
      %v5816 = vadd.f32 %v5815, %v5446
      %v5817 = vadd.f32 %v5816, %v5458
      %v5818 = vadd.f32 %v5817, %v5470
      %v5819 = vadd.f32 %v5818, %v5482
      %v5820 = vadd.f32 %v5819, %v5494
      %v5821 = vadd.f32 %v5820, %v5506
      %v5822 = vadd.f32 %v5821, %v5518
      %v5823 = vadd.f32 %v5822, %v5530
      %v5824 = vadd.f32 %v5823, %v5542
      %v5825 = vadd.f32 %v5824, %v5554
      %v5826 = vadd.f32 %v5825, %v5566
      %v5827 = vadd.f32 %v5826, %v5578
      %v5828 = vadd.f32 %v5827, %v5590
      %v5829 = vadd.f32 %v5828, %v5602
      %v5830 = vadd.f32 %v5829, %v5614
      %v5831 = vadd.f32 %v5830, %v5626
      %v5832 = vadd.f32 %v5831, %v5638
      %v5833 = vadd.f32 %v5832, %v5650
      %v5834 = vadd.f32 %v5833, %v5662
      %v5835 = vadd.f32 %v5834, %v5674
      %v5836 = vadd.f32 %v5835, %v5686
      %v5837 = vadd.f32 %v5836, %v5698
      %v5838 = vadd.f32 %v5837, %v5710
      %v5839 = vadd.f32 %v5838, %v5722
      %v5840 = vrot.slane %v5839, 4
      %v5841 = vadd.f32 %v5839, %v5840
      %v5842 = vrot.slane %v5841, 2
      %v5843 = vadd.f32 %v5841, %v5842
      %v5844 = vrot.slane %v5843, 1
      %v5845 = vadd.f32 %v5843, %v5844
      %v5846 = vadd.f32 %v5352, %v5364
      %v5847 = vadd.f32 %v5846, %v5376
      %v5848 = vadd.f32 %v5847, %v5388
      %v5849 = vadd.f32 %v5848, %v5400
      %v5850 = vadd.f32 %v5849, %v5412
      %v5851 = vadd.f32 %v5850, %v5424
      %v5852 = vadd.f32 %v5851, %v5436
      %v5853 = vadd.f32 %v5852, %v5448
      %v5854 = vadd.f32 %v5853, %v5460
      %v5855 = vadd.f32 %v5854, %v5472
      %v5856 = vadd.f32 %v5855, %v5484
      %v5857 = vadd.f32 %v5856, %v5496
      %v5858 = vadd.f32 %v5857, %v5508
      %v5859 = vadd.f32 %v5858, %v5520
      %v5860 = vadd.f32 %v5859, %v5532
      %v5861 = vadd.f32 %v5860, %v5544
      %v5862 = vadd.f32 %v5861, %v5556
      %v5863 = vadd.f32 %v5862, %v5568
      %v5864 = vadd.f32 %v5863, %v5580
      %v5865 = vadd.f32 %v5864, %v5592
      %v5866 = vadd.f32 %v5865, %v5604
      %v5867 = vadd.f32 %v5866, %v5616
      %v5868 = vadd.f32 %v5867, %v5628
      %v5869 = vadd.f32 %v5868, %v5640
      %v5870 = vadd.f32 %v5869, %v5652
      %v5871 = vadd.f32 %v5870, %v5664
      %v5872 = vadd.f32 %v5871, %v5676
      %v5873 = vadd.f32 %v5872, %v5688
      %v5874 = vadd.f32 %v5873, %v5700
      %v5875 = vadd.f32 %v5874, %v5712
      %v5876 = vadd.f32 %v5875, %v5724
      %v5877 = vrot.slane %v5876, 4
      %v5878 = vadd.f32 %v5876, %v5877
      %v5879 = vrot.slane %v5878, 2
      %v5880 = vadd.f32 %v5878, %v5879
      %v5881 = vrot.slane %v5880, 1
      %v5882 = vadd.f32 %v5880, %v5881
      %v5883 = vadd.f32 %v5354, %v5366
      %v5884 = vadd.f32 %v5883, %v5378
      %v5885 = vadd.f32 %v5884, %v5390
      %v5886 = vadd.f32 %v5885, %v5402
      %v5887 = vadd.f32 %v5886, %v5414
      %v5888 = vadd.f32 %v5887, %v5426
      %v5889 = vadd.f32 %v5888, %v5438
      %v5890 = vadd.f32 %v5889, %v5450
      %v5891 = vadd.f32 %v5890, %v5462
      %v5892 = vadd.f32 %v5891, %v5474
      %v5893 = vadd.f32 %v5892, %v5486
      %v5894 = vadd.f32 %v5893, %v5498
      %v5895 = vadd.f32 %v5894, %v5510
      %v5896 = vadd.f32 %v5895, %v5522
      %v5897 = vadd.f32 %v5896, %v5534
      %v5898 = vadd.f32 %v5897, %v5546
      %v5899 = vadd.f32 %v5898, %v5558
      %v5900 = vadd.f32 %v5899, %v5570
      %v5901 = vadd.f32 %v5900, %v5582
      %v5902 = vadd.f32 %v5901, %v5594
      %v5903 = vadd.f32 %v5902, %v5606
      %v5904 = vadd.f32 %v5903, %v5618
      %v5905 = vadd.f32 %v5904, %v5630
      %v5906 = vadd.f32 %v5905, %v5642
      %v5907 = vadd.f32 %v5906, %v5654
      %v5908 = vadd.f32 %v5907, %v5666
      %v5909 = vadd.f32 %v5908, %v5678
      %v5910 = vadd.f32 %v5909, %v5690
      %v5911 = vadd.f32 %v5910, %v5702
      %v5912 = vadd.f32 %v5911, %v5714
      %v5913 = vadd.f32 %v5912, %v5726
      %v5914 = vrot.slane %v5913, 4
      %v5915 = vadd.f32 %v5913, %v5914
      %v5916 = vrot.slane %v5915, 2
      %v5917 = vadd.f32 %v5915, %v5916
      %v5918 = vrot.slane %v5917, 1
      %v5919 = vadd.f32 %v5917, %v5918
      %v5920 = vadd.f32 %v5356, %v5368
      %v5921 = vadd.f32 %v5920, %v5380
      %v5922 = vadd.f32 %v5921, %v5392
      %v5923 = vadd.f32 %v5922, %v5404
      %v5924 = vadd.f32 %v5923, %v5416
      %v5925 = vadd.f32 %v5924, %v5428
      %v5926 = vadd.f32 %v5925, %v5440
      %v5927 = vadd.f32 %v5926, %v5452
      %v5928 = vadd.f32 %v5927, %v5464
      %v5929 = vadd.f32 %v5928, %v5476
      %v5930 = vadd.f32 %v5929, %v5488
      %v5931 = vadd.f32 %v5930, %v5500
      %v5932 = vadd.f32 %v5931, %v5512
      %v5933 = vadd.f32 %v5932, %v5524
      %v5934 = vadd.f32 %v5933, %v5536
      %v5935 = vadd.f32 %v5934, %v5548
      %v5936 = vadd.f32 %v5935, %v5560
      %v5937 = vadd.f32 %v5936, %v5572
      %v5938 = vadd.f32 %v5937, %v5584
      %v5939 = vadd.f32 %v5938, %v5596
      %v5940 = vadd.f32 %v5939, %v5608
      %v5941 = vadd.f32 %v5940, %v5620
      %v5942 = vadd.f32 %v5941, %v5632
      %v5943 = vadd.f32 %v5942, %v5644
      %v5944 = vadd.f32 %v5943, %v5656
      %v5945 = vadd.f32 %v5944, %v5668
      %v5946 = vadd.f32 %v5945, %v5680
      %v5947 = vadd.f32 %v5946, %v5692
      %v5948 = vadd.f32 %v5947, %v5704
      %v5949 = vadd.f32 %v5948, %v5716
      %v5950 = vadd.f32 %v5949, %v5728
      %v5951 = vrot.slane %v5950, 4
      %v5952 = vadd.f32 %v5950, %v5951
      %v5953 = vrot.slane %v5952, 2
      %v5954 = vadd.f32 %v5952, %v5953
      %v5955 = vrot.slane %v5954, 1
      %v5956 = vadd.f32 %v5954, %v5955
      %v5957 = vadd.f32 %v5729, %v5771
      %v5958 = vadd.f32 %v5730, %v5808
      %v5959 = vadd.f32 %v5731, %v5845
      %v5960 = vadd.f32 %v5732, %v5882
      %v5961 = vadd.f32 %v5733, %v5919
      %v5962 = vadd.f32 %v5734, %v5956
      %v5963 = vpack.c.bf16 %v5358, %v5346
      %v5964 = vpack.c.bf16 %v5360, %v5348
      %v5965 = vpack.c.bf16 %v5362, %v5350
      %v5966 = vpack.c.bf16 %v5364, %v5352
      %v5967 = vpack.c.bf16 %v5366, %v5354
      %v5968 = vpack.c.bf16 %v5368, %v5356
      %v5969 = vpack.c.bf16 %v5382, %v5370
      %v5970 = vpack.c.bf16 %v5384, %v5372
      %v5971 = vpack.c.bf16 %v5386, %v5374
      %v5972 = vpack.c.bf16 %v5388, %v5376
      %v5973 = vpack.c.bf16 %v5390, %v5378
      %v5974 = vpack.c.bf16 %v5392, %v5380
      %v5975 = vpack.c.bf16 %v5406, %v5394
      %v5976 = vpack.c.bf16 %v5408, %v5396
      %v5977 = vpack.c.bf16 %v5410, %v5398
      %v5978 = vpack.c.bf16 %v5412, %v5400
      %v5979 = vpack.c.bf16 %v5414, %v5402
      %v5980 = vpack.c.bf16 %v5416, %v5404
      %v5981 = vpack.c.bf16 %v5430, %v5418
      %v5982 = vpack.c.bf16 %v5432, %v5420
      %v5983 = vpack.c.bf16 %v5434, %v5422
      %v5984 = vpack.c.bf16 %v5436, %v5424
      %v5985 = vpack.c.bf16 %v5438, %v5426
      %v5986 = vpack.c.bf16 %v5440, %v5428
      %v5987 = vpack.c.bf16 %v5454, %v5442
      %v5988 = vpack.c.bf16 %v5456, %v5444
      %v5989 = vpack.c.bf16 %v5458, %v5446
      %v5990 = vpack.c.bf16 %v5460, %v5448
      %v5991 = vpack.c.bf16 %v5462, %v5450
      %v5992 = vpack.c.bf16 %v5464, %v5452
      %v5993 = vpack.c.bf16 %v5478, %v5466
      %v5994 = vpack.c.bf16 %v5480, %v5468
      %v5995 = vpack.c.bf16 %v5482, %v5470
      %v5996 = vpack.c.bf16 %v5484, %v5472
      %v5997 = vpack.c.bf16 %v5486, %v5474
      %v5998 = vpack.c.bf16 %v5488, %v5476
      %v5999 = vpack.c.bf16 %v5502, %v5490
      %v6000 = vpack.c.bf16 %v5504, %v5492
      %v6001 = vpack.c.bf16 %v5506, %v5494
      %v6002 = vpack.c.bf16 %v5508, %v5496
      %v6003 = vpack.c.bf16 %v5510, %v5498
      %v6004 = vpack.c.bf16 %v5512, %v5500
      %v6005 = vpack.c.bf16 %v5526, %v5514
      %v6006 = vpack.c.bf16 %v5528, %v5516
      %v6007 = vpack.c.bf16 %v5530, %v5518
      %v6008 = vpack.c.bf16 %v5532, %v5520
      %v6009 = vpack.c.bf16 %v5534, %v5522
      %v6010 = vpack.c.bf16 %v5536, %v5524
      %v6011 = vpack.c.bf16 %v5550, %v5538
      %v6012 = vpack.c.bf16 %v5552, %v5540
      %v6013 = vpack.c.bf16 %v5554, %v5542
      %v6014 = vpack.c.bf16 %v5556, %v5544
      %v6015 = vpack.c.bf16 %v5558, %v5546
      %v6016 = vpack.c.bf16 %v5560, %v5548
      %v6017 = vpack.c.bf16 %v5574, %v5562
      %v6018 = vpack.c.bf16 %v5576, %v5564
      %v6019 = vpack.c.bf16 %v5578, %v5566
      %v6020 = vpack.c.bf16 %v5580, %v5568
      %v6021 = vpack.c.bf16 %v5582, %v5570
      %v6022 = vpack.c.bf16 %v5584, %v5572
      %v6023 = vpack.c.bf16 %v5598, %v5586
      %v6024 = vpack.c.bf16 %v5600, %v5588
      %v6025 = vpack.c.bf16 %v5602, %v5590
      %v6026 = vpack.c.bf16 %v5604, %v5592
      %v6027 = vpack.c.bf16 %v5606, %v5594
      %v6028 = vpack.c.bf16 %v5608, %v5596
      %v6029 = vpack.c.bf16 %v5622, %v5610
      %v6030 = vpack.c.bf16 %v5624, %v5612
      %v6031 = vpack.c.bf16 %v5626, %v5614
      %v6032 = vpack.c.bf16 %v5628, %v5616
      %v6033 = vpack.c.bf16 %v5630, %v5618
      %v6034 = vpack.c.bf16 %v5632, %v5620
      %v6035 = vpack.c.bf16 %v5646, %v5634
      %v6036 = vpack.c.bf16 %v5648, %v5636
      %v6037 = vpack.c.bf16 %v5650, %v5638
      %v6038 = vpack.c.bf16 %v5652, %v5640
      %v6039 = vpack.c.bf16 %v5654, %v5642
      %v6040 = vpack.c.bf16 %v5656, %v5644
      %v6041 = vpack.c.bf16 %v5670, %v5658
      %v6042 = vpack.c.bf16 %v5672, %v5660
      %v6043 = vpack.c.bf16 %v5674, %v5662
      %v6044 = vpack.c.bf16 %v5676, %v5664
      %v6045 = vpack.c.bf16 %v5678, %v5666
      %v6046 = vpack.c.bf16 %v5680, %v5668
      %v6047 = vpack.c.bf16 %v5694, %v5682
      %v6048 = vpack.c.bf16 %v5696, %v5684
      %v6049 = vpack.c.bf16 %v5698, %v5686
      %v6050 = vpack.c.bf16 %v5700, %v5688
      %v6051 = vpack.c.bf16 %v5702, %v5690
      %v6052 = vpack.c.bf16 %v5704, %v5692
      %v6053 = vpack.c.bf16 %v5718, %v5706
      %v6054 = vpack.c.bf16 %v5720, %v5708
      %v6055 = vpack.c.bf16 %v5722, %v5710
      %v6056 = vpack.c.bf16 %v5724, %v5712
      %v6057 = vpack.c.bf16 %v5726, %v5714
      %v6058 = vpack.c.bf16 %v5728, %v5716
      %v6060 = vunpack.c.l.b16 %v4240
      %v6061 = vunpack.c.h.b16 %v4240
      %v6062 = vpack.c.b16 %v6060, %v6060
      %v6063 = vpack.c.b16 %v6061, %v6061
      %6066 = vmatprep.subr.bf16.mxu0 %v5964
      %6067 = vmatpush1.bf16.msra.mxu0 %v5963
      %6068 = vmatprep.subr.bf16.mxu0 %v5970
      %6069 = vmatpush1.bf16.msra.mxu0 %v5969
      %6070 = vmatprep.subr.bf16.mxu0 %v5976
      %6071 = vmatpush1.bf16.msra.mxu0 %v5975
      %6072 = vmatprep.subr.bf16.mxu0 %v5982
      %6073 = vmatpush1.bf16.msra.mxu0 %v5981
      %6074 = vmatprep.subr.bf16.mxu0 %v5988
      %6075 = vmatpush1.bf16.msra.mxu0 %v5987
      %6076 = vmatprep.subr.bf16.mxu0 %v5994
      %6077 = vmatpush1.bf16.msra.mxu0 %v5993
      %6078 = vmatprep.subr.bf16.mxu0 %v6000
      %6079 = vmatpush1.bf16.msra.mxu0 %v5999
      %6080 = vmatprep.subr.bf16.mxu0 %v6006
      %6081 = vmatpush1.bf16.msra.mxu0 %v6005
      %6082 = vmatprep.subr.bf16.mxu0 %v6012
      %6083 = vmatpush1.bf16.msra.mxu0 %v6011
      %6084 = vmatprep.subr.bf16.mxu0 %v6018
      %6085 = vmatpush1.bf16.msra.mxu0 %v6017
      %6086 = vmatprep.subr.bf16.mxu0 %v6024
      %6087 = vmatpush1.bf16.msra.mxu0 %v6023
      %6088 = vmatprep.subr.bf16.mxu0 %v6030
      %6089 = vmatpush1.bf16.msra.mxu0 %v6029
      %6090 = vmatprep.subr.bf16.mxu0 %v6036
      %6091 = vmatpush1.bf16.msra.mxu0 %v6035
      %6092 = vmatprep.subr.bf16.mxu0 %v6042
      %6093 = vmatpush1.bf16.msra.mxu0 %v6041
      %6094 = vmatprep.subr.bf16.mxu0 %v6048
      %6095 = vmatpush1.bf16.msra.mxu0 %v6047
      %6096 = vmatprep.subr.bf16.mxu0 %v6054
      %6097 = vmatpush1.bf16.msra.mxu0 %v6053
      %6098 = vmatprep.mubr.bf16.mxu0 %v6063
      %6099 = vmatmul.mubr.bf16.gmra.mrb[0].mxu0 %v6062
      %v6100 = vpop.f32.mrb[0].mxu0
      %v6101 = vadd.f32 0.0, %v6100
      %v6102 = vpop.f32.mrb[0].mxu0
      %v6103 = vadd.f32 0.0, %v6102
      %v6104 = vpop.f32.mrb[0].mxu0
      %v6105 = vpop.f32.mrb[0].mxu0
      %6106 = vdwg.mxu0
      %6107 = vmatprep.subr.bf16.mxu0 %v5966
      %6108 = vmatpush1.bf16.msra.mxu0 %v5965
      %6109 = vmatprep.subr.bf16.mxu0 %v5972
      %6110 = vmatpush1.bf16.msra.mxu0 %v5971
      %6111 = vmatprep.subr.bf16.mxu0 %v5978
      %6112 = vmatpush1.bf16.msra.mxu0 %v5977
      %6113 = vmatprep.subr.bf16.mxu0 %v5984
      %6114 = vmatpush1.bf16.msra.mxu0 %v5983
      %6115 = vmatprep.subr.bf16.mxu0 %v5990
      %6116 = vmatpush1.bf16.msra.mxu0 %v5989
      %6117 = vmatprep.subr.bf16.mxu0 %v5996
      %6118 = vmatpush1.bf16.msra.mxu0 %v5995
      %6119 = vmatprep.subr.bf16.mxu0 %v6002
      %6120 = vmatpush1.bf16.msra.mxu0 %v6001
      %6121 = vmatprep.subr.bf16.mxu0 %v6008
      %6122 = vmatpush1.bf16.msra.mxu0 %v6007
      %6123 = vmatprep.subr.bf16.mxu0 %v6014
      %6124 = vmatpush1.bf16.msra.mxu0 %v6013
      %6125 = vmatprep.subr.bf16.mxu0 %v6020
      %6126 = vmatpush1.bf16.msra.mxu0 %v6019
      %6127 = vmatprep.subr.bf16.mxu0 %v6026
      %6128 = vmatpush1.bf16.msra.mxu0 %v6025
      %6129 = vmatprep.subr.bf16.mxu0 %v6032
      %6130 = vmatpush1.bf16.msra.mxu0 %v6031
      %6131 = vmatprep.subr.bf16.mxu0 %v6038
      %6132 = vmatpush1.bf16.msra.mxu0 %v6037
      %6133 = vmatprep.subr.bf16.mxu0 %v6044
      %6134 = vmatpush1.bf16.msra.mxu0 %v6043
      %6135 = vmatprep.subr.bf16.mxu0 %v6050
      %6136 = vmatpush1.bf16.msra.mxu0 %v6049
      %6137 = vmatprep.subr.bf16.mxu0 %v6056
      %6138 = vmatpush1.bf16.msra.mxu0 %v6055
      %6139 = vmatprep.mubr.bf16.mxu0 %v6063
      %6140 = vmatmul.mubr.bf16.gmra.mrb[0].mxu0 %v6062
      %v6141 = vpop.f32.mrb[0].mxu0
      %v6142 = vadd.f32 0.0, %v6141
      %v6143 = vpop.f32.mrb[0].mxu0
      %v6144 = vadd.f32 0.0, %v6143
      %v6145 = vpop.f32.mrb[0].mxu0
      %v6146 = vpop.f32.mrb[0].mxu0
      %6147 = vdwg.mxu0
      %6148 = vmatprep.subr.bf16.mxu0 %v5968
      %6149 = vmatpush1.bf16.msra.mxu0 %v5967
      %6150 = vmatprep.subr.bf16.mxu0 %v5974
      %6151 = vmatpush1.bf16.msra.mxu0 %v5973
      %6152 = vmatprep.subr.bf16.mxu0 %v5980
      %6153 = vmatpush1.bf16.msra.mxu0 %v5979
      %6154 = vmatprep.subr.bf16.mxu0 %v5986
      %6155 = vmatpush1.bf16.msra.mxu0 %v5985
      %6156 = vmatprep.subr.bf16.mxu0 %v5992
      %6157 = vmatpush1.bf16.msra.mxu0 %v5991
      %6158 = vmatprep.subr.bf16.mxu0 %v5998
      %6159 = vmatpush1.bf16.msra.mxu0 %v5997
      %6160 = vmatprep.subr.bf16.mxu0 %v6004
      %6161 = vmatpush1.bf16.msra.mxu0 %v6003
      %6162 = vmatprep.subr.bf16.mxu0 %v6010
      %6163 = vmatpush1.bf16.msra.mxu0 %v6009
      %6164 = vmatprep.subr.bf16.mxu0 %v6016
      %6165 = vmatpush1.bf16.msra.mxu0 %v6015
      %6166 = vmatprep.subr.bf16.mxu0 %v6022
      %6167 = vmatpush1.bf16.msra.mxu0 %v6021
      %6168 = vmatprep.subr.bf16.mxu0 %v6028
      %6169 = vmatpush1.bf16.msra.mxu0 %v6027
      %6170 = vmatprep.subr.bf16.mxu0 %v6034
      %6171 = vmatpush1.bf16.msra.mxu0 %v6033
      %6172 = vmatprep.subr.bf16.mxu0 %v6040
      %6173 = vmatpush1.bf16.msra.mxu0 %v6039
      %6174 = vmatprep.subr.bf16.mxu0 %v6046
      %6175 = vmatpush1.bf16.msra.mxu0 %v6045
      %6176 = vmatprep.subr.bf16.mxu0 %v6052
      %6177 = vmatpush1.bf16.msra.mxu0 %v6051
      %6178 = vmatprep.subr.bf16.mxu0 %v6058
      %6179 = vmatpush1.bf16.msra.mxu0 %v6057
      %6180 = vmatprep.mubr.bf16.mxu0 %v6063
      %6181 = vmatmul.mubr.bf16.gmra.mrb[0].mxu0 %v6062
      %v6182 = vpop.f32.mrb[0].mxu0
      %v6183 = vadd.f32 0.0, %v6182
      %v6184 = vpop.f32.mrb[0].mxu0
      %v6185 = vadd.f32 0.0, %v6184
      %v6186 = vpop.f32.mrb[0].mxu0
      %v6187 = vpop.f32.mrb[0].mxu0
      %6188 = vdwg.mxu0
      %v6189 = vmul.f32 %v5142, %v4231
      %v6190 = vmul.f32 %v5144, %v4232
      %v6191 = vmul.f32 %v5146, %v4233
      %v6192 = vmul.f32 %v5148, %v4234
      %v6193 = vmul.f32 %v5150, %v4235
      %v6194 = vmul.f32 %v5152, %v4236
      %v6195 = vadd.f32 %v6189, %v6101
      %v6196 = vadd.f32 %v6190, %v6103
      %v6197 = vadd.f32 %v6191, %v6142
      %v6198 = vadd.f32 %v6192, %v6144
      %v6199 = vadd.f32 %v6193, %v6183
      %v6200 = vadd.f32 %v6194, %v6185
      %s6201 = scalar_lea.vmem %s265, 24
      %v6202 = vld [vmem:[%s6201] sm:$0xff]
      %s6203 = scalar_lea.vmem %s270, 24
      %v6204 = vld [vmem:[%s6203] sm:$0xff]
      %v6206 = vunpack.c.l.b16 %v6202
      %v6207 = vunpack.c.h.b16 %v6202
      %v6208 = vpack.c.b16 %v6206, %v6206
      %v6209 = vpack.c.b16 %v6207, %v6207
      %6212 = vxpose.xlu0.c.b16.start [1/8] %v6208, 128
      %6213 = vxpose.xlu0.c.b16.cont [2/8] 0, 128
      %6214 = vxpose.xlu0.c.b16.cont [3/8] 0, 128
      %6215 = vxpose.xlu0.c.b16.cont [4/8] 0, 128
      %6216 = vxpose.xlu0.c.b16.cont [5/8] 0, 128
      %6217 = vxpose.xlu0.c.b16.cont [6/8] 0, 128
      %6218 = vxpose.xlu0.c.b16.cont [7/8] 0, 128
      %6219 = vxpose.xlu0.c.b16.end [8/8] 0, 128
      %v6220 = vpop.trf.xlu0
      %v6221 = vpop.trf.xlu0
      %v6222 = vpop.trf.xlu0
      %v6223 = vpop.trf.xlu0
      %v6224 = vpop.trf.xlu0
      %v6225 = vpop.trf.xlu0
      %v6226 = vpop.trf.xlu0
      %v6227 = vpop.trf.xlu0
      %6228 = vxpose.xlu0.c.b16.start [1/8] %v6209, 128
      %6229 = vxpose.xlu0.c.b16.cont [2/8] 0, 128
      %6230 = vxpose.xlu0.c.b16.cont [3/8] 0, 128
      %6231 = vxpose.xlu0.c.b16.cont [4/8] 0, 128
      %6232 = vxpose.xlu0.c.b16.cont [5/8] 0, 128
      %6233 = vxpose.xlu0.c.b16.cont [6/8] 0, 128
      %6234 = vxpose.xlu0.c.b16.cont [7/8] 0, 128
      %6235 = vxpose.xlu0.c.b16.end [8/8] 0, 128
      %v6236 = vpop.trf.xlu0
      %v6237 = vpop.trf.xlu0
      %v6238 = vpop.trf.xlu0
      %v6239 = vpop.trf.xlu0
      %v6240 = vpop.trf.xlu0
      %v6241 = vpop.trf.xlu0
      %v6242 = vpop.trf.xlu0
      %v6243 = vpop.trf.xlu0
      %v6245 = vsel %vm344, %v6220, 0
      %v6248 = vsel %vm344, %v6221, 0
      %v6251 = vsel %vm344, %v6222, 0
      %v6254 = vsel %vm344, %v6223, 0
      %v6257 = vsel %vm344, %v6224, 0
      %v6260 = vsel %vm344, %v6225, 0
      %v6263 = vsel %vm344, %v6226, 0
      %v6266 = vsel %vm344, %v6227, 0
      %v6269 = vsel %vm344, %v6236, 0
      %v6272 = vsel %vm344, %v6237, 0
      %v6275 = vsel %vm344, %v6238, 0
      %v6278 = vsel %vm344, %v6239, 0
      %v6281 = vsel %vm344, %v6240, 0
      %v6284 = vsel %vm344, %v6241, 0
      %v6287 = vsel %vm344, %v6242, 0
      %v6290 = vsel %vm344, %v6243, 0
      %6292 = vmatprep.subr.bf16.mxu0 %v398
      %6293 = vmatpush1.bf16.msra.mxu0 %v395
      %6294 = vmatprep.subr.bf16.mxu0 0
      %6295 = vmatpush1.bf16.msra.mxu0 0
      %6296 = vmatprep.subr.bf16.mxu0 0
      %6297 = vmatpush1.bf16.msra.mxu0 0
      %6298 = vmatprep.subr.bf16.mxu0 0
      %6299 = vmatpush1.bf16.msra.mxu0 0
      %6300 = vmatprep.subr.bf16.mxu0 0
      %6301 = vmatpush1.bf16.msra.mxu0 0
      %6302 = vmatprep.subr.bf16.mxu0 0
      %6303 = vmatpush1.bf16.msra.mxu0 0
      %6304 = vmatprep.subr.bf16.mxu0 0
      %6305 = vmatpush1.bf16.msra.mxu0 0
      %6306 = vmatprep.subr.bf16.mxu0 0
      %6307 = vmatpush1.bf16.msra.mxu0 0
      %6308 = vmatprep.subr.bf16.mxu0 0
      %6309 = vmatpush1.bf16.msra.mxu0 0
      %6310 = vmatprep.subr.bf16.mxu0 0
      %6311 = vmatpush1.bf16.msra.mxu0 0
      %6312 = vmatprep.subr.bf16.mxu0 0
      %6313 = vmatpush1.bf16.msra.mxu0 0
      %6314 = vmatprep.subr.bf16.mxu0 0
      %6315 = vmatpush1.bf16.msra.mxu0 0
      %6316 = vmatprep.subr.bf16.mxu0 0
      %6317 = vmatpush1.bf16.msra.mxu0 0
      %6318 = vmatprep.subr.bf16.mxu0 0
      %6319 = vmatpush1.bf16.msra.mxu0 0
      %6320 = vmatprep.subr.bf16.mxu0 0
      %6321 = vmatpush1.bf16.msra.mxu0 0
      %6322 = vmatprep.subr.bf16.mxu0 0
      %6323 = vmatpush1.bf16.msra.mxu0 0
      %6324 = vmatprep.mubr.bf16.mxu0 0
      %6325 = vmatmul.mubr.bf16.gmra.mrb[0].mxu0 %v6245
      %v6326 = vpop.f32.mrb[0].mxu0
      %v6327 = vadd.f32 0.0, %v6326
      %v6328 = vpop.f32.mrb[0].mxu0
      %v6329 = vadd.f32 0.0, %v6328
      %v6330 = vpop.f32.mrb[0].mxu0
      %v6331 = vadd.f32 0.0, %v6330
      %v6332 = vpop.f32.mrb[0].mxu0
      %v6333 = vadd.f32 0.0, %v6332
      %6334 = vmatprep.mubr.bf16.mxu0 0
      %6335 = vmatmul.mubr.bf16.gmra.mrb[0].mxu0 %v6248
      %v6336 = vpop.f32.mrb[0].mxu0
      %v6337 = vadd.f32 0.0, %v6336
      %v6338 = vpop.f32.mrb[0].mxu0
      %v6339 = vadd.f32 0.0, %v6338
      %v6340 = vpop.f32.mrb[0].mxu0
      %v6341 = vadd.f32 0.0, %v6340
      %v6342 = vpop.f32.mrb[0].mxu0
      %v6343 = vadd.f32 0.0, %v6342
      %6344 = vmatprep.mubr.bf16.mxu0 0
      %6345 = vmatmul.mubr.bf16.gmra.mrb[0].mxu0 %v6251
      %v6346 = vpop.f32.mrb[0].mxu0
      %v6347 = vadd.f32 0.0, %v6346
      %v6348 = vpop.f32.mrb[0].mxu0
      %v6349 = vadd.f32 0.0, %v6348
      %v6350 = vpop.f32.mrb[0].mxu0
      %v6351 = vadd.f32 0.0, %v6350
      %v6352 = vpop.f32.mrb[0].mxu0
      %v6353 = vadd.f32 0.0, %v6352
      %6354 = vmatprep.mubr.bf16.mxu0 0
      %6355 = vmatmul.mubr.bf16.gmra.mrb[0].mxu0 %v6254
      %v6356 = vpop.f32.mrb[0].mxu0
      %v6357 = vadd.f32 0.0, %v6356
      %v6358 = vpop.f32.mrb[0].mxu0
      %v6359 = vadd.f32 0.0, %v6358
      %v6360 = vpop.f32.mrb[0].mxu0
      %v6361 = vadd.f32 0.0, %v6360
      %v6362 = vpop.f32.mrb[0].mxu0
      %v6363 = vadd.f32 0.0, %v6362
      %6364 = vmatprep.mubr.bf16.mxu0 0
      %6365 = vmatmul.mubr.bf16.gmra.mrb[0].mxu0 %v6257
      %v6366 = vpop.f32.mrb[0].mxu0
      %v6367 = vadd.f32 0.0, %v6366
      %v6368 = vpop.f32.mrb[0].mxu0
      %v6369 = vadd.f32 0.0, %v6368
      %v6370 = vpop.f32.mrb[0].mxu0
      %v6371 = vadd.f32 0.0, %v6370
      %v6372 = vpop.f32.mrb[0].mxu0
      %v6373 = vadd.f32 0.0, %v6372
      %6374 = vmatprep.mubr.bf16.mxu0 0
      %6375 = vmatmul.mubr.bf16.gmra.mrb[0].mxu0 %v6260
      %v6376 = vpop.f32.mrb[0].mxu0
      %v6377 = vadd.f32 0.0, %v6376
      %v6378 = vpop.f32.mrb[0].mxu0
      %v6379 = vadd.f32 0.0, %v6378
      %v6380 = vpop.f32.mrb[0].mxu0
      %v6381 = vadd.f32 0.0, %v6380
      %v6382 = vpop.f32.mrb[0].mxu0
      %v6383 = vadd.f32 0.0, %v6382
      %6384 = vmatprep.mubr.bf16.mxu0 0
      %6385 = vmatmul.mubr.bf16.gmra.mrb[0].mxu0 %v6263
      %v6386 = vpop.f32.mrb[0].mxu0
      %v6387 = vadd.f32 0.0, %v6386
      %v6388 = vpop.f32.mrb[0].mxu0
      %v6389 = vadd.f32 0.0, %v6388
      %v6390 = vpop.f32.mrb[0].mxu0
      %v6391 = vadd.f32 0.0, %v6390
      %v6392 = vpop.f32.mrb[0].mxu0
      %v6393 = vadd.f32 0.0, %v6392
      %6394 = vmatprep.mubr.bf16.mxu0 0
      %6395 = vmatmul.mubr.bf16.gmra.mrb[0].mxu0 %v6266
      %v6396 = vpop.f32.mrb[0].mxu0
      %v6397 = vadd.f32 0.0, %v6396
      %v6398 = vpop.f32.mrb[0].mxu0
      %v6399 = vadd.f32 0.0, %v6398
      %v6400 = vpop.f32.mrb[0].mxu0
      %v6401 = vadd.f32 0.0, %v6400
      %v6402 = vpop.f32.mrb[0].mxu0
      %v6403 = vadd.f32 0.0, %v6402
      %6404 = vmatprep.mubr.bf16.mxu0 0
      %6405 = vmatmul.mubr.bf16.gmra.mrb[0].mxu0 %v6269
      %v6406 = vpop.f32.mrb[0].mxu0
      %v6407 = vadd.f32 0.0, %v6406
      %v6408 = vpop.f32.mrb[0].mxu0
      %v6409 = vadd.f32 0.0, %v6408
      %v6410 = vpop.f32.mrb[0].mxu0
      %v6411 = vadd.f32 0.0, %v6410
      %v6412 = vpop.f32.mrb[0].mxu0
      %v6413 = vadd.f32 0.0, %v6412
      %6414 = vmatprep.mubr.bf16.mxu0 0
      %6415 = vmatmul.mubr.bf16.gmra.mrb[0].mxu0 %v6272
      %v6416 = vpop.f32.mrb[0].mxu0
      %v6417 = vadd.f32 0.0, %v6416
      %v6418 = vpop.f32.mrb[0].mxu0
      %v6419 = vadd.f32 0.0, %v6418
      %v6420 = vpop.f32.mrb[0].mxu0
      %v6421 = vadd.f32 0.0, %v6420
      %v6422 = vpop.f32.mrb[0].mxu0
      %v6423 = vadd.f32 0.0, %v6422
      %6424 = vmatprep.mubr.bf16.mxu0 0
      %6425 = vmatmul.mubr.bf16.gmra.mrb[0].mxu0 %v6275
      %v6426 = vpop.f32.mrb[0].mxu0
      %v6427 = vadd.f32 0.0, %v6426
      %v6428 = vpop.f32.mrb[0].mxu0
      %v6429 = vadd.f32 0.0, %v6428
      %v6430 = vpop.f32.mrb[0].mxu0
      %v6431 = vadd.f32 0.0, %v6430
      %v6432 = vpop.f32.mrb[0].mxu0
      %v6433 = vadd.f32 0.0, %v6432
      %6434 = vmatprep.mubr.bf16.mxu0 0
      %6435 = vmatmul.mubr.bf16.gmra.mrb[0].mxu0 %v6278
      %v6436 = vpop.f32.mrb[0].mxu0
      %v6437 = vadd.f32 0.0, %v6436
      %v6438 = vpop.f32.mrb[0].mxu0
      %v6439 = vadd.f32 0.0, %v6438
      %v6440 = vpop.f32.mrb[0].mxu0
      %v6441 = vadd.f32 0.0, %v6440
      %v6442 = vpop.f32.mrb[0].mxu0
      %v6443 = vadd.f32 0.0, %v6442
      %6444 = vmatprep.mubr.bf16.mxu0 0
      %6445 = vmatmul.mubr.bf16.gmra.mrb[0].mxu0 %v6281
      %v6446 = vpop.f32.mrb[0].mxu0
      %v6447 = vadd.f32 0.0, %v6446
      %v6448 = vpop.f32.mrb[0].mxu0
      %v6449 = vadd.f32 0.0, %v6448
      %v6450 = vpop.f32.mrb[0].mxu0
      %v6451 = vadd.f32 0.0, %v6450
      %v6452 = vpop.f32.mrb[0].mxu0
      %v6453 = vadd.f32 0.0, %v6452
      %6454 = vmatprep.mubr.bf16.mxu0 0
      %6455 = vmatmul.mubr.bf16.gmra.mrb[0].mxu0 %v6284
      %v6456 = vpop.f32.mrb[0].mxu0
      %v6457 = vadd.f32 0.0, %v6456
      %v6458 = vpop.f32.mrb[0].mxu0
      %v6459 = vadd.f32 0.0, %v6458
      %v6460 = vpop.f32.mrb[0].mxu0
      %v6461 = vadd.f32 0.0, %v6460
      %v6462 = vpop.f32.mrb[0].mxu0
      %v6463 = vadd.f32 0.0, %v6462
      %6464 = vmatprep.mubr.bf16.mxu0 0
      %6465 = vmatmul.mubr.bf16.gmra.mrb[0].mxu0 %v6287
      %v6466 = vpop.f32.mrb[0].mxu0
      %v6467 = vadd.f32 0.0, %v6466
      %v6468 = vpop.f32.mrb[0].mxu0
      %v6469 = vadd.f32 0.0, %v6468
      %v6470 = vpop.f32.mrb[0].mxu0
      %v6471 = vadd.f32 0.0, %v6470
      %v6472 = vpop.f32.mrb[0].mxu0
      %v6473 = vadd.f32 0.0, %v6472
      %6474 = vmatprep.mubr.bf16.mxu0 0
      %6475 = vmatmul.mubr.bf16.gmra.mrb[0].mxu0 %v6290
      %v6476 = vpop.f32.mrb[0].mxu0
      %v6477 = vadd.f32 0.0, %v6476
      %v6478 = vpop.f32.mrb[0].mxu0
      %v6479 = vadd.f32 0.0, %v6478
      %v6480 = vpop.f32.mrb[0].mxu0
      %v6481 = vadd.f32 0.0, %v6480
      %v6482 = vpop.f32.mrb[0].mxu0
      %v6483 = vadd.f32 0.0, %v6482
      %6484 = vdwg.mxu0
      %6485 = vmatprep.subr.bf16.mxu0 %v404
      %6486 = vmatpush1.bf16.msra.mxu0 %v401
      %6487 = vmatprep.subr.bf16.mxu0 0
      %6488 = vmatpush1.bf16.msra.mxu0 0
      %6489 = vmatprep.subr.bf16.mxu0 0
      %6490 = vmatpush1.bf16.msra.mxu0 0
      %6491 = vmatprep.subr.bf16.mxu0 0
      %6492 = vmatpush1.bf16.msra.mxu0 0
      %6493 = vmatprep.subr.bf16.mxu0 0
      %6494 = vmatpush1.bf16.msra.mxu0 0
      %6495 = vmatprep.subr.bf16.mxu0 0
      %6496 = vmatpush1.bf16.msra.mxu0 0
      %6497 = vmatprep.subr.bf16.mxu0 0
      %6498 = vmatpush1.bf16.msra.mxu0 0
      %6499 = vmatprep.subr.bf16.mxu0 0
      %6500 = vmatpush1.bf16.msra.mxu0 0
      %6501 = vmatprep.subr.bf16.mxu0 0
      %6502 = vmatpush1.bf16.msra.mxu0 0
      %6503 = vmatprep.subr.bf16.mxu0 0
      %6504 = vmatpush1.bf16.msra.mxu0 0
      %6505 = vmatprep.subr.bf16.mxu0 0
      %6506 = vmatpush1.bf16.msra.mxu0 0
      %6507 = vmatprep.subr.bf16.mxu0 0
      %6508 = vmatpush1.bf16.msra.mxu0 0
      %6509 = vmatprep.subr.bf16.mxu0 0
      %6510 = vmatpush1.bf16.msra.mxu0 0
      %6511 = vmatprep.subr.bf16.mxu0 0
      %6512 = vmatpush1.bf16.msra.mxu0 0
      %6513 = vmatprep.subr.bf16.mxu0 0
      %6514 = vmatpush1.bf16.msra.mxu0 0
      %6515 = vmatprep.subr.bf16.mxu0 0
      %6516 = vmatpush1.bf16.msra.mxu0 0
      %6517 = vmatprep.mubr.bf16.mxu0 0
      %6518 = vmatmul.mubr.bf16.gmra.mrb[0].mxu0 %v6245
      %v6519 = vpop.f32.mrb[0].mxu0
      %v6520 = vadd.f32 0.0, %v6519
      %v6521 = vpop.f32.mrb[0].mxu0
      %v6522 = vadd.f32 0.0, %v6521
      %v6523 = vpop.f32.mrb[0].mxu0
      %v6524 = vadd.f32 0.0, %v6523
      %v6525 = vpop.f32.mrb[0].mxu0
      %v6526 = vadd.f32 0.0, %v6525
      %6527 = vmatprep.mubr.bf16.mxu0 0
      %6528 = vmatmul.mubr.bf16.gmra.mrb[0].mxu0 %v6248
      %v6529 = vpop.f32.mrb[0].mxu0
      %v6530 = vadd.f32 0.0, %v6529
      %v6531 = vpop.f32.mrb[0].mxu0
      %v6532 = vadd.f32 0.0, %v6531
      %v6533 = vpop.f32.mrb[0].mxu0
      %v6534 = vadd.f32 0.0, %v6533
      %v6535 = vpop.f32.mrb[0].mxu0
      %v6536 = vadd.f32 0.0, %v6535
      %6537 = vmatprep.mubr.bf16.mxu0 0
      %6538 = vmatmul.mubr.bf16.gmra.mrb[0].mxu0 %v6251
      %v6539 = vpop.f32.mrb[0].mxu0
      %v6540 = vadd.f32 0.0, %v6539
      %v6541 = vpop.f32.mrb[0].mxu0
      %v6542 = vadd.f32 0.0, %v6541
      %v6543 = vpop.f32.mrb[0].mxu0
      %v6544 = vadd.f32 0.0, %v6543
      %v6545 = vpop.f32.mrb[0].mxu0
      %v6546 = vadd.f32 0.0, %v6545
      %6547 = vmatprep.mubr.bf16.mxu0 0
      %6548 = vmatmul.mubr.bf16.gmra.mrb[0].mxu0 %v6254
      %v6549 = vpop.f32.mrb[0].mxu0
      %v6550 = vadd.f32 0.0, %v6549
      %v6551 = vpop.f32.mrb[0].mxu0
      %v6552 = vadd.f32 0.0, %v6551
      %v6553 = vpop.f32.mrb[0].mxu0
      %v6554 = vadd.f32 0.0, %v6553
      %v6555 = vpop.f32.mrb[0].mxu0
      %v6556 = vadd.f32 0.0, %v6555
      %6557 = vmatprep.mubr.bf16.mxu0 0
      %6558 = vmatmul.mubr.bf16.gmra.mrb[0].mxu0 %v6257
      %v6559 = vpop.f32.mrb[0].mxu0
      %v6560 = vadd.f32 0.0, %v6559
      %v6561 = vpop.f32.mrb[0].mxu0
      %v6562 = vadd.f32 0.0, %v6561
      %v6563 = vpop.f32.mrb[0].mxu0
      %v6564 = vadd.f32 0.0, %v6563
      %v6565 = vpop.f32.mrb[0].mxu0
      %v6566 = vadd.f32 0.0, %v6565
      %6567 = vmatprep.mubr.bf16.mxu0 0
      %6568 = vmatmul.mubr.bf16.gmra.mrb[0].mxu0 %v6260
      %v6569 = vpop.f32.mrb[0].mxu0
      %v6570 = vadd.f32 0.0, %v6569
      %v6571 = vpop.f32.mrb[0].mxu0
      %v6572 = vadd.f32 0.0, %v6571
      %v6573 = vpop.f32.mrb[0].mxu0
      %v6574 = vadd.f32 0.0, %v6573
      %v6575 = vpop.f32.mrb[0].mxu0
      %v6576 = vadd.f32 0.0, %v6575
      %6577 = vmatprep.mubr.bf16.mxu0 0
      %6578 = vmatmul.mubr.bf16.gmra.mrb[0].mxu0 %v6263
      %v6579 = vpop.f32.mrb[0].mxu0
      %v6580 = vadd.f32 0.0, %v6579
      %v6581 = vpop.f32.mrb[0].mxu0
      %v6582 = vadd.f32 0.0, %v6581
      %v6583 = vpop.f32.mrb[0].mxu0
      %v6584 = vadd.f32 0.0, %v6583
      %v6585 = vpop.f32.mrb[0].mxu0
      %v6586 = vadd.f32 0.0, %v6585
      %6587 = vmatprep.mubr.bf16.mxu0 0
      %6588 = vmatmul.mubr.bf16.gmra.mrb[0].mxu0 %v6266
      %v6589 = vpop.f32.mrb[0].mxu0
      %v6590 = vadd.f32 0.0, %v6589
      %v6591 = vpop.f32.mrb[0].mxu0
      %v6592 = vadd.f32 0.0, %v6591
      %v6593 = vpop.f32.mrb[0].mxu0
      %v6594 = vadd.f32 0.0, %v6593
      %v6595 = vpop.f32.mrb[0].mxu0
      %v6596 = vadd.f32 0.0, %v6595
      %6597 = vmatprep.mubr.bf16.mxu0 0
      %6598 = vmatmul.mubr.bf16.gmra.mrb[0].mxu0 %v6269
      %v6599 = vpop.f32.mrb[0].mxu0
      %v6600 = vadd.f32 0.0, %v6599
      %v6601 = vpop.f32.mrb[0].mxu0
      %v6602 = vadd.f32 0.0, %v6601
      %v6603 = vpop.f32.mrb[0].mxu0
      %v6604 = vadd.f32 0.0, %v6603
      %v6605 = vpop.f32.mrb[0].mxu0
      %v6606 = vadd.f32 0.0, %v6605
      %6607 = vmatprep.mubr.bf16.mxu0 0
      %6608 = vmatmul.mubr.bf16.gmra.mrb[0].mxu0 %v6272
      %v6609 = vpop.f32.mrb[0].mxu0
      %v6610 = vadd.f32 0.0, %v6609
      %v6611 = vpop.f32.mrb[0].mxu0
      %v6612 = vadd.f32 0.0, %v6611
      %v6613 = vpop.f32.mrb[0].mxu0
      %v6614 = vadd.f32 0.0, %v6613
      %v6615 = vpop.f32.mrb[0].mxu0
      %v6616 = vadd.f32 0.0, %v6615
      %6617 = vmatprep.mubr.bf16.mxu0 0
      %6618 = vmatmul.mubr.bf16.gmra.mrb[0].mxu0 %v6275
      %v6619 = vpop.f32.mrb[0].mxu0
      %v6620 = vadd.f32 0.0, %v6619
      %v6621 = vpop.f32.mrb[0].mxu0
      %v6622 = vadd.f32 0.0, %v6621
      %v6623 = vpop.f32.mrb[0].mxu0
      %v6624 = vadd.f32 0.0, %v6623
      %v6625 = vpop.f32.mrb[0].mxu0
      %v6626 = vadd.f32 0.0, %v6625
      %6627 = vmatprep.mubr.bf16.mxu0 0
      %6628 = vmatmul.mubr.bf16.gmra.mrb[0].mxu0 %v6278
      %v6629 = vpop.f32.mrb[0].mxu0
      %v6630 = vadd.f32 0.0, %v6629
      %v6631 = vpop.f32.mrb[0].mxu0
      %v6632 = vadd.f32 0.0, %v6631
      %v6633 = vpop.f32.mrb[0].mxu0
      %v6634 = vadd.f32 0.0, %v6633
      %v6635 = vpop.f32.mrb[0].mxu0
      %v6636 = vadd.f32 0.0, %v6635
      %6637 = vmatprep.mubr.bf16.mxu0 0
      %6638 = vmatmul.mubr.bf16.gmra.mrb[0].mxu0 %v6281
      %v6639 = vpop.f32.mrb[0].mxu0
      %v6640 = vadd.f32 0.0, %v6639
      %v6641 = vpop.f32.mrb[0].mxu0
      %v6642 = vadd.f32 0.0, %v6641
      %v6643 = vpop.f32.mrb[0].mxu0
      %v6644 = vadd.f32 0.0, %v6643
      %v6645 = vpop.f32.mrb[0].mxu0
      %v6646 = vadd.f32 0.0, %v6645
      %6647 = vmatprep.mubr.bf16.mxu0 0
      %6648 = vmatmul.mubr.bf16.gmra.mrb[0].mxu0 %v6284
      %v6649 = vpop.f32.mrb[0].mxu0
      %v6650 = vadd.f32 0.0, %v6649
      %v6651 = vpop.f32.mrb[0].mxu0
      %v6652 = vadd.f32 0.0, %v6651
      %v6653 = vpop.f32.mrb[0].mxu0
      %v6654 = vadd.f32 0.0, %v6653
      %v6655 = vpop.f32.mrb[0].mxu0
      %v6656 = vadd.f32 0.0, %v6655
      %6657 = vmatprep.mubr.bf16.mxu0 0
      %6658 = vmatmul.mubr.bf16.gmra.mrb[0].mxu0 %v6287
      %v6659 = vpop.f32.mrb[0].mxu0
      %v6660 = vadd.f32 0.0, %v6659
      %v6661 = vpop.f32.mrb[0].mxu0
      %v6662 = vadd.f32 0.0, %v6661
      %v6663 = vpop.f32.mrb[0].mxu0
      %v6664 = vadd.f32 0.0, %v6663
      %v6665 = vpop.f32.mrb[0].mxu0
      %v6666 = vadd.f32 0.0, %v6665
      %6667 = vmatprep.mubr.bf16.mxu0 0
      %6668 = vmatmul.mubr.bf16.gmra.mrb[0].mxu0 %v6290
      %v6669 = vpop.f32.mrb[0].mxu0
      %v6670 = vadd.f32 0.0, %v6669
      %v6671 = vpop.f32.mrb[0].mxu0
      %v6672 = vadd.f32 0.0, %v6671
      %v6673 = vpop.f32.mrb[0].mxu0
      %v6674 = vadd.f32 0.0, %v6673
      %v6675 = vpop.f32.mrb[0].mxu0
      %v6676 = vadd.f32 0.0, %v6675
      %6677 = vdwg.mxu0
      %6678 = vmatprep.subr.bf16.mxu0 %v410
      %6679 = vmatpush1.bf16.msra.mxu0 %v407
      %6680 = vmatprep.subr.bf16.mxu0 0
      %6681 = vmatpush1.bf16.msra.mxu0 0
      %6682 = vmatprep.subr.bf16.mxu0 0
      %6683 = vmatpush1.bf16.msra.mxu0 0
      %6684 = vmatprep.subr.bf16.mxu0 0
      %6685 = vmatpush1.bf16.msra.mxu0 0
      %6686 = vmatprep.subr.bf16.mxu0 0
      %6687 = vmatpush1.bf16.msra.mxu0 0
      %6688 = vmatprep.subr.bf16.mxu0 0
      %6689 = vmatpush1.bf16.msra.mxu0 0
      %6690 = vmatprep.subr.bf16.mxu0 0
      %6691 = vmatpush1.bf16.msra.mxu0 0
      %6692 = vmatprep.subr.bf16.mxu0 0
      %6693 = vmatpush1.bf16.msra.mxu0 0
      %6694 = vmatprep.subr.bf16.mxu0 0
      %6695 = vmatpush1.bf16.msra.mxu0 0
      %6696 = vmatprep.subr.bf16.mxu0 0
      %6697 = vmatpush1.bf16.msra.mxu0 0
      %6698 = vmatprep.subr.bf16.mxu0 0
      %6699 = vmatpush1.bf16.msra.mxu0 0
      %6700 = vmatprep.subr.bf16.mxu0 0
      %6701 = vmatpush1.bf16.msra.mxu0 0
      %6702 = vmatprep.subr.bf16.mxu0 0
      %6703 = vmatpush1.bf16.msra.mxu0 0
      %6704 = vmatprep.subr.bf16.mxu0 0
      %6705 = vmatpush1.bf16.msra.mxu0 0
      %6706 = vmatprep.subr.bf16.mxu0 0
      %6707 = vmatpush1.bf16.msra.mxu0 0
      %6708 = vmatprep.subr.bf16.mxu0 0
      %6709 = vmatpush1.bf16.msra.mxu0 0
      %6710 = vmatprep.mubr.bf16.mxu0 0
      %6711 = vmatmul.mubr.bf16.gmra.mrb[0].mxu0 %v6245
      %v6712 = vpop.f32.mrb[0].mxu0
      %v6713 = vadd.f32 0.0, %v6712
      %v6714 = vpop.f32.mrb[0].mxu0
      %v6715 = vadd.f32 0.0, %v6714
      %v6716 = vpop.f32.mrb[0].mxu0
      %v6717 = vadd.f32 0.0, %v6716
      %v6718 = vpop.f32.mrb[0].mxu0
      %v6719 = vadd.f32 0.0, %v6718
      %6720 = vmatprep.mubr.bf16.mxu0 0
      %6721 = vmatmul.mubr.bf16.gmra.mrb[0].mxu0 %v6248
      %v6722 = vpop.f32.mrb[0].mxu0
      %v6723 = vadd.f32 0.0, %v6722
      %v6724 = vpop.f32.mrb[0].mxu0
      %v6725 = vadd.f32 0.0, %v6724
      %v6726 = vpop.f32.mrb[0].mxu0
      %v6727 = vadd.f32 0.0, %v6726
      %v6728 = vpop.f32.mrb[0].mxu0
      %v6729 = vadd.f32 0.0, %v6728
      %6730 = vmatprep.mubr.bf16.mxu0 0
      %6731 = vmatmul.mubr.bf16.gmra.mrb[0].mxu0 %v6251
      %v6732 = vpop.f32.mrb[0].mxu0
      %v6733 = vadd.f32 0.0, %v6732
      %v6734 = vpop.f32.mrb[0].mxu0
      %v6735 = vadd.f32 0.0, %v6734
      %v6736 = vpop.f32.mrb[0].mxu0
      %v6737 = vadd.f32 0.0, %v6736
      %v6738 = vpop.f32.mrb[0].mxu0
      %v6739 = vadd.f32 0.0, %v6738
      %6740 = vmatprep.mubr.bf16.mxu0 0
      %6741 = vmatmul.mubr.bf16.gmra.mrb[0].mxu0 %v6254
      %v6742 = vpop.f32.mrb[0].mxu0
      %v6743 = vadd.f32 0.0, %v6742
      %v6744 = vpop.f32.mrb[0].mxu0
      %v6745 = vadd.f32 0.0, %v6744
      %v6746 = vpop.f32.mrb[0].mxu0
      %v6747 = vadd.f32 0.0, %v6746
      %v6748 = vpop.f32.mrb[0].mxu0
      %v6749 = vadd.f32 0.0, %v6748
      %6750 = vmatprep.mubr.bf16.mxu0 0
      %6751 = vmatmul.mubr.bf16.gmra.mrb[0].mxu0 %v6257
      %v6752 = vpop.f32.mrb[0].mxu0
      %v6753 = vadd.f32 0.0, %v6752
      %v6754 = vpop.f32.mrb[0].mxu0
      %v6755 = vadd.f32 0.0, %v6754
      %v6756 = vpop.f32.mrb[0].mxu0
      %v6757 = vadd.f32 0.0, %v6756
      %v6758 = vpop.f32.mrb[0].mxu0
      %v6759 = vadd.f32 0.0, %v6758
      %6760 = vmatprep.mubr.bf16.mxu0 0
      %6761 = vmatmul.mubr.bf16.gmra.mrb[0].mxu0 %v6260
      %v6762 = vpop.f32.mrb[0].mxu0
      %v6763 = vadd.f32 0.0, %v6762
      %v6764 = vpop.f32.mrb[0].mxu0
      %v6765 = vadd.f32 0.0, %v6764
      %v6766 = vpop.f32.mrb[0].mxu0
      %v6767 = vadd.f32 0.0, %v6766
      %v6768 = vpop.f32.mrb[0].mxu0
      %v6769 = vadd.f32 0.0, %v6768
      %6770 = vmatprep.mubr.bf16.mxu0 0
      %6771 = vmatmul.mubr.bf16.gmra.mrb[0].mxu0 %v6263
      %v6772 = vpop.f32.mrb[0].mxu0
      %v6773 = vadd.f32 0.0, %v6772
      %v6774 = vpop.f32.mrb[0].mxu0
      %v6775 = vadd.f32 0.0, %v6774
      %v6776 = vpop.f32.mrb[0].mxu0
      %v6777 = vadd.f32 0.0, %v6776
      %v6778 = vpop.f32.mrb[0].mxu0
      %v6779 = vadd.f32 0.0, %v6778
      %6780 = vmatprep.mubr.bf16.mxu0 0
      %6781 = vmatmul.mubr.bf16.gmra.mrb[0].mxu0 %v6266
      %v6782 = vpop.f32.mrb[0].mxu0
      %v6783 = vadd.f32 0.0, %v6782
      %v6784 = vpop.f32.mrb[0].mxu0
      %v6785 = vadd.f32 0.0, %v6784
      %v6786 = vpop.f32.mrb[0].mxu0
      %v6787 = vadd.f32 0.0, %v6786
      %v6788 = vpop.f32.mrb[0].mxu0
      %v6789 = vadd.f32 0.0, %v6788
      %6790 = vmatprep.mubr.bf16.mxu0 0
      %6791 = vmatmul.mubr.bf16.gmra.mrb[0].mxu0 %v6269
      %v6792 = vpop.f32.mrb[0].mxu0
      %v6793 = vadd.f32 0.0, %v6792
      %v6794 = vpop.f32.mrb[0].mxu0
      %v6795 = vadd.f32 0.0, %v6794
      %v6796 = vpop.f32.mrb[0].mxu0
      %v6797 = vadd.f32 0.0, %v6796
      %v6798 = vpop.f32.mrb[0].mxu0
      %v6799 = vadd.f32 0.0, %v6798
      %6800 = vmatprep.mubr.bf16.mxu0 0
      %6801 = vmatmul.mubr.bf16.gmra.mrb[0].mxu0 %v6272
      %v6802 = vpop.f32.mrb[0].mxu0
      %v6803 = vadd.f32 0.0, %v6802
      %v6804 = vpop.f32.mrb[0].mxu0
      %v6805 = vadd.f32 0.0, %v6804
      %v6806 = vpop.f32.mrb[0].mxu0
      %v6807 = vadd.f32 0.0, %v6806
      %v6808 = vpop.f32.mrb[0].mxu0
      %v6809 = vadd.f32 0.0, %v6808
      %6810 = vmatprep.mubr.bf16.mxu0 0
      %6811 = vmatmul.mubr.bf16.gmra.mrb[0].mxu0 %v6275
      %v6812 = vpop.f32.mrb[0].mxu0
      %v6813 = vadd.f32 0.0, %v6812
      %v6814 = vpop.f32.mrb[0].mxu0
      %v6815 = vadd.f32 0.0, %v6814
      %v6816 = vpop.f32.mrb[0].mxu0
      %v6817 = vadd.f32 0.0, %v6816
      %v6818 = vpop.f32.mrb[0].mxu0
      %v6819 = vadd.f32 0.0, %v6818
      %6820 = vmatprep.mubr.bf16.mxu0 0
      %6821 = vmatmul.mubr.bf16.gmra.mrb[0].mxu0 %v6278
      %v6822 = vpop.f32.mrb[0].mxu0
      %v6823 = vadd.f32 0.0, %v6822
      %v6824 = vpop.f32.mrb[0].mxu0
      %v6825 = vadd.f32 0.0, %v6824
      %v6826 = vpop.f32.mrb[0].mxu0
      %v6827 = vadd.f32 0.0, %v6826
      %v6828 = vpop.f32.mrb[0].mxu0
      %v6829 = vadd.f32 0.0, %v6828
      %6830 = vmatprep.mubr.bf16.mxu0 0
      %6831 = vmatmul.mubr.bf16.gmra.mrb[0].mxu0 %v6281
      %v6832 = vpop.f32.mrb[0].mxu0
      %v6833 = vadd.f32 0.0, %v6832
      %v6834 = vpop.f32.mrb[0].mxu0
      %v6835 = vadd.f32 0.0, %v6834
      %v6836 = vpop.f32.mrb[0].mxu0
      %v6837 = vadd.f32 0.0, %v6836
      %v6838 = vpop.f32.mrb[0].mxu0
      %v6839 = vadd.f32 0.0, %v6838
      %6840 = vmatprep.mubr.bf16.mxu0 0
      %6841 = vmatmul.mubr.bf16.gmra.mrb[0].mxu0 %v6284
      %v6842 = vpop.f32.mrb[0].mxu0
      %v6843 = vadd.f32 0.0, %v6842
      %v6844 = vpop.f32.mrb[0].mxu0
      %v6845 = vadd.f32 0.0, %v6844
      %v6846 = vpop.f32.mrb[0].mxu0
      %v6847 = vadd.f32 0.0, %v6846
      %v6848 = vpop.f32.mrb[0].mxu0
      %v6849 = vadd.f32 0.0, %v6848
      %6850 = vmatprep.mubr.bf16.mxu0 0
      %6851 = vmatmul.mubr.bf16.gmra.mrb[0].mxu0 %v6287
      %v6852 = vpop.f32.mrb[0].mxu0
      %v6853 = vadd.f32 0.0, %v6852
      %v6854 = vpop.f32.mrb[0].mxu0
      %v6855 = vadd.f32 0.0, %v6854
      %v6856 = vpop.f32.mrb[0].mxu0
      %v6857 = vadd.f32 0.0, %v6856
      %v6858 = vpop.f32.mrb[0].mxu0
      %v6859 = vadd.f32 0.0, %v6858
      %6860 = vmatprep.mubr.bf16.mxu0 0
      %6861 = vmatmul.mubr.bf16.gmra.mrb[0].mxu0 %v6290
      %v6862 = vpop.f32.mrb[0].mxu0
      %v6863 = vadd.f32 0.0, %v6862
      %v6864 = vpop.f32.mrb[0].mxu0
      %v6865 = vadd.f32 0.0, %v6864
      %v6866 = vpop.f32.mrb[0].mxu0
      %v6867 = vadd.f32 0.0, %v6866
      %v6868 = vpop.f32.mrb[0].mxu0
      %v6869 = vadd.f32 0.0, %v6868
      %6870 = vdwg.mxu0
      %v6871 = vmax.f32 %v6327, %v6331
      %v6872 = vmax.f32 %v6871, %v6337
      %v6873 = vmax.f32 %v6872, %v6341
      %v6874 = vmax.f32 %v6873, %v6347
      %v6875 = vmax.f32 %v6874, %v6351
      %v6876 = vmax.f32 %v6875, %v6357
      %v6877 = vmax.f32 %v6876, %v6361
      %v6878 = vmax.f32 %v6877, %v6367
      %v6879 = vmax.f32 %v6878, %v6371
      %v6880 = vmax.f32 %v6879, %v6377
      %v6881 = vmax.f32 %v6880, %v6381
      %v6882 = vmax.f32 %v6881, %v6387
      %v6883 = vmax.f32 %v6882, %v6391
      %v6884 = vmax.f32 %v6883, %v6397
      %v6885 = vmax.f32 %v6884, %v6401
      %v6886 = vmax.f32 %v6885, %v6407
      %v6887 = vmax.f32 %v6886, %v6411
      %v6888 = vmax.f32 %v6887, %v6417
      %v6889 = vmax.f32 %v6888, %v6421
      %v6890 = vmax.f32 %v6889, %v6427
      %v6891 = vmax.f32 %v6890, %v6431
      %v6892 = vmax.f32 %v6891, %v6437
      %v6893 = vmax.f32 %v6892, %v6441
      %v6894 = vmax.f32 %v6893, %v6447
      %v6895 = vmax.f32 %v6894, %v6451
      %v6896 = vmax.f32 %v6895, %v6457
      %v6897 = vmax.f32 %v6896, %v6461
      %v6898 = vmax.f32 %v6897, %v6467
      %v6899 = vmax.f32 %v6898, %v6471
      %v6900 = vmax.f32 %v6899, %v6477
      %v6901 = vmax.f32 %v6900, %v6481
      %v6902 = vrot.slane %v6901, 4
      %v6903 = vmax.f32 %v6901, %v6902
      %v6904 = vrot.slane %v6903, 2
      %v6905 = vmax.f32 %v6903, %v6904
      %v6906 = vrot.slane %v6905, 1
      %v6907 = vmax.f32 %v6905, %v6906
      %v6908 = vmax.f32 %v6329, %v6333
      %v6909 = vmax.f32 %v6908, %v6339
      %v6910 = vmax.f32 %v6909, %v6343
      %v6911 = vmax.f32 %v6910, %v6349
      %v6912 = vmax.f32 %v6911, %v6353
      %v6913 = vmax.f32 %v6912, %v6359
      %v6914 = vmax.f32 %v6913, %v6363
      %v6915 = vmax.f32 %v6914, %v6369
      %v6916 = vmax.f32 %v6915, %v6373
      %v6917 = vmax.f32 %v6916, %v6379
      %v6918 = vmax.f32 %v6917, %v6383
      %v6919 = vmax.f32 %v6918, %v6389
      %v6920 = vmax.f32 %v6919, %v6393
      %v6921 = vmax.f32 %v6920, %v6399
      %v6922 = vmax.f32 %v6921, %v6403
      %v6923 = vmax.f32 %v6922, %v6409
      %v6924 = vmax.f32 %v6923, %v6413
      %v6925 = vmax.f32 %v6924, %v6419
      %v6926 = vmax.f32 %v6925, %v6423
      %v6927 = vmax.f32 %v6926, %v6429
      %v6928 = vmax.f32 %v6927, %v6433
      %v6929 = vmax.f32 %v6928, %v6439
      %v6930 = vmax.f32 %v6929, %v6443
      %v6931 = vmax.f32 %v6930, %v6449
      %v6932 = vmax.f32 %v6931, %v6453
      %v6933 = vmax.f32 %v6932, %v6459
      %v6934 = vmax.f32 %v6933, %v6463
      %v6935 = vmax.f32 %v6934, %v6469
      %v6936 = vmax.f32 %v6935, %v6473
      %v6937 = vmax.f32 %v6936, %v6479
      %v6938 = vmax.f32 %v6937, %v6483
      %v6939 = vrot.slane %v6938, 4
      %v6940 = vmax.f32 %v6938, %v6939
      %v6941 = vrot.slane %v6940, 2
      %v6942 = vmax.f32 %v6940, %v6941
      %v6943 = vrot.slane %v6942, 1
      %v6944 = vmax.f32 %v6942, %v6943
      %v6945 = vmax.f32 %v6520, %v6524
      %v6946 = vmax.f32 %v6945, %v6530
      %v6947 = vmax.f32 %v6946, %v6534
      %v6948 = vmax.f32 %v6947, %v6540
      %v6949 = vmax.f32 %v6948, %v6544
      %v6950 = vmax.f32 %v6949, %v6550
      %v6951 = vmax.f32 %v6950, %v6554
      %v6952 = vmax.f32 %v6951, %v6560
      %v6953 = vmax.f32 %v6952, %v6564
      %v6954 = vmax.f32 %v6953, %v6570
      %v6955 = vmax.f32 %v6954, %v6574
      %v6956 = vmax.f32 %v6955, %v6580
      %v6957 = vmax.f32 %v6956, %v6584
      %v6958 = vmax.f32 %v6957, %v6590
      %v6959 = vmax.f32 %v6958, %v6594
      %v6960 = vmax.f32 %v6959, %v6600
      %v6961 = vmax.f32 %v6960, %v6604
      %v6962 = vmax.f32 %v6961, %v6610
      %v6963 = vmax.f32 %v6962, %v6614
      %v6964 = vmax.f32 %v6963, %v6620
      %v6965 = vmax.f32 %v6964, %v6624
      %v6966 = vmax.f32 %v6965, %v6630
      %v6967 = vmax.f32 %v6966, %v6634
      %v6968 = vmax.f32 %v6967, %v6640
      %v6969 = vmax.f32 %v6968, %v6644
      %v6970 = vmax.f32 %v6969, %v6650
      %v6971 = vmax.f32 %v6970, %v6654
      %v6972 = vmax.f32 %v6971, %v6660
      %v6973 = vmax.f32 %v6972, %v6664
      %v6974 = vmax.f32 %v6973, %v6670
      %v6975 = vmax.f32 %v6974, %v6674
      %v6976 = vrot.slane %v6975, 4
      %v6977 = vmax.f32 %v6975, %v6976
      %v6978 = vrot.slane %v6977, 2
      %v6979 = vmax.f32 %v6977, %v6978
      %v6980 = vrot.slane %v6979, 1
      %v6981 = vmax.f32 %v6979, %v6980
      %v6982 = vmax.f32 %v6522, %v6526
      %v6983 = vmax.f32 %v6982, %v6532
      %v6984 = vmax.f32 %v6983, %v6536
      %v6985 = vmax.f32 %v6984, %v6542
      %v6986 = vmax.f32 %v6985, %v6546
      %v6987 = vmax.f32 %v6986, %v6552
      %v6988 = vmax.f32 %v6987, %v6556
      %v6989 = vmax.f32 %v6988, %v6562
      %v6990 = vmax.f32 %v6989, %v6566
      %v6991 = vmax.f32 %v6990, %v6572
      %v6992 = vmax.f32 %v6991, %v6576
      %v6993 = vmax.f32 %v6992, %v6582
      %v6994 = vmax.f32 %v6993, %v6586
      %v6995 = vmax.f32 %v6994, %v6592
      %v6996 = vmax.f32 %v6995, %v6596
      %v6997 = vmax.f32 %v6996, %v6602
      %v6998 = vmax.f32 %v6997, %v6606
      %v6999 = vmax.f32 %v6998, %v6612
      %v7000 = vmax.f32 %v6999, %v6616
      %v7001 = vmax.f32 %v7000, %v6622
      %v7002 = vmax.f32 %v7001, %v6626
      %v7003 = vmax.f32 %v7002, %v6632
      %v7004 = vmax.f32 %v7003, %v6636
      %v7005 = vmax.f32 %v7004, %v6642
      %v7006 = vmax.f32 %v7005, %v6646
      %v7007 = vmax.f32 %v7006, %v6652
      %v7008 = vmax.f32 %v7007, %v6656
      %v7009 = vmax.f32 %v7008, %v6662
      %v7010 = vmax.f32 %v7009, %v6666
      %v7011 = vmax.f32 %v7010, %v6672
      %v7012 = vmax.f32 %v7011, %v6676
      %v7013 = vrot.slane %v7012, 4
      %v7014 = vmax.f32 %v7012, %v7013
      %v7015 = vrot.slane %v7014, 2
      %v7016 = vmax.f32 %v7014, %v7015
      %v7017 = vrot.slane %v7016, 1
      %v7018 = vmax.f32 %v7016, %v7017
      %v7019 = vmax.f32 %v6713, %v6717
      %v7020 = vmax.f32 %v7019, %v6723
      %v7021 = vmax.f32 %v7020, %v6727
      %v7022 = vmax.f32 %v7021, %v6733
      %v7023 = vmax.f32 %v7022, %v6737
      %v7024 = vmax.f32 %v7023, %v6743
      %v7025 = vmax.f32 %v7024, %v6747
      %v7026 = vmax.f32 %v7025, %v6753
      %v7027 = vmax.f32 %v7026, %v6757
      %v7028 = vmax.f32 %v7027, %v6763
      %v7029 = vmax.f32 %v7028, %v6767
      %v7030 = vmax.f32 %v7029, %v6773
      %v7031 = vmax.f32 %v7030, %v6777
      %v7032 = vmax.f32 %v7031, %v6783
      %v7033 = vmax.f32 %v7032, %v6787
      %v7034 = vmax.f32 %v7033, %v6793
      %v7035 = vmax.f32 %v7034, %v6797
      %v7036 = vmax.f32 %v7035, %v6803
      %v7037 = vmax.f32 %v7036, %v6807
      %v7038 = vmax.f32 %v7037, %v6813
      %v7039 = vmax.f32 %v7038, %v6817
      %v7040 = vmax.f32 %v7039, %v6823
      %v7041 = vmax.f32 %v7040, %v6827
      %v7042 = vmax.f32 %v7041, %v6833
      %v7043 = vmax.f32 %v7042, %v6837
      %v7044 = vmax.f32 %v7043, %v6843
      %v7045 = vmax.f32 %v7044, %v6847
      %v7046 = vmax.f32 %v7045, %v6853
      %v7047 = vmax.f32 %v7046, %v6857
      %v7048 = vmax.f32 %v7047, %v6863
      %v7049 = vmax.f32 %v7048, %v6867
      %v7050 = vrot.slane %v7049, 4
      %v7051 = vmax.f32 %v7049, %v7050
      %v7052 = vrot.slane %v7051, 2
      %v7053 = vmax.f32 %v7051, %v7052
      %v7054 = vrot.slane %v7053, 1
      %v7055 = vmax.f32 %v7053, %v7054
      %v7056 = vmax.f32 %v6715, %v6719
      %v7057 = vmax.f32 %v7056, %v6725
      %v7058 = vmax.f32 %v7057, %v6729
      %v7059 = vmax.f32 %v7058, %v6735
      %v7060 = vmax.f32 %v7059, %v6739
      %v7061 = vmax.f32 %v7060, %v6745
      %v7062 = vmax.f32 %v7061, %v6749
      %v7063 = vmax.f32 %v7062, %v6755
      %v7064 = vmax.f32 %v7063, %v6759
      %v7065 = vmax.f32 %v7064, %v6765
      %v7066 = vmax.f32 %v7065, %v6769
      %v7067 = vmax.f32 %v7066, %v6775
      %v7068 = vmax.f32 %v7067, %v6779
      %v7069 = vmax.f32 %v7068, %v6785
      %v7070 = vmax.f32 %v7069, %v6789
      %v7071 = vmax.f32 %v7070, %v6795
      %v7072 = vmax.f32 %v7071, %v6799
      %v7073 = vmax.f32 %v7072, %v6805
      %v7074 = vmax.f32 %v7073, %v6809
      %v7075 = vmax.f32 %v7074, %v6815
      %v7076 = vmax.f32 %v7075, %v6819
      %v7077 = vmax.f32 %v7076, %v6825
      %v7078 = vmax.f32 %v7077, %v6829
      %v7079 = vmax.f32 %v7078, %v6835
      %v7080 = vmax.f32 %v7079, %v6839
      %v7081 = vmax.f32 %v7080, %v6845
      %v7082 = vmax.f32 %v7081, %v6849
      %v7083 = vmax.f32 %v7082, %v6855
      %v7084 = vmax.f32 %v7083, %v6859
      %v7085 = vmax.f32 %v7084, %v6865
      %v7086 = vmax.f32 %v7085, %v6869
      %v7087 = vrot.slane %v7086, 4
      %v7088 = vmax.f32 %v7086, %v7087
      %v7089 = vrot.slane %v7088, 2
      %v7090 = vmax.f32 %v7088, %v7089
      %v7091 = vrot.slane %v7090, 1
      %v7092 = vmax.f32 %v7090, %v7091
      %v7093 = vmax.f32 %v5129, %v6907
      %v7094 = vmax.f32 %v5130, %v6944
      %v7095 = vmax.f32 %v5131, %v6981
      %v7096 = vmax.f32 %v5132, %v7018
      %v7097 = vmax.f32 %v5133, %v7055
      %v7098 = vmax.f32 %v5134, %v7092
      %v7099 = vsub.f32 %v5129, %v7093
      %v7100 = vsub.f32 %v5130, %v7094
      %v7101 = vsub.f32 %v5131, %v7095
      %v7102 = vsub.f32 %v5132, %v7096
      %v7103 = vsub.f32 %v5133, %v7097
      %v7104 = vsub.f32 %v5134, %v7098
      %v7105 = vmul.f32 %v7099, 1.442695
      %v7106 = vpow.pop %v7105
      %v7107 = vmul.f32 %v7100, 1.442695
      %v7108 = vpow.pop %v7107
      %v7109 = vmul.f32 %v7101, 1.442695
      %v7110 = vpow.pop %v7109
      %v7111 = vmul.f32 %v7102, 1.442695
      %v7112 = vpow.pop %v7111
      %v7113 = vmul.f32 %v7103, 1.442695
      %v7114 = vpow.pop %v7113
      %v7115 = vmul.f32 %v7104, 1.442695
      %v7116 = vpow.pop %v7115
      %v7117 = vsub.f32 %v6327, %v7093
      %v7118 = vsub.f32 %v6329, %v7094
      %v7119 = vsub.f32 %v6520, %v7095
      %v7120 = vsub.f32 %v6522, %v7096
      %v7121 = vsub.f32 %v6713, %v7097
      %v7122 = vsub.f32 %v6715, %v7098
      %v7123 = vsub.f32 %v6331, %v7093
      %v7124 = vsub.f32 %v6333, %v7094
      %v7125 = vsub.f32 %v6524, %v7095
      %v7126 = vsub.f32 %v6526, %v7096
      %v7127 = vsub.f32 %v6717, %v7097
      %v7128 = vsub.f32 %v6719, %v7098
      %v7129 = vsub.f32 %v6337, %v7093
      %v7130 = vsub.f32 %v6339, %v7094
      %v7131 = vsub.f32 %v6530, %v7095
      %v7132 = vsub.f32 %v6532, %v7096
      %v7133 = vsub.f32 %v6723, %v7097
      %v7134 = vsub.f32 %v6725, %v7098
      %v7135 = vsub.f32 %v6341, %v7093
      %v7136 = vsub.f32 %v6343, %v7094
      %v7137 = vsub.f32 %v6534, %v7095
      %v7138 = vsub.f32 %v6536, %v7096
      %v7139 = vsub.f32 %v6727, %v7097
      %v7140 = vsub.f32 %v6729, %v7098
      %v7141 = vsub.f32 %v6347, %v7093
      %v7142 = vsub.f32 %v6349, %v7094
      %v7143 = vsub.f32 %v6540, %v7095
      %v7144 = vsub.f32 %v6542, %v7096
      %v7145 = vsub.f32 %v6733, %v7097
      %v7146 = vsub.f32 %v6735, %v7098
      %v7147 = vsub.f32 %v6351, %v7093
      %v7148 = vsub.f32 %v6353, %v7094
      %v7149 = vsub.f32 %v6544, %v7095
      %v7150 = vsub.f32 %v6546, %v7096
      %v7151 = vsub.f32 %v6737, %v7097
      %v7152 = vsub.f32 %v6739, %v7098
      %v7153 = vsub.f32 %v6357, %v7093
      %v7154 = vsub.f32 %v6359, %v7094
      %v7155 = vsub.f32 %v6550, %v7095
      %v7156 = vsub.f32 %v6552, %v7096
      %v7157 = vsub.f32 %v6743, %v7097
      %v7158 = vsub.f32 %v6745, %v7098
      %v7159 = vsub.f32 %v6361, %v7093
      %v7160 = vsub.f32 %v6363, %v7094
      %v7161 = vsub.f32 %v6554, %v7095
      %v7162 = vsub.f32 %v6556, %v7096
      %v7163 = vsub.f32 %v6747, %v7097
      %v7164 = vsub.f32 %v6749, %v7098
      %v7165 = vsub.f32 %v6367, %v7093
      %v7166 = vsub.f32 %v6369, %v7094
      %v7167 = vsub.f32 %v6560, %v7095
      %v7168 = vsub.f32 %v6562, %v7096
      %v7169 = vsub.f32 %v6753, %v7097
      %v7170 = vsub.f32 %v6755, %v7098
      %v7171 = vsub.f32 %v6371, %v7093
      %v7172 = vsub.f32 %v6373, %v7094
      %v7173 = vsub.f32 %v6564, %v7095
      %v7174 = vsub.f32 %v6566, %v7096
      %v7175 = vsub.f32 %v6757, %v7097
      %v7176 = vsub.f32 %v6759, %v7098
      %v7177 = vsub.f32 %v6377, %v7093
      %v7178 = vsub.f32 %v6379, %v7094
      %v7179 = vsub.f32 %v6570, %v7095
      %v7180 = vsub.f32 %v6572, %v7096
      %v7181 = vsub.f32 %v6763, %v7097
      %v7182 = vsub.f32 %v6765, %v7098
      %v7183 = vsub.f32 %v6381, %v7093
      %v7184 = vsub.f32 %v6383, %v7094
      %v7185 = vsub.f32 %v6574, %v7095
      %v7186 = vsub.f32 %v6576, %v7096
      %v7187 = vsub.f32 %v6767, %v7097
      %v7188 = vsub.f32 %v6769, %v7098
      %v7189 = vsub.f32 %v6387, %v7093
      %v7190 = vsub.f32 %v6389, %v7094
      %v7191 = vsub.f32 %v6580, %v7095
      %v7192 = vsub.f32 %v6582, %v7096
      %v7193 = vsub.f32 %v6773, %v7097
      %v7194 = vsub.f32 %v6775, %v7098
      %v7195 = vsub.f32 %v6391, %v7093
      %v7196 = vsub.f32 %v6393, %v7094
      %v7197 = vsub.f32 %v6584, %v7095
      %v7198 = vsub.f32 %v6586, %v7096
      %v7199 = vsub.f32 %v6777, %v7097
      %v7200 = vsub.f32 %v6779, %v7098
      %v7201 = vsub.f32 %v6397, %v7093
      %v7202 = vsub.f32 %v6399, %v7094
      %v7203 = vsub.f32 %v6590, %v7095
      %v7204 = vsub.f32 %v6592, %v7096
      %v7205 = vsub.f32 %v6783, %v7097
      %v7206 = vsub.f32 %v6785, %v7098
      %v7207 = vsub.f32 %v6401, %v7093
      %v7208 = vsub.f32 %v6403, %v7094
      %v7209 = vsub.f32 %v6594, %v7095
      %v7210 = vsub.f32 %v6596, %v7096
      %v7211 = vsub.f32 %v6787, %v7097
      %v7212 = vsub.f32 %v6789, %v7098
      %v7213 = vsub.f32 %v6407, %v7093
      %v7214 = vsub.f32 %v6409, %v7094
      %v7215 = vsub.f32 %v6600, %v7095
      %v7216 = vsub.f32 %v6602, %v7096
      %v7217 = vsub.f32 %v6793, %v7097
      %v7218 = vsub.f32 %v6795, %v7098
      %v7219 = vsub.f32 %v6411, %v7093
      %v7220 = vsub.f32 %v6413, %v7094
      %v7221 = vsub.f32 %v6604, %v7095
      %v7222 = vsub.f32 %v6606, %v7096
      %v7223 = vsub.f32 %v6797, %v7097
      %v7224 = vsub.f32 %v6799, %v7098
      %v7225 = vsub.f32 %v6417, %v7093
      %v7226 = vsub.f32 %v6419, %v7094
      %v7227 = vsub.f32 %v6610, %v7095
      %v7228 = vsub.f32 %v6612, %v7096
      %v7229 = vsub.f32 %v6803, %v7097
      %v7230 = vsub.f32 %v6805, %v7098
      %v7231 = vsub.f32 %v6421, %v7093
      %v7232 = vsub.f32 %v6423, %v7094
      %v7233 = vsub.f32 %v6614, %v7095
      %v7234 = vsub.f32 %v6616, %v7096
      %v7235 = vsub.f32 %v6807, %v7097
      %v7236 = vsub.f32 %v6809, %v7098
      %v7237 = vsub.f32 %v6427, %v7093
      %v7238 = vsub.f32 %v6429, %v7094
      %v7239 = vsub.f32 %v6620, %v7095
      %v7240 = vsub.f32 %v6622, %v7096
      %v7241 = vsub.f32 %v6813, %v7097
      %v7242 = vsub.f32 %v6815, %v7098
      %v7243 = vsub.f32 %v6431, %v7093
      %v7244 = vsub.f32 %v6433, %v7094
      %v7245 = vsub.f32 %v6624, %v7095
      %v7246 = vsub.f32 %v6626, %v7096
      %v7247 = vsub.f32 %v6817, %v7097
      %v7248 = vsub.f32 %v6819, %v7098
      %v7249 = vsub.f32 %v6437, %v7093
      %v7250 = vsub.f32 %v6439, %v7094
      %v7251 = vsub.f32 %v6630, %v7095
      %v7252 = vsub.f32 %v6632, %v7096
      %v7253 = vsub.f32 %v6823, %v7097
      %v7254 = vsub.f32 %v6825, %v7098
      %v7255 = vsub.f32 %v6441, %v7093
      %v7256 = vsub.f32 %v6443, %v7094
      %v7257 = vsub.f32 %v6634, %v7095
      %v7258 = vsub.f32 %v6636, %v7096
      %v7259 = vsub.f32 %v6827, %v7097
      %v7260 = vsub.f32 %v6829, %v7098
      %v7261 = vsub.f32 %v6447, %v7093
      %v7262 = vsub.f32 %v6449, %v7094
      %v7263 = vsub.f32 %v6640, %v7095
      %v7264 = vsub.f32 %v6642, %v7096
      %v7265 = vsub.f32 %v6833, %v7097
      %v7266 = vsub.f32 %v6835, %v7098
      %v7267 = vsub.f32 %v6451, %v7093
      %v7268 = vsub.f32 %v6453, %v7094
      %v7269 = vsub.f32 %v6644, %v7095
      %v7270 = vsub.f32 %v6646, %v7096
      %v7271 = vsub.f32 %v6837, %v7097
      %v7272 = vsub.f32 %v6839, %v7098
      %v7273 = vsub.f32 %v6457, %v7093
      %v7274 = vsub.f32 %v6459, %v7094
      %v7275 = vsub.f32 %v6650, %v7095
      %v7276 = vsub.f32 %v6652, %v7096
      %v7277 = vsub.f32 %v6843, %v7097
      %v7278 = vsub.f32 %v6845, %v7098
      %v7279 = vsub.f32 %v6461, %v7093
      %v7280 = vsub.f32 %v6463, %v7094
      %v7281 = vsub.f32 %v6654, %v7095
      %v7282 = vsub.f32 %v6656, %v7096
      %v7283 = vsub.f32 %v6847, %v7097
      %v7284 = vsub.f32 %v6849, %v7098
      %v7285 = vsub.f32 %v6467, %v7093
      %v7286 = vsub.f32 %v6469, %v7094
      %v7287 = vsub.f32 %v6660, %v7095
      %v7288 = vsub.f32 %v6662, %v7096
      %v7289 = vsub.f32 %v6853, %v7097
      %v7290 = vsub.f32 %v6855, %v7098
      %v7291 = vsub.f32 %v6471, %v7093
      %v7292 = vsub.f32 %v6473, %v7094
      %v7293 = vsub.f32 %v6664, %v7095
      %v7294 = vsub.f32 %v6666, %v7096
      %v7295 = vsub.f32 %v6857, %v7097
      %v7296 = vsub.f32 %v6859, %v7098
      %v7297 = vsub.f32 %v6477, %v7093
      %v7298 = vsub.f32 %v6479, %v7094
      %v7299 = vsub.f32 %v6670, %v7095
      %v7300 = vsub.f32 %v6672, %v7096
      %v7301 = vsub.f32 %v6863, %v7097
      %v7302 = vsub.f32 %v6865, %v7098
      %v7303 = vsub.f32 %v6481, %v7093
      %v7304 = vsub.f32 %v6483, %v7094
      %v7305 = vsub.f32 %v6674, %v7095
      %v7306 = vsub.f32 %v6676, %v7096
      %v7307 = vsub.f32 %v6867, %v7097
      %v7308 = vsub.f32 %v6869, %v7098
      %v7309 = vmul.f32 %v7117, 1.442695
      %v7310 = vpow.pop %v7309
      %v7311 = vmul.f32 %v7118, 1.442695
      %v7312 = vpow.pop %v7311
      %v7313 = vmul.f32 %v7119, 1.442695
      %v7314 = vpow.pop %v7313
      %v7315 = vmul.f32 %v7120, 1.442695
      %v7316 = vpow.pop %v7315
      %v7317 = vmul.f32 %v7121, 1.442695
      %v7318 = vpow.pop %v7317
      %v7319 = vmul.f32 %v7122, 1.442695
      %v7320 = vpow.pop %v7319
      %v7321 = vmul.f32 %v7123, 1.442695
      %v7322 = vpow.pop %v7321
      %v7323 = vmul.f32 %v7124, 1.442695
      %v7324 = vpow.pop %v7323
      %v7325 = vmul.f32 %v7125, 1.442695
      %v7326 = vpow.pop %v7325
      %v7327 = vmul.f32 %v7126, 1.442695
      %v7328 = vpow.pop %v7327
      %v7329 = vmul.f32 %v7127, 1.442695
      %v7330 = vpow.pop %v7329
      %v7331 = vmul.f32 %v7128, 1.442695
      %v7332 = vpow.pop %v7331
      %v7333 = vmul.f32 %v7129, 1.442695
      %v7334 = vpow.pop %v7333
      %v7335 = vmul.f32 %v7130, 1.442695
      %v7336 = vpow.pop %v7335
      %v7337 = vmul.f32 %v7131, 1.442695
      %v7338 = vpow.pop %v7337
      %v7339 = vmul.f32 %v7132, 1.442695
      %v7340 = vpow.pop %v7339
      %v7341 = vmul.f32 %v7133, 1.442695
      %v7342 = vpow.pop %v7341
      %v7343 = vmul.f32 %v7134, 1.442695
      %v7344 = vpow.pop %v7343
      %v7345 = vmul.f32 %v7135, 1.442695
      %v7346 = vpow.pop %v7345
      %v7347 = vmul.f32 %v7136, 1.442695
      %v7348 = vpow.pop %v7347
      %v7349 = vmul.f32 %v7137, 1.442695
      %v7350 = vpow.pop %v7349
      %v7351 = vmul.f32 %v7138, 1.442695
      %v7352 = vpow.pop %v7351
      %v7353 = vmul.f32 %v7139, 1.442695
      %v7354 = vpow.pop %v7353
      %v7355 = vmul.f32 %v7140, 1.442695
      %v7356 = vpow.pop %v7355
      %v7357 = vmul.f32 %v7141, 1.442695
      %v7358 = vpow.pop %v7357
      %v7359 = vmul.f32 %v7142, 1.442695
      %v7360 = vpow.pop %v7359
      %v7361 = vmul.f32 %v7143, 1.442695
      %v7362 = vpow.pop %v7361
      %v7363 = vmul.f32 %v7144, 1.442695
      %v7364 = vpow.pop %v7363
      %v7365 = vmul.f32 %v7145, 1.442695
      %v7366 = vpow.pop %v7365
      %v7367 = vmul.f32 %v7146, 1.442695
      %v7368 = vpow.pop %v7367
      %v7369 = vmul.f32 %v7147, 1.442695
      %v7370 = vpow.pop %v7369
      %v7371 = vmul.f32 %v7148, 1.442695
      %v7372 = vpow.pop %v7371
      %v7373 = vmul.f32 %v7149, 1.442695
      %v7374 = vpow.pop %v7373
      %v7375 = vmul.f32 %v7150, 1.442695
      %v7376 = vpow.pop %v7375
      %v7377 = vmul.f32 %v7151, 1.442695
      %v7378 = vpow.pop %v7377
      %v7379 = vmul.f32 %v7152, 1.442695
      %v7380 = vpow.pop %v7379
      %v7381 = vmul.f32 %v7153, 1.442695
      %v7382 = vpow.pop %v7381
      %v7383 = vmul.f32 %v7154, 1.442695
      %v7384 = vpow.pop %v7383
      %v7385 = vmul.f32 %v7155, 1.442695
      %v7386 = vpow.pop %v7385
      %v7387 = vmul.f32 %v7156, 1.442695
      %v7388 = vpow.pop %v7387
      %v7389 = vmul.f32 %v7157, 1.442695
      %v7390 = vpow.pop %v7389
      %v7391 = vmul.f32 %v7158, 1.442695
      %v7392 = vpow.pop %v7391
      %v7393 = vmul.f32 %v7159, 1.442695
      %v7394 = vpow.pop %v7393
      %v7395 = vmul.f32 %v7160, 1.442695
      %v7396 = vpow.pop %v7395
      %v7397 = vmul.f32 %v7161, 1.442695
      %v7398 = vpow.pop %v7397
      %v7399 = vmul.f32 %v7162, 1.442695
      %v7400 = vpow.pop %v7399
      %v7401 = vmul.f32 %v7163, 1.442695
      %v7402 = vpow.pop %v7401
      %v7403 = vmul.f32 %v7164, 1.442695
      %v7404 = vpow.pop %v7403
      %v7405 = vmul.f32 %v7165, 1.442695
      %v7406 = vpow.pop %v7405
      %v7407 = vmul.f32 %v7166, 1.442695
      %v7408 = vpow.pop %v7407
      %v7409 = vmul.f32 %v7167, 1.442695
      %v7410 = vpow.pop %v7409
      %v7411 = vmul.f32 %v7168, 1.442695
      %v7412 = vpow.pop %v7411
      %v7413 = vmul.f32 %v7169, 1.442695
      %v7414 = vpow.pop %v7413
      %v7415 = vmul.f32 %v7170, 1.442695
      %v7416 = vpow.pop %v7415
      %v7417 = vmul.f32 %v7171, 1.442695
      %v7418 = vpow.pop %v7417
      %v7419 = vmul.f32 %v7172, 1.442695
      %v7420 = vpow.pop %v7419
      %v7421 = vmul.f32 %v7173, 1.442695
      %v7422 = vpow.pop %v7421
      %v7423 = vmul.f32 %v7174, 1.442695
      %v7424 = vpow.pop %v7423
      %v7425 = vmul.f32 %v7175, 1.442695
      %v7426 = vpow.pop %v7425
      %v7427 = vmul.f32 %v7176, 1.442695
      %v7428 = vpow.pop %v7427
      %v7429 = vmul.f32 %v7177, 1.442695
      %v7430 = vpow.pop %v7429
      %v7431 = vmul.f32 %v7178, 1.442695
      %v7432 = vpow.pop %v7431
      %v7433 = vmul.f32 %v7179, 1.442695
      %v7434 = vpow.pop %v7433
      %v7435 = vmul.f32 %v7180, 1.442695
      %v7436 = vpow.pop %v7435
      %v7437 = vmul.f32 %v7181, 1.442695
      %v7438 = vpow.pop %v7437
      %v7439 = vmul.f32 %v7182, 1.442695
      %v7440 = vpow.pop %v7439
      %v7441 = vmul.f32 %v7183, 1.442695
      %v7442 = vpow.pop %v7441
      %v7443 = vmul.f32 %v7184, 1.442695
      %v7444 = vpow.pop %v7443
      %v7445 = vmul.f32 %v7185, 1.442695
      %v7446 = vpow.pop %v7445
      %v7447 = vmul.f32 %v7186, 1.442695
      %v7448 = vpow.pop %v7447
      %v7449 = vmul.f32 %v7187, 1.442695
      %v7450 = vpow.pop %v7449
      %v7451 = vmul.f32 %v7188, 1.442695
      %v7452 = vpow.pop %v7451
      %v7453 = vmul.f32 %v7189, 1.442695
      %v7454 = vpow.pop %v7453
      %v7455 = vmul.f32 %v7190, 1.442695
      %v7456 = vpow.pop %v7455
      %v7457 = vmul.f32 %v7191, 1.442695
      %v7458 = vpow.pop %v7457
      %v7459 = vmul.f32 %v7192, 1.442695
      %v7460 = vpow.pop %v7459
      %v7461 = vmul.f32 %v7193, 1.442695
      %v7462 = vpow.pop %v7461
      %v7463 = vmul.f32 %v7194, 1.442695
      %v7464 = vpow.pop %v7463
      %v7465 = vmul.f32 %v7195, 1.442695
      %v7466 = vpow.pop %v7465
      %v7467 = vmul.f32 %v7196, 1.442695
      %v7468 = vpow.pop %v7467
      %v7469 = vmul.f32 %v7197, 1.442695
      %v7470 = vpow.pop %v7469
      %v7471 = vmul.f32 %v7198, 1.442695
      %v7472 = vpow.pop %v7471
      %v7473 = vmul.f32 %v7199, 1.442695
      %v7474 = vpow.pop %v7473
      %v7475 = vmul.f32 %v7200, 1.442695
      %v7476 = vpow.pop %v7475
      %v7477 = vmul.f32 %v7201, 1.442695
      %v7478 = vpow.pop %v7477
      %v7479 = vmul.f32 %v7202, 1.442695
      %v7480 = vpow.pop %v7479
      %v7481 = vmul.f32 %v7203, 1.442695
      %v7482 = vpow.pop %v7481
      %v7483 = vmul.f32 %v7204, 1.442695
      %v7484 = vpow.pop %v7483
      %v7485 = vmul.f32 %v7205, 1.442695
      %v7486 = vpow.pop %v7485
      %v7487 = vmul.f32 %v7206, 1.442695
      %v7488 = vpow.pop %v7487
      %v7489 = vmul.f32 %v7207, 1.442695
      %v7490 = vpow.pop %v7489
      %v7491 = vmul.f32 %v7208, 1.442695
      %v7492 = vpow.pop %v7491
      %v7493 = vmul.f32 %v7209, 1.442695
      %v7494 = vpow.pop %v7493
      %v7495 = vmul.f32 %v7210, 1.442695
      %v7496 = vpow.pop %v7495
      %v7497 = vmul.f32 %v7211, 1.442695
      %v7498 = vpow.pop %v7497
      %v7499 = vmul.f32 %v7212, 1.442695
      %v7500 = vpow.pop %v7499
      %v7501 = vmul.f32 %v7213, 1.442695
      %v7502 = vpow.pop %v7501
      %v7503 = vmul.f32 %v7214, 1.442695
      %v7504 = vpow.pop %v7503
      %v7505 = vmul.f32 %v7215, 1.442695
      %v7506 = vpow.pop %v7505
      %v7507 = vmul.f32 %v7216, 1.442695
      %v7508 = vpow.pop %v7507
      %v7509 = vmul.f32 %v7217, 1.442695
      %v7510 = vpow.pop %v7509
      %v7511 = vmul.f32 %v7218, 1.442695
      %v7512 = vpow.pop %v7511
      %v7513 = vmul.f32 %v7219, 1.442695
      %v7514 = vpow.pop %v7513
      %v7515 = vmul.f32 %v7220, 1.442695
      %v7516 = vpow.pop %v7515
      %v7517 = vmul.f32 %v7221, 1.442695
      %v7518 = vpow.pop %v7517
      %v7519 = vmul.f32 %v7222, 1.442695
      %v7520 = vpow.pop %v7519
      %v7521 = vmul.f32 %v7223, 1.442695
      %v7522 = vpow.pop %v7521
      %v7523 = vmul.f32 %v7224, 1.442695
      %v7524 = vpow.pop %v7523
      %v7525 = vmul.f32 %v7225, 1.442695
      %v7526 = vpow.pop %v7525
      %v7527 = vmul.f32 %v7226, 1.442695
      %v7528 = vpow.pop %v7527
      %v7529 = vmul.f32 %v7227, 1.442695
      %v7530 = vpow.pop %v7529
      %v7531 = vmul.f32 %v7228, 1.442695
      %v7532 = vpow.pop %v7531
      %v7533 = vmul.f32 %v7229, 1.442695
      %v7534 = vpow.pop %v7533
      %v7535 = vmul.f32 %v7230, 1.442695
      %v7536 = vpow.pop %v7535
      %v7537 = vmul.f32 %v7231, 1.442695
      %v7538 = vpow.pop %v7537
      %v7539 = vmul.f32 %v7232, 1.442695
      %v7540 = vpow.pop %v7539
      %v7541 = vmul.f32 %v7233, 1.442695
      %v7542 = vpow.pop %v7541
      %v7543 = vmul.f32 %v7234, 1.442695
      %v7544 = vpow.pop %v7543
      %v7545 = vmul.f32 %v7235, 1.442695
      %v7546 = vpow.pop %v7545
      %v7547 = vmul.f32 %v7236, 1.442695
      %v7548 = vpow.pop %v7547
      %v7549 = vmul.f32 %v7237, 1.442695
      %v7550 = vpow.pop %v7549
      %v7551 = vmul.f32 %v7238, 1.442695
      %v7552 = vpow.pop %v7551
      %v7553 = vmul.f32 %v7239, 1.442695
      %v7554 = vpow.pop %v7553
      %v7555 = vmul.f32 %v7240, 1.442695
      %v7556 = vpow.pop %v7555
      %v7557 = vmul.f32 %v7241, 1.442695
      %v7558 = vpow.pop %v7557
      %v7559 = vmul.f32 %v7242, 1.442695
      %v7560 = vpow.pop %v7559
      %v7561 = vmul.f32 %v7243, 1.442695
      %v7562 = vpow.pop %v7561
      %v7563 = vmul.f32 %v7244, 1.442695
      %v7564 = vpow.pop %v7563
      %v7565 = vmul.f32 %v7245, 1.442695
      %v7566 = vpow.pop %v7565
      %v7567 = vmul.f32 %v7246, 1.442695
      %v7568 = vpow.pop %v7567
      %v7569 = vmul.f32 %v7247, 1.442695
      %v7570 = vpow.pop %v7569
      %v7571 = vmul.f32 %v7248, 1.442695
      %v7572 = vpow.pop %v7571
      %v7573 = vmul.f32 %v7249, 1.442695
      %v7574 = vpow.pop %v7573
      %v7575 = vmul.f32 %v7250, 1.442695
      %v7576 = vpow.pop %v7575
      %v7577 = vmul.f32 %v7251, 1.442695
      %v7578 = vpow.pop %v7577
      %v7579 = vmul.f32 %v7252, 1.442695
      %v7580 = vpow.pop %v7579
      %v7581 = vmul.f32 %v7253, 1.442695
      %v7582 = vpow.pop %v7581
      %v7583 = vmul.f32 %v7254, 1.442695
      %v7584 = vpow.pop %v7583
      %v7585 = vmul.f32 %v7255, 1.442695
      %v7586 = vpow.pop %v7585
      %v7587 = vmul.f32 %v7256, 1.442695
      %v7588 = vpow.pop %v7587
      %v7589 = vmul.f32 %v7257, 1.442695
      %v7590 = vpow.pop %v7589
      %v7591 = vmul.f32 %v7258, 1.442695
      %v7592 = vpow.pop %v7591
      %v7593 = vmul.f32 %v7259, 1.442695
      %v7594 = vpow.pop %v7593
      %v7595 = vmul.f32 %v7260, 1.442695
      %v7596 = vpow.pop %v7595
      %v7597 = vmul.f32 %v7261, 1.442695
      %v7598 = vpow.pop %v7597
      %v7599 = vmul.f32 %v7262, 1.442695
      %v7600 = vpow.pop %v7599
      %v7601 = vmul.f32 %v7263, 1.442695
      %v7602 = vpow.pop %v7601
      %v7603 = vmul.f32 %v7264, 1.442695
      %v7604 = vpow.pop %v7603
      %v7605 = vmul.f32 %v7265, 1.442695
      %v7606 = vpow.pop %v7605
      %v7607 = vmul.f32 %v7266, 1.442695
      %v7608 = vpow.pop %v7607
      %v7609 = vmul.f32 %v7267, 1.442695
      %v7610 = vpow.pop %v7609
      %v7611 = vmul.f32 %v7268, 1.442695
      %v7612 = vpow.pop %v7611
      %v7613 = vmul.f32 %v7269, 1.442695
      %v7614 = vpow.pop %v7613
      %v7615 = vmul.f32 %v7270, 1.442695
      %v7616 = vpow.pop %v7615
      %v7617 = vmul.f32 %v7271, 1.442695
      %v7618 = vpow.pop %v7617
      %v7619 = vmul.f32 %v7272, 1.442695
      %v7620 = vpow.pop %v7619
      %v7621 = vmul.f32 %v7273, 1.442695
      %v7622 = vpow.pop %v7621
      %v7623 = vmul.f32 %v7274, 1.442695
      %v7624 = vpow.pop %v7623
      %v7625 = vmul.f32 %v7275, 1.442695
      %v7626 = vpow.pop %v7625
      %v7627 = vmul.f32 %v7276, 1.442695
      %v7628 = vpow.pop %v7627
      %v7629 = vmul.f32 %v7277, 1.442695
      %v7630 = vpow.pop %v7629
      %v7631 = vmul.f32 %v7278, 1.442695
      %v7632 = vpow.pop %v7631
      %v7633 = vmul.f32 %v7279, 1.442695
      %v7634 = vpow.pop %v7633
      %v7635 = vmul.f32 %v7280, 1.442695
      %v7636 = vpow.pop %v7635
      %v7637 = vmul.f32 %v7281, 1.442695
      %v7638 = vpow.pop %v7637
      %v7639 = vmul.f32 %v7282, 1.442695
      %v7640 = vpow.pop %v7639
      %v7641 = vmul.f32 %v7283, 1.442695
      %v7642 = vpow.pop %v7641
      %v7643 = vmul.f32 %v7284, 1.442695
      %v7644 = vpow.pop %v7643
      %v7645 = vmul.f32 %v7285, 1.442695
      %v7646 = vpow.pop %v7645
      %v7647 = vmul.f32 %v7286, 1.442695
      %v7648 = vpow.pop %v7647
      %v7649 = vmul.f32 %v7287, 1.442695
      %v7650 = vpow.pop %v7649
      %v7651 = vmul.f32 %v7288, 1.442695
      %v7652 = vpow.pop %v7651
      %v7653 = vmul.f32 %v7289, 1.442695
      %v7654 = vpow.pop %v7653
      %v7655 = vmul.f32 %v7290, 1.442695
      %v7656 = vpow.pop %v7655
      %v7657 = vmul.f32 %v7291, 1.442695
      %v7658 = vpow.pop %v7657
      %v7659 = vmul.f32 %v7292, 1.442695
      %v7660 = vpow.pop %v7659
      %v7661 = vmul.f32 %v7293, 1.442695
      %v7662 = vpow.pop %v7661
      %v7663 = vmul.f32 %v7294, 1.442695
      %v7664 = vpow.pop %v7663
      %v7665 = vmul.f32 %v7295, 1.442695
      %v7666 = vpow.pop %v7665
      %v7667 = vmul.f32 %v7296, 1.442695
      %v7668 = vpow.pop %v7667
      %v7669 = vmul.f32 %v7297, 1.442695
      %v7670 = vpow.pop %v7669
      %v7671 = vmul.f32 %v7298, 1.442695
      %v7672 = vpow.pop %v7671
      %v7673 = vmul.f32 %v7299, 1.442695
      %v7674 = vpow.pop %v7673
      %v7675 = vmul.f32 %v7300, 1.442695
      %v7676 = vpow.pop %v7675
      %v7677 = vmul.f32 %v7301, 1.442695
      %v7678 = vpow.pop %v7677
      %v7679 = vmul.f32 %v7302, 1.442695
      %v7680 = vpow.pop %v7679
      %v7681 = vmul.f32 %v7303, 1.442695
      %v7682 = vpow.pop %v7681
      %v7683 = vmul.f32 %v7304, 1.442695
      %v7684 = vpow.pop %v7683
      %v7685 = vmul.f32 %v7305, 1.442695
      %v7686 = vpow.pop %v7685
      %v7687 = vmul.f32 %v7306, 1.442695
      %v7688 = vpow.pop %v7687
      %v7689 = vmul.f32 %v7307, 1.442695
      %v7690 = vpow.pop %v7689
      %v7691 = vmul.f32 %v7308, 1.442695
      %v7692 = vpow.pop %v7691
      %v7693 = vmul.f32 %v7106, %v5957
      %v7694 = vmul.f32 %v7108, %v5958
      %v7695 = vmul.f32 %v7110, %v5959
      %v7696 = vmul.f32 %v7112, %v5960
      %v7697 = vmul.f32 %v7114, %v5961
      %v7698 = vmul.f32 %v7116, %v5962
      %v7699 = vadd.f32 %v7310, %v7322
      %v7700 = vadd.f32 %v7699, %v7334
      %v7701 = vadd.f32 %v7700, %v7346
      %v7702 = vadd.f32 %v7701, %v7358
      %v7703 = vadd.f32 %v7702, %v7370
      %v7704 = vadd.f32 %v7703, %v7382
      %v7705 = vadd.f32 %v7704, %v7394
      %v7706 = vadd.f32 %v7705, %v7406
      %v7707 = vadd.f32 %v7706, %v7418
      %v7708 = vadd.f32 %v7707, %v7430
      %v7709 = vadd.f32 %v7708, %v7442
      %v7710 = vadd.f32 %v7709, %v7454
      %v7711 = vadd.f32 %v7710, %v7466
      %v7712 = vadd.f32 %v7711, %v7478
      %v7713 = vadd.f32 %v7712, %v7490
      %v7714 = vadd.f32 %v7713, %v7502
      %v7715 = vadd.f32 %v7714, %v7514
      %v7716 = vadd.f32 %v7715, %v7526
      %v7717 = vadd.f32 %v7716, %v7538
      %v7718 = vadd.f32 %v7717, %v7550
      %v7719 = vadd.f32 %v7718, %v7562
      %v7720 = vadd.f32 %v7719, %v7574
      %v7721 = vadd.f32 %v7720, %v7586
      %v7722 = vadd.f32 %v7721, %v7598
      %v7723 = vadd.f32 %v7722, %v7610
      %v7724 = vadd.f32 %v7723, %v7622
      %v7725 = vadd.f32 %v7724, %v7634
      %v7726 = vadd.f32 %v7725, %v7646
      %v7727 = vadd.f32 %v7726, %v7658
      %v7728 = vadd.f32 %v7727, %v7670
      %v7729 = vadd.f32 %v7728, %v7682
      %v7730 = vrot.slane %v7729, 4
      %v7731 = vadd.f32 %v7729, %v7730
      %v7732 = vrot.slane %v7731, 2
      %v7733 = vadd.f32 %v7731, %v7732
      %v7734 = vrot.slane %v7733, 1
      %v7735 = vadd.f32 %v7733, %v7734
      %v7736 = vadd.f32 %v7312, %v7324
      %v7737 = vadd.f32 %v7736, %v7336
      %v7738 = vadd.f32 %v7737, %v7348
      %v7739 = vadd.f32 %v7738, %v7360
      %v7740 = vadd.f32 %v7739, %v7372
      %v7741 = vadd.f32 %v7740, %v7384
      %v7742 = vadd.f32 %v7741, %v7396
      %v7743 = vadd.f32 %v7742, %v7408
      %v7744 = vadd.f32 %v7743, %v7420
      %v7745 = vadd.f32 %v7744, %v7432
      %v7746 = vadd.f32 %v7745, %v7444
      %v7747 = vadd.f32 %v7746, %v7456
      %v7748 = vadd.f32 %v7747, %v7468
      %v7749 = vadd.f32 %v7748, %v7480
      %v7750 = vadd.f32 %v7749, %v7492
      %v7751 = vadd.f32 %v7750, %v7504
      %v7752 = vadd.f32 %v7751, %v7516
      %v7753 = vadd.f32 %v7752, %v7528
      %v7754 = vadd.f32 %v7753, %v7540
      %v7755 = vadd.f32 %v7754, %v7552
      %v7756 = vadd.f32 %v7755, %v7564
      %v7757 = vadd.f32 %v7756, %v7576
      %v7758 = vadd.f32 %v7757, %v7588
      %v7759 = vadd.f32 %v7758, %v7600
      %v7760 = vadd.f32 %v7759, %v7612
      %v7761 = vadd.f32 %v7760, %v7624
      %v7762 = vadd.f32 %v7761, %v7636
      %v7763 = vadd.f32 %v7762, %v7648
      %v7764 = vadd.f32 %v7763, %v7660
      %v7765 = vadd.f32 %v7764, %v7672
      %v7766 = vadd.f32 %v7765, %v7684
      %v7767 = vrot.slane %v7766, 4
      %v7768 = vadd.f32 %v7766, %v7767
      %v7769 = vrot.slane %v7768, 2
      %v7770 = vadd.f32 %v7768, %v7769
      %v7771 = vrot.slane %v7770, 1
      %v7772 = vadd.f32 %v7770, %v7771
      %v7773 = vadd.f32 %v7314, %v7326
      %v7774 = vadd.f32 %v7773, %v7338
      %v7775 = vadd.f32 %v7774, %v7350
      %v7776 = vadd.f32 %v7775, %v7362
      %v7777 = vadd.f32 %v7776, %v7374
      %v7778 = vadd.f32 %v7777, %v7386
      %v7779 = vadd.f32 %v7778, %v7398
      %v7780 = vadd.f32 %v7779, %v7410
      %v7781 = vadd.f32 %v7780, %v7422
      %v7782 = vadd.f32 %v7781, %v7434
      %v7783 = vadd.f32 %v7782, %v7446
      %v7784 = vadd.f32 %v7783, %v7458
      %v7785 = vadd.f32 %v7784, %v7470
      %v7786 = vadd.f32 %v7785, %v7482
      %v7787 = vadd.f32 %v7786, %v7494
      %v7788 = vadd.f32 %v7787, %v7506
      %v7789 = vadd.f32 %v7788, %v7518
      %v7790 = vadd.f32 %v7789, %v7530
      %v7791 = vadd.f32 %v7790, %v7542
      %v7792 = vadd.f32 %v7791, %v7554
      %v7793 = vadd.f32 %v7792, %v7566
      %v7794 = vadd.f32 %v7793, %v7578
      %v7795 = vadd.f32 %v7794, %v7590
      %v7796 = vadd.f32 %v7795, %v7602
      %v7797 = vadd.f32 %v7796, %v7614
      %v7798 = vadd.f32 %v7797, %v7626
      %v7799 = vadd.f32 %v7798, %v7638
      %v7800 = vadd.f32 %v7799, %v7650
      %v7801 = vadd.f32 %v7800, %v7662
      %v7802 = vadd.f32 %v7801, %v7674
      %v7803 = vadd.f32 %v7802, %v7686
      %v7804 = vrot.slane %v7803, 4
      %v7805 = vadd.f32 %v7803, %v7804
      %v7806 = vrot.slane %v7805, 2
      %v7807 = vadd.f32 %v7805, %v7806
      %v7808 = vrot.slane %v7807, 1
      %v7809 = vadd.f32 %v7807, %v7808
      %v7810 = vadd.f32 %v7316, %v7328
      %v7811 = vadd.f32 %v7810, %v7340
      %v7812 = vadd.f32 %v7811, %v7352
      %v7813 = vadd.f32 %v7812, %v7364
      %v7814 = vadd.f32 %v7813, %v7376
      %v7815 = vadd.f32 %v7814, %v7388
      %v7816 = vadd.f32 %v7815, %v7400
      %v7817 = vadd.f32 %v7816, %v7412
      %v7818 = vadd.f32 %v7817, %v7424
      %v7819 = vadd.f32 %v7818, %v7436
      %v7820 = vadd.f32 %v7819, %v7448
      %v7821 = vadd.f32 %v7820, %v7460
      %v7822 = vadd.f32 %v7821, %v7472
      %v7823 = vadd.f32 %v7822, %v7484
      %v7824 = vadd.f32 %v7823, %v7496
      %v7825 = vadd.f32 %v7824, %v7508
      %v7826 = vadd.f32 %v7825, %v7520
      %v7827 = vadd.f32 %v7826, %v7532
      %v7828 = vadd.f32 %v7827, %v7544
      %v7829 = vadd.f32 %v7828, %v7556
      %v7830 = vadd.f32 %v7829, %v7568
      %v7831 = vadd.f32 %v7830, %v7580
      %v7832 = vadd.f32 %v7831, %v7592
      %v7833 = vadd.f32 %v7832, %v7604
      %v7834 = vadd.f32 %v7833, %v7616
      %v7835 = vadd.f32 %v7834, %v7628
      %v7836 = vadd.f32 %v7835, %v7640
      %v7837 = vadd.f32 %v7836, %v7652
      %v7838 = vadd.f32 %v7837, %v7664
      %v7839 = vadd.f32 %v7838, %v7676
      %v7840 = vadd.f32 %v7839, %v7688
      %v7841 = vrot.slane %v7840, 4
      %v7842 = vadd.f32 %v7840, %v7841
      %v7843 = vrot.slane %v7842, 2
      %v7844 = vadd.f32 %v7842, %v7843
      %v7845 = vrot.slane %v7844, 1
      %v7846 = vadd.f32 %v7844, %v7845
      %v7847 = vadd.f32 %v7318, %v7330
      %v7848 = vadd.f32 %v7847, %v7342
      %v7849 = vadd.f32 %v7848, %v7354
      %v7850 = vadd.f32 %v7849, %v7366
      %v7851 = vadd.f32 %v7850, %v7378
      %v7852 = vadd.f32 %v7851, %v7390
      %v7853 = vadd.f32 %v7852, %v7402
      %v7854 = vadd.f32 %v7853, %v7414
      %v7855 = vadd.f32 %v7854, %v7426
      %v7856 = vadd.f32 %v7855, %v7438
      %v7857 = vadd.f32 %v7856, %v7450
      %v7858 = vadd.f32 %v7857, %v7462
      %v7859 = vadd.f32 %v7858, %v7474
      %v7860 = vadd.f32 %v7859, %v7486
      %v7861 = vadd.f32 %v7860, %v7498
      %v7862 = vadd.f32 %v7861, %v7510
      %v7863 = vadd.f32 %v7862, %v7522
      %v7864 = vadd.f32 %v7863, %v7534
      %v7865 = vadd.f32 %v7864, %v7546
      %v7866 = vadd.f32 %v7865, %v7558
      %v7867 = vadd.f32 %v7866, %v7570
      %v7868 = vadd.f32 %v7867, %v7582
      %v7869 = vadd.f32 %v7868, %v7594
      %v7870 = vadd.f32 %v7869, %v7606
      %v7871 = vadd.f32 %v7870, %v7618
      %v7872 = vadd.f32 %v7871, %v7630
      %v7873 = vadd.f32 %v7872, %v7642
      %v7874 = vadd.f32 %v7873, %v7654
      %v7875 = vadd.f32 %v7874, %v7666
      %v7876 = vadd.f32 %v7875, %v7678
      %v7877 = vadd.f32 %v7876, %v7690
      %v7878 = vrot.slane %v7877, 4
      %v7879 = vadd.f32 %v7877, %v7878
      %v7880 = vrot.slane %v7879, 2
      %v7881 = vadd.f32 %v7879, %v7880
      %v7882 = vrot.slane %v7881, 1
      %v7883 = vadd.f32 %v7881, %v7882
      %v7884 = vadd.f32 %v7320, %v7332
      %v7885 = vadd.f32 %v7884, %v7344
      %v7886 = vadd.f32 %v7885, %v7356
      %v7887 = vadd.f32 %v7886, %v7368
      %v7888 = vadd.f32 %v7887, %v7380
      %v7889 = vadd.f32 %v7888, %v7392
      %v7890 = vadd.f32 %v7889, %v7404
      %v7891 = vadd.f32 %v7890, %v7416
      %v7892 = vadd.f32 %v7891, %v7428
      %v7893 = vadd.f32 %v7892, %v7440
      %v7894 = vadd.f32 %v7893, %v7452
      %v7895 = vadd.f32 %v7894, %v7464
      %v7896 = vadd.f32 %v7895, %v7476
      %v7897 = vadd.f32 %v7896, %v7488
      %v7898 = vadd.f32 %v7897, %v7500
      %v7899 = vadd.f32 %v7898, %v7512
      %v7900 = vadd.f32 %v7899, %v7524
      %v7901 = vadd.f32 %v7900, %v7536
      %v7902 = vadd.f32 %v7901, %v7548
      %v7903 = vadd.f32 %v7902, %v7560
      %v7904 = vadd.f32 %v7903, %v7572
      %v7905 = vadd.f32 %v7904, %v7584
      %v7906 = vadd.f32 %v7905, %v7596
      %v7907 = vadd.f32 %v7906, %v7608
      %v7908 = vadd.f32 %v7907, %v7620
      %v7909 = vadd.f32 %v7908, %v7632
      %v7910 = vadd.f32 %v7909, %v7644
      %v7911 = vadd.f32 %v7910, %v7656
      %v7912 = vadd.f32 %v7911, %v7668
      %v7913 = vadd.f32 %v7912, %v7680
      %v7914 = vadd.f32 %v7913, %v7692
      %v7915 = vrot.slane %v7914, 4
      %v7916 = vadd.f32 %v7914, %v7915
      %v7917 = vrot.slane %v7916, 2
      %v7918 = vadd.f32 %v7916, %v7917
      %v7919 = vrot.slane %v7918, 1
      %v7920 = vadd.f32 %v7918, %v7919
      %v7921 = vadd.f32 %v7693, %v7735
      %v7922 = vadd.f32 %v7694, %v7772
      %v7923 = vadd.f32 %v7695, %v7809
      %v7924 = vadd.f32 %v7696, %v7846
      %v7925 = vadd.f32 %v7697, %v7883
      %v7926 = vadd.f32 %v7698, %v7920
      %v7927 = vpack.c.bf16 %v7322, %v7310
      %v7928 = vpack.c.bf16 %v7324, %v7312
      %v7929 = vpack.c.bf16 %v7326, %v7314
      %v7930 = vpack.c.bf16 %v7328, %v7316
      %v7931 = vpack.c.bf16 %v7330, %v7318
      %v7932 = vpack.c.bf16 %v7332, %v7320
      %v7933 = vpack.c.bf16 %v7346, %v7334
      %v7934 = vpack.c.bf16 %v7348, %v7336
      %v7935 = vpack.c.bf16 %v7350, %v7338
      %v7936 = vpack.c.bf16 %v7352, %v7340
      %v7937 = vpack.c.bf16 %v7354, %v7342
      %v7938 = vpack.c.bf16 %v7356, %v7344
      %v7939 = vpack.c.bf16 %v7370, %v7358
      %v7940 = vpack.c.bf16 %v7372, %v7360
      %v7941 = vpack.c.bf16 %v7374, %v7362
      %v7942 = vpack.c.bf16 %v7376, %v7364
      %v7943 = vpack.c.bf16 %v7378, %v7366
      %v7944 = vpack.c.bf16 %v7380, %v7368
      %v7945 = vpack.c.bf16 %v7394, %v7382
      %v7946 = vpack.c.bf16 %v7396, %v7384
      %v7947 = vpack.c.bf16 %v7398, %v7386
      %v7948 = vpack.c.bf16 %v7400, %v7388
      %v7949 = vpack.c.bf16 %v7402, %v7390
      %v7950 = vpack.c.bf16 %v7404, %v7392
      %v7951 = vpack.c.bf16 %v7418, %v7406
      %v7952 = vpack.c.bf16 %v7420, %v7408
      %v7953 = vpack.c.bf16 %v7422, %v7410
      %v7954 = vpack.c.bf16 %v7424, %v7412
      %v7955 = vpack.c.bf16 %v7426, %v7414
      %v7956 = vpack.c.bf16 %v7428, %v7416
      %v7957 = vpack.c.bf16 %v7442, %v7430
      %v7958 = vpack.c.bf16 %v7444, %v7432
      %v7959 = vpack.c.bf16 %v7446, %v7434
      %v7960 = vpack.c.bf16 %v7448, %v7436
      %v7961 = vpack.c.bf16 %v7450, %v7438
      %v7962 = vpack.c.bf16 %v7452, %v7440
      %v7963 = vpack.c.bf16 %v7466, %v7454
      %v7964 = vpack.c.bf16 %v7468, %v7456
      %v7965 = vpack.c.bf16 %v7470, %v7458
      %v7966 = vpack.c.bf16 %v7472, %v7460
      %v7967 = vpack.c.bf16 %v7474, %v7462
      %v7968 = vpack.c.bf16 %v7476, %v7464
      %v7969 = vpack.c.bf16 %v7490, %v7478
      %v7970 = vpack.c.bf16 %v7492, %v7480
      %v7971 = vpack.c.bf16 %v7494, %v7482
      %v7972 = vpack.c.bf16 %v7496, %v7484
      %v7973 = vpack.c.bf16 %v7498, %v7486
      %v7974 = vpack.c.bf16 %v7500, %v7488
      %v7975 = vpack.c.bf16 %v7514, %v7502
      %v7976 = vpack.c.bf16 %v7516, %v7504
      %v7977 = vpack.c.bf16 %v7518, %v7506
      %v7978 = vpack.c.bf16 %v7520, %v7508
      %v7979 = vpack.c.bf16 %v7522, %v7510
      %v7980 = vpack.c.bf16 %v7524, %v7512
      %v7981 = vpack.c.bf16 %v7538, %v7526
      %v7982 = vpack.c.bf16 %v7540, %v7528
      %v7983 = vpack.c.bf16 %v7542, %v7530
      %v7984 = vpack.c.bf16 %v7544, %v7532
      %v7985 = vpack.c.bf16 %v7546, %v7534
      %v7986 = vpack.c.bf16 %v7548, %v7536
      %v7987 = vpack.c.bf16 %v7562, %v7550
      %v7988 = vpack.c.bf16 %v7564, %v7552
      %v7989 = vpack.c.bf16 %v7566, %v7554
      %v7990 = vpack.c.bf16 %v7568, %v7556
      %v7991 = vpack.c.bf16 %v7570, %v7558
      %v7992 = vpack.c.bf16 %v7572, %v7560
      %v7993 = vpack.c.bf16 %v7586, %v7574
      %v7994 = vpack.c.bf16 %v7588, %v7576
      %v7995 = vpack.c.bf16 %v7590, %v7578
      %v7996 = vpack.c.bf16 %v7592, %v7580
      %v7997 = vpack.c.bf16 %v7594, %v7582
      %v7998 = vpack.c.bf16 %v7596, %v7584
      %v7999 = vpack.c.bf16 %v7610, %v7598
      %v8000 = vpack.c.bf16 %v7612, %v7600
      %v8001 = vpack.c.bf16 %v7614, %v7602
      %v8002 = vpack.c.bf16 %v7616, %v7604
      %v8003 = vpack.c.bf16 %v7618, %v7606
      %v8004 = vpack.c.bf16 %v7620, %v7608
      %v8005 = vpack.c.bf16 %v7634, %v7622
      %v8006 = vpack.c.bf16 %v7636, %v7624
      %v8007 = vpack.c.bf16 %v7638, %v7626
      %v8008 = vpack.c.bf16 %v7640, %v7628
      %v8009 = vpack.c.bf16 %v7642, %v7630
      %v8010 = vpack.c.bf16 %v7644, %v7632
      %v8011 = vpack.c.bf16 %v7658, %v7646
      %v8012 = vpack.c.bf16 %v7660, %v7648
      %v8013 = vpack.c.bf16 %v7662, %v7650
      %v8014 = vpack.c.bf16 %v7664, %v7652
      %v8015 = vpack.c.bf16 %v7666, %v7654
      %v8016 = vpack.c.bf16 %v7668, %v7656
      %v8017 = vpack.c.bf16 %v7682, %v7670
      %v8018 = vpack.c.bf16 %v7684, %v7672
      %v8019 = vpack.c.bf16 %v7686, %v7674
      %v8020 = vpack.c.bf16 %v7688, %v7676
      %v8021 = vpack.c.bf16 %v7690, %v7678
      %v8022 = vpack.c.bf16 %v7692, %v7680
      %v8024 = vunpack.c.l.b16 %v6204
      %v8025 = vunpack.c.h.b16 %v6204
      %v8026 = vpack.c.b16 %v8024, %v8024
      %v8027 = vpack.c.b16 %v8025, %v8025
      %8030 = vmatprep.subr.bf16.mxu0 %v7928
      %8031 = vmatpush1.bf16.msra.mxu0 %v7927
      %8032 = vmatprep.subr.bf16.mxu0 %v7934
      %8033 = vmatpush1.bf16.msra.mxu0 %v7933
      %8034 = vmatprep.subr.bf16.mxu0 %v7940
      %8035 = vmatpush1.bf16.msra.mxu0 %v7939
      %8036 = vmatprep.subr.bf16.mxu0 %v7946
      %8037 = vmatpush1.bf16.msra.mxu0 %v7945
      %8038 = vmatprep.subr.bf16.mxu0 %v7952
      %8039 = vmatpush1.bf16.msra.mxu0 %v7951
      %8040 = vmatprep.subr.bf16.mxu0 %v7958
      %8041 = vmatpush1.bf16.msra.mxu0 %v7957
      %8042 = vmatprep.subr.bf16.mxu0 %v7964
      %8043 = vmatpush1.bf16.msra.mxu0 %v7963
      %8044 = vmatprep.subr.bf16.mxu0 %v7970
      %8045 = vmatpush1.bf16.msra.mxu0 %v7969
      %8046 = vmatprep.subr.bf16.mxu0 %v7976
      %8047 = vmatpush1.bf16.msra.mxu0 %v7975
      %8048 = vmatprep.subr.bf16.mxu0 %v7982
      %8049 = vmatpush1.bf16.msra.mxu0 %v7981
      %8050 = vmatprep.subr.bf16.mxu0 %v7988
      %8051 = vmatpush1.bf16.msra.mxu0 %v7987
      %8052 = vmatprep.subr.bf16.mxu0 %v7994
      %8053 = vmatpush1.bf16.msra.mxu0 %v7993
      %8054 = vmatprep.subr.bf16.mxu0 %v8000
      %8055 = vmatpush1.bf16.msra.mxu0 %v7999
      %8056 = vmatprep.subr.bf16.mxu0 %v8006
      %8057 = vmatpush1.bf16.msra.mxu0 %v8005
      %8058 = vmatprep.subr.bf16.mxu0 %v8012
      %8059 = vmatpush1.bf16.msra.mxu0 %v8011
      %8060 = vmatprep.subr.bf16.mxu0 %v8018
      %8061 = vmatpush1.bf16.msra.mxu0 %v8017
      %8062 = vmatprep.mubr.bf16.mxu0 %v8027
      %8063 = vmatmul.mubr.bf16.gmra.mrb[0].mxu0 %v8026
      %v8064 = vpop.f32.mrb[0].mxu0
      %v8065 = vadd.f32 0.0, %v8064
      %v8066 = vpop.f32.mrb[0].mxu0
      %v8067 = vadd.f32 0.0, %v8066
      %v8068 = vpop.f32.mrb[0].mxu0
      %v8069 = vpop.f32.mrb[0].mxu0
      %8070 = vdwg.mxu0
      %8071 = vmatprep.subr.bf16.mxu0 %v7930
      %8072 = vmatpush1.bf16.msra.mxu0 %v7929
      %8073 = vmatprep.subr.bf16.mxu0 %v7936
      %8074 = vmatpush1.bf16.msra.mxu0 %v7935
      %8075 = vmatprep.subr.bf16.mxu0 %v7942
      %8076 = vmatpush1.bf16.msra.mxu0 %v7941
      %8077 = vmatprep.subr.bf16.mxu0 %v7948
      %8078 = vmatpush1.bf16.msra.mxu0 %v7947
      %8079 = vmatprep.subr.bf16.mxu0 %v7954
      %8080 = vmatpush1.bf16.msra.mxu0 %v7953
      %8081 = vmatprep.subr.bf16.mxu0 %v7960
      %8082 = vmatpush1.bf16.msra.mxu0 %v7959
      %8083 = vmatprep.subr.bf16.mxu0 %v7966
      %8084 = vmatpush1.bf16.msra.mxu0 %v7965
      %8085 = vmatprep.subr.bf16.mxu0 %v7972
      %8086 = vmatpush1.bf16.msra.mxu0 %v7971
      %8087 = vmatprep.subr.bf16.mxu0 %v7978
      %8088 = vmatpush1.bf16.msra.mxu0 %v7977
      %8089 = vmatprep.subr.bf16.mxu0 %v7984
      %8090 = vmatpush1.bf16.msra.mxu0 %v7983
      %8091 = vmatprep.subr.bf16.mxu0 %v7990
      %8092 = vmatpush1.bf16.msra.mxu0 %v7989
      %8093 = vmatprep.subr.bf16.mxu0 %v7996
      %8094 = vmatpush1.bf16.msra.mxu0 %v7995
      %8095 = vmatprep.subr.bf16.mxu0 %v8002
      %8096 = vmatpush1.bf16.msra.mxu0 %v8001
      %8097 = vmatprep.subr.bf16.mxu0 %v8008
      %8098 = vmatpush1.bf16.msra.mxu0 %v8007
      %8099 = vmatprep.subr.bf16.mxu0 %v8014
      %8100 = vmatpush1.bf16.msra.mxu0 %v8013
      %8101 = vmatprep.subr.bf16.mxu0 %v8020
      %8102 = vmatpush1.bf16.msra.mxu0 %v8019
      %8103 = vmatprep.mubr.bf16.mxu0 %v8027
      %8104 = vmatmul.mubr.bf16.gmra.mrb[0].mxu0 %v8026
      %v8105 = vpop.f32.mrb[0].mxu0
      %v8106 = vadd.f32 0.0, %v8105
      %v8107 = vpop.f32.mrb[0].mxu0
      %v8108 = vadd.f32 0.0, %v8107
      %v8109 = vpop.f32.mrb[0].mxu0
      %v8110 = vpop.f32.mrb[0].mxu0
      %8111 = vdwg.mxu0
      %8112 = vmatprep.subr.bf16.mxu0 %v7932
      %8113 = vmatpush1.bf16.msra.mxu0 %v7931
      %8114 = vmatprep.subr.bf16.mxu0 %v7938
      %8115 = vmatpush1.bf16.msra.mxu0 %v7937
      %8116 = vmatprep.subr.bf16.mxu0 %v7944
      %8117 = vmatpush1.bf16.msra.mxu0 %v7943
      %8118 = vmatprep.subr.bf16.mxu0 %v7950
      %8119 = vmatpush1.bf16.msra.mxu0 %v7949
      %8120 = vmatprep.subr.bf16.mxu0 %v7956
      %8121 = vmatpush1.bf16.msra.mxu0 %v7955
      %8122 = vmatprep.subr.bf16.mxu0 %v7962
      %8123 = vmatpush1.bf16.msra.mxu0 %v7961
      %8124 = vmatprep.subr.bf16.mxu0 %v7968
      %8125 = vmatpush1.bf16.msra.mxu0 %v7967
      %8126 = vmatprep.subr.bf16.mxu0 %v7974
      %8127 = vmatpush1.bf16.msra.mxu0 %v7973
      %8128 = vmatprep.subr.bf16.mxu0 %v7980
      %8129 = vmatpush1.bf16.msra.mxu0 %v7979
      %8130 = vmatprep.subr.bf16.mxu0 %v7986
      %8131 = vmatpush1.bf16.msra.mxu0 %v7985
      %8132 = vmatprep.subr.bf16.mxu0 %v7992
      %8133 = vmatpush1.bf16.msra.mxu0 %v7991
      %8134 = vmatprep.subr.bf16.mxu0 %v7998
      %8135 = vmatpush1.bf16.msra.mxu0 %v7997
      %8136 = vmatprep.subr.bf16.mxu0 %v8004
      %8137 = vmatpush1.bf16.msra.mxu0 %v8003
      %8138 = vmatprep.subr.bf16.mxu0 %v8010
      %8139 = vmatpush1.bf16.msra.mxu0 %v8009
      %8140 = vmatprep.subr.bf16.mxu0 %v8016
      %8141 = vmatpush1.bf16.msra.mxu0 %v8015
      %8142 = vmatprep.subr.bf16.mxu0 %v8022
      %8143 = vmatpush1.bf16.msra.mxu0 %v8021
      %8144 = vmatprep.mubr.bf16.mxu0 %v8027
      %8145 = vmatmul.mubr.bf16.gmra.mrb[0].mxu0 %v8026
      %v8146 = vpop.f32.mrb[0].mxu0
      %v8147 = vadd.f32 0.0, %v8146
      %v8148 = vpop.f32.mrb[0].mxu0
      %v8149 = vadd.f32 0.0, %v8148
      %v8150 = vpop.f32.mrb[0].mxu0
      %v8151 = vpop.f32.mrb[0].mxu0
      %8152 = vdwg.mxu0
      %v8153 = vmul.f32 %v7106, %v6195
      %v8154 = vmul.f32 %v7108, %v6196
      %v8155 = vmul.f32 %v7110, %v6197
      %v8156 = vmul.f32 %v7112, %v6198
      %v8157 = vmul.f32 %v7114, %v6199
      %v8158 = vmul.f32 %v7116, %v6200
      %v8159 = vadd.f32 %v8153, %v8065
      %v8160 = vadd.f32 %v8154, %v8067
      %v8161 = vadd.f32 %v8155, %v8106
      %v8162 = vadd.f32 %v8156, %v8108
      %v8163 = vadd.f32 %v8157, %v8147
      %v8164 = vadd.f32 %v8158, %v8149
      %v8165 = vrcp.pop %v7921
      %v8166 = vrcp.pop %v7922
      %v8167 = vrcp.pop %v7923
      %v8168 = vrcp.pop %v7924
      %v8169 = vrcp.pop %v7925
      %v8170 = vrcp.pop %v7926
      %v8171 = vmul.f32 %v8159, %v8165
      %v8172 = vmul.f32 %v8160, %v8166
      %v8173 = vmul.f32 %v8161, %v8167
      %v8174 = vmul.f32 %v8162, %v8168
      %v8175 = vmul.f32 %v8163, %v8169
      %v8176 = vmul.f32 %v8164, %v8170
      %8177 = vst [vmem:[%s279] sm:$0xff] %v8171
      %8178 = vst [vmem:[%s279 + $0x8] sm:$0xff] %v8172
      %8179 = vst [vmem:[%s279 + $0x10] sm:$0xff] %v8173
      %8180 = vst [vmem:[%s279 + $0x18] sm:$0xff] %v8174
      %8181 = vst [vmem:[%s279 + $0x20] sm:$0xff] %v8175
      %8182 = vst [vmem:[%s279 + $0x28] sm:$0xff] %v8176
      %v8183 = vld [vmem:[%s260] sm:$0xff]
      %v8184 = vld [vmem:[%s260 + $0x8] sm:$0xff]
      %v8185 = vld [vmem:[%s260 + $0x10] sm:$0xff]
      %v8186 = vunpack.c.l.bf16 %v8183
      %v8187 = vunpack.c.h.bf16 %v8183
      %v8188 = vunpack.c.l.bf16 %v8184
      %v8189 = vunpack.c.h.bf16 %v8184
      %v8190 = vunpack.c.l.bf16 %v8185
      %v8191 = vunpack.c.h.bf16 %v8185
      %8192 = vst [vmem:[%s279 + $0x30] sm:$0xff] %v8186
      %8193 = vst [vmem:[%s279 + $0x38] sm:$0xff] %v8187
      %8194 = vst [vmem:[%s279 + $0x40] sm:$0xff] %v8188
      %8195 = vst [vmem:[%s279 + $0x48] sm:$0xff] %v8189
      %8196 = vst [vmem:[%s279 + $0x50] sm:$0xff] %v8190
      %8197 = vst [vmem:[%s279 + $0x58] sm:$0xff] %v8191
      %p8198 = scmp.lt.s32.totalorder %s20, 1
      %s8199 = scalar_select %p8198, %s20, 1
      %p8200 = scmp.lt.s32.totalorder %s19, 1
      %s8201 = scalar_select %p8200, %s19, 1
      %s8202 = smul.addr %s8201, 12
      %s8203 = smul.addr %s8199, 24
      %s8204 = sadd.s32 %s8202, %s8203
      %s8205 = smul.addr %s8204, 8
      %s8206 = scalar_lea.vmem %s4, %s8205
      // Predicated region
      $region37: #{memory_network_forward.4} parent=35 // pred_check
        %p8207 = pneg %p151
      $region38: #{memory_network_forward.4} parent=35 // pred_check_branch
        %8209 = sbr.rel (%p8207) target = $region40
      $region39: #{memory_network_forward.4} parent=35 // pred_region
        _
      $region40: #{memory_network_forward.4} parent=35 // pred_fallthru
        _
    $region36: #{memory_network_forward.4} parent=5 // pred_fallthru
      _
    %p8210 = scmp.le.s32.totalorder 2, %s10
    // Predicated region
    $region41: #{memory_network_forward.4} parent=5 // pred_check
      %p8211 = pneg %p8210
    $region42: #{memory_network_forward.4} parent=5 // pred_check_branch
      %8213 = sbr.rel (%p8211) target = $region44
    $region43: #{memory_network_forward.4} parent=5 // pred_region
      %s8214 = ssub.s32 %s10, 2
      // Predicated region
      $region45: #{memory_network_forward.4} parent=43 // pred_check
        %p8215 = pneg %p157
      $region46: #{memory_network_forward.4} parent=43 // pred_check_branch
        %8217 = sbr.rel (%p8215) target = $region48
      $region47: #{memory_network_forward.4} parent=43 // pred_region
        %p8218 = scmp.lt.s32.totalorder %s22, 1
        %s8219 = scalar_select %p8218, %s22, 1
        %p8220 = scmp.lt.s32.totalorder %s21, 1
        %s8221 = scalar_select %p8220, %s21, 1
        %s8222 = smul.addr %s8221, 12
        %s8223 = smul.addr %s8219, 24
        %s8224 = sadd.s32 %s8222, %s8223
        %s8225 = smul.addr %s8224, 8
        %s8226 = scalar_lea.vmem %s4, %s8225
      $region48: #{memory_network_forward.4} parent=43 // pred_fallthru
        _
    $region44: #{memory_network_forward.4} parent=5 // pred_fallthru
      _
  $region6: #{memory_network_forward.4} parent=0 // loop_footer
    %s14 = sadd.s32 1, %s10
  $region7: #{memory_network_forward.4} parent=0 // loop_footer_branch
    %9 = sbr.rel target = $region3
  $region8: #{memory_network_forward.4} parent=0 // loop_exit
    _

</llo_original>
